<compile_context>
chip_gen: v7x
topology: tpu7x:2x2x1
jax: 0.10.0
libtpu: 0.0.40
codegen_flags: <defaults>
</compile_context>

<pallas_src>
import numpy as np
import jax
import jax.numpy as jnp
from jax.experimental import pallas as pl
from jax.experimental.pallas import tpu as pltpu


# ----------------------------------------------------------------------------
# Fused whole-network kernel: one image per grid step, weights resident in VMEM
# ----------------------------------------------------------------------------
def _fused_net_kernel(x_ref, w1b_ref, s1_ref, selc1_ref, selr1_ref,
                      w2b_ref, s2_ref, selc2_ref, selr2_ref,
                      wfc1_ref, b1_ref, wfc2_ref, b2_ref, wfc3_ref, b3_ref,
                      o_ref):
    f32 = jnp.float32
    bf16 = jnp.bfloat16
    x = x_ref[0]                                             # (28, 28) f32

    # conv1 + bn1 + relu : 5 banded shifted-row matmuls -> (24, 24*32) f32
    acc1 = jnp.zeros((24, 24 * 32), f32)
    for di in range(5):
        acc1 = acc1 + jnp.dot(x[di:di + 24, :].astype(bf16), w1b_ref[di],
                              preferred_element_type=f32)
    h1 = jnp.maximum(acc1 + s1_ref[...], 0.0)                # lanes: j*32 + oc

    # 2x2 max-pool via exact 0/1-selection matmuls -> (12, 12*32) f32
    hh1 = jnp.maximum(jnp.dot(h1, selc1_ref[0], preferred_element_type=f32),
                      jnp.dot(h1, selc1_ref[1], preferred_element_type=f32))
    y1 = jnp.maximum(jnp.dot(selr1_ref[0], hh1, preferred_element_type=f32),
                     jnp.dot(selr1_ref[1], hh1, preferred_element_type=f32))

    # conv2 + bn2 + relu : 5 banded shifted-row matmuls -> (8, 8*64) f32
    acc2 = jnp.zeros((8, 8 * 64), f32)
    for di in range(5):
        acc2 = acc2 + jnp.dot(y1[di:di + 8, :].astype(bf16), w2b_ref[di],
                              preferred_element_type=f32)
    h2 = jnp.maximum(acc2 + s2_ref[...], 0.0)                # lanes: j2*64 + oc

    # 2x2 max-pool -> (4, 4*64) f32
    hh2 = jnp.maximum(jnp.dot(h2, selc2_ref[0], preferred_element_type=f32),
                      jnp.dot(h2, selc2_ref[1], preferred_element_type=f32))
    y2 = jnp.maximum(jnp.dot(selr2_ref[0], hh2, preferred_element_type=f32),
                     jnp.dot(selr2_ref[1], hh2, preferred_element_type=f32))

    # fc1 + relu : flatten folded into 4 row-chunks of the (permuted, padded) weight
    h = jnp.dot(y2[0:1, :].astype(bf16), wfc1_ref[0], preferred_element_type=f32)
    for r in range(1, 4):
        h = h + jnp.dot(y2[r:r + 1, :].astype(bf16), wfc1_ref[r],
                        preferred_element_type=f32)
    h = jnp.maximum(h + b1_ref[...], 0.0)                    # (1, 128) f32, dropout=id
    # fc2 + relu
    h = jnp.dot(h.astype(bf16), wfc2_ref[...], preferred_element_type=f32)
    h = jnp.maximum(h + b2_ref[...], 0.0)
    # fc3
    h = jnp.dot(h.astype(bf16), wfc3_ref[...], preferred_element_type=f32)
    o_ref[0] = h + b3_ref[...]


def _const_spec(arr):
    """Full-array block that never changes across the grid (weights stay in VMEM)."""
    zeros = (0,) * arr.ndim
    return pl.BlockSpec(arr.shape, lambda i: zeros)


def customnet1_forward(params, x_nchw, *, num_classes=10):
    n, c, hh, ww = x_nchw.shape
    if (c, hh, ww) != (1, 28, 28):
        raise ValueError("CustomNet1 expects (N, 1, 28, 28) inputs")
    x = x_nchw.reshape(n, 28, 28)

    operands = (x,
                params["w1b"], params["s1"], params["selc1"], params["selr1"],
                params["w2b"], params["s2"], params["selc2"], params["selr2"],
                params["wfc1"], params["b1"], params["wfc2"], params["b2"],
                params["wfc3"], params["b3"])

    in_specs = [pl.BlockSpec((1, 28, 28), lambda i: (i, 0, 0))]
    in_specs += [_const_spec(op) for op in operands[1:]]

    out = pl.pallas_call(
        _fused_net_kernel,
        out_shape=jax.ShapeDtypeStruct((n, 1, 128), jnp.float32),
        grid=(n,),
        in_specs=in_specs,
        out_specs=pl.BlockSpec((1, 1, 128), lambda i: (i, 0, 0)),
        compiler_params=pltpu.CompilerParams(
            dimension_semantics=("parallel",),            # shards images over TCs (v7x)
            vmem_limit_bytes=32 * 1024 * 1024,
        ),
    )(*operands)
    return out[:, 0, :num_classes]


# ----------------------------------------------------------------------------
# One-time parameter preparation (host side, numpy): banded conv weights with BN
# folded in, pooling selection matrices, permuted/padded FC weights.
# ----------------------------------------------------------------------------
def _banded_conv1_weight(conv1_w, scale):
    # torch (OC=32, IC=1, 5, 5) -> W[di] of shape (28, 24*32) with
    # W[di][cc, j*32 + oc] = conv1_w[oc, 0, di, cc - j] * scale[oc]  (0 <= cc-j < 5)
    w = np.transpose(np.asarray(conv1_w, np.float32)[:, 0], (1, 2, 0))   # (di, dj, oc)
    w = w * np.asarray(scale, np.float32)[None, None, :]
    out = np.zeros((5, 28, 24 * 32), np.float32)
    for di in range(5):
        for j in range(24):
            for dj in range(5):
                out[di, j + dj, j * 32:(j + 1) * 32] = w[di, dj]
    return out


def _banded_conv2_weight(conv2_w, scale):
    # torch (OC=64, IC=32, 5, 5) -> W[di] of shape (12*32, 8*64) with
    # W[di][j*32 + ci, j2*64 + oc] = conv2_w[oc, ci, di, j - j2] * scale[oc]
    w = np.transpose(np.asarray(conv2_w, np.float32), (2, 3, 1, 0))      # (di, dj, ci, oc)
    w = w * np.asarray(scale, np.float32)[None, None, None, :]
    out = np.zeros((5, 12 * 32, 8 * 64), np.float32)
    for di in range(5):
        for j2 in range(8):
            for dj in range(5):
                j = j2 + dj
                out[di, j * 32:(j + 1) * 32, j2 * 64:(j2 + 1) * 64] = w[di, dj]
    return out


def _pool_col_select(w_spatial, ch):
    # (2, w*ch, (w//2)*ch): S[q][(2*jo + q)*ch + c, jo*ch + c] = 1 (exact lane selection)
    half = w_spatial // 2
    out = np.zeros((2, w_spatial * ch, half * ch), np.float32)
    eye = np.eye(ch, dtype=np.float32)
    for q in range(2):
        for jo in range(half):
            r0 = (2 * jo + q) * ch
            out[q, r0:r0 + ch, jo * ch:(jo + 1) * ch] = eye
    return out


def _pool_row_select(h_spatial):
    half = h_spatial // 2
    out = np.zeros((2, half, h_spatial), np.float32)
    for p in range(2):
        out[p, np.arange(half), 2 * np.arange(half) + p] = 1.0
    return out


_FC_PAD = 128


def prepare_params(p, num_classes=10, eps=1e-5):
    if num_classes > _FC_PAD:
        raise ValueError("num_classes must be <= 128")
    f = lambda a: np.asarray(a, np.float32)
    q = {}
    # conv1 + bn1 (BN scale folded into weights, shift applied in the epilogue)
    s1 = f(p["bn1_gamma"]) / np.sqrt(f(p["bn1_var"]) + eps)
    sh1 = (f(p["conv1_b"]) - f(p["bn1_mean"])) * s1 + f(p["bn1_beta"])
    q["w1b"] = jnp.asarray(_banded_conv1_weight(p["conv1_w"], s1), jnp.bfloat16)
    q["s1"] = jnp.asarray(np.tile(sh1, 24)[None, :])                      # (1, 768) f32
    # conv2 + bn2
    s2 = f(p["bn2_gamma"]) / np.sqrt(f(p["bn2_var"]) + eps)
    sh2 = (f(p["conv2_b"]) - f(p["bn2_mean"])) * s2 + f(p["bn2_beta"])
    q["w2b"] = jnp.asarray(_banded_conv2_weight(p["conv2_w"], s2), jnp.bfloat16)
    q["s2"] = jnp.asarray(np.tile(sh2, 8)[None, :])                       # (1, 512) f32
    # exact 0/1 selection matrices for the two 2x2 max-pools (f32, selection is exact)
    q["selc1"] = jnp.asarray(_pool_col_select(24, 32))                    # (2, 768, 384)
    q["selr1"] = jnp.asarray(_pool_row_select(24))                        # (2, 12, 24)
    q["selc2"] = jnp.asarray(_pool_col_select(8, 64))                     # (2, 512, 256)
    q["selr2"] = jnp.asarray(_pool_row_select(8))                         # (2, 4, 8)
    # fc1: fold the PyTorch NCHW-flatten permutation into the rows, pad 120 -> 128,
    # split into 4 chunks (one per pooled spatial row; the flatten stays in-kernel).
    wfc1 = f(p["fc1_w"]).reshape(64, 4, 4, 120).transpose(1, 2, 0, 3).reshape(1024, 120)
    wfc1 = np.pad(wfc1, ((0, 0), (0, _FC_PAD - 120)))
    q["wfc1"] = jnp.asarray(wfc1.reshape(4, 256, _FC_PAD), jnp.bfloat16)
    q["b1"] = jnp.asarray(np.pad(f(p["fc1_b"]), (0, _FC_PAD - 120))[None, :])
    # fc2: zero-padded rows are sound only because padded fc1 lanes are exactly 0
    # (zero weight columns, zero bias, ReLU).
    q["wfc2"] = jnp.asarray(
        np.pad(f(p["fc2_w"]), ((0, _FC_PAD - 120), (0, _FC_PAD - 84))), jnp.bfloat16)
    q["b2"] = jnp.asarray(np.pad(f(p["fc2_b"]), (0, _FC_PAD - 84))[None, :])
    # fc3
    q["wfc3"] = jnp.asarray(
        np.pad(f(p["fc3_w"]), ((0, _FC_PAD - 84), (0, _FC_PAD - num_classes))), jnp.bfloat16)
    q["b3"] = jnp.asarray(np.pad(f(p["fc3_b"]), (0, _FC_PAD - num_classes))[None, :])
    return q


# ----------------------------------------------------------------------------
# Deterministic synthetic parameters (PyTorch-style layout) + pure-JAX reference
# ----------------------------------------------------------------------------
def init_params(key, num_classes=10):
    ks = jax.random.split(key, 18)
    p = {}
    p["conv1_w"] = 0.2 * jax.random.normal(ks[0], (32, 1, 5, 5), jnp.float32)
    p["conv1_b"] = 0.1 * jax.random.normal(ks[1], (32,), jnp.float32)
    p["bn1_gamma"] = 1.0 + 0.1 * jax.random.normal(ks[2], (32,), jnp.float32)
    p["bn1_beta"] = 0.1 * jax.random.normal(ks[3], (32,), jnp.float32)
    p["bn1_mean"] = 0.1 * jax.random.normal(ks[4], (32,), jnp.float32)
    p["bn1_var"] = jax.random.uniform(ks[5], (32,), jnp.float32, 0.5, 1.5)
    p["conv2_w"] = 0.05 * jax.random.normal(ks[6], (64, 32, 5, 5), jnp.float32)
    p["conv2_b"] = 0.1 * jax.random.normal(ks[7], (64,), jnp.float32)
    p["bn2_gamma"] = 1.0 + 0.1 * jax.random.normal(ks[8], (64,), jnp.float32)
    p["bn2_beta"] = 0.1 * jax.random.normal(ks[9], (64,), jnp.float32)
    p["bn2_mean"] = 0.1 * jax.random.normal(ks[10], (64,), jnp.float32)
    p["bn2_var"] = jax.random.uniform(ks[11], (64,), jnp.float32, 0.5, 1.5)
    # FC weights stored as (K, N) for x @ W; fc1 rows are in PyTorch NCHW-flatten order.
    p["fc1_w"] = 0.05 * jax.random.normal(ks[12], (64 * 4 * 4, 120), jnp.float32)
    p["fc1_b"] = 0.05 * jax.random.normal(ks[13], (120,), jnp.float32)
    p["fc2_w"] = 0.05 * jax.random.normal(ks[14], (120, 84), jnp.float32)
    p["fc2_b"] = 0.05 * jax.random.normal(ks[15], (84,), jnp.float32)
    p["fc3_w"] = 0.05 * jax.random.normal(ks[16], (84, num_classes), jnp.float32)
    p["fc3_b"] = 0.05 * jax.random.normal(ks[17], (num_classes,), jnp.float32)
    return p


def reference_forward(p, x_nchw, eps=1e-5):
    """Plain-XLA float32 reference of the PyTorch module in eval mode."""
    hp = jax.lax.Precision.HIGHEST

    def conv(x, w, b):
        y = jax.lax.conv_general_dilated(
            x, w, window_strides=(1, 1), padding="VALID",
            dimension_numbers=("NCHW", "OIHW", "NCHW"), precision=hp)
        return y + b[None, :, None, None]

    def bn(x, g, be, m, v):
        return (x - m[None, :, None, None]) * (
            g[None, :, None, None] / jnp.sqrt(v[None, :, None, None] + eps)
        ) + be[None, :, None, None]

    def pool(x):
        n, c, h, w = x.shape
        return x.reshape(n, c, h // 2, 2, w // 2, 2).max(axis=(3, 5))

    y = pool(jax.nn.relu(bn(conv(x_nchw, p["conv1_w"], p["conv1_b"]),
                            p["bn1_gamma"], p["bn1_beta"], p["bn1_mean"], p["bn1_var"])))
    y = pool(jax.nn.relu(bn(conv(y, p["conv2_w"], p["conv2_b"]),
                            p["bn2_gamma"], p["bn2_beta"], p["bn2_mean"], p["bn2_var"])))
    y = y.reshape(y.shape[0], -1)                       # NCHW flatten (c*16 + h*4 + w)
    y = jax.nn.relu(jnp.dot(y, p["fc1_w"], precision=hp) + p["fc1_b"])
    y = jax.nn.relu(jnp.dot(y, p["fc2_w"], precision=hp) + p["fc2_b"])
    return jnp.dot(y, p["fc3_w"], precision=hp) + p["fc3_b"]


if __name__ == "__main__":
    key = jax.random.PRNGKey(0)
    pkey, xkey = jax.random.split(key)
    raw_params = init_params(pkey, num_classes=10)
    params = prepare_params(raw_params, num_classes=10)

    # MNIST-shaped input implied by the module: (N, 1, 28, 28)
    x = jax.random.normal(xkey, (2, 1, 28, 28), jnp.float32)

    fwd = jax.jit(customnet1_forward, static_argnames=("num_classes",))
    out = jax.block_until_ready(fwd(params, x, num_classes=10))
    assert out.shape == (2, 10), out.shape
    assert bool(jnp.all(jnp.isfinite(out)))

    # Correctness self-check vs. a float32 XLA reference (bf16 matmul operands in the
    # kernel -> loose tolerance; see notes).
    ref = jax.block_until_ready(jax.jit(reference_forward)(raw_params, x))
    err = float(jnp.max(jnp.abs(out - ref)))
    scale = float(jnp.max(jnp.abs(ref)))
    assert err <= 0.1 * scale + 2e-2, ("mismatch vs reference", err, scale)

    print("KERNEL_OK")
</pallas_src>

<mosaic_0001>
module attributes {stable_mosaic.version = 11 : i64} {
  func.func @_fused_net_kernel(%arg0: i32, %arg1: memref<1x28x28xf32, #tpu.memory_space<vmem>>, %arg2: memref<5x28x768xbf16, #tpu.memory_space<vmem>>, %arg3: memref<1x768xf32, #tpu.memory_space<vmem>>, %arg4: memref<2x768x384xf32, #tpu.memory_space<vmem>>, %arg5: memref<2x12x24xf32, #tpu.memory_space<vmem>>, %arg6: memref<5x384x512xbf16, #tpu.memory_space<vmem>>, %arg7: memref<1x512xf32, #tpu.memory_space<vmem>>, %arg8: memref<2x512x256xf32, #tpu.memory_space<vmem>>, %arg9: memref<2x4x8xf32, #tpu.memory_space<vmem>>, %arg10: memref<4x256x128xbf16, #tpu.memory_space<vmem>>, %arg11: memref<1x128xf32, #tpu.memory_space<vmem>>, %arg12: memref<128x128xbf16, #tpu.memory_space<vmem>>, %arg13: memref<1x128xf32, #tpu.memory_space<vmem>>, %arg14: memref<128x128xbf16, #tpu.memory_space<vmem>>, %arg15: memref<1x128xf32, #tpu.memory_space<vmem>>, %arg16: memref<1x1x128xf32, #tpu.memory_space<vmem>>) attributes {dimension_semantics = [#tpu.dimension_semantics<parallel>], iteration_bounds = array<i64: 2>, scalar_prefetch = 0 : i64, scratch_operands = 0 : i64, tpu.core_type = #tpu.core_type<tc>, window_params = [{transform_indices = @transform_0, window_bounds = array<i64: 1, 28, 28>}, {pipeline_mode = #tpu.pipeline_mode<synchronous>, transform_indices = @transform_1, window_bounds = array<i64: 5, 28, 768>}, {pipeline_mode = #tpu.pipeline_mode<synchronous>, transform_indices = @transform_2, window_bounds = array<i64: 1, 768>}, {pipeline_mode = #tpu.pipeline_mode<synchronous>, transform_indices = @transform_3, window_bounds = array<i64: 2, 768, 384>}, {pipeline_mode = #tpu.pipeline_mode<synchronous>, transform_indices = @transform_4, window_bounds = array<i64: 2, 12, 24>}, {pipeline_mode = #tpu.pipeline_mode<synchronous>, transform_indices = @transform_5, window_bounds = array<i64: 5, 384, 512>}, {pipeline_mode = #tpu.pipeline_mode<synchronous>, transform_indices = @transform_6, window_bounds = array<i64: 1, 512>}, {pipeline_mode = #tpu.pipeline_mode<synchronous>, transform_indices = @transform_7, window_bounds = array<i64: 2, 512, 256>}, {pipeline_mode = #tpu.pipeline_mode<synchronous>, transform_indices = @transform_8, window_bounds = array<i64: 2, 4, 8>}, {pipeline_mode = #tpu.pipeline_mode<synchronous>, transform_indices = @transform_9, window_bounds = array<i64: 4, 256, 128>}, {pipeline_mode = #tpu.pipeline_mode<synchronous>, transform_indices = @transform_10, window_bounds = array<i64: 1, 128>}, {pipeline_mode = #tpu.pipeline_mode<synchronous>, transform_indices = @transform_11, window_bounds = array<i64: 128, 128>}, {pipeline_mode = #tpu.pipeline_mode<synchronous>, transform_indices = @transform_12, window_bounds = array<i64: 1, 128>}, {pipeline_mode = #tpu.pipeline_mode<synchronous>, transform_indices = @transform_13, window_bounds = array<i64: 128, 128>}, {pipeline_mode = #tpu.pipeline_mode<synchronous>, transform_indices = @transform_14, window_bounds = array<i64: 1, 128>}, {transform_indices = @transform_15, window_bounds = array<i64: 1, 1, 128>}]} {
    %c0 = arith.constant 0 : index
    %c0_0 = arith.constant 0 : index
    %c0_1 = arith.constant 0 : index
    %0 = vector.load %arg1[%c0, %c0_0, %c0_1] : memref<1x28x28xf32, #tpu.memory_space<vmem>>, vector<1x28x28xf32>
    %1 = vector.shape_cast %0 : vector<1x28x28xf32> to vector<28x28xf32>
    %cst = arith.constant 0.000000e+00 : f32
    %2 = vector.broadcast %cst : f32 to vector<24x768xf32>
    %3 = vector.extract_strided_slice %1 {offsets = [0, 0], sizes = [24, 28], strides = [1, 1]} : vector<28x28xf32> to vector<24x28xf32>
    %4 = arith.truncf %3 : vector<24x28xf32> to vector<24x28xbf16>
    %c0_2 = arith.constant 0 : index
    %c0_3 = arith.constant 0 : index
    %c0_4 = arith.constant 0 : index
    %5 = vector.load %arg2[%c0_2, %c0_3, %c0_4] : memref<5x28x768xbf16, #tpu.memory_space<vmem>>, vector<1x28x768xbf16>
    %6 = vector.shape_cast %5 : vector<1x28x768xbf16> to vector<28x768xbf16>
    %cst_5 = arith.constant dense<0.000000e+00> : vector<24x768xf32>
    %7 = tpu.matmul %4, %6, %cst_5 {dimension_numbers = #tpu.dot_dimension_numbers<[1], [0], [0], [1], [0, 0, 1, 1], [], []>} : vector<24x28xbf16>, vector<28x768xbf16>, vector<24x768xf32> -> vector<24x768xf32>
    %8 = arith.addf %2, %7 : vector<24x768xf32>
    %9 = vector.extract_strided_slice %1 {offsets = [1, 0], sizes = [24, 28], strides = [1, 1]} : vector<28x28xf32> to vector<24x28xf32>
    %10 = arith.truncf %9 : vector<24x28xf32> to vector<24x28xbf16>
    %c1 = arith.constant 1 : index
    %c0_6 = arith.constant 0 : index
    %c0_7 = arith.constant 0 : index
    %11 = vector.load %arg2[%c1, %c0_6, %c0_7] : memref<5x28x768xbf16, #tpu.memory_space<vmem>>, vector<1x28x768xbf16>
    %12 = vector.shape_cast %11 : vector<1x28x768xbf16> to vector<28x768xbf16>
    %cst_8 = arith.constant dense<0.000000e+00> : vector<24x768xf32>
    %13 = tpu.matmul %10, %12, %cst_8 {dimension_numbers = #tpu.dot_dimension_numbers<[1], [0], [0], [1], [0, 0, 1, 1], [], []>} : vector<24x28xbf16>, vector<28x768xbf16>, vector<24x768xf32> -> vector<24x768xf32>
    %14 = arith.addf %8, %13 : vector<24x768xf32>
    %15 = vector.extract_strided_slice %1 {offsets = [2, 0], sizes = [24, 28], strides = [1, 1]} : vector<28x28xf32> to vector<24x28xf32>
    %16 = arith.truncf %15 : vector<24x28xf32> to vector<24x28xbf16>
    %c2 = arith.constant 2 : index
    %c0_9 = arith.constant 0 : index
    %c0_10 = arith.constant 0 : index
    %17 = vector.load %arg2[%c2, %c0_9, %c0_10] : memref<5x28x768xbf16, #tpu.memory_space<vmem>>, vector<1x28x768xbf16>
    %18 = vector.shape_cast %17 : vector<1x28x768xbf16> to vector<28x768xbf16>
    %cst_11 = arith.constant dense<0.000000e+00> : vector<24x768xf32>
    %19 = tpu.matmul %16, %18, %cst_11 {dimension_numbers = #tpu.dot_dimension_numbers<[1], [0], [0], [1], [0, 0, 1, 1], [], []>} : vector<24x28xbf16>, vector<28x768xbf16>, vector<24x768xf32> -> vector<24x768xf32>
    %20 = arith.addf %14, %19 : vector<24x768xf32>
    %21 = vector.extract_strided_slice %1 {offsets = [3, 0], sizes = [24, 28], strides = [1, 1]} : vector<28x28xf32> to vector<24x28xf32>
    %22 = arith.truncf %21 : vector<24x28xf32> to vector<24x28xbf16>
    %c3 = arith.constant 3 : index
    %c0_12 = arith.constant 0 : index
    %c0_13 = arith.constant 0 : index
    %23 = vector.load %arg2[%c3, %c0_12, %c0_13] : memref<5x28x768xbf16, #tpu.memory_space<vmem>>, vector<1x28x768xbf16>
    %24 = vector.shape_cast %23 : vector<1x28x768xbf16> to vector<28x768xbf16>
    %cst_14 = arith.constant dense<0.000000e+00> : vector<24x768xf32>
    %25 = tpu.matmul %22, %24, %cst_14 {dimension_numbers = #tpu.dot_dimension_numbers<[1], [0], [0], [1], [0, 0, 1, 1], [], []>} : vector<24x28xbf16>, vector<28x768xbf16>, vector<24x768xf32> -> vector<24x768xf32>
    %26 = arith.addf %20, %25 : vector<24x768xf32>
    %27 = vector.extract_strided_slice %1 {offsets = [4, 0], sizes = [24, 28], strides = [1, 1]} : vector<28x28xf32> to vector<24x28xf32>
    %28 = arith.truncf %27 : vector<24x28xf32> to vector<24x28xbf16>
    %c4 = arith.constant 4 : index
    %c0_15 = arith.constant 0 : index
    %c0_16 = arith.constant 0 : index
    %29 = vector.load %arg2[%c4, %c0_15, %c0_16] : memref<5x28x768xbf16, #tpu.memory_space<vmem>>, vector<1x28x768xbf16>
    %30 = vector.shape_cast %29 : vector<1x28x768xbf16> to vector<28x768xbf16>
    %cst_17 = arith.constant dense<0.000000e+00> : vector<24x768xf32>
    %31 = tpu.matmul %28, %30, %cst_17 {dimension_numbers = #tpu.dot_dimension_numbers<[1], [0], [0], [1], [0, 0, 1, 1], [], []>} : vector<24x28xbf16>, vector<28x768xbf16>, vector<24x768xf32> -> vector<24x768xf32>
    %32 = arith.addf %26, %31 : vector<24x768xf32>
    %c0_18 = arith.constant 0 : index
    %c0_19 = arith.constant 0 : index
    %33 = vector.load %arg3[%c0_18, %c0_19] : memref<1x768xf32, #tpu.memory_space<vmem>>, vector<1x768xf32>
    %34 = vector.broadcast %33 : vector<1x768xf32> to vector<24x768xf32>
    %35 = arith.addf %32, %34 : vector<24x768xf32>
    %cst_20 = arith.constant 0.000000e+00 : f32
    %36 = vector.broadcast %cst_20 : f32 to vector<24x768xf32>
    %37 = arith.maximumf %35, %36 : vector<24x768xf32>
    %c0_21 = arith.constant 0 : index
    %c0_22 = arith.constant 0 : index
    %c0_23 = arith.constant 0 : index
    %38 = vector.load %arg4[%c0_21, %c0_22, %c0_23] : memref<2x768x384xf32, #tpu.memory_space<vmem>>, vector<1x768x384xf32>
    %39 = vector.shape_cast %38 : vector<1x768x384xf32> to vector<768x384xf32>
    %cst_24 = arith.constant dense<0.000000e+00> : vector<24x384xf32>
    %40 = tpu.matmul %37, %39, %cst_24 {dimension_numbers = #tpu.dot_dimension_numbers<[1], [0], [0], [1], [0, 0, 1, 1], [], []>} : vector<24x768xf32>, vector<768x384xf32>, vector<24x384xf32> -> vector<24x384xf32>
    %c1_25 = arith.constant 1 : index
    %c0_26 = arith.constant 0 : index
    %c0_27 = arith.constant 0 : index
    %41 = vector.load %arg4[%c1_25, %c0_26, %c0_27] : memref<2x768x384xf32, #tpu.memory_space<vmem>>, vector<1x768x384xf32>
    %42 = vector.shape_cast %41 : vector<1x768x384xf32> to vector<768x384xf32>
    %cst_28 = arith.constant dense<0.000000e+00> : vector<24x384xf32>
    %43 = tpu.matmul %37, %42, %cst_28 {dimension_numbers = #tpu.dot_dimension_numbers<[1], [0], [0], [1], [0, 0, 1, 1], [], []>} : vector<24x768xf32>, vector<768x384xf32>, vector<24x384xf32> -> vector<24x384xf32>
    %44 = arith.maximumf %40, %43 : vector<24x384xf32>
    %c0_29 = arith.constant 0 : index
    %c0_30 = arith.constant 0 : index
    %c0_31 = arith.constant 0 : index
    %45 = vector.load %arg5[%c0_29, %c0_30, %c0_31] : memref<2x12x24xf32, #tpu.memory_space<vmem>>, vector<1x12x24xf32>
    %46 = vector.shape_cast %45 : vector<1x12x24xf32> to vector<12x24xf32>
    %cst_32 = arith.constant dense<0.000000e+00> : vector<12x384xf32>
    %47 = tpu.matmul %46, %44, %cst_32 {dimension_numbers = #tpu.dot_dimension_numbers<[1], [0], [0], [1], [0, 0, 1, 1], [], []>} : vector<12x24xf32>, vector<24x384xf32>, vector<12x384xf32> -> vector<12x384xf32>
    %c1_33 = arith.constant 1 : index
    %c0_34 = arith.constant 0 : index
    %c0_35 = arith.constant 0 : index
    %48 = vector.load %arg5[%c1_33, %c0_34, %c0_35] : memref<2x12x24xf32, #tpu.memory_space<vmem>>, vector<1x12x24xf32>
    %49 = vector.shape_cast %48 : vector<1x12x24xf32> to vector<12x24xf32>
    %cst_36 = arith.constant dense<0.000000e+00> : vector<12x384xf32>
    %50 = tpu.matmul %49, %44, %cst_36 {dimension_numbers = #tpu.dot_dimension_numbers<[1], [0], [0], [1], [0, 0, 1, 1], [], []>} : vector<12x24xf32>, vector<24x384xf32>, vector<12x384xf32> -> vector<12x384xf32>
    %51 = arith.maximumf %47, %50 : vector<12x384xf32>
    %cst_37 = arith.constant 0.000000e+00 : f32
    %52 = vector.broadcast %cst_37 : f32 to vector<8x512xf32>
    %53 = vector.extract_strided_slice %51 {offsets = [0, 0], sizes = [8, 384], strides = [1, 1]} : vector<12x384xf32> to vector<8x384xf32>
    %54 = arith.truncf %53 : vector<8x384xf32> to vector<8x384xbf16>
    %c0_38 = arith.constant 0 : index
    %c0_39 = arith.constant 0 : index
    %c0_40 = arith.constant 0 : index
    %55 = vector.load %arg6[%c0_38, %c0_39, %c0_40] : memref<5x384x512xbf16, #tpu.memory_space<vmem>>, vector<1x384x512xbf16>
    %56 = vector.shape_cast %55 : vector<1x384x512xbf16> to vector<384x512xbf16>
    %cst_41 = arith.constant dense<0.000000e+00> : vector<8x512xf32>
    %57 = tpu.matmul %54, %56, %cst_41 {dimension_numbers = #tpu.dot_dimension_numbers<[1], [0], [0], [1], [0, 0, 1, 1], [], []>} : vector<8x384xbf16>, vector<384x512xbf16>, vector<8x512xf32> -> vector<8x512xf32>
    %58 = arith.addf %52, %57 : vector<8x512xf32>
    %59 = vector.extract_strided_slice %51 {offsets = [1, 0], sizes = [8, 384], strides = [1, 1]} : vector<12x384xf32> to vector<8x384xf32>
    %60 = arith.truncf %59 : vector<8x384xf32> to vector<8x384xbf16>
    %c1_42 = arith.constant 1 : index
    %c0_43 = arith.constant 0 : index
    %c0_44 = arith.constant 0 : index
    %61 = vector.load %arg6[%c1_42, %c0_43, %c0_44] : memref<5x384x512xbf16, #tpu.memory_space<vmem>>, vector<1x384x512xbf16>
    %62 = vector.shape_cast %61 : vector<1x384x512xbf16> to vector<384x512xbf16>
    %cst_45 = arith.constant dense<0.000000e+00> : vector<8x512xf32>
    %63 = tpu.matmul %60, %62, %cst_45 {dimension_numbers = #tpu.dot_dimension_numbers<[1], [0], [0], [1], [0, 0, 1, 1], [], []>} : vector<8x384xbf16>, vector<384x512xbf16>, vector<8x512xf32> -> vector<8x512xf32>
    %64 = arith.addf %58, %63 : vector<8x512xf32>
    %65 = vector.extract_strided_slice %51 {offsets = [2, 0], sizes = [8, 384], strides = [1, 1]} : vector<12x384xf32> to vector<8x384xf32>
    %66 = arith.truncf %65 : vector<8x384xf32> to vector<8x384xbf16>
    %c2_46 = arith.constant 2 : index
    %c0_47 = arith.constant 0 : index
    %c0_48 = arith.constant 0 : index
    %67 = vector.load %arg6[%c2_46, %c0_47, %c0_48] : memref<5x384x512xbf16, #tpu.memory_space<vmem>>, vector<1x384x512xbf16>
    %68 = vector.shape_cast %67 : vector<1x384x512xbf16> to vector<384x512xbf16>
    %cst_49 = arith.constant dense<0.000000e+00> : vector<8x512xf32>
    %69 = tpu.matmul %66, %68, %cst_49 {dimension_numbers = #tpu.dot_dimension_numbers<[1], [0], [0], [1], [0, 0, 1, 1], [], []>} : vector<8x384xbf16>, vector<384x512xbf16>, vector<8x512xf32> -> vector<8x512xf32>
    %70 = arith.addf %64, %69 : vector<8x512xf32>
    %71 = vector.extract_strided_slice %51 {offsets = [3, 0], sizes = [8, 384], strides = [1, 1]} : vector<12x384xf32> to vector<8x384xf32>
    %72 = arith.truncf %71 : vector<8x384xf32> to vector<8x384xbf16>
    %c3_50 = arith.constant 3 : index
    %c0_51 = arith.constant 0 : index
    %c0_52 = arith.constant 0 : index
    %73 = vector.load %arg6[%c3_50, %c0_51, %c0_52] : memref<5x384x512xbf16, #tpu.memory_space<vmem>>, vector<1x384x512xbf16>
    %74 = vector.shape_cast %73 : vector<1x384x512xbf16> to vector<384x512xbf16>
    %cst_53 = arith.constant dense<0.000000e+00> : vector<8x512xf32>
    %75 = tpu.matmul %72, %74, %cst_53 {dimension_numbers = #tpu.dot_dimension_numbers<[1], [0], [0], [1], [0, 0, 1, 1], [], []>} : vector<8x384xbf16>, vector<384x512xbf16>, vector<8x512xf32> -> vector<8x512xf32>
    %76 = arith.addf %70, %75 : vector<8x512xf32>
    %77 = vector.extract_strided_slice %51 {offsets = [4, 0], sizes = [8, 384], strides = [1, 1]} : vector<12x384xf32> to vector<8x384xf32>
    %78 = arith.truncf %77 : vector<8x384xf32> to vector<8x384xbf16>
    %c4_54 = arith.constant 4 : index
    %c0_55 = arith.constant 0 : index
    %c0_56 = arith.constant 0 : index
    %79 = vector.load %arg6[%c4_54, %c0_55, %c0_56] : memref<5x384x512xbf16, #tpu.memory_space<vmem>>, vector<1x384x512xbf16>
    %80 = vector.shape_cast %79 : vector<1x384x512xbf16> to vector<384x512xbf16>
    %cst_57 = arith.constant dense<0.000000e+00> : vector<8x512xf32>
    %81 = tpu.matmul %78, %80, %cst_57 {dimension_numbers = #tpu.dot_dimension_numbers<[1], [0], [0], [1], [0, 0, 1, 1], [], []>} : vector<8x384xbf16>, vector<384x512xbf16>, vector<8x512xf32> -> vector<8x512xf32>
    %82 = arith.addf %76, %81 : vector<8x512xf32>
    %c0_58 = arith.constant 0 : index
    %c0_59 = arith.constant 0 : index
    %83 = vector.load %arg7[%c0_58, %c0_59] : memref<1x512xf32, #tpu.memory_space<vmem>>, vector<1x512xf32>
    %84 = vector.broadcast %83 : vector<1x512xf32> to vector<8x512xf32>
    %85 = arith.addf %82, %84 : vector<8x512xf32>
    %cst_60 = arith.constant 0.000000e+00 : f32
    %86 = vector.broadcast %cst_60 : f32 to vector<8x512xf32>
    %87 = arith.maximumf %85, %86 : vector<8x512xf32>
    %c0_61 = arith.constant 0 : index
    %c0_62 = arith.constant 0 : index
    %c0_63 = arith.constant 0 : index
    %88 = vector.load %arg8[%c0_61, %c0_62, %c0_63] : memref<2x512x256xf32, #tpu.memory_space<vmem>>, vector<1x512x256xf32>
    %89 = vector.shape_cast %88 : vector<1x512x256xf32> to vector<512x256xf32>
    %cst_64 = arith.constant dense<0.000000e+00> : vector<8x256xf32>
    %90 = tpu.matmul %87, %89, %cst_64 {dimension_numbers = #tpu.dot_dimension_numbers<[1], [0], [0], [1], [0, 0, 1, 1], [], []>} : vector<8x512xf32>, vector<512x256xf32>, vector<8x256xf32> -> vector<8x256xf32>
    %c1_65 = arith.constant 1 : index
    %c0_66 = arith.constant 0 : index
    %c0_67 = arith.constant 0 : index
    %91 = vector.load %arg8[%c1_65, %c0_66, %c0_67] : memref<2x512x256xf32, #tpu.memory_space<vmem>>, vector<1x512x256xf32>
    %92 = vector.shape_cast %91 : vector<1x512x256xf32> to vector<512x256xf32>
    %cst_68 = arith.constant dense<0.000000e+00> : vector<8x256xf32>
    %93 = tpu.matmul %87, %92, %cst_68 {dimension_numbers = #tpu.dot_dimension_numbers<[1], [0], [0], [1], [0, 0, 1, 1], [], []>} : vector<8x512xf32>, vector<512x256xf32>, vector<8x256xf32> -> vector<8x256xf32>
    %94 = arith.maximumf %90, %93 : vector<8x256xf32>
    %c0_69 = arith.constant 0 : index
    %c0_70 = arith.constant 0 : index
    %c0_71 = arith.constant 0 : index
    %95 = vector.load %arg9[%c0_69, %c0_70, %c0_71] : memref<2x4x8xf32, #tpu.memory_space<vmem>>, vector<1x4x8xf32>
    %96 = vector.shape_cast %95 : vector<1x4x8xf32> to vector<4x8xf32>
    %cst_72 = arith.constant dense<0.000000e+00> : vector<4x256xf32>
    %97 = tpu.matmul %96, %94, %cst_72 {dimension_numbers = #tpu.dot_dimension_numbers<[1], [0], [0], [1], [0, 0, 1, 1], [], []>} : vector<4x8xf32>, vector<8x256xf32>, vector<4x256xf32> -> vector<4x256xf32>
    %c1_73 = arith.constant 1 : index
    %c0_74 = arith.constant 0 : index
    %c0_75 = arith.constant 0 : index
    %98 = vector.load %arg9[%c1_73, %c0_74, %c0_75] : memref<2x4x8xf32, #tpu.memory_space<vmem>>, vector<1x4x8xf32>
    %99 = vector.shape_cast %98 : vector<1x4x8xf32> to vector<4x8xf32>
    %cst_76 = arith.constant dense<0.000000e+00> : vector<4x256xf32>
    %100 = tpu.matmul %99, %94, %cst_76 {dimension_numbers = #tpu.dot_dimension_numbers<[1], [0], [0], [1], [0, 0, 1, 1], [], []>} : vector<4x8xf32>, vector<8x256xf32>, vector<4x256xf32> -> vector<4x256xf32>
    %101 = arith.maximumf %97, %100 : vector<4x256xf32>
    %102 = vector.extract_strided_slice %101 {offsets = [0, 0], sizes = [1, 256], strides = [1, 1]} : vector<4x256xf32> to vector<1x256xf32>
    %103 = arith.truncf %102 : vector<1x256xf32> to vector<1x256xbf16>
    %c0_77 = arith.constant 0 : index
    %c0_78 = arith.constant 0 : index
    %c0_79 = arith.constant 0 : index
    %104 = vector.load %arg10[%c0_77, %c0_78, %c0_79] : memref<4x256x128xbf16, #tpu.memory_space<vmem>>, vector<1x256x128xbf16>
    %105 = vector.shape_cast %104 : vector<1x256x128xbf16> to vector<256x128xbf16>
    %cst_80 = arith.constant dense<0.000000e+00> : vector<1x128xf32>
    %106 = tpu.matmul %103, %105, %cst_80 {dimension_numbers = #tpu.dot_dimension_numbers<[1], [0], [0], [1], [0, 0, 1, 1], [], []>} : vector<1x256xbf16>, vector<256x128xbf16>, vector<1x128xf32> -> vector<1x128xf32>
    %107 = vector.extract_strided_slice %101 {offsets = [1, 0], sizes = [1, 256], strides = [1, 1]} : vector<4x256xf32> to vector<1x256xf32>
    %108 = arith.truncf %107 : vector<1x256xf32> to vector<1x256xbf16>
    %c1_81 = arith.constant 1 : index
    %c0_82 = arith.constant 0 : index
    %c0_83 = arith.constant 0 : index
    %109 = vector.load %arg10[%c1_81, %c0_82, %c0_83] : memref<4x256x128xbf16, #tpu.memory_space<vmem>>, vector<1x256x128xbf16>
    %110 = vector.shape_cast %109 : vector<1x256x128xbf16> to vector<256x128xbf16>
    %cst_84 = arith.constant dense<0.000000e+00> : vector<1x128xf32>
    %111 = tpu.matmul %108, %110, %cst_84 {dimension_numbers = #tpu.dot_dimension_numbers<[1], [0], [0], [1], [0, 0, 1, 1], [], []>} : vector<1x256xbf16>, vector<256x128xbf16>, vector<1x128xf32> -> vector<1x128xf32>
    %112 = arith.addf %106, %111 : vector<1x128xf32>
    %113 = vector.extract_strided_slice %101 {offsets = [2, 0], sizes = [1, 256], strides = [1, 1]} : vector<4x256xf32> to vector<1x256xf32>
    %114 = arith.truncf %113 : vector<1x256xf32> to vector<1x256xbf16>
    %c2_85 = arith.constant 2 : index
    %c0_86 = arith.constant 0 : index
    %c0_87 = arith.constant 0 : index
    %115 = vector.load %arg10[%c2_85, %c0_86, %c0_87] : memref<4x256x128xbf16, #tpu.memory_space<vmem>>, vector<1x256x128xbf16>
    %116 = vector.shape_cast %115 : vector<1x256x128xbf16> to vector<256x128xbf16>
    %cst_88 = arith.constant dense<0.000000e+00> : vector<1x128xf32>
    %117 = tpu.matmul %114, %116, %cst_88 {dimension_numbers = #tpu.dot_dimension_numbers<[1], [0], [0], [1], [0, 0, 1, 1], [], []>} : vector<1x256xbf16>, vector<256x128xbf16>, vector<1x128xf32> -> vector<1x128xf32>
    %118 = arith.addf %112, %117 : vector<1x128xf32>
    %119 = vector.extract_strided_slice %101 {offsets = [3, 0], sizes = [1, 256], strides = [1, 1]} : vector<4x256xf32> to vector<1x256xf32>
    %120 = arith.truncf %119 : vector<1x256xf32> to vector<1x256xbf16>
    %c3_89 = arith.constant 3 : index
    %c0_90 = arith.constant 0 : index
    %c0_91 = arith.constant 0 : index
    %121 = vector.load %arg10[%c3_89, %c0_90, %c0_91] : memref<4x256x128xbf16, #tpu.memory_space<vmem>>, vector<1x256x128xbf16>
    %122 = vector.shape_cast %121 : vector<1x256x128xbf16> to vector<256x128xbf16>
    %cst_92 = arith.constant dense<0.000000e+00> : vector<1x128xf32>
    %123 = tpu.matmul %120, %122, %cst_92 {dimension_numbers = #tpu.dot_dimension_numbers<[1], [0], [0], [1], [0, 0, 1, 1], [], []>} : vector<1x256xbf16>, vector<256x128xbf16>, vector<1x128xf32> -> vector<1x128xf32>
    %124 = arith.addf %118, %123 : vector<1x128xf32>
    %c0_93 = arith.constant 0 : index
    %c0_94 = arith.constant 0 : index
    %125 = vector.load %arg11[%c0_93, %c0_94] : memref<1x128xf32, #tpu.memory_space<vmem>>, vector<1x128xf32>
    %126 = arith.addf %124, %125 : vector<1x128xf32>
    %cst_95 = arith.constant 0.000000e+00 : f32
    %127 = vector.broadcast %cst_95 : f32 to vector<1x128xf32>
    %128 = arith.maximumf %126, %127 : vector<1x128xf32>
    %129 = arith.truncf %128 : vector<1x128xf32> to vector<1x128xbf16>
    %c0_96 = arith.constant 0 : index
    %c0_97 = arith.constant 0 : index
    %130 = vector.load %arg12[%c0_96, %c0_97] : memref<128x128xbf16, #tpu.memory_space<vmem>>, vector<128x128xbf16>
    %cst_98 = arith.constant dense<0.000000e+00> : vector<1x128xf32>
    %131 = tpu.matmul %129, %130, %cst_98 {dimension_numbers = #tpu.dot_dimension_numbers<[1], [0], [0], [1], [0, 0, 1, 1], [], []>} : vector<1x128xbf16>, vector<128x128xbf16>, vector<1x128xf32> -> vector<1x128xf32>
    %c0_99 = arith.constant 0 : index
    %c0_100 = arith.constant 0 : index
    %132 = vector.load %arg13[%c0_99, %c0_100] : memref<1x128xf32, #tpu.memory_space<vmem>>, vector<1x128xf32>
    %133 = arith.addf %131, %132 : vector<1x128xf32>
    %cst_101 = arith.constant 0.000000e+00 : f32
    %134 = vector.broadcast %cst_101 : f32 to vector<1x128xf32>
    %135 = arith.maximumf %133, %134 : vector<1x128xf32>
    %136 = arith.truncf %135 : vector<1x128xf32> to vector<1x128xbf16>
    %c0_102 = arith.constant 0 : index
    %c0_103 = arith.constant 0 : index
    %137 = vector.load %arg14[%c0_102, %c0_103] : memref<128x128xbf16, #tpu.memory_space<vmem>>, vector<128x128xbf16>
    %cst_104 = arith.constant dense<0.000000e+00> : vector<1x128xf32>
    %138 = tpu.matmul %136, %137, %cst_104 {dimension_numbers = #tpu.dot_dimension_numbers<[1], [0], [0], [1], [0, 0, 1, 1], [], []>} : vector<1x128xbf16>, vector<128x128xbf16>, vector<1x128xf32> -> vector<1x128xf32>
    %c0_105 = arith.constant 0 : index
    %c0_106 = arith.constant 0 : index
    %139 = vector.load %arg15[%c0_105, %c0_106] : memref<1x128xf32, #tpu.memory_space<vmem>>, vector<1x128xf32>
    %140 = arith.addf %138, %139 : vector<1x128xf32>
    %c0_107 = arith.constant 0 : index
    %c0_108 = arith.constant 0 : index
    %c0_109 = arith.constant 0 : index
    %141 = vector.load %arg16[%c0_107, %c0_108, %c0_109] : memref<1x1x128xf32, #tpu.memory_space<vmem>>, vector<1x1x128xf32>
    %142 = vector.shape_cast %141 : vector<1x1x128xf32> to vector<1x128xf32>
    %143 = vector.shape_cast %140 : vector<1x128xf32> to vector<1x1x128xf32>
    tpu.vector_store %arg16[%c0_107, %c0_108, %c0_109], %143 {strides = array<i32>} : memref<1x1x128xf32, #tpu.memory_space<vmem>>, vector<1x1x128xf32>,
    return
  }
  func.func @transform_0(%arg0: i32) -> (i32, i32, i32) {
    %c0_i32 = arith.constant 0 : i32
    %c0_i32_0 = arith.constant 0 : i32
    %c0_i32_1 = arith.constant 0 : i32
    return %arg0, %c0_i32, %c0_i32_0 : i32, i32, i32
  }
  func.func @transform_1(%arg0: i32) -> (i32, i32, i32) {
    %c0_i32 = arith.constant 0 : i32
    %c0_i32_0 = arith.constant 0 : i32
    %c0_i32_1 = arith.constant 0 : i32
    %c0_i32_2 = arith.constant 0 : i32
    return %c0_i32, %c0_i32_0, %c0_i32_1 : i32, i32, i32
  }
  func.func @transform_2(%arg0: i32) -> (i32, i32) {
    %c0_i32 = arith.constant 0 : i32
    %c0_i32_0 = arith.constant 0 : i32
    %c0_i32_1 = arith.constant 0 : i32
    return %c0_i32, %c0_i32_0 : i32, i32
  }
  func.func @transform_3(%arg0: i32) -> (i32, i32, i32) {
    %c0_i32 = arith.constant 0 : i32
    %c0_i32_0 = arith.constant 0 : i32
    %c0_i32_1 = arith.constant 0 : i32
    %c0_i32_2 = arith.constant 0 : i32
    return %c0_i32, %c0_i32_0, %c0_i32_1 : i32, i32, i32
  }
  func.func @transform_4(%arg0: i32) -> (i32, i32, i32) {
    %c0_i32 = arith.constant 0 : i32
    %c0_i32_0 = arith.constant 0 : i32
    %c0_i32_1 = arith.constant 0 : i32
    %c0_i32_2 = arith.constant 0 : i32
    return %c0_i32, %c0_i32_0, %c0_i32_1 : i32, i32, i32
  }
  func.func @transform_5(%arg0: i32) -> (i32, i32, i32) {
    %c0_i32 = arith.constant 0 : i32
    %c0_i32_0 = arith.constant 0 : i32
    %c0_i32_1 = arith.constant 0 : i32
    %c0_i32_2 = arith.constant 0 : i32
    return %c0_i32, %c0_i32_0, %c0_i32_1 : i32, i32, i32
  }
  func.func @transform_6(%arg0: i32) -> (i32, i32) {
    %c0_i32 = arith.constant 0 : i32
    %c0_i32_0 = arith.constant 0 : i32
    %c0_i32_1 = arith.constant 0 : i32
    return %c0_i32, %c0_i32_0 : i32, i32
  }
  func.func @transform_7(%arg0: i32) -> (i32, i32, i32) {
    %c0_i32 = arith.constant 0 : i32
    %c0_i32_0 = arith.constant 0 : i32
    %c0_i32_1 = arith.constant 0 : i32
    %c0_i32_2 = arith.constant 0 : i32
    return %c0_i32, %c0_i32_0, %c0_i32_1 : i32, i32, i32
  }
  func.func @transform_8(%arg0: i32) -> (i32, i32, i32) {
    %c0_i32 = arith.constant 0 : i32
    %c0_i32_0 = arith.constant 0 : i32
    %c0_i32_1 = arith.constant 0 : i32
    %c0_i32_2 = arith.constant 0 : i32
    return %c0_i32, %c0_i32_0, %c0_i32_1 : i32, i32, i32
  }
  func.func @transform_9(%arg0: i32) -> (i32, i32, i32) {
    %c0_i32 = arith.constant 0 : i32
    %c0_i32_0 = arith.constant 0 : i32
    %c0_i32_1 = arith.constant 0 : i32
    %c0_i32_2 = arith.constant 0 : i32
    return %c0_i32, %c0_i32_0, %c0_i32_1 : i32, i32, i32
  }
  func.func @transform_10(%arg0: i32) -> (i32, i32) {
    %c0_i32 = arith.constant 0 : i32
    %c0_i32_0 = arith.constant 0 : i32
    %c0_i32_1 = arith.constant 0 : i32
    return %c0_i32, %c0_i32_0 : i32, i32
  }
  func.func @transform_11(%arg0: i32) -> (i32, i32) {
    %c0_i32 = arith.constant 0 : i32
    %c0_i32_0 = arith.constant 0 : i32
    %c0_i32_1 = arith.constant 0 : i32
    return %c0_i32, %c0_i32_0 : i32, i32
  }
  func.func @transform_12(%arg0: i32) -> (i32, i32) {
    %c0_i32 = arith.constant 0 : i32
    %c0_i32_0 = arith.constant 0 : i32
    %c0_i32_1 = arith.constant 0 : i32
    return %c0_i32, %c0_i32_0 : i32, i32
  }
  func.func @transform_13(%arg0: i32) -> (i32, i32) {
    %c0_i32 = arith.constant 0 : i32
    %c0_i32_0 = arith.constant 0 : i32
    %c0_i32_1 = arith.constant 0 : i32
    return %c0_i32, %c0_i32_0 : i32, i32
  }
  func.func @transform_14(%arg0: i32) -> (i32, i32) {
    %c0_i32 = arith.constant 0 : i32
    %c0_i32_0 = arith.constant 0 : i32
    %c0_i32_1 = arith.constant 0 : i32
    return %c0_i32, %c0_i32_0 : i32, i32
  }
  func.func @transform_15(%arg0: i32) -> (i32, i32, i32) {
    %c0_i32 = arith.constant 0 : i32
    %c0_i32_0 = arith.constant 0 : i32
    %c0_i32_1 = arith.constant 0 : i32
    return %arg0, %c0_i32, %c0_i32_0 : i32, i32, i32
  }
}

</mosaic_0001>

<llo_original>
// kernel: customnet1_forward.1
$region0: #{customnet1_forward.1}
  #allocation0 [shape = 'u32[]', space=smem, size = 0x4, offset = 0x4, fixed_abs, tag = 'smem constant byte address 0x4 - core index']
  #allocation1 [shape = 'u32[144,128]{1,0:T(1,128)}', space=vmem, size = 0x12000, scoped, tag = 'internal scratch']
  %s0 = inlined_call_operand.vmem [shape: f32[2,28,28], index: 0, kind: input, shape index: {}]
  %s1 = inlined_call_operand.hbm [shape: bf16[5,28,768], index: 1, kind: input, shape index: {}]
  %s2 = inlined_call_operand.hbm [shape: f32[1,768], index: 2, kind: input, shape index: {}]
  %s3 = inlined_call_operand.hbm [shape: f32[2,768,384], index: 3, kind: input, shape index: {}]
  %s4 = inlined_call_operand.vmem [shape: f32[2,12,24], index: 4, kind: input, shape index: {}]
  %s5 = inlined_call_operand.hbm [shape: bf16[5,384,512], index: 5, kind: input, shape index: {}]
  %s6 = inlined_call_operand.hbm [shape: f32[1,512], index: 6, kind: input, shape index: {}]
  %s7 = inlined_call_operand.hbm [shape: f32[2,512,256], index: 7, kind: input, shape index: {}]
  %s8 = inlined_call_operand.hbm [shape: f32[2,4,8], index: 8, kind: input, shape index: {}]
  %s9 = inlined_call_operand.hbm [shape: bf16[4,256,128], index: 9, kind: input, shape index: {}]
  %s10 = inlined_call_operand.hbm [shape: f32[1,128], index: 10, kind: input, shape index: {}]
  %s11 = inlined_call_operand.hbm [shape: bf16[128,128], index: 11, kind: input, shape index: {}]
  %s12 = inlined_call_operand.hbm [shape: f32[1,128], index: 12, kind: input, shape index: {}]
  %s13 = inlined_call_operand.hbm [shape: bf16[128,128], index: 13, kind: input, shape index: {}]
  %s14 = inlined_call_operand.hbm [shape: f32[1,128], index: 14, kind: input, shape index: {}]
  %s15 = inlined_call_operand.hbm [shape: f32[2,1,128], index: 15, kind: output, shape index: {}]
  %s16 = sld [smem:[#allocation0]]
  $region145: #{customnet1_forward.1} parent=0
    _
  %s18 = ssub.s32 1, %s16
  %s19 = scalar_select 0, %s18, %s16
  $region1: #{customnet1_forward.1} parent=0
    #allocation2 [shape = 'u8[245760]{0}', space=vmem, size = 0x3c000, scoped, tag = 'input window, operand 1, single buffered']
    #allocation3 [shape = 's32[2]{0}', space=sflag, size = 0x8, scoped, tag = 'scoped memory for customnet1_forward.1']
    #allocation4 [shape = 's32[2]{0}', space=sflag, size = 0x8, scoped, tag = 'scoped memory for customnet1_forward.1']
    #allocation5 [shape = 'u8[3072]{0}', space=vmem, size = 0xc00, scoped, tag = 'input window, operand 2, single buffered']
    #allocation6 [shape = 's32[1]{0}', space=sflag, size = 0x4, scoped, tag = 'scoped memory for customnet1_forward.1']
    #allocation7 [shape = 'u8[2359296]{0}', space=vmem, size = 0x240000, scoped, tag = 'input window, operand 3, single buffered']
    #allocation8 [shape = 'u8[1966080]{0}', space=vmem, size = 0x1e0000, scoped, tag = 'input window, operand 5, single buffered']
    #allocation9 [shape = 's32[1]{0}', space=sflag, size = 0x4, scoped, tag = 'scoped memory for customnet1_forward.1']
    #allocation10 [shape = 'u8[2048]{0}', space=vmem, size = 0x800, scoped, tag = 'input window, operand 6, single buffered']
    #allocation11 [shape = 'u8[1048576]{0}', space=vmem, size = 0x100000, scoped, tag = 'input window, operand 7, single buffered']
    #allocation12 [shape = 's32[1]{0}', space=sflag, size = 0x4, scoped, tag = 'scoped memory for customnet1_forward.1']
    #allocation13 [shape = 'u8[4096]{0}', space=vmem, size = 0x1000, scoped, tag = 'input window, operand 8, single buffered']
    #allocation14 [shape = 'u8[262144]{0}', space=vmem, size = 0x40000, scoped, tag = 'input window, operand 9, single buffered']
    #allocation15 [shape = 's32[1]{0}', space=sflag, size = 0x4, scoped, tag = 'scoped memory for customnet1_forward.1']
    #allocation16 [shape = 'u8[512]{0}', space=vmem, size = 0x400, scoped, tag = 'input window, operand 10, single buffered']
    #allocation17 [shape = 'u8[32768]{0}', space=vmem, size = 0x8000, scoped, tag = 'input window, operand 11, single buffered']
    #allocation18 [shape = 's32[1]{0}', space=sflag, size = 0x4, scoped, tag = 'scoped memory for customnet1_forward.1']
    #allocation19 [shape = 'u8[512]{0}', space=vmem, size = 0x400, scoped, tag = 'input window, operand 12, single buffered']
    #allocation20 [shape = 'u8[32768]{0}', space=vmem, size = 0x8000, scoped, tag = 'input window, operand 13, single buffered']
    #allocation21 [shape = 's32[1]{0}', space=sflag, size = 0x4, scoped, tag = 'scoped memory for customnet1_forward.1']
    #allocation22 [shape = 'u8[512]{0}', space=vmem, size = 0x400, scoped, tag = 'input window, operand 14, single buffered']
    #allocation23 [shape = 'u8[1024]{0}', space=vmem, size = 0x400, scoped, tag = 'output window, operand 0']
    %20 = vsyncpa [#allocation3], 0
    %21 = vsyncpa [#allocation6], 0
    %22 = vsyncpa [#allocation9], 0
    %23 = vsyncpa [#allocation12], 0
    %24 = vsyncpa [#allocation15], 0
    %25 = vsyncpa [#allocation18], 0
    %26 = vsyncpa [#allocation21], 0
    %27 = vsyncpa [#allocation4], 0
    %s28 = scalar_lea.sflag [#allocation4], 1
    %29 = vsyncpa %s28, 0
    loop: start=0, step=1, limit=4
    $region2: #{customnet1_forward.1} parent=1 // loop_pre_header
      _
    $region3: #{customnet1_forward.1} parent=1 // loop_header
      %s31 = sphi 0, %s35
      %p32 = scmp.ge.s32.totalorder %s31, 4
      %s41 = sphi 0, %s43
      %s44 = sphi 0, %s41
      %s45 = sphi 0, %s44
      %s61 = sphi 0, %s45
      %s65 = sphi 0, %s65
      %s67 = sphi 0, %s65
      %s68 = sphi 0, %s67
      %s82 = sphi 0, %s68
      %s86 = sphi 0, %s86
      %s88 = sphi 0, %s86
      %s89 = sphi 0, %s88
      %s103 = sphi 0, %s89
      %s107 = sphi 0, %s107
      %s109 = sphi 0, %s107
      %s110 = sphi 0, %s109
      %s124 = sphi 0, %s110
      %s128 = sphi 0, %s128
      %s130 = sphi 0, %s128
      %s131 = sphi 0, %s130
      %s145 = sphi 0, %s131
      %s149 = sphi 0, %s149
      %s151 = sphi 0, %s149
      %s152 = sphi 0, %s151
      %s166 = sphi 0, %s152
      %s170 = sphi 0, %s170
      %s172 = sphi 0, %s170
      %s173 = sphi 0, %s172
      %s187 = sphi 0, %s173
      %s191 = sphi 0, %s191
      %s193 = sphi 0, %s191
      %s194 = sphi 0, %s193
      %s208 = sphi 0, %s194
      %s212 = sphi 0, %s212
      %s214 = sphi 0, %s212
      %s215 = sphi 0, %s214
      %s229 = sphi 0, %s215
      %s233 = sphi 0, %s233
      %s235 = sphi 0, %s233
      %s236 = sphi 0, %s235
      %s250 = sphi 0, %s236
      %s254 = sphi 0, %s254
      %s256 = sphi 0, %s254
      %s257 = sphi 0, %s256
      %s271 = sphi 0, %s257
      %s275 = sphi 0, %s275
      %s277 = sphi 0, %s275
      %s278 = sphi 0, %s277
      %s292 = sphi 0, %s278
      %s296 = sphi 0, %s296
      %s298 = sphi 0, %s296
      %s299 = sphi 0, %s298
      %s313 = sphi 0, %s299
      %s317 = sphi 0, %s317
      %s319 = sphi 0, %s317
      %s320 = sphi 0, %s319
      %s334 = sphi 0, %s320
      %s338 = sphi 0, %s338
      %s340 = sphi 0, %s338
      %s341 = sphi 0, %s340
      %s355 = sphi 0, %s341
      %s361 = sphi 0, %s363
      %s364 = sphi 0, %s361
      %s365 = sphi 0, %s364
      %s381 = sphi 0, %s365
    $region4: #{customnet1_forward.1} parent=1 // loop_header_branch
      %34 = sbr.rel (%p32) target = $region8
    $region5: #{customnet1_forward.1} parent=1 // loop_body
      %s36 = ssub.s32 %s31, 1
      %s37 = ssub.s32 %s31, 2
      %s38 = sadd.s32 %s31, 1
      %s39 = ssub.s32 %s31, %s38
      %p40 = scmp.eq.s32.totalorder %s39, 0
      %s42 = sadd.s32 %s41, 1
      %s43 = scalar_select %p40, %s41, %s42
      %p46 = pneg %p40
      %p47 = scmp.eq.s32.totalorder %s31, 1
      %p48 = por %p46, %p47
      %p49 = scmp.ne.s32.totalorder %s41, %s44
      %p50 = scmp.eq.s32.totalorder %s31, 0
      %p51 = por %p49, %p50
      %p52 = scmp.ne.s32.totalorder %s41, %s44
      %p53 = scmp.eq.s32.totalorder %s36, 1
      %p54 = por %p52, %p53
      %p55 = scmp.ne.s32.totalorder %s44, %s45
      %p56 = scmp.eq.s32.totalorder %s36, 0
      %p57 = por %p55, %p56
      %p58 = scmp.ne.s32.totalorder %s44, %s45
      %p59 = scmp.eq.s32.totalorder %s37, 1
      %p60 = por %p58, %p59
      %p62 = scmp.ne.s32.totalorder %s45, %s61
      %p63 = scmp.eq.s32.totalorder %s37, 0
      %p64 = por %p62, %p63
      %s66 = sadd.s32 %s65, 1
      %p69 = scmp.eq.s32.totalorder %s31, 1
      %p70 = scmp.ne.s32.totalorder %s65, %s67
      %p71 = scmp.eq.s32.totalorder %s31, 0
      %p72 = por %p70, %p71
      %p73 = scmp.ne.s32.totalorder %s65, %s67
      %p74 = scmp.eq.s32.totalorder %s36, 1
      %p75 = por %p73, %p74
      %p76 = scmp.ne.s32.totalorder %s67, %s68
      %p77 = scmp.eq.s32.totalorder %s36, 0
      %p78 = por %p76, %p77
      %p79 = scmp.ne.s32.totalorder %s67, %s68
      %p80 = scmp.eq.s32.totalorder %s37, 1
      %p81 = por %p79, %p80
      %p83 = scmp.ne.s32.totalorder %s68, %s82
      %p84 = scmp.eq.s32.totalorder %s37, 0
      %p85 = por %p83, %p84
      %s87 = sadd.s32 %s86, 1
      %p90 = scmp.eq.s32.totalorder %s31, 1
      %p91 = scmp.ne.s32.totalorder %s86, %s88
      %p92 = scmp.eq.s32.totalorder %s31, 0
      %p93 = por %p91, %p92
      %p94 = scmp.ne.s32.totalorder %s86, %s88
      %p95 = scmp.eq.s32.totalorder %s36, 1
      %p96 = por %p94, %p95
      %p97 = scmp.ne.s32.totalorder %s88, %s89
      %p98 = scmp.eq.s32.totalorder %s36, 0
      %p99 = por %p97, %p98
      %p100 = scmp.ne.s32.totalorder %s88, %s89
      %p101 = scmp.eq.s32.totalorder %s37, 1
      %p102 = por %p100, %p101
      %p104 = scmp.ne.s32.totalorder %s89, %s103
      %p105 = scmp.eq.s32.totalorder %s37, 0
      %p106 = por %p104, %p105
      %s108 = sadd.s32 %s107, 1
      %p111 = scmp.eq.s32.totalorder %s31, 1
      %p112 = scmp.ne.s32.totalorder %s107, %s109
      %p113 = scmp.eq.s32.totalorder %s31, 0
      %p114 = por %p112, %p113
      %p115 = scmp.ne.s32.totalorder %s107, %s109
      %p116 = scmp.eq.s32.totalorder %s36, 1
      %p117 = por %p115, %p116
      %p118 = scmp.ne.s32.totalorder %s109, %s110
      %p119 = scmp.eq.s32.totalorder %s36, 0
      %p120 = por %p118, %p119
      %p121 = scmp.ne.s32.totalorder %s109, %s110
      %p122 = scmp.eq.s32.totalorder %s37, 1
      %p123 = por %p121, %p122
      %p125 = scmp.ne.s32.totalorder %s110, %s124
      %p126 = scmp.eq.s32.totalorder %s37, 0
      %p127 = por %p125, %p126
      %s129 = sadd.s32 %s128, 1
      %p132 = scmp.eq.s32.totalorder %s31, 1
      %p133 = scmp.ne.s32.totalorder %s128, %s130
      %p134 = scmp.eq.s32.totalorder %s31, 0
      %p135 = por %p133, %p134
      %p136 = scmp.ne.s32.totalorder %s128, %s130
      %p137 = scmp.eq.s32.totalorder %s36, 1
      %p138 = por %p136, %p137
      %p139 = scmp.ne.s32.totalorder %s130, %s131
      %p140 = scmp.eq.s32.totalorder %s36, 0
      %p141 = por %p139, %p140
      %p142 = scmp.ne.s32.totalorder %s130, %s131
      %p143 = scmp.eq.s32.totalorder %s37, 1
      %p144 = por %p142, %p143
      %p146 = scmp.ne.s32.totalorder %s131, %s145
      %p147 = scmp.eq.s32.totalorder %s37, 0
      %p148 = por %p146, %p147
      %s150 = sadd.s32 %s149, 1
      %p153 = scmp.eq.s32.totalorder %s31, 1
      %p154 = scmp.ne.s32.totalorder %s149, %s151
      %p155 = scmp.eq.s32.totalorder %s31, 0
      %p156 = por %p154, %p155
      %p157 = scmp.ne.s32.totalorder %s149, %s151
      %p158 = scmp.eq.s32.totalorder %s36, 1
      %p159 = por %p157, %p158
      %p160 = scmp.ne.s32.totalorder %s151, %s152
      %p161 = scmp.eq.s32.totalorder %s36, 0
      %p162 = por %p160, %p161
      %p163 = scmp.ne.s32.totalorder %s151, %s152
      %p164 = scmp.eq.s32.totalorder %s37, 1
      %p165 = por %p163, %p164
      %p167 = scmp.ne.s32.totalorder %s152, %s166
      %p168 = scmp.eq.s32.totalorder %s37, 0
      %p169 = por %p167, %p168
      %s171 = sadd.s32 %s170, 1
      %p174 = scmp.eq.s32.totalorder %s31, 1
      %p175 = scmp.ne.s32.totalorder %s170, %s172
      %p176 = scmp.eq.s32.totalorder %s31, 0
      %p177 = por %p175, %p176
      %p178 = scmp.ne.s32.totalorder %s170, %s172
      %p179 = scmp.eq.s32.totalorder %s36, 1
      %p180 = por %p178, %p179
      %p181 = scmp.ne.s32.totalorder %s172, %s173
      %p182 = scmp.eq.s32.totalorder %s36, 0
      %p183 = por %p181, %p182
      %p184 = scmp.ne.s32.totalorder %s172, %s173
      %p185 = scmp.eq.s32.totalorder %s37, 1
      %p186 = por %p184, %p185
      %p188 = scmp.ne.s32.totalorder %s173, %s187
      %p189 = scmp.eq.s32.totalorder %s37, 0
      %p190 = por %p188, %p189
      %s192 = sadd.s32 %s191, 1
      %p195 = scmp.eq.s32.totalorder %s31, 1
      %p196 = scmp.ne.s32.totalorder %s191, %s193
      %p197 = scmp.eq.s32.totalorder %s31, 0
      %p198 = por %p196, %p197
      %p199 = scmp.ne.s32.totalorder %s191, %s193
      %p200 = scmp.eq.s32.totalorder %s36, 1
      %p201 = por %p199, %p200
      %p202 = scmp.ne.s32.totalorder %s193, %s194
      %p203 = scmp.eq.s32.totalorder %s36, 0
      %p204 = por %p202, %p203
      %p205 = scmp.ne.s32.totalorder %s193, %s194
      %p206 = scmp.eq.s32.totalorder %s37, 1
      %p207 = por %p205, %p206
      %p209 = scmp.ne.s32.totalorder %s194, %s208
      %p210 = scmp.eq.s32.totalorder %s37, 0
      %p211 = por %p209, %p210
      %s213 = sadd.s32 %s212, 1
      %p216 = scmp.eq.s32.totalorder %s31, 1
      %p217 = scmp.ne.s32.totalorder %s212, %s214
      %p218 = scmp.eq.s32.totalorder %s31, 0
      %p219 = por %p217, %p218
      %p220 = scmp.ne.s32.totalorder %s212, %s214
      %p221 = scmp.eq.s32.totalorder %s36, 1
      %p222 = por %p220, %p221
      %p223 = scmp.ne.s32.totalorder %s214, %s215
      %p224 = scmp.eq.s32.totalorder %s36, 0
      %p225 = por %p223, %p224
      %p226 = scmp.ne.s32.totalorder %s214, %s215
      %p227 = scmp.eq.s32.totalorder %s37, 1
      %p228 = por %p226, %p227
      %p230 = scmp.ne.s32.totalorder %s215, %s229
      %p231 = scmp.eq.s32.totalorder %s37, 0
      %p232 = por %p230, %p231
      %s234 = sadd.s32 %s233, 1
      %p237 = scmp.eq.s32.totalorder %s31, 1
      %p238 = scmp.ne.s32.totalorder %s233, %s235
      %p239 = scmp.eq.s32.totalorder %s31, 0
      %p240 = por %p238, %p239
      %p241 = scmp.ne.s32.totalorder %s233, %s235
      %p242 = scmp.eq.s32.totalorder %s36, 1
      %p243 = por %p241, %p242
      %p244 = scmp.ne.s32.totalorder %s235, %s236
      %p245 = scmp.eq.s32.totalorder %s36, 0
      %p246 = por %p244, %p245
      %p247 = scmp.ne.s32.totalorder %s235, %s236
      %p248 = scmp.eq.s32.totalorder %s37, 1
      %p249 = por %p247, %p248
      %p251 = scmp.ne.s32.totalorder %s236, %s250
      %p252 = scmp.eq.s32.totalorder %s37, 0
      %p253 = por %p251, %p252
      %s255 = sadd.s32 %s254, 1
      %p258 = scmp.eq.s32.totalorder %s31, 1
      %p259 = scmp.ne.s32.totalorder %s254, %s256
      %p260 = scmp.eq.s32.totalorder %s31, 0
      %p261 = por %p259, %p260
      %p262 = scmp.ne.s32.totalorder %s254, %s256
      %p263 = scmp.eq.s32.totalorder %s36, 1
      %p264 = por %p262, %p263
      %p265 = scmp.ne.s32.totalorder %s256, %s257
      %p266 = scmp.eq.s32.totalorder %s36, 0
      %p267 = por %p265, %p266
      %p268 = scmp.ne.s32.totalorder %s256, %s257
      %p269 = scmp.eq.s32.totalorder %s37, 1
      %p270 = por %p268, %p269
      %p272 = scmp.ne.s32.totalorder %s257, %s271
      %p273 = scmp.eq.s32.totalorder %s37, 0
      %p274 = por %p272, %p273
      %s276 = sadd.s32 %s275, 1
      %p279 = scmp.eq.s32.totalorder %s31, 1
      %p280 = scmp.ne.s32.totalorder %s275, %s277
      %p281 = scmp.eq.s32.totalorder %s31, 0
      %p282 = por %p280, %p281
      %p283 = scmp.ne.s32.totalorder %s275, %s277
      %p284 = scmp.eq.s32.totalorder %s36, 1
      %p285 = por %p283, %p284
      %p286 = scmp.ne.s32.totalorder %s277, %s278
      %p287 = scmp.eq.s32.totalorder %s36, 0
      %p288 = por %p286, %p287
      %p289 = scmp.ne.s32.totalorder %s277, %s278
      %p290 = scmp.eq.s32.totalorder %s37, 1
      %p291 = por %p289, %p290
      %p293 = scmp.ne.s32.totalorder %s278, %s292
      %p294 = scmp.eq.s32.totalorder %s37, 0
      %p295 = por %p293, %p294
      %s297 = sadd.s32 %s296, 1
      %p300 = scmp.eq.s32.totalorder %s31, 1
      %p301 = scmp.ne.s32.totalorder %s296, %s298
      %p302 = scmp.eq.s32.totalorder %s31, 0
      %p303 = por %p301, %p302
      %p304 = scmp.ne.s32.totalorder %s296, %s298
      %p305 = scmp.eq.s32.totalorder %s36, 1
      %p306 = por %p304, %p305
      %p307 = scmp.ne.s32.totalorder %s298, %s299
      %p308 = scmp.eq.s32.totalorder %s36, 0
      %p309 = por %p307, %p308
      %p310 = scmp.ne.s32.totalorder %s298, %s299
      %p311 = scmp.eq.s32.totalorder %s37, 1
      %p312 = por %p310, %p311
      %p314 = scmp.ne.s32.totalorder %s299, %s313
      %p315 = scmp.eq.s32.totalorder %s37, 0
      %p316 = por %p314, %p315
      %s318 = sadd.s32 %s317, 1
      %p321 = scmp.eq.s32.totalorder %s31, 1
      %p322 = scmp.ne.s32.totalorder %s317, %s319
      %p323 = scmp.eq.s32.totalorder %s31, 0
      %p324 = por %p322, %p323
      %p325 = scmp.ne.s32.totalorder %s317, %s319
      %p326 = scmp.eq.s32.totalorder %s36, 1
      %p327 = por %p325, %p326
      %p328 = scmp.ne.s32.totalorder %s319, %s320
      %p329 = scmp.eq.s32.totalorder %s36, 0
      %p330 = por %p328, %p329
      %p331 = scmp.ne.s32.totalorder %s319, %s320
      %p332 = scmp.eq.s32.totalorder %s37, 1
      %p333 = por %p331, %p332
      %p335 = scmp.ne.s32.totalorder %s320, %s334
      %p336 = scmp.eq.s32.totalorder %s37, 0
      %p337 = por %p335, %p336
      %s339 = sadd.s32 %s338, 1
      %p342 = scmp.eq.s32.totalorder %s31, 1
      %p343 = scmp.ne.s32.totalorder %s338, %s340
      %p344 = scmp.eq.s32.totalorder %s31, 0
      %p345 = por %p343, %p344
      %p346 = scmp.ne.s32.totalorder %s338, %s340
      %p347 = scmp.eq.s32.totalorder %s36, 1
      %p348 = por %p346, %p347
      %p349 = scmp.ne.s32.totalorder %s340, %s341
      %p350 = scmp.eq.s32.totalorder %s36, 0
      %p351 = por %p349, %p350
      %p352 = scmp.ne.s32.totalorder %s340, %s341
      %p353 = scmp.eq.s32.totalorder %s37, 1
      %p354 = por %p352, %p353
      %p356 = scmp.ne.s32.totalorder %s341, %s355
      %p357 = scmp.eq.s32.totalorder %s37, 0
      %p358 = por %p356, %p357
      %s359 = ssub.s32 %s31, %s38
      %p360 = scmp.eq.s32.totalorder %s359, 0
      %s362 = sadd.s32 %s361, 1
      %s363 = scalar_select %p360, %s361, %s362
      %p366 = pneg %p360
      %p367 = scmp.eq.s32.totalorder %s31, 1
      %p368 = por %p366, %p367
      %p369 = scmp.ne.s32.totalorder %s361, %s364
      %p370 = scmp.eq.s32.totalorder %s31, 0
      %p371 = por %p369, %p370
      %p372 = scmp.ne.s32.totalorder %s361, %s364
      %p373 = scmp.eq.s32.totalorder %s36, 1
      %p374 = por %p372, %p373
      %p375 = scmp.ne.s32.totalorder %s364, %s365
      %p376 = scmp.eq.s32.totalorder %s36, 0
      %p377 = por %p375, %p376
      %p378 = scmp.ne.s32.totalorder %s364, %s365
      %p379 = scmp.eq.s32.totalorder %s37, 1
      %p380 = por %p378, %p379
      %p382 = scmp.ne.s32.totalorder %s365, %s381
      %p383 = scmp.eq.s32.totalorder %s37, 0
      %p384 = por %p382, %p383
      %p385 = scmp.le.s32.totalorder 1, %s31
      %p386 = scmp.lt.s32.totalorder %s31, 3
      %p387 = pnand %p385, %p386
      %p388 = pneg %p387
      // Predicated region
      $region9: #{customnet1_forward.1} parent=5 // pred_check
        _
      $region10: #{customnet1_forward.1} parent=5 // pred_check_branch
        %390 = sbr.rel (%p387) target = $region12
      $region11: #{customnet1_forward.1} parent=5 // pred_region
        %s391 = ssub.s32 %s31, 1
        // Predicated region
        $region13: #{customnet1_forward.1} parent=11 // pred_check
          %p392 = pneg %p78
        $region14: #{customnet1_forward.1} parent=11 // pred_check_branch
          %394 = sbr.rel (%p392) target = $region16
        $region15: #{customnet1_forward.1} parent=11 // pred_region
          %s396 = ssub.s32 7680, 7680
          %397 = vsyncadd [#allocation3], %s396
          %s398 = sshll.u32 [#allocation2], 4
          %s399 = int_to_ptr.vmem [resolvable:$true] %s398
          %404 = dma.hbm_to_vmem [thread:$0]  %s1, 7680, %s399, [#allocation3], 384, 384, 24
        $region16: #{customnet1_forward.1} parent=11 // pred_fallthru
          _
        // Predicated region
        $region17: #{customnet1_forward.1} parent=11 // pred_check
          %p405 = pneg %p99
        $region18: #{customnet1_forward.1} parent=11 // pred_check_branch
          %407 = sbr.rel (%p405) target = $region20
        $region19: #{customnet1_forward.1} parent=11 // pred_region
          %s409 = ssub.s32 96, 96
          %410 = vsyncadd [#allocation6], %s409
          %s412 = sshll.u32 [#allocation5], 4
          %s413 = int_to_ptr.vmem [resolvable:$true] %s412
          %415 = dma.hbm_to_vmem [thread:$0]  %s2, 96, %s413, [#allocation6]
        $region20: #{customnet1_forward.1} parent=11 // pred_fallthru
          _
        // Predicated region
        $region21: #{customnet1_forward.1} parent=11 // pred_check
          %p416 = pneg %p120
        $region22: #{customnet1_forward.1} parent=11 // pred_check_branch
          %418 = sbr.rel (%p416) target = $region24
        $region23: #{customnet1_forward.1} parent=11 // pred_region
          %s420 = ssub.s32 73728, 73728
          %421 = vsyncadd [#allocation6], %s420
          %s422 = sshll.u32 [#allocation7], 4
          %s423 = int_to_ptr.vmem [resolvable:$true] %s422
          %428 = dma.hbm_to_vmem [thread:$0]  %s3, 73728, %s423, [#allocation6], 384, 384, 24
        $region24: #{customnet1_forward.1} parent=11 // pred_fallthru
          _
        // Predicated region
        $region25: #{customnet1_forward.1} parent=11 // pred_check
          %p429 = pneg %p141
        $region26: #{customnet1_forward.1} parent=11 // pred_check_branch
          %431 = sbr.rel (%p429) target = $region28
        $region27: #{customnet1_forward.1} parent=11 // pred_region
          _
        $region28: #{customnet1_forward.1} parent=11 // pred_fallthru
          _
        // Predicated region
        $region29: #{customnet1_forward.1} parent=11 // pred_check
          %p432 = pneg %p162
        $region30: #{customnet1_forward.1} parent=11 // pred_check_branch
          %434 = sbr.rel (%p432) target = $region32
        $region31: #{customnet1_forward.1} parent=11 // pred_region
          %s436 = ssub.s32 61440, 61440
          %437 = vsyncadd [#allocation9], %s436
          %s438 = sshll.u32 [#allocation8], 4
          %s439 = int_to_ptr.vmem [resolvable:$true] %s438
          %444 = dma.hbm_to_vmem [thread:$0]  %s5, 61440, %s439, [#allocation9], 256, 256, 16
        $region32: #{customnet1_forward.1} parent=11 // pred_fallthru
          _
        // Predicated region
        $region33: #{customnet1_forward.1} parent=11 // pred_check
          %p445 = pneg %p183
        $region34: #{customnet1_forward.1} parent=11 // pred_check_branch
          %447 = sbr.rel (%p445) target = $region36
        $region35: #{customnet1_forward.1} parent=11 // pred_region
          %s449 = ssub.s32 64, 64
          %450 = vsyncadd [#allocation9], %s449
          %s452 = sshll.u32 [#allocation10], 4
          %s453 = int_to_ptr.vmem [resolvable:$true] %s452
          %455 = dma.hbm_to_vmem [thread:$0]  %s6, 64, %s453, [#allocation9]
        $region36: #{customnet1_forward.1} parent=11 // pred_fallthru
          _
        // Predicated region
        $region37: #{customnet1_forward.1} parent=11 // pred_check
          %p456 = pneg %p204
        $region38: #{customnet1_forward.1} parent=11 // pred_check_branch
          %458 = sbr.rel (%p456) target = $region40
        $region39: #{customnet1_forward.1} parent=11 // pred_region
          %s460 = ssub.s32 32768, 32768
          %461 = vsyncadd [#allocation12], %s460
          %s462 = sshll.u32 [#allocation11], 4
          %s463 = int_to_ptr.vmem [resolvable:$true] %s462
          %468 = dma.hbm_to_vmem [thread:$0]  %s7, 32768, %s463, [#allocation12], 256, 256, 16
        $region40: #{customnet1_forward.1} parent=11 // pred_fallthru
          _
        // Predicated region
        $region41: #{customnet1_forward.1} parent=11 // pred_check
          %p469 = pneg %p225
        $region42: #{customnet1_forward.1} parent=11 // pred_check_branch
          %471 = sbr.rel (%p469) target = $region44
        $region43: #{customnet1_forward.1} parent=11 // pred_region
          %s473 = ssub.s32 128, 128
          %474 = vsyncadd [#allocation12], %s473
          %s475 = sshll.u32 [#allocation13], 4
          %s476 = int_to_ptr.vmem [resolvable:$true] %s475
          %481 = dma.hbm_to_vmem [thread:$0]  %s8, 128, %s476, [#allocation12], 64, 64, 4
        $region44: #{customnet1_forward.1} parent=11 // pred_fallthru
          _
        // Predicated region
        $region45: #{customnet1_forward.1} parent=11 // pred_check
          %p482 = pneg %p246
        $region46: #{customnet1_forward.1} parent=11 // pred_check_branch
          %484 = sbr.rel (%p482) target = $region48
        $region47: #{customnet1_forward.1} parent=11 // pred_region
          %s486 = ssub.s32 8192, 8192
          %487 = vsyncadd [#allocation15], %s486
          %s488 = sshll.u32 [#allocation14], 4
          %s489 = int_to_ptr.vmem [resolvable:$true] %s488
          %494 = dma.hbm_to_vmem [thread:$0]  %s9, 8192, %s489, [#allocation15], 64, 64, 4
        $region48: #{customnet1_forward.1} parent=11 // pred_fallthru
          _
        // Predicated region
        $region49: #{customnet1_forward.1} parent=11 // pred_check
          %p495 = pneg %p267
        $region50: #{customnet1_forward.1} parent=11 // pred_check_branch
          %497 = sbr.rel (%p495) target = $region52
        $region51: #{customnet1_forward.1} parent=11 // pred_region
          %s499 = ssub.s32 16, 16
          %500 = vsyncadd [#allocation15], %s499
          %s502 = sshll.u32 [#allocation16], 4
          %s503 = int_to_ptr.vmem [resolvable:$true] %s502
          %505 = dma.hbm_to_vmem [thread:$0]  %s10, 16, %s503, [#allocation15]
        $region52: #{customnet1_forward.1} parent=11 // pred_fallthru
          _
        // Predicated region
        $region53: #{customnet1_forward.1} parent=11 // pred_check
          %p506 = pneg %p288
        $region54: #{customnet1_forward.1} parent=11 // pred_check_branch
          %508 = sbr.rel (%p506) target = $region56
        $region55: #{customnet1_forward.1} parent=11 // pred_region
          %s510 = ssub.s32 1024, 1024
          %511 = vsyncadd [#allocation18], %s510
          %s512 = sshll.u32 [#allocation17], 4
          %s513 = int_to_ptr.vmem [resolvable:$true] %s512
          %518 = dma.hbm_to_vmem [thread:$0]  %s11, 1024, %s513, [#allocation18], 64, 64, 4
        $region56: #{customnet1_forward.1} parent=11 // pred_fallthru
          _
        // Predicated region
        $region57: #{customnet1_forward.1} parent=11 // pred_check
          %p519 = pneg %p309
        $region58: #{customnet1_forward.1} parent=11 // pred_check_branch
          %521 = sbr.rel (%p519) target = $region60
        $region59: #{customnet1_forward.1} parent=11 // pred_region
          %s523 = ssub.s32 16, 16
          %524 = vsyncadd [#allocation18], %s523
          %s526 = sshll.u32 [#allocation19], 4
          %s527 = int_to_ptr.vmem [resolvable:$true] %s526
          %529 = dma.hbm_to_vmem [thread:$0]  %s12, 16, %s527, [#allocation18]
        $region60: #{customnet1_forward.1} parent=11 // pred_fallthru
          _
        // Predicated region
        $region61: #{customnet1_forward.1} parent=11 // pred_check
          %p530 = pneg %p330
        $region62: #{customnet1_forward.1} parent=11 // pred_check_branch
          %532 = sbr.rel (%p530) target = $region64
        $region63: #{customnet1_forward.1} parent=11 // pred_region
          %s534 = ssub.s32 1024, 1024
          %535 = vsyncadd [#allocation21], %s534
          %s536 = sshll.u32 [#allocation20], 4
          %s537 = int_to_ptr.vmem [resolvable:$true] %s536
          %542 = dma.hbm_to_vmem [thread:$0]  %s13, 1024, %s537, [#allocation21], 64, 64, 4
        $region64: #{customnet1_forward.1} parent=11 // pred_fallthru
          _
        // Predicated region
        $region65: #{customnet1_forward.1} parent=11 // pred_check
          %p543 = pneg %p351
        $region66: #{customnet1_forward.1} parent=11 // pred_check_branch
          %545 = sbr.rel (%p543) target = $region68
        $region67: #{customnet1_forward.1} parent=11 // pred_region
          %s547 = ssub.s32 16, 16
          %548 = vsyncadd [#allocation21], %s547
          %s550 = sshll.u32 [#allocation22], 4
          %s551 = int_to_ptr.vmem [resolvable:$true] %s550
          %553 = dma.hbm_to_vmem [thread:$0]  %s14, 16, %s551, [#allocation21]
        $region68: #{customnet1_forward.1} parent=11 // pred_fallthru
          _
      $region12: #{customnet1_forward.1} parent=5 // pred_fallthru
        _
      %p554 = scmp.lt.s32.totalorder %s31, 2
      // Predicated region
      $region69: #{customnet1_forward.1} parent=5 // pred_check
        %p555 = pneg %p554
      $region70: #{customnet1_forward.1} parent=5 // pred_check_branch
        %557 = sbr.rel (%p555) target = $region72
      $region71: #{customnet1_forward.1} parent=5 // pred_region
        // Predicated region
        $region73: #{customnet1_forward.1} parent=71 // pred_check
          %p558 = pneg %p51
        $region74: #{customnet1_forward.1} parent=71 // pred_check_branch
          %560 = sbr.rel (%p558) target = $region76
        $region75: #{customnet1_forward.1} parent=71 // pred_region
          %p561 = scmp.lt.s32.totalorder %s31, 1
          %s562 = scalar_select %p561, %s31, 1
          %s563 = smul.addr %s562, 4
          %s564 = smul.addr %s563, 8
          %s565 = scalar_lea.vmem %s0, %s564
        $region76: #{customnet1_forward.1} parent=71 // pred_fallthru
          _
      $region72: #{customnet1_forward.1} parent=5 // pred_fallthru
        _
      %p566 = scmp.le.s32.totalorder 1, %s31
      %p567 = scmp.lt.s32.totalorder %s31, 3
      %p568 = pnand %p566, %p567
      %p569 = pneg %p568
      // Predicated region
      $region77: #{customnet1_forward.1} parent=5 // pred_check
        _
      $region78: #{customnet1_forward.1} parent=5 // pred_check_branch
        %571 = sbr.rel (%p568) target = $region80
      $region79: #{customnet1_forward.1} parent=5 // pred_region
        %s572 = ssub.s32 %s31, 1
        // Predicated region
        $region81: #{customnet1_forward.1} parent=79 // pred_check
          %p573 = pneg %p78
        $region82: #{customnet1_forward.1} parent=79 // pred_check_branch
          %575 = sbr.rel (%p573) target = $region84
        $region83: #{customnet1_forward.1} parent=79 // pred_region
          %576 = dma.done [#allocation3], 7680
        $region84: #{customnet1_forward.1} parent=79 // pred_fallthru
          _
        // Predicated region
        $region85: #{customnet1_forward.1} parent=79 // pred_check
          %p577 = pneg %p99
        $region86: #{customnet1_forward.1} parent=79 // pred_check_branch
          %579 = sbr.rel (%p577) target = $region88
        $region87: #{customnet1_forward.1} parent=79 // pred_region
          %580 = dma.done [#allocation6], 96
        $region88: #{customnet1_forward.1} parent=79 // pred_fallthru
          _
        // Predicated region
        $region89: #{customnet1_forward.1} parent=79 // pred_check
          %p581 = pneg %p120
        $region90: #{customnet1_forward.1} parent=79 // pred_check_branch
          %583 = sbr.rel (%p581) target = $region92
        $region91: #{customnet1_forward.1} parent=79 // pred_region
          %584 = dma.done [#allocation6], 73728
        $region92: #{customnet1_forward.1} parent=79 // pred_fallthru
          _
        // Predicated region
        $region93: #{customnet1_forward.1} parent=79 // pred_check
          %p585 = pneg %p162
        $region94: #{customnet1_forward.1} parent=79 // pred_check_branch
          %587 = sbr.rel (%p585) target = $region96
        $region95: #{customnet1_forward.1} parent=79 // pred_region
          %588 = dma.done [#allocation9], 61440
        $region96: #{customnet1_forward.1} parent=79 // pred_fallthru
          _
        // Predicated region
        $region97: #{customnet1_forward.1} parent=79 // pred_check
          %p589 = pneg %p183
        $region98: #{customnet1_forward.1} parent=79 // pred_check_branch
          %591 = sbr.rel (%p589) target = $region100
        $region99: #{customnet1_forward.1} parent=79 // pred_region
          %592 = dma.done [#allocation9], 64
        $region100: #{customnet1_forward.1} parent=79 // pred_fallthru
          _
        // Predicated region
        $region101: #{customnet1_forward.1} parent=79 // pred_check
          %p593 = pneg %p204
        $region102: #{customnet1_forward.1} parent=79 // pred_check_branch
          %595 = sbr.rel (%p593) target = $region104
        $region103: #{customnet1_forward.1} parent=79 // pred_region
          %596 = dma.done [#allocation12], 32768
        $region104: #{customnet1_forward.1} parent=79 // pred_fallthru
          _
        // Predicated region
        $region105: #{customnet1_forward.1} parent=79 // pred_check
          %p597 = pneg %p225
        $region106: #{customnet1_forward.1} parent=79 // pred_check_branch
          %599 = sbr.rel (%p597) target = $region108
        $region107: #{customnet1_forward.1} parent=79 // pred_region
          %600 = dma.done [#allocation12], 128
        $region108: #{customnet1_forward.1} parent=79 // pred_fallthru
          _
        // Predicated region
        $region109: #{customnet1_forward.1} parent=79 // pred_check
          %p601 = pneg %p246
        $region110: #{customnet1_forward.1} parent=79 // pred_check_branch
          %603 = sbr.rel (%p601) target = $region112
        $region111: #{customnet1_forward.1} parent=79 // pred_region
          %604 = dma.done [#allocation15], 8192
        $region112: #{customnet1_forward.1} parent=79 // pred_fallthru
          _
        // Predicated region
        $region113: #{customnet1_forward.1} parent=79 // pred_check
          %p605 = pneg %p267
        $region114: #{customnet1_forward.1} parent=79 // pred_check_branch
          %607 = sbr.rel (%p605) target = $region116
        $region115: #{customnet1_forward.1} parent=79 // pred_region
          %608 = dma.done [#allocation15], 16
        $region116: #{customnet1_forward.1} parent=79 // pred_fallthru
          _
        // Predicated region
        $region117: #{customnet1_forward.1} parent=79 // pred_check
          %p609 = pneg %p288
        $region118: #{customnet1_forward.1} parent=79 // pred_check_branch
          %611 = sbr.rel (%p609) target = $region120
        $region119: #{customnet1_forward.1} parent=79 // pred_region
          %612 = dma.done [#allocation18], 1024
        $region120: #{customnet1_forward.1} parent=79 // pred_fallthru
          _
        // Predicated region
        $region121: #{customnet1_forward.1} parent=79 // pred_check
          %p613 = pneg %p309
        $region122: #{customnet1_forward.1} parent=79 // pred_check_branch
          %615 = sbr.rel (%p613) target = $region124
        $region123: #{customnet1_forward.1} parent=79 // pred_region
          %616 = dma.done [#allocation18], 16
        $region124: #{customnet1_forward.1} parent=79 // pred_fallthru
          _
        // Predicated region
        $region125: #{customnet1_forward.1} parent=79 // pred_check
          %p617 = pneg %p330
        $region126: #{customnet1_forward.1} parent=79 // pred_check_branch
          %619 = sbr.rel (%p617) target = $region128
        $region127: #{customnet1_forward.1} parent=79 // pred_region
          %620 = dma.done [#allocation21], 1024
        $region128: #{customnet1_forward.1} parent=79 // pred_fallthru
          _
        // Predicated region
        $region129: #{customnet1_forward.1} parent=79 // pred_check
          %p621 = pneg %p351
        $region130: #{customnet1_forward.1} parent=79 // pred_check_branch
          %623 = sbr.rel (%p621) target = $region132
        $region131: #{customnet1_forward.1} parent=79 // pred_region
          %624 = dma.done [#allocation21], 16
        $region132: #{customnet1_forward.1} parent=79 // pred_fallthru
          _
        %p625 = scmp.lt.s32.totalorder %s36, 1
        %s626 = scalar_select %p625, %s36, 1
        %s627 = smul.addr %s626, 4
        %s628 = smul.addr %s627, 8
        %s629 = scalar_lea.vmem %s0, %s628
        %p630 = pneg %p57
        %p631 = pneg %p54
        %p632 = pneg %p78
        %p633 = pneg %p75
        %p634 = pneg %p99
        %p635 = pneg %p96
        %p636 = pneg %p120
        %p637 = pneg %p117
        %p638 = pneg %p141
        %p639 = pneg %p138
        %p640 = pneg %p162
        %p641 = pneg %p159
        %p642 = pneg %p183
        %p643 = pneg %p180
        %p644 = pneg %p204
        %p645 = pneg %p201
        %p646 = pneg %p225
        %p647 = pneg %p222
        %p648 = pneg %p246
        %p649 = pneg %p243
        %p650 = pneg %p267
        %p651 = pneg %p264
        %p652 = pneg %p288
        %p653 = pneg %p285
        %p654 = pneg %p309
        %p655 = pneg %p306
        %p656 = pneg %p330
        %p657 = pneg %p327
        %p658 = pneg %p351
        %p659 = pneg %p348
        %p660 = pneg %p377
        %p661 = pneg %p374
        %s662 = sand.u32 %s364, 1
        %s663 = scalar_lea.sflag [#allocation4], %s662
        %s664 = sand.u32 %s364, 1
        %s665 = scalar_lea.vmem [#allocation23], %s664
        %p666 = scmp.lt.s32.totalorder %s36, 1
        %s667 = scalar_select %p666, %s36, 1
        %s668 = smul.addr %s667, 4
        %s669 = smul.addr %s668, 8
        %s670 = scalar_lea.vmem %s0, %s669
        %v672 = vld [vmem:[%s670] sm:$0xff]
        %v673 = vld [vmem:[%s670 + $0x8] sm:$0xff]
        %v674 = vld [vmem:[%s670 + $0x10] sm:$0xff]
        %v675 = vld [vmem:[%s670 + $0x18] sm:$0xf]
        %v676 = vpack.c.bf16 %v673, %v672
        %v677 = vpack.c.bf16 %v674, %v674
        %v678 = vld [vmem:[#allocation2] sm:$0xff]
        %v679 = vld [vmem:[#allocation2 + $0x8] sm:$0xff]
        %v680 = vld [vmem:[#allocation2 + $0x10] sm:$0xff]
        %v681 = vld [vmem:[#allocation2 + $0x18] sm:$0xff]
        %v682 = vld [vmem:[#allocation2 + $0x20] sm:$0xff]
        %v683 = vld [vmem:[#allocation2 + $0x28] sm:$0xff]
        %v684 = vld [vmem:[#allocation2 + $0x30] sm:$0xff]
        %v685 = vld [vmem:[#allocation2 + $0x38] sm:$0xff]
        %v686 = vld [vmem:[#allocation2 + $0x40] sm:$0xff]
        %v687 = vld [vmem:[#allocation2 + $0x48] sm:$0x33]
        %v688 = vld [vmem:[#allocation2 + $0x50] sm:$0x33]
        %v689 = vld [vmem:[#allocation2 + $0x58] sm:$0x33]
        %v690 = vpack.c.bf16 %v675, %v674
        %s691 = scalar_lea.vmem [#allocation2], 96
        %v692 = vld [vmem:[%s691] sm:$0xff]
        %v693 = vld [vmem:[%s691 + $0x8] sm:$0xff]
        %v694 = vld [vmem:[%s691 + $0x10] sm:$0xff]
        %v695 = vld [vmem:[%s691 + $0x18] sm:$0xff]
        %v696 = vld [vmem:[%s691 + $0x20] sm:$0xff]
        %v697 = vld [vmem:[%s691 + $0x28] sm:$0xff]
        %v698 = vld [vmem:[%s691 + $0x30] sm:$0xff]
        %v699 = vld [vmem:[%s691 + $0x38] sm:$0xff]
        %v700 = vld [vmem:[%s691 + $0x40] sm:$0xff]
        %v701 = vld [vmem:[%s691 + $0x48] sm:$0x33]
        %v702 = vld [vmem:[%s691 + $0x50] sm:$0x33]
        %v703 = vld [vmem:[%s691 + $0x58] sm:$0x33]
        %vm704 = vsmask.f32 7424
        %v706 = vshrl.u32 %v676, 16
        %v708 = vshll.u32 %v676, 16
        %v710 = vrot.slane %v708, 1
        %v711 = vor.u32 %v706, %v710
        %v713 = vshll.u32 %v690, 16
        %v715 = vrot.slane %v713, 1
        %v716 = vsel %vm704, %v711, %v715
        %v717 = vshrl.u32 %v690, 16
        %v719 = vor.u32 %v717, %v715
        %v732 = vunpack.c.l.b16 %v692
        %v733 = vunpack.c.h.b16 %v692
        %v734 = vunpack.c.l.b16 %v693
        %v735 = vunpack.c.h.b16 %v693
        %v736 = vunpack.c.l.b16 %v694
        %v737 = vunpack.c.h.b16 %v694
        %v738 = vunpack.c.l.b16 %v695
        %v739 = vunpack.c.h.b16 %v695
        %v740 = vunpack.c.l.b16 %v696
        %v741 = vunpack.c.h.b16 %v696
        %v742 = vunpack.c.l.b16 %v697
        %v743 = vunpack.c.h.b16 %v697
        %v744 = vunpack.c.l.b16 %v698
        %v745 = vunpack.c.h.b16 %v698
        %v746 = vunpack.c.l.b16 %v699
        %v747 = vunpack.c.h.b16 %v699
        %v748 = vunpack.c.l.b16 %v700
        %v749 = vunpack.c.h.b16 %v700
        %v750 = vunpack.c.l.b16 %v701
        %v751 = vunpack.c.h.b16 %v701
        %v752 = vunpack.c.l.b16 %v702
        %v753 = vunpack.c.h.b16 %v702
        %v754 = vunpack.c.l.b16 %v703
        %v755 = vunpack.c.h.b16 %v703
        %v756 = vpack.c.b16 %v738, %v732
        %v757 = vpack.c.b16 %v739, %v733
        %v758 = vpack.c.b16 %v740, %v734
        %v759 = vpack.c.b16 %v741, %v735
        %v760 = vpack.c.b16 %v742, %v736
        %v761 = vpack.c.b16 %v743, %v737
        %v762 = vpack.c.b16 %v750, %v744
        %v763 = vpack.c.b16 %v751, %v745
        %v764 = vpack.c.b16 %v752, %v746
        %v765 = vpack.c.b16 %v753, %v747
        %v766 = vpack.c.b16 %v754, %v748
        %v767 = vpack.c.b16 %v755, %v749
        %vm774 = vcmask 228352
        %v776 = vsel %vm774, %v716, 0
        %v779 = vsel %vm774, %v719, 0
        %vm781 = vcmask 1045504
        %v783 = vsel %vm781, %v762, 0
        %v786 = vsel %vm781, %v763, 0
        %v789 = vsel %vm781, %v764, 0
        %v792 = vsel %vm781, %v765, 0
        %v795 = vsel %vm781, %v766, 0
        %v798 = vsel %vm781, %v767, 0
        %800 = vmatprep.subr.bf16.mxu0 %v757
        %801 = vmatpush1.bf16.msra.mxu0 %v756
        %802 = vmatprep.subr.bf16.mxu0 %v786
        %803 = vmatpush1.bf16.msra.mxu0 %v783
        %804 = vmatprep.subr.bf16.mxu0 0
        %805 = vmatpush1.bf16.msra.mxu0 0
        %806 = vmatprep.subr.bf16.mxu0 0
        %807 = vmatpush1.bf16.msra.mxu0 0
        %808 = vmatprep.subr.bf16.mxu0 0
        %809 = vmatpush1.bf16.msra.mxu0 0
        %810 = vmatprep.subr.bf16.mxu0 0
        %811 = vmatpush1.bf16.msra.mxu0 0
        %812 = vmatprep.subr.bf16.mxu0 0
        %813 = vmatpush1.bf16.msra.mxu0 0
        %814 = vmatprep.subr.bf16.mxu0 0
        %815 = vmatpush1.bf16.msra.mxu0 0
        %816 = vmatprep.subr.bf16.mxu0 0
        %817 = vmatpush1.bf16.msra.mxu0 0
        %818 = vmatprep.subr.bf16.mxu0 0
        %819 = vmatpush1.bf16.msra.mxu0 0
        %820 = vmatprep.subr.bf16.mxu0 0
        %821 = vmatpush1.bf16.msra.mxu0 0
        %822 = vmatprep.subr.bf16.mxu0 0
        %823 = vmatpush1.bf16.msra.mxu0 0
        %824 = vmatprep.subr.bf16.mxu0 0
        %825 = vmatpush1.bf16.msra.mxu0 0
        %826 = vmatprep.subr.bf16.mxu0 0
        %827 = vmatpush1.bf16.msra.mxu0 0
        %828 = vmatprep.subr.bf16.mxu0 0
        %829 = vmatpush1.bf16.msra.mxu0 0
        %830 = vmatprep.subr.bf16.mxu0 0
        %831 = vmatpush1.bf16.msra.mxu0 0
        %832 = vmatprep.mubr.bf16.mxu0 0
        %833 = vmatmul.mubr.bf16.gmra.mrb[0].mxu0 %v776
        %v834 = vpop.f32.mrb[0].mxu0
        %v835 = vadd.f32 0.0, %v834
        %v836 = vpop.f32.mrb[0].mxu0
        %v837 = vadd.f32 0.0, %v836
        %v838 = vpop.f32.mrb[0].mxu0
        %v839 = vadd.f32 0.0, %v838
        %v840 = vpop.f32.mrb[0].mxu0
        %v841 = vadd.f32 0.0, %v840
        %842 = vmatprep.mubr.bf16.mxu0 0
        %843 = vmatmul.mubr.bf16.gmra.mrb[0].mxu0 %v779
        %v844 = vpop.f32.mrb[0].mxu0
        %v845 = vadd.f32 0.0, %v844
        %v846 = vpop.f32.mrb[0].mxu0
        %v847 = vadd.f32 0.0, %v846
        %v848 = vpop.f32.mrb[0].mxu0
        %v849 = vpop.f32.mrb[0].mxu0
        %850 = vdwg.mxu0
        %851 = vmatprep.subr.bf16.mxu0 %v759
        %852 = vmatpush1.bf16.msra.mxu0 %v758
        %853 = vmatprep.subr.bf16.mxu0 %v792
        %854 = vmatpush1.bf16.msra.mxu0 %v789
        %855 = vmatprep.subr.bf16.mxu0 0
        %856 = vmatpush1.bf16.msra.mxu0 0
        %857 = vmatprep.subr.bf16.mxu0 0
        %858 = vmatpush1.bf16.msra.mxu0 0
        %859 = vmatprep.subr.bf16.mxu0 0
        %860 = vmatpush1.bf16.msra.mxu0 0
        %861 = vmatprep.subr.bf16.mxu0 0
        %862 = vmatpush1.bf16.msra.mxu0 0
        %863 = vmatprep.subr.bf16.mxu0 0
        %864 = vmatpush1.bf16.msra.mxu0 0
        %865 = vmatprep.subr.bf16.mxu0 0
        %866 = vmatpush1.bf16.msra.mxu0 0
        %867 = vmatprep.subr.bf16.mxu0 0
        %868 = vmatpush1.bf16.msra.mxu0 0
        %869 = vmatprep.subr.bf16.mxu0 0
        %870 = vmatpush1.bf16.msra.mxu0 0
        %871 = vmatprep.subr.bf16.mxu0 0
        %872 = vmatpush1.bf16.msra.mxu0 0
        %873 = vmatprep.subr.bf16.mxu0 0
        %874 = vmatpush1.bf16.msra.mxu0 0
        %875 = vmatprep.subr.bf16.mxu0 0
        %876 = vmatpush1.bf16.msra.mxu0 0
        %877 = vmatprep.subr.bf16.mxu0 0
        %878 = vmatpush1.bf16.msra.mxu0 0
        %879 = vmatprep.subr.bf16.mxu0 0
        %880 = vmatpush1.bf16.msra.mxu0 0
        %881 = vmatprep.subr.bf16.mxu0 0
        %882 = vmatpush1.bf16.msra.mxu0 0
        %883 = vmatprep.mubr.bf16.mxu0 0
        %884 = vmatmul.mubr.bf16.gmra.mrb[0].mxu0 %v776
        %v885 = vpop.f32.mrb[0].mxu0
        %v886 = vadd.f32 0.0, %v885
        %v887 = vpop.f32.mrb[0].mxu0
        %v888 = vadd.f32 0.0, %v887
        %v889 = vpop.f32.mrb[0].mxu0
        %v890 = vadd.f32 0.0, %v889
        %v891 = vpop.f32.mrb[0].mxu0
        %v892 = vadd.f32 0.0, %v891
        %893 = vmatprep.mubr.bf16.mxu0 0
        %894 = vmatmul.mubr.bf16.gmra.mrb[0].mxu0 %v779
        %v895 = vpop.f32.mrb[0].mxu0
        %v896 = vadd.f32 0.0, %v895
        %v897 = vpop.f32.mrb[0].mxu0
        %v898 = vadd.f32 0.0, %v897
        %v899 = vpop.f32.mrb[0].mxu0
        %v900 = vpop.f32.mrb[0].mxu0
        %901 = vdwg.mxu0
        %902 = vmatprep.subr.bf16.mxu0 %v761
        %903 = vmatpush1.bf16.msra.mxu0 %v760
        %904 = vmatprep.subr.bf16.mxu0 %v798
        %905 = vmatpush1.bf16.msra.mxu0 %v795
        %906 = vmatprep.subr.bf16.mxu0 0
        %907 = vmatpush1.bf16.msra.mxu0 0
        %908 = vmatprep.subr.bf16.mxu0 0
        %909 = vmatpush1.bf16.msra.mxu0 0
        %910 = vmatprep.subr.bf16.mxu0 0
        %911 = vmatpush1.bf16.msra.mxu0 0
        %912 = vmatprep.subr.bf16.mxu0 0
        %913 = vmatpush1.bf16.msra.mxu0 0
        %914 = vmatprep.subr.bf16.mxu0 0
        %915 = vmatpush1.bf16.msra.mxu0 0
        %916 = vmatprep.subr.bf16.mxu0 0
        %917 = vmatpush1.bf16.msra.mxu0 0
        %918 = vmatprep.subr.bf16.mxu0 0
        %919 = vmatpush1.bf16.msra.mxu0 0
        %920 = vmatprep.subr.bf16.mxu0 0
        %921 = vmatpush1.bf16.msra.mxu0 0
        %922 = vmatprep.subr.bf16.mxu0 0
        %923 = vmatpush1.bf16.msra.mxu0 0
        %924 = vmatprep.subr.bf16.mxu0 0
        %925 = vmatpush1.bf16.msra.mxu0 0
        %926 = vmatprep.subr.bf16.mxu0 0
        %927 = vmatpush1.bf16.msra.mxu0 0
        %928 = vmatprep.subr.bf16.mxu0 0
        %929 = vmatpush1.bf16.msra.mxu0 0
        %930 = vmatprep.subr.bf16.mxu0 0
        %931 = vmatpush1.bf16.msra.mxu0 0
        %932 = vmatprep.subr.bf16.mxu0 0
        %933 = vmatpush1.bf16.msra.mxu0 0
        %934 = vmatprep.mubr.bf16.mxu0 0
        %935 = vmatmul.mubr.bf16.gmra.mrb[0].mxu0 %v776
        %v936 = vpop.f32.mrb[0].mxu0
        %v937 = vadd.f32 0.0, %v936
        %v938 = vpop.f32.mrb[0].mxu0
        %v939 = vadd.f32 0.0, %v938
        %v940 = vpop.f32.mrb[0].mxu0
        %v941 = vadd.f32 0.0, %v940
        %v942 = vpop.f32.mrb[0].mxu0
        %v943 = vadd.f32 0.0, %v942
        %944 = vmatprep.mubr.bf16.mxu0 0
        %945 = vmatmul.mubr.bf16.gmra.mrb[0].mxu0 %v779
        %v946 = vpop.f32.mrb[0].mxu0
        %v947 = vadd.f32 0.0, %v946
        %v948 = vpop.f32.mrb[0].mxu0
        %v949 = vadd.f32 0.0, %v948
        %v950 = vpop.f32.mrb[0].mxu0
        %v951 = vpop.f32.mrb[0].mxu0
        %952 = vdwg.mxu0
        %v965 = vunpack.c.l.b16 %v678
        %v966 = vunpack.c.h.b16 %v678
        %v967 = vunpack.c.l.b16 %v679
        %v968 = vunpack.c.h.b16 %v679
        %v969 = vunpack.c.l.b16 %v680
        %v970 = vunpack.c.h.b16 %v680
        %v971 = vunpack.c.l.b16 %v681
        %v972 = vunpack.c.h.b16 %v681
        %v973 = vunpack.c.l.b16 %v682
        %v974 = vunpack.c.h.b16 %v682
        %v975 = vunpack.c.l.b16 %v683
        %v976 = vunpack.c.h.b16 %v683
        %v977 = vunpack.c.l.b16 %v684
        %v978 = vunpack.c.h.b16 %v684
        %v979 = vunpack.c.l.b16 %v685
        %v980 = vunpack.c.h.b16 %v685
        %v981 = vunpack.c.l.b16 %v686
        %v982 = vunpack.c.h.b16 %v686
        %v983 = vunpack.c.l.b16 %v687
        %v984 = vunpack.c.h.b16 %v687
        %v985 = vunpack.c.l.b16 %v688
        %v986 = vunpack.c.h.b16 %v688
        %v987 = vunpack.c.l.b16 %v689
        %v988 = vunpack.c.h.b16 %v689
        %v989 = vpack.c.b16 %v971, %v965
        %v990 = vpack.c.b16 %v972, %v966
        %v991 = vpack.c.b16 %v973, %v967
        %v992 = vpack.c.b16 %v974, %v968
        %v993 = vpack.c.b16 %v975, %v969
        %v994 = vpack.c.b16 %v976, %v970
        %v995 = vpack.c.b16 %v983, %v977
        %v996 = vpack.c.b16 %v984, %v978
        %v997 = vpack.c.b16 %v985, %v979
        %v998 = vpack.c.b16 %v986, %v980
        %v999 = vpack.c.b16 %v987, %v981
        %v1000 = vpack.c.b16 %v988, %v982
        %v1007 = vsel %vm774, %v676, 0
        %v1010 = vsel %vm774, %v677, 0
        %v1013 = vsel %vm781, %v995, 0
        %v1016 = vsel %vm781, %v996, 0
        %v1019 = vsel %vm781, %v997, 0
        %v1022 = vsel %vm781, %v998, 0
        %v1025 = vsel %vm781, %v999, 0
        %v1028 = vsel %vm781, %v1000, 0
        %1030 = vmatprep.subr.bf16.mxu0 %v990
        %1031 = vmatpush1.bf16.msra.mxu0 %v989
        %1032 = vmatprep.subr.bf16.mxu0 %v1016
        %1033 = vmatpush1.bf16.msra.mxu0 %v1013
        %1034 = vmatprep.subr.bf16.mxu0 0
        %1035 = vmatpush1.bf16.msra.mxu0 0
        %1036 = vmatprep.subr.bf16.mxu0 0
        %1037 = vmatpush1.bf16.msra.mxu0 0
        %1038 = vmatprep.subr.bf16.mxu0 0
        %1039 = vmatpush1.bf16.msra.mxu0 0
        %1040 = vmatprep.subr.bf16.mxu0 0
        %1041 = vmatpush1.bf16.msra.mxu0 0
        %1042 = vmatprep.subr.bf16.mxu0 0
        %1043 = vmatpush1.bf16.msra.mxu0 0
        %1044 = vmatprep.subr.bf16.mxu0 0
        %1045 = vmatpush1.bf16.msra.mxu0 0
        %1046 = vmatprep.subr.bf16.mxu0 0
        %1047 = vmatpush1.bf16.msra.mxu0 0
        %1048 = vmatprep.subr.bf16.mxu0 0
        %1049 = vmatpush1.bf16.msra.mxu0 0
        %1050 = vmatprep.subr.bf16.mxu0 0
        %1051 = vmatpush1.bf16.msra.mxu0 0
        %1052 = vmatprep.subr.bf16.mxu0 0
        %1053 = vmatpush1.bf16.msra.mxu0 0
        %1054 = vmatprep.subr.bf16.mxu0 0
        %1055 = vmatpush1.bf16.msra.mxu0 0
        %1056 = vmatprep.subr.bf16.mxu0 0
        %1057 = vmatpush1.bf16.msra.mxu0 0
        %1058 = vmatprep.subr.bf16.mxu0 0
        %1059 = vmatpush1.bf16.msra.mxu0 0
        %1060 = vmatprep.subr.bf16.mxu0 0
        %1061 = vmatpush1.bf16.msra.mxu0 0
        %1062 = vmatprep.mubr.bf16.mxu0 0
        %1063 = vmatmul.mubr.bf16.gmra.mrb[0].mxu0 %v1007
        %v1064 = vpop.f32.mrb[0].mxu0
        %v1065 = vadd.f32 %v835, %v1064
        %v1066 = vpop.f32.mrb[0].mxu0
        %v1067 = vadd.f32 %v837, %v1066
        %v1068 = vpop.f32.mrb[0].mxu0
        %v1069 = vadd.f32 %v839, %v1068
        %v1070 = vpop.f32.mrb[0].mxu0
        %v1071 = vadd.f32 %v841, %v1070
        %1072 = vmatprep.mubr.bf16.mxu0 0
        %1073 = vmatmul.mubr.bf16.gmra.mrb[0].mxu0 %v1010
        %v1074 = vpop.f32.mrb[0].mxu0
        %v1075 = vadd.f32 %v845, %v1074
        %v1076 = vpop.f32.mrb[0].mxu0
        %v1077 = vadd.f32 %v847, %v1076
        %v1078 = vpop.f32.mrb[0].mxu0
        %v1079 = vpop.f32.mrb[0].mxu0
        %1080 = vdwg.mxu0
        %1081 = vmatprep.subr.bf16.mxu0 %v992
        %1082 = vmatpush1.bf16.msra.mxu0 %v991
        %1083 = vmatprep.subr.bf16.mxu0 %v1022
        %1084 = vmatpush1.bf16.msra.mxu0 %v1019
        %1085 = vmatprep.subr.bf16.mxu0 0
        %1086 = vmatpush1.bf16.msra.mxu0 0
        %1087 = vmatprep.subr.bf16.mxu0 0
        %1088 = vmatpush1.bf16.msra.mxu0 0
        %1089 = vmatprep.subr.bf16.mxu0 0
        %1090 = vmatpush1.bf16.msra.mxu0 0
        %1091 = vmatprep.subr.bf16.mxu0 0
        %1092 = vmatpush1.bf16.msra.mxu0 0
        %1093 = vmatprep.subr.bf16.mxu0 0
        %1094 = vmatpush1.bf16.msra.mxu0 0
        %1095 = vmatprep.subr.bf16.mxu0 0
        %1096 = vmatpush1.bf16.msra.mxu0 0
        %1097 = vmatprep.subr.bf16.mxu0 0
        %1098 = vmatpush1.bf16.msra.mxu0 0
        %1099 = vmatprep.subr.bf16.mxu0 0
        %1100 = vmatpush1.bf16.msra.mxu0 0
        %1101 = vmatprep.subr.bf16.mxu0 0
        %1102 = vmatpush1.bf16.msra.mxu0 0
        %1103 = vmatprep.subr.bf16.mxu0 0
        %1104 = vmatpush1.bf16.msra.mxu0 0
        %1105 = vmatprep.subr.bf16.mxu0 0
        %1106 = vmatpush1.bf16.msra.mxu0 0
        %1107 = vmatprep.subr.bf16.mxu0 0
        %1108 = vmatpush1.bf16.msra.mxu0 0
        %1109 = vmatprep.subr.bf16.mxu0 0
        %1110 = vmatpush1.bf16.msra.mxu0 0
        %1111 = vmatprep.subr.bf16.mxu0 0
        %1112 = vmatpush1.bf16.msra.mxu0 0
        %1113 = vmatprep.mubr.bf16.mxu0 0
        %1114 = vmatmul.mubr.bf16.gmra.mrb[0].mxu0 %v1007
        %v1115 = vpop.f32.mrb[0].mxu0
        %v1116 = vadd.f32 %v886, %v1115
        %v1117 = vpop.f32.mrb[0].mxu0
        %v1118 = vadd.f32 %v888, %v1117
        %v1119 = vpop.f32.mrb[0].mxu0
        %v1120 = vadd.f32 %v890, %v1119
        %v1121 = vpop.f32.mrb[0].mxu0
        %v1122 = vadd.f32 %v892, %v1121
        %1123 = vmatprep.mubr.bf16.mxu0 0
        %1124 = vmatmul.mubr.bf16.gmra.mrb[0].mxu0 %v1010
        %v1125 = vpop.f32.mrb[0].mxu0
        %v1126 = vadd.f32 %v896, %v1125
        %v1127 = vpop.f32.mrb[0].mxu0
        %v1128 = vadd.f32 %v898, %v1127
        %v1129 = vpop.f32.mrb[0].mxu0
        %v1130 = vpop.f32.mrb[0].mxu0
        %1131 = vdwg.mxu0
        %1132 = vmatprep.subr.bf16.mxu0 %v994
        %1133 = vmatpush1.bf16.msra.mxu0 %v993
        %1134 = vmatprep.subr.bf16.mxu0 %v1028
        %1135 = vmatpush1.bf16.msra.mxu0 %v1025
        %1136 = vmatprep.subr.bf16.mxu0 0
        %1137 = vmatpush1.bf16.msra.mxu0 0
        %1138 = vmatprep.subr.bf16.mxu0 0
        %1139 = vmatpush1.bf16.msra.mxu0 0
        %1140 = vmatprep.subr.bf16.mxu0 0
        %1141 = vmatpush1.bf16.msra.mxu0 0
        %1142 = vmatprep.subr.bf16.mxu0 0
        %1143 = vmatpush1.bf16.msra.mxu0 0
        %1144 = vmatprep.subr.bf16.mxu0 0
        %1145 = vmatpush1.bf16.msra.mxu0 0
        %1146 = vmatprep.subr.bf16.mxu0 0
        %1147 = vmatpush1.bf16.msra.mxu0 0
        %1148 = vmatprep.subr.bf16.mxu0 0
        %1149 = vmatpush1.bf16.msra.mxu0 0
        %1150 = vmatprep.subr.bf16.mxu0 0
        %1151 = vmatpush1.bf16.msra.mxu0 0
        %1152 = vmatprep.subr.bf16.mxu0 0
        %1153 = vmatpush1.bf16.msra.mxu0 0
        %1154 = vmatprep.subr.bf16.mxu0 0
        %1155 = vmatpush1.bf16.msra.mxu0 0
        %1156 = vmatprep.subr.bf16.mxu0 0
        %1157 = vmatpush1.bf16.msra.mxu0 0
        %1158 = vmatprep.subr.bf16.mxu0 0
        %1159 = vmatpush1.bf16.msra.mxu0 0
        %1160 = vmatprep.subr.bf16.mxu0 0
        %1161 = vmatpush1.bf16.msra.mxu0 0
        %1162 = vmatprep.subr.bf16.mxu0 0
        %1163 = vmatpush1.bf16.msra.mxu0 0
        %1164 = vmatprep.mubr.bf16.mxu0 0
        %1165 = vmatmul.mubr.bf16.gmra.mrb[0].mxu0 %v1007
        %v1166 = vpop.f32.mrb[0].mxu0
        %v1167 = vadd.f32 %v937, %v1166
        %v1168 = vpop.f32.mrb[0].mxu0
        %v1169 = vadd.f32 %v939, %v1168
        %v1170 = vpop.f32.mrb[0].mxu0
        %v1171 = vadd.f32 %v941, %v1170
        %v1172 = vpop.f32.mrb[0].mxu0
        %v1173 = vadd.f32 %v943, %v1172
        %1174 = vmatprep.mubr.bf16.mxu0 0
        %1175 = vmatmul.mubr.bf16.gmra.mrb[0].mxu0 %v1010
        %v1176 = vpop.f32.mrb[0].mxu0
        %v1177 = vadd.f32 %v947, %v1176
        %v1178 = vpop.f32.mrb[0].mxu0
        %v1179 = vadd.f32 %v949, %v1178
        %v1180 = vpop.f32.mrb[0].mxu0
        %v1181 = vpop.f32.mrb[0].mxu0
        %1182 = vdwg.mxu0
        %s1183 = scalar_lea.vmem [#allocation2], 192
        %v1184 = vld [vmem:[%s1183] sm:$0xff]
        %v1185 = vld [vmem:[%s1183 + $0x8] sm:$0xff]
        %v1186 = vld [vmem:[%s1183 + $0x10] sm:$0xff]
        %v1187 = vld [vmem:[%s1183 + $0x18] sm:$0xff]
        %v1188 = vld [vmem:[%s1183 + $0x20] sm:$0xff]
        %v1189 = vld [vmem:[%s1183 + $0x28] sm:$0xff]
        %v1190 = vld [vmem:[%s1183 + $0x30] sm:$0xff]
        %v1191 = vld [vmem:[%s1183 + $0x38] sm:$0xff]
        %v1192 = vld [vmem:[%s1183 + $0x40] sm:$0xff]
        %v1193 = vld [vmem:[%s1183 + $0x48] sm:$0x33]
        %v1194 = vld [vmem:[%s1183 + $0x50] sm:$0x33]
        %v1195 = vld [vmem:[%s1183 + $0x58] sm:$0x33]
        %vm1198 = vcmask 1046528
        %v1199 = vrot.slane %v676, 1
        %v1200 = vrot.slane %v690, 1
        %v1201 = vsel %vm1198, %v1199, %v1200
        %v1214 = vunpack.c.l.b16 %v1184
        %v1215 = vunpack.c.h.b16 %v1184
        %v1216 = vunpack.c.l.b16 %v1185
        %v1217 = vunpack.c.h.b16 %v1185
        %v1218 = vunpack.c.l.b16 %v1186
        %v1219 = vunpack.c.h.b16 %v1186
        %v1220 = vunpack.c.l.b16 %v1187
        %v1221 = vunpack.c.h.b16 %v1187
        %v1222 = vunpack.c.l.b16 %v1188
        %v1223 = vunpack.c.h.b16 %v1188
        %v1224 = vunpack.c.l.b16 %v1189
        %v1225 = vunpack.c.h.b16 %v1189
        %v1226 = vunpack.c.l.b16 %v1190
        %v1227 = vunpack.c.h.b16 %v1190
        %v1228 = vunpack.c.l.b16 %v1191
        %v1229 = vunpack.c.h.b16 %v1191
        %v1230 = vunpack.c.l.b16 %v1192
        %v1231 = vunpack.c.h.b16 %v1192
        %v1232 = vunpack.c.l.b16 %v1193
        %v1233 = vunpack.c.h.b16 %v1193
        %v1234 = vunpack.c.l.b16 %v1194
        %v1235 = vunpack.c.h.b16 %v1194
        %v1236 = vunpack.c.l.b16 %v1195
        %v1237 = vunpack.c.h.b16 %v1195
        %v1238 = vpack.c.b16 %v1220, %v1214
        %v1239 = vpack.c.b16 %v1221, %v1215
        %v1240 = vpack.c.b16 %v1222, %v1216
        %v1241 = vpack.c.b16 %v1223, %v1217
        %v1242 = vpack.c.b16 %v1224, %v1218
        %v1243 = vpack.c.b16 %v1225, %v1219
        %v1244 = vpack.c.b16 %v1232, %v1226
        %v1245 = vpack.c.b16 %v1233, %v1227
        %v1246 = vpack.c.b16 %v1234, %v1228
        %v1247 = vpack.c.b16 %v1235, %v1229
        %v1248 = vpack.c.b16 %v1236, %v1230
        %v1249 = vpack.c.b16 %v1237, %v1231
        %v1257 = vsel %vm774, %v1201, 0
        %v1260 = vsel %vm774, %v1200, 0
        %v1263 = vsel %vm781, %v1244, 0
        %v1266 = vsel %vm781, %v1245, 0
        %v1269 = vsel %vm781, %v1246, 0
        %v1272 = vsel %vm781, %v1247, 0
        %v1275 = vsel %vm781, %v1248, 0
        %v1278 = vsel %vm781, %v1249, 0
        %1280 = vmatprep.subr.bf16.mxu0 %v1239
        %1281 = vmatpush1.bf16.msra.mxu0 %v1238
        %1282 = vmatprep.subr.bf16.mxu0 %v1266
        %1283 = vmatpush1.bf16.msra.mxu0 %v1263
        %1284 = vmatprep.subr.bf16.mxu0 0
        %1285 = vmatpush1.bf16.msra.mxu0 0
        %1286 = vmatprep.subr.bf16.mxu0 0
        %1287 = vmatpush1.bf16.msra.mxu0 0
        %1288 = vmatprep.subr.bf16.mxu0 0
        %1289 = vmatpush1.bf16.msra.mxu0 0
        %1290 = vmatprep.subr.bf16.mxu0 0
        %1291 = vmatpush1.bf16.msra.mxu0 0
        %1292 = vmatprep.subr.bf16.mxu0 0
        %1293 = vmatpush1.bf16.msra.mxu0 0
        %1294 = vmatprep.subr.bf16.mxu0 0
        %1295 = vmatpush1.bf16.msra.mxu0 0
        %1296 = vmatprep.subr.bf16.mxu0 0
        %1297 = vmatpush1.bf16.msra.mxu0 0
        %1298 = vmatprep.subr.bf16.mxu0 0
        %1299 = vmatpush1.bf16.msra.mxu0 0
        %1300 = vmatprep.subr.bf16.mxu0 0
        %1301 = vmatpush1.bf16.msra.mxu0 0
        %1302 = vmatprep.subr.bf16.mxu0 0
        %1303 = vmatpush1.bf16.msra.mxu0 0
        %1304 = vmatprep.subr.bf16.mxu0 0
        %1305 = vmatpush1.bf16.msra.mxu0 0
        %1306 = vmatprep.subr.bf16.mxu0 0
        %1307 = vmatpush1.bf16.msra.mxu0 0
        %1308 = vmatprep.subr.bf16.mxu0 0
        %1309 = vmatpush1.bf16.msra.mxu0 0
        %1310 = vmatprep.subr.bf16.mxu0 0
        %1311 = vmatpush1.bf16.msra.mxu0 0
        %1312 = vmatprep.mubr.bf16.mxu0 0
        %1313 = vmatmul.mubr.bf16.gmra.mrb[0].mxu0 %v1257
        %v1314 = vpop.f32.mrb[0].mxu0
        %v1315 = vadd.f32 0.0, %v1314
        %v1316 = vpop.f32.mrb[0].mxu0
        %v1317 = vadd.f32 0.0, %v1316
        %v1318 = vpop.f32.mrb[0].mxu0
        %v1319 = vadd.f32 0.0, %v1318
        %v1320 = vpop.f32.mrb[0].mxu0
        %v1321 = vadd.f32 0.0, %v1320
        %1322 = vmatprep.mubr.bf16.mxu0 0
        %1323 = vmatmul.mubr.bf16.gmra.mrb[0].mxu0 %v1260
        %v1324 = vpop.f32.mrb[0].mxu0
        %v1325 = vadd.f32 0.0, %v1324
        %v1326 = vpop.f32.mrb[0].mxu0
        %v1327 = vadd.f32 0.0, %v1326
        %v1328 = vpop.f32.mrb[0].mxu0
        %v1329 = vpop.f32.mrb[0].mxu0
        %1330 = vdwg.mxu0
        %1331 = vmatprep.subr.bf16.mxu0 %v1241
        %1332 = vmatpush1.bf16.msra.mxu0 %v1240
        %1333 = vmatprep.subr.bf16.mxu0 %v1272
        %1334 = vmatpush1.bf16.msra.mxu0 %v1269
        %1335 = vmatprep.subr.bf16.mxu0 0
        %1336 = vmatpush1.bf16.msra.mxu0 0
        %1337 = vmatprep.subr.bf16.mxu0 0
        %1338 = vmatpush1.bf16.msra.mxu0 0
        %1339 = vmatprep.subr.bf16.mxu0 0
        %1340 = vmatpush1.bf16.msra.mxu0 0
        %1341 = vmatprep.subr.bf16.mxu0 0
        %1342 = vmatpush1.bf16.msra.mxu0 0
        %1343 = vmatprep.subr.bf16.mxu0 0
        %1344 = vmatpush1.bf16.msra.mxu0 0
        %1345 = vmatprep.subr.bf16.mxu0 0
        %1346 = vmatpush1.bf16.msra.mxu0 0
        %1347 = vmatprep.subr.bf16.mxu0 0
        %1348 = vmatpush1.bf16.msra.mxu0 0
        %1349 = vmatprep.subr.bf16.mxu0 0
        %1350 = vmatpush1.bf16.msra.mxu0 0
        %1351 = vmatprep.subr.bf16.mxu0 0
        %1352 = vmatpush1.bf16.msra.mxu0 0
        %1353 = vmatprep.subr.bf16.mxu0 0
        %1354 = vmatpush1.bf16.msra.mxu0 0
        %1355 = vmatprep.subr.bf16.mxu0 0
        %1356 = vmatpush1.bf16.msra.mxu0 0
        %1357 = vmatprep.subr.bf16.mxu0 0
        %1358 = vmatpush1.bf16.msra.mxu0 0
        %1359 = vmatprep.subr.bf16.mxu0 0
        %1360 = vmatpush1.bf16.msra.mxu0 0
        %1361 = vmatprep.subr.bf16.mxu0 0
        %1362 = vmatpush1.bf16.msra.mxu0 0
        %1363 = vmatprep.mubr.bf16.mxu0 0
        %1364 = vmatmul.mubr.bf16.gmra.mrb[0].mxu0 %v1257
        %v1365 = vpop.f32.mrb[0].mxu0
        %v1366 = vadd.f32 0.0, %v1365
        %v1367 = vpop.f32.mrb[0].mxu0
        %v1368 = vadd.f32 0.0, %v1367
        %v1369 = vpop.f32.mrb[0].mxu0
        %v1370 = vadd.f32 0.0, %v1369
        %v1371 = vpop.f32.mrb[0].mxu0
        %v1372 = vadd.f32 0.0, %v1371
        %1373 = vmatprep.mubr.bf16.mxu0 0
        %1374 = vmatmul.mubr.bf16.gmra.mrb[0].mxu0 %v1260
        %v1375 = vpop.f32.mrb[0].mxu0
        %v1376 = vadd.f32 0.0, %v1375
        %v1377 = vpop.f32.mrb[0].mxu0
        %v1378 = vadd.f32 0.0, %v1377
        %v1379 = vpop.f32.mrb[0].mxu0
        %v1380 = vpop.f32.mrb[0].mxu0
        %1381 = vdwg.mxu0
        %1382 = vmatprep.subr.bf16.mxu0 %v1243
        %1383 = vmatpush1.bf16.msra.mxu0 %v1242
        %1384 = vmatprep.subr.bf16.mxu0 %v1278
        %1385 = vmatpush1.bf16.msra.mxu0 %v1275
        %1386 = vmatprep.subr.bf16.mxu0 0
        %1387 = vmatpush1.bf16.msra.mxu0 0
        %1388 = vmatprep.subr.bf16.mxu0 0
        %1389 = vmatpush1.bf16.msra.mxu0 0
        %1390 = vmatprep.subr.bf16.mxu0 0
        %1391 = vmatpush1.bf16.msra.mxu0 0
        %1392 = vmatprep.subr.bf16.mxu0 0
        %1393 = vmatpush1.bf16.msra.mxu0 0
        %1394 = vmatprep.subr.bf16.mxu0 0
        %1395 = vmatpush1.bf16.msra.mxu0 0
        %1396 = vmatprep.subr.bf16.mxu0 0
        %1397 = vmatpush1.bf16.msra.mxu0 0
        %1398 = vmatprep.subr.bf16.mxu0 0
        %1399 = vmatpush1.bf16.msra.mxu0 0
        %1400 = vmatprep.subr.bf16.mxu0 0
        %1401 = vmatpush1.bf16.msra.mxu0 0
        %1402 = vmatprep.subr.bf16.mxu0 0
        %1403 = vmatpush1.bf16.msra.mxu0 0
        %1404 = vmatprep.subr.bf16.mxu0 0
        %1405 = vmatpush1.bf16.msra.mxu0 0
        %1406 = vmatprep.subr.bf16.mxu0 0
        %1407 = vmatpush1.bf16.msra.mxu0 0
        %1408 = vmatprep.subr.bf16.mxu0 0
        %1409 = vmatpush1.bf16.msra.mxu0 0
        %1410 = vmatprep.subr.bf16.mxu0 0
        %1411 = vmatpush1.bf16.msra.mxu0 0
        %1412 = vmatprep.subr.bf16.mxu0 0
        %1413 = vmatpush1.bf16.msra.mxu0 0
        %1414 = vmatprep.mubr.bf16.mxu0 0
        %1415 = vmatmul.mubr.bf16.gmra.mrb[0].mxu0 %v1257
        %v1416 = vpop.f32.mrb[0].mxu0
        %v1417 = vadd.f32 0.0, %v1416
        %v1418 = vpop.f32.mrb[0].mxu0
        %v1419 = vadd.f32 0.0, %v1418
        %v1420 = vpop.f32.mrb[0].mxu0
        %v1421 = vadd.f32 0.0, %v1420
        %v1422 = vpop.f32.mrb[0].mxu0
        %v1423 = vadd.f32 0.0, %v1422
        %1424 = vmatprep.mubr.bf16.mxu0 0
        %1425 = vmatmul.mubr.bf16.gmra.mrb[0].mxu0 %v1260
        %v1426 = vpop.f32.mrb[0].mxu0
        %v1427 = vadd.f32 0.0, %v1426
        %v1428 = vpop.f32.mrb[0].mxu0
        %v1429 = vadd.f32 0.0, %v1428
        %v1430 = vpop.f32.mrb[0].mxu0
        %v1431 = vpop.f32.mrb[0].mxu0
        %1432 = vdwg.mxu0
        %v1433 = vadd.f32 %v1065, %v1315
        %v1434 = vadd.f32 %v1067, %v1317
        %v1435 = vadd.f32 %v1116, %v1366
        %v1436 = vadd.f32 %v1118, %v1368
        %v1437 = vadd.f32 %v1167, %v1417
        %v1438 = vadd.f32 %v1169, %v1419
        %v1439 = vadd.f32 %v1069, %v1319
        %v1440 = vadd.f32 %v1071, %v1321
        %v1441 = vadd.f32 %v1120, %v1370
        %v1442 = vadd.f32 %v1122, %v1372
        %v1443 = vadd.f32 %v1171, %v1421
        %v1444 = vadd.f32 %v1173, %v1423
        %v1445 = vadd.f32 %v1075, %v1325
        %v1446 = vadd.f32 %v1077, %v1327
        %v1447 = vadd.f32 %v1126, %v1376
        %v1448 = vadd.f32 %v1128, %v1378
        %v1449 = vadd.f32 %v1177, %v1427
        %v1450 = vadd.f32 %v1179, %v1429
        %s1451 = scalar_lea.vmem [#allocation2], 288
        %v1452 = vld [vmem:[%s1451] sm:$0xff]
        %v1453 = vld [vmem:[%s1451 + $0x8] sm:$0xff]
        %v1454 = vld [vmem:[%s1451 + $0x10] sm:$0xff]
        %v1455 = vld [vmem:[%s1451 + $0x18] sm:$0xff]
        %v1456 = vld [vmem:[%s1451 + $0x20] sm:$0xff]
        %v1457 = vld [vmem:[%s1451 + $0x28] sm:$0xff]
        %v1458 = vld [vmem:[%s1451 + $0x30] sm:$0xff]
        %v1459 = vld [vmem:[%s1451 + $0x38] sm:$0xff]
        %v1460 = vld [vmem:[%s1451 + $0x40] sm:$0xff]
        %v1461 = vld [vmem:[%s1451 + $0x48] sm:$0x33]
        %v1462 = vld [vmem:[%s1451 + $0x50] sm:$0x33]
        %v1463 = vld [vmem:[%s1451 + $0x58] sm:$0x33]
        %vm1464 = vsmask.f32 6400
        %v1465 = vrot.slane %v706, 1
        %v1466 = vrot.slane %v708, 2
        %v1467 = vor.u32 %v1465, %v1466
        %v1468 = vrot.slane %v717, 1
        %v1469 = vrot.slane %v713, 2
        %v1470 = vor.u32 %v1468, %v1469
        %v1471 = vsel %vm1464, %v1467, %v1470
        %v1484 = vunpack.c.l.b16 %v1452
        %v1485 = vunpack.c.h.b16 %v1452
        %v1486 = vunpack.c.l.b16 %v1453
        %v1487 = vunpack.c.h.b16 %v1453
        %v1488 = vunpack.c.l.b16 %v1454
        %v1489 = vunpack.c.h.b16 %v1454
        %v1490 = vunpack.c.l.b16 %v1455
        %v1491 = vunpack.c.h.b16 %v1455
        %v1492 = vunpack.c.l.b16 %v1456
        %v1493 = vunpack.c.h.b16 %v1456
        %v1494 = vunpack.c.l.b16 %v1457
        %v1495 = vunpack.c.h.b16 %v1457
        %v1496 = vunpack.c.l.b16 %v1458
        %v1497 = vunpack.c.h.b16 %v1458
        %v1498 = vunpack.c.l.b16 %v1459
        %v1499 = vunpack.c.h.b16 %v1459
        %v1500 = vunpack.c.l.b16 %v1460
        %v1501 = vunpack.c.h.b16 %v1460
        %v1502 = vunpack.c.l.b16 %v1461
        %v1503 = vunpack.c.h.b16 %v1461
        %v1504 = vunpack.c.l.b16 %v1462
        %v1505 = vunpack.c.h.b16 %v1462
        %v1506 = vunpack.c.l.b16 %v1463
        %v1507 = vunpack.c.h.b16 %v1463
        %v1508 = vpack.c.b16 %v1490, %v1484
        %v1509 = vpack.c.b16 %v1491, %v1485
        %v1510 = vpack.c.b16 %v1492, %v1486
        %v1511 = vpack.c.b16 %v1493, %v1487
        %v1512 = vpack.c.b16 %v1494, %v1488
        %v1513 = vpack.c.b16 %v1495, %v1489
        %v1514 = vpack.c.b16 %v1502, %v1496
        %v1515 = vpack.c.b16 %v1503, %v1497
        %v1516 = vpack.c.b16 %v1504, %v1498
        %v1517 = vpack.c.b16 %v1505, %v1499
        %v1518 = vpack.c.b16 %v1506, %v1500
        %v1519 = vpack.c.b16 %v1507, %v1501
        %v1527 = vsel %vm774, %v1471, 0
        %v1530 = vsel %vm774, %v1470, 0
        %v1533 = vsel %vm781, %v1514, 0
        %v1536 = vsel %vm781, %v1515, 0
        %v1539 = vsel %vm781, %v1516, 0
        %v1542 = vsel %vm781, %v1517, 0
        %v1545 = vsel %vm781, %v1518, 0
        %v1548 = vsel %vm781, %v1519, 0
        %1550 = vmatprep.subr.bf16.mxu0 %v1509
        %1551 = vmatpush1.bf16.msra.mxu0 %v1508
        %1552 = vmatprep.subr.bf16.mxu0 %v1536
        %1553 = vmatpush1.bf16.msra.mxu0 %v1533
        %1554 = vmatprep.subr.bf16.mxu0 0
        %1555 = vmatpush1.bf16.msra.mxu0 0
        %1556 = vmatprep.subr.bf16.mxu0 0
        %1557 = vmatpush1.bf16.msra.mxu0 0
        %1558 = vmatprep.subr.bf16.mxu0 0
        %1559 = vmatpush1.bf16.msra.mxu0 0
        %1560 = vmatprep.subr.bf16.mxu0 0
        %1561 = vmatpush1.bf16.msra.mxu0 0
        %1562 = vmatprep.subr.bf16.mxu0 0
        %1563 = vmatpush1.bf16.msra.mxu0 0
        %1564 = vmatprep.subr.bf16.mxu0 0
        %1565 = vmatpush1.bf16.msra.mxu0 0
        %1566 = vmatprep.subr.bf16.mxu0 0
        %1567 = vmatpush1.bf16.msra.mxu0 0
        %1568 = vmatprep.subr.bf16.mxu0 0
        %1569 = vmatpush1.bf16.msra.mxu0 0
        %1570 = vmatprep.subr.bf16.mxu0 0
        %1571 = vmatpush1.bf16.msra.mxu0 0
        %1572 = vmatprep.subr.bf16.mxu0 0
        %1573 = vmatpush1.bf16.msra.mxu0 0
        %1574 = vmatprep.subr.bf16.mxu0 0
        %1575 = vmatpush1.bf16.msra.mxu0 0
        %1576 = vmatprep.subr.bf16.mxu0 0
        %1577 = vmatpush1.bf16.msra.mxu0 0
        %1578 = vmatprep.subr.bf16.mxu0 0
        %1579 = vmatpush1.bf16.msra.mxu0 0
        %1580 = vmatprep.subr.bf16.mxu0 0
        %1581 = vmatpush1.bf16.msra.mxu0 0
        %1582 = vmatprep.mubr.bf16.mxu0 0
        %1583 = vmatmul.mubr.bf16.gmra.mrb[0].mxu0 %v1527
        %v1584 = vpop.f32.mrb[0].mxu0
        %v1585 = vadd.f32 0.0, %v1584
        %v1586 = vpop.f32.mrb[0].mxu0
        %v1587 = vadd.f32 0.0, %v1586
        %v1588 = vpop.f32.mrb[0].mxu0
        %v1589 = vadd.f32 0.0, %v1588
        %v1590 = vpop.f32.mrb[0].mxu0
        %v1591 = vadd.f32 0.0, %v1590
        %1592 = vmatprep.mubr.bf16.mxu0 0
        %1593 = vmatmul.mubr.bf16.gmra.mrb[0].mxu0 %v1530
        %v1594 = vpop.f32.mrb[0].mxu0
        %v1595 = vadd.f32 0.0, %v1594
        %v1596 = vpop.f32.mrb[0].mxu0
        %v1597 = vadd.f32 0.0, %v1596
        %v1598 = vpop.f32.mrb[0].mxu0
        %v1599 = vpop.f32.mrb[0].mxu0
        %1600 = vdwg.mxu0
        %1601 = vmatprep.subr.bf16.mxu0 %v1511
        %1602 = vmatpush1.bf16.msra.mxu0 %v1510
        %1603 = vmatprep.subr.bf16.mxu0 %v1542
        %1604 = vmatpush1.bf16.msra.mxu0 %v1539
        %1605 = vmatprep.subr.bf16.mxu0 0
        %1606 = vmatpush1.bf16.msra.mxu0 0
        %1607 = vmatprep.subr.bf16.mxu0 0
        %1608 = vmatpush1.bf16.msra.mxu0 0
        %1609 = vmatprep.subr.bf16.mxu0 0
        %1610 = vmatpush1.bf16.msra.mxu0 0
        %1611 = vmatprep.subr.bf16.mxu0 0
        %1612 = vmatpush1.bf16.msra.mxu0 0
        %1613 = vmatprep.subr.bf16.mxu0 0
        %1614 = vmatpush1.bf16.msra.mxu0 0
        %1615 = vmatprep.subr.bf16.mxu0 0
        %1616 = vmatpush1.bf16.msra.mxu0 0
        %1617 = vmatprep.subr.bf16.mxu0 0
        %1618 = vmatpush1.bf16.msra.mxu0 0
        %1619 = vmatprep.subr.bf16.mxu0 0
        %1620 = vmatpush1.bf16.msra.mxu0 0
        %1621 = vmatprep.subr.bf16.mxu0 0
        %1622 = vmatpush1.bf16.msra.mxu0 0
        %1623 = vmatprep.subr.bf16.mxu0 0
        %1624 = vmatpush1.bf16.msra.mxu0 0
        %1625 = vmatprep.subr.bf16.mxu0 0
        %1626 = vmatpush1.bf16.msra.mxu0 0
        %1627 = vmatprep.subr.bf16.mxu0 0
        %1628 = vmatpush1.bf16.msra.mxu0 0
        %1629 = vmatprep.subr.bf16.mxu0 0
        %1630 = vmatpush1.bf16.msra.mxu0 0
        %1631 = vmatprep.subr.bf16.mxu0 0
        %1632 = vmatpush1.bf16.msra.mxu0 0
        %1633 = vmatprep.mubr.bf16.mxu0 0
        %1634 = vmatmul.mubr.bf16.gmra.mrb[0].mxu0 %v1527
        %v1635 = vpop.f32.mrb[0].mxu0
        %v1636 = vadd.f32 0.0, %v1635
        %v1637 = vpop.f32.mrb[0].mxu0
        %v1638 = vadd.f32 0.0, %v1637
        %v1639 = vpop.f32.mrb[0].mxu0
        %v1640 = vadd.f32 0.0, %v1639
        %v1641 = vpop.f32.mrb[0].mxu0
        %v1642 = vadd.f32 0.0, %v1641
        %1643 = vmatprep.mubr.bf16.mxu0 0
        %1644 = vmatmul.mubr.bf16.gmra.mrb[0].mxu0 %v1530
        %v1645 = vpop.f32.mrb[0].mxu0
        %v1646 = vadd.f32 0.0, %v1645
        %v1647 = vpop.f32.mrb[0].mxu0
        %v1648 = vadd.f32 0.0, %v1647
        %v1649 = vpop.f32.mrb[0].mxu0
        %v1650 = vpop.f32.mrb[0].mxu0
        %1651 = vdwg.mxu0
        %1652 = vmatprep.subr.bf16.mxu0 %v1513
        %1653 = vmatpush1.bf16.msra.mxu0 %v1512
        %1654 = vmatprep.subr.bf16.mxu0 %v1548
        %1655 = vmatpush1.bf16.msra.mxu0 %v1545
        %1656 = vmatprep.subr.bf16.mxu0 0
        %1657 = vmatpush1.bf16.msra.mxu0 0
        %1658 = vmatprep.subr.bf16.mxu0 0
        %1659 = vmatpush1.bf16.msra.mxu0 0
        %1660 = vmatprep.subr.bf16.mxu0 0
        %1661 = vmatpush1.bf16.msra.mxu0 0
        %1662 = vmatprep.subr.bf16.mxu0 0
        %1663 = vmatpush1.bf16.msra.mxu0 0
        %1664 = vmatprep.subr.bf16.mxu0 0
        %1665 = vmatpush1.bf16.msra.mxu0 0
        %1666 = vmatprep.subr.bf16.mxu0 0
        %1667 = vmatpush1.bf16.msra.mxu0 0
        %1668 = vmatprep.subr.bf16.mxu0 0
        %1669 = vmatpush1.bf16.msra.mxu0 0
        %1670 = vmatprep.subr.bf16.mxu0 0
        %1671 = vmatpush1.bf16.msra.mxu0 0
        %1672 = vmatprep.subr.bf16.mxu0 0
        %1673 = vmatpush1.bf16.msra.mxu0 0
        %1674 = vmatprep.subr.bf16.mxu0 0
        %1675 = vmatpush1.bf16.msra.mxu0 0
        %1676 = vmatprep.subr.bf16.mxu0 0
        %1677 = vmatpush1.bf16.msra.mxu0 0
        %1678 = vmatprep.subr.bf16.mxu0 0
        %1679 = vmatpush1.bf16.msra.mxu0 0
        %1680 = vmatprep.subr.bf16.mxu0 0
        %1681 = vmatpush1.bf16.msra.mxu0 0
        %1682 = vmatprep.subr.bf16.mxu0 0
        %1683 = vmatpush1.bf16.msra.mxu0 0
        %1684 = vmatprep.mubr.bf16.mxu0 0
        %1685 = vmatmul.mubr.bf16.gmra.mrb[0].mxu0 %v1527
        %v1686 = vpop.f32.mrb[0].mxu0
        %v1687 = vadd.f32 0.0, %v1686
        %v1688 = vpop.f32.mrb[0].mxu0
        %v1689 = vadd.f32 0.0, %v1688
        %v1690 = vpop.f32.mrb[0].mxu0
        %v1691 = vadd.f32 0.0, %v1690
        %v1692 = vpop.f32.mrb[0].mxu0
        %v1693 = vadd.f32 0.0, %v1692
        %1694 = vmatprep.mubr.bf16.mxu0 0
        %1695 = vmatmul.mubr.bf16.gmra.mrb[0].mxu0 %v1530
        %v1696 = vpop.f32.mrb[0].mxu0
        %v1697 = vadd.f32 0.0, %v1696
        %v1698 = vpop.f32.mrb[0].mxu0
        %v1699 = vadd.f32 0.0, %v1698
        %v1700 = vpop.f32.mrb[0].mxu0
        %v1701 = vpop.f32.mrb[0].mxu0
        %1702 = vdwg.mxu0
        %v1703 = vadd.f32 %v1433, %v1585
        %v1704 = vadd.f32 %v1434, %v1587
        %v1705 = vadd.f32 %v1435, %v1636
        %v1706 = vadd.f32 %v1436, %v1638
        %v1707 = vadd.f32 %v1437, %v1687
        %v1708 = vadd.f32 %v1438, %v1689
        %v1709 = vadd.f32 %v1439, %v1589
        %v1710 = vadd.f32 %v1440, %v1591
        %v1711 = vadd.f32 %v1441, %v1640
        %v1712 = vadd.f32 %v1442, %v1642
        %v1713 = vadd.f32 %v1443, %v1691
        %v1714 = vadd.f32 %v1444, %v1693
        %v1715 = vadd.f32 %v1445, %v1595
        %v1716 = vadd.f32 %v1446, %v1597
        %v1717 = vadd.f32 %v1447, %v1646
        %v1718 = vadd.f32 %v1448, %v1648
        %v1719 = vadd.f32 %v1449, %v1697
        %v1720 = vadd.f32 %v1450, %v1699
        %s1721 = scalar_lea.vmem [#allocation2], 384
        %v1722 = vld [vmem:[%s1721] sm:$0xff]
        %v1723 = vld [vmem:[%s1721 + $0x8] sm:$0xff]
        %v1724 = vld [vmem:[%s1721 + $0x10] sm:$0xff]
        %v1725 = vld [vmem:[%s1721 + $0x18] sm:$0xff]
        %v1726 = vld [vmem:[%s1721 + $0x20] sm:$0xff]
        %v1727 = vld [vmem:[%s1721 + $0x28] sm:$0xff]
        %v1728 = vld [vmem:[%s1721 + $0x30] sm:$0xff]
        %v1729 = vld [vmem:[%s1721 + $0x38] sm:$0xff]
        %v1730 = vld [vmem:[%s1721 + $0x40] sm:$0xff]
        %v1731 = vld [vmem:[%s1721 + $0x48] sm:$0x33]
        %v1732 = vld [vmem:[%s1721 + $0x50] sm:$0x33]
        %v1733 = vld [vmem:[%s1721 + $0x58] sm:$0x33]
        %vm1734 = vcmask 1045504
        %v1735 = vrot.slane %v676, 2
        %v1736 = vrot.slane %v690, 2
        %v1737 = vsel %vm1734, %v1735, %v1736
        %v1750 = vunpack.c.l.b16 %v1722
        %v1751 = vunpack.c.h.b16 %v1722
        %v1752 = vunpack.c.l.b16 %v1723
        %v1753 = vunpack.c.h.b16 %v1723
        %v1754 = vunpack.c.l.b16 %v1724
        %v1755 = vunpack.c.h.b16 %v1724
        %v1756 = vunpack.c.l.b16 %v1725
        %v1757 = vunpack.c.h.b16 %v1725
        %v1758 = vunpack.c.l.b16 %v1726
        %v1759 = vunpack.c.h.b16 %v1726
        %v1760 = vunpack.c.l.b16 %v1727
        %v1761 = vunpack.c.h.b16 %v1727
        %v1762 = vunpack.c.l.b16 %v1728
        %v1763 = vunpack.c.h.b16 %v1728
        %v1764 = vunpack.c.l.b16 %v1729
        %v1765 = vunpack.c.h.b16 %v1729
        %v1766 = vunpack.c.l.b16 %v1730
        %v1767 = vunpack.c.h.b16 %v1730
        %v1768 = vunpack.c.l.b16 %v1731
        %v1769 = vunpack.c.h.b16 %v1731
        %v1770 = vunpack.c.l.b16 %v1732
        %v1771 = vunpack.c.h.b16 %v1732
        %v1772 = vunpack.c.l.b16 %v1733
        %v1773 = vunpack.c.h.b16 %v1733
        %v1774 = vpack.c.b16 %v1756, %v1750
        %v1775 = vpack.c.b16 %v1757, %v1751
        %v1776 = vpack.c.b16 %v1758, %v1752
        %v1777 = vpack.c.b16 %v1759, %v1753
        %v1778 = vpack.c.b16 %v1760, %v1754
        %v1779 = vpack.c.b16 %v1761, %v1755
        %v1780 = vpack.c.b16 %v1768, %v1762
        %v1781 = vpack.c.b16 %v1769, %v1763
        %v1782 = vpack.c.b16 %v1770, %v1764
        %v1783 = vpack.c.b16 %v1771, %v1765
        %v1784 = vpack.c.b16 %v1772, %v1766
        %v1785 = vpack.c.b16 %v1773, %v1767
        %v1793 = vsel %vm774, %v1737, 0
        %v1796 = vsel %vm774, %v1736, 0
        %v1799 = vsel %vm781, %v1780, 0
        %v1802 = vsel %vm781, %v1781, 0
        %v1805 = vsel %vm781, %v1782, 0
        %v1808 = vsel %vm781, %v1783, 0
        %v1811 = vsel %vm781, %v1784, 0
        %v1814 = vsel %vm781, %v1785, 0
        %1816 = vmatprep.subr.bf16.mxu0 %v1775
        %1817 = vmatpush1.bf16.msra.mxu0 %v1774
        %1818 = vmatprep.subr.bf16.mxu0 %v1802
        %1819 = vmatpush1.bf16.msra.mxu0 %v1799
        %1820 = vmatprep.subr.bf16.mxu0 0
        %1821 = vmatpush1.bf16.msra.mxu0 0
        %1822 = vmatprep.subr.bf16.mxu0 0
        %1823 = vmatpush1.bf16.msra.mxu0 0
        %1824 = vmatprep.subr.bf16.mxu0 0
        %1825 = vmatpush1.bf16.msra.mxu0 0
        %1826 = vmatprep.subr.bf16.mxu0 0
        %1827 = vmatpush1.bf16.msra.mxu0 0
        %1828 = vmatprep.subr.bf16.mxu0 0
        %1829 = vmatpush1.bf16.msra.mxu0 0
        %1830 = vmatprep.subr.bf16.mxu0 0
        %1831 = vmatpush1.bf16.msra.mxu0 0
        %1832 = vmatprep.subr.bf16.mxu0 0
        %1833 = vmatpush1.bf16.msra.mxu0 0
        %1834 = vmatprep.subr.bf16.mxu0 0
        %1835 = vmatpush1.bf16.msra.mxu0 0
        %1836 = vmatprep.subr.bf16.mxu0 0
        %1837 = vmatpush1.bf16.msra.mxu0 0
        %1838 = vmatprep.subr.bf16.mxu0 0
        %1839 = vmatpush1.bf16.msra.mxu0 0
        %1840 = vmatprep.subr.bf16.mxu0 0
        %1841 = vmatpush1.bf16.msra.mxu0 0
        %1842 = vmatprep.subr.bf16.mxu0 0
        %1843 = vmatpush1.bf16.msra.mxu0 0
        %1844 = vmatprep.subr.bf16.mxu0 0
        %1845 = vmatpush1.bf16.msra.mxu0 0
        %1846 = vmatprep.subr.bf16.mxu0 0
        %1847 = vmatpush1.bf16.msra.mxu0 0
        %1848 = vmatprep.mubr.bf16.mxu0 0
        %1849 = vmatmul.mubr.bf16.gmra.mrb[0].mxu0 %v1793
        %v1850 = vpop.f32.mrb[0].mxu0
        %v1851 = vadd.f32 0.0, %v1850
        %v1852 = vpop.f32.mrb[0].mxu0
        %v1853 = vadd.f32 0.0, %v1852
        %v1854 = vpop.f32.mrb[0].mxu0
        %v1855 = vadd.f32 0.0, %v1854
        %v1856 = vpop.f32.mrb[0].mxu0
        %v1857 = vadd.f32 0.0, %v1856
        %1858 = vmatprep.mubr.bf16.mxu0 0
        %1859 = vmatmul.mubr.bf16.gmra.mrb[0].mxu0 %v1796
        %v1860 = vpop.f32.mrb[0].mxu0
        %v1861 = vadd.f32 0.0, %v1860
        %v1862 = vpop.f32.mrb[0].mxu0
        %v1863 = vadd.f32 0.0, %v1862
        %v1864 = vpop.f32.mrb[0].mxu0
        %v1865 = vpop.f32.mrb[0].mxu0
        %1866 = vdwg.mxu0
        %1867 = vmatprep.subr.bf16.mxu0 %v1777
        %1868 = vmatpush1.bf16.msra.mxu0 %v1776
        %1869 = vmatprep.subr.bf16.mxu0 %v1808
        %1870 = vmatpush1.bf16.msra.mxu0 %v1805
        %1871 = vmatprep.subr.bf16.mxu0 0
        %1872 = vmatpush1.bf16.msra.mxu0 0
        %1873 = vmatprep.subr.bf16.mxu0 0
        %1874 = vmatpush1.bf16.msra.mxu0 0
        %1875 = vmatprep.subr.bf16.mxu0 0
        %1876 = vmatpush1.bf16.msra.mxu0 0
        %1877 = vmatprep.subr.bf16.mxu0 0
        %1878 = vmatpush1.bf16.msra.mxu0 0
        %1879 = vmatprep.subr.bf16.mxu0 0
        %1880 = vmatpush1.bf16.msra.mxu0 0
        %1881 = vmatprep.subr.bf16.mxu0 0
        %1882 = vmatpush1.bf16.msra.mxu0 0
        %1883 = vmatprep.subr.bf16.mxu0 0
        %1884 = vmatpush1.bf16.msra.mxu0 0
        %1885 = vmatprep.subr.bf16.mxu0 0
        %1886 = vmatpush1.bf16.msra.mxu0 0
        %1887 = vmatprep.subr.bf16.mxu0 0
        %1888 = vmatpush1.bf16.msra.mxu0 0
        %1889 = vmatprep.subr.bf16.mxu0 0
        %1890 = vmatpush1.bf16.msra.mxu0 0
        %1891 = vmatprep.subr.bf16.mxu0 0
        %1892 = vmatpush1.bf16.msra.mxu0 0
        %1893 = vmatprep.subr.bf16.mxu0 0
        %1894 = vmatpush1.bf16.msra.mxu0 0
        %1895 = vmatprep.subr.bf16.mxu0 0
        %1896 = vmatpush1.bf16.msra.mxu0 0
        %1897 = vmatprep.subr.bf16.mxu0 0
        %1898 = vmatpush1.bf16.msra.mxu0 0
        %1899 = vmatprep.mubr.bf16.mxu0 0
        %1900 = vmatmul.mubr.bf16.gmra.mrb[0].mxu0 %v1793
        %v1901 = vpop.f32.mrb[0].mxu0
        %v1902 = vadd.f32 0.0, %v1901
        %v1903 = vpop.f32.mrb[0].mxu0
        %v1904 = vadd.f32 0.0, %v1903
        %v1905 = vpop.f32.mrb[0].mxu0
        %v1906 = vadd.f32 0.0, %v1905
        %v1907 = vpop.f32.mrb[0].mxu0
        %v1908 = vadd.f32 0.0, %v1907
        %1909 = vmatprep.mubr.bf16.mxu0 0
        %1910 = vmatmul.mubr.bf16.gmra.mrb[0].mxu0 %v1796
        %v1911 = vpop.f32.mrb[0].mxu0
        %v1912 = vadd.f32 0.0, %v1911
        %v1913 = vpop.f32.mrb[0].mxu0
        %v1914 = vadd.f32 0.0, %v1913
        %v1915 = vpop.f32.mrb[0].mxu0
        %v1916 = vpop.f32.mrb[0].mxu0
        %1917 = vdwg.mxu0
        %1918 = vmatprep.subr.bf16.mxu0 %v1779
        %1919 = vmatpush1.bf16.msra.mxu0 %v1778
        %1920 = vmatprep.subr.bf16.mxu0 %v1814
        %1921 = vmatpush1.bf16.msra.mxu0 %v1811
        %1922 = vmatprep.subr.bf16.mxu0 0
        %1923 = vmatpush1.bf16.msra.mxu0 0
        %1924 = vmatprep.subr.bf16.mxu0 0
        %1925 = vmatpush1.bf16.msra.mxu0 0
        %1926 = vmatprep.subr.bf16.mxu0 0
        %1927 = vmatpush1.bf16.msra.mxu0 0
        %1928 = vmatprep.subr.bf16.mxu0 0
        %1929 = vmatpush1.bf16.msra.mxu0 0
        %1930 = vmatprep.subr.bf16.mxu0 0
        %1931 = vmatpush1.bf16.msra.mxu0 0
        %1932 = vmatprep.subr.bf16.mxu0 0
        %1933 = vmatpush1.bf16.msra.mxu0 0
        %1934 = vmatprep.subr.bf16.mxu0 0
        %1935 = vmatpush1.bf16.msra.mxu0 0
        %1936 = vmatprep.subr.bf16.mxu0 0
        %1937 = vmatpush1.bf16.msra.mxu0 0
        %1938 = vmatprep.subr.bf16.mxu0 0
        %1939 = vmatpush1.bf16.msra.mxu0 0
        %1940 = vmatprep.subr.bf16.mxu0 0
        %1941 = vmatpush1.bf16.msra.mxu0 0
        %1942 = vmatprep.subr.bf16.mxu0 0
        %1943 = vmatpush1.bf16.msra.mxu0 0
        %1944 = vmatprep.subr.bf16.mxu0 0
        %1945 = vmatpush1.bf16.msra.mxu0 0
        %1946 = vmatprep.subr.bf16.mxu0 0
        %1947 = vmatpush1.bf16.msra.mxu0 0
        %1948 = vmatprep.subr.bf16.mxu0 0
        %1949 = vmatpush1.bf16.msra.mxu0 0
        %1950 = vmatprep.mubr.bf16.mxu0 0
        %1951 = vmatmul.mubr.bf16.gmra.mrb[0].mxu0 %v1793
        %v1952 = vpop.f32.mrb[0].mxu0
        %v1953 = vadd.f32 0.0, %v1952
        %v1954 = vpop.f32.mrb[0].mxu0
        %v1955 = vadd.f32 0.0, %v1954
        %v1956 = vpop.f32.mrb[0].mxu0
        %v1957 = vadd.f32 0.0, %v1956
        %v1958 = vpop.f32.mrb[0].mxu0
        %v1959 = vadd.f32 0.0, %v1958
        %1960 = vmatprep.mubr.bf16.mxu0 0
        %1961 = vmatmul.mubr.bf16.gmra.mrb[0].mxu0 %v1796
        %v1962 = vpop.f32.mrb[0].mxu0
        %v1963 = vadd.f32 0.0, %v1962
        %v1964 = vpop.f32.mrb[0].mxu0
        %v1965 = vadd.f32 0.0, %v1964
        %v1966 = vpop.f32.mrb[0].mxu0
        %v1967 = vpop.f32.mrb[0].mxu0
        %1968 = vdwg.mxu0
        %v1969 = vadd.f32 %v1703, %v1851
        %v1970 = vadd.f32 %v1704, %v1853
        %v1971 = vadd.f32 %v1705, %v1902
        %v1972 = vadd.f32 %v1706, %v1904
        %v1973 = vadd.f32 %v1707, %v1953
        %v1974 = vadd.f32 %v1708, %v1955
        %v1975 = vadd.f32 %v1709, %v1855
        %v1976 = vadd.f32 %v1710, %v1857
        %v1977 = vadd.f32 %v1711, %v1906
        %v1978 = vadd.f32 %v1712, %v1908
        %v1979 = vadd.f32 %v1713, %v1957
        %v1980 = vadd.f32 %v1714, %v1959
        %v1981 = vadd.f32 %v1715, %v1861
        %v1982 = vadd.f32 %v1716, %v1863
        %v1983 = vadd.f32 %v1717, %v1912
        %v1984 = vadd.f32 %v1718, %v1914
        %v1985 = vadd.f32 %v1719, %v1963
        %v1986 = vadd.f32 %v1720, %v1965
        %v1987 = vld [vmem:[#allocation5] sm:$0x3f]
        %v1989 = vlaneseq
        %v1990 = vshrl.u32 %v1989, 7
        %v1991 = vsub.s32 0, %v1990
        %v1992 = vrot.slane %v1987, %v1991
        %v1993 = vlaneseq
        %v1994 = vshrl.u32 %v1993, 7
        %v1995 = vsub.s32 1, %v1994
        %v1996 = vrot.slane %v1987, %v1995
        %v1997 = vlaneseq
        %v1998 = vshrl.u32 %v1997, 7
        %v1999 = vsub.s32 2, %v1998
        %v2000 = vrot.slane %v1987, %v1999
        %v2001 = vlaneseq
        %v2002 = vshrl.u32 %v2001, 7
        %v2003 = vsub.s32 3, %v2002
        %v2004 = vrot.slane %v1987, %v2003
        %v2005 = vlaneseq
        %v2006 = vshrl.u32 %v2005, 7
        %v2007 = vsub.s32 4, %v2006
        %v2008 = vrot.slane %v1987, %v2007
        %v2009 = vlaneseq
        %v2010 = vshrl.u32 %v2009, 7
        %v2011 = vsub.s32 5, %v2010
        %v2012 = vrot.slane %v1987, %v2011
        %v2019 = vadd.f32 %v1969, %v1992
        %v2020 = vadd.f32 %v1970, %v1996
        %v2021 = vadd.f32 %v1971, %v2000
        %v2022 = vadd.f32 %v1972, %v2004
        %v2023 = vadd.f32 %v1973, %v2008
        %v2024 = vadd.f32 %v1974, %v2012
        %v2025 = vadd.f32 %v1975, %v1992
        %v2026 = vadd.f32 %v1976, %v1996
        %v2027 = vadd.f32 %v1977, %v2000
        %v2028 = vadd.f32 %v1978, %v2004
        %v2029 = vadd.f32 %v1979, %v2008
        %v2030 = vadd.f32 %v1980, %v2012
        %v2031 = vadd.f32 %v1981, %v1992
        %v2032 = vadd.f32 %v1982, %v1996
        %v2033 = vadd.f32 %v1983, %v2000
        %v2034 = vadd.f32 %v1984, %v2004
        %v2035 = vadd.f32 %v1985, %v2008
        %v2036 = vadd.f32 %v1986, %v2012
        %v2037 = vmax.f32 %v2019, 0.0
        %v2038 = vmax.f32 %v2020, 0.0
        %v2039 = vmax.f32 %v2021, 0.0
        %v2040 = vmax.f32 %v2022, 0.0
        %v2041 = vmax.f32 %v2023, 0.0
        %v2042 = vmax.f32 %v2024, 0.0
        %v2043 = vmax.f32 %v2025, 0.0
        %v2044 = vmax.f32 %v2026, 0.0
        %v2045 = vmax.f32 %v2027, 0.0
        %v2046 = vmax.f32 %v2028, 0.0
        %v2047 = vmax.f32 %v2029, 0.0
        %v2048 = vmax.f32 %v2030, 0.0
        %v2049 = vmax.f32 %v2031, 0.0
        %v2050 = vmax.f32 %v2032, 0.0
        %v2051 = vmax.f32 %v2033, 0.0
        %v2052 = vmax.f32 %v2034, 0.0
        %v2053 = vmax.f32 %v2035, 0.0
        %v2054 = vmax.f32 %v2036, 0.0
        %v2055 = vld [vmem:[#allocation7] sm:$0xff]
        %v2056 = vld [vmem:[#allocation7 + $0x8] sm:$0xff]
        %v2057 = vld [vmem:[#allocation7 + $0x10] sm:$0xff]
        %v2058 = vld [vmem:[#allocation7 + $0x18] sm:$0xff]
        %v2059 = vld [vmem:[#allocation7 + $0x20] sm:$0xff]
        %v2060 = vld [vmem:[#allocation7 + $0x28] sm:$0xff]
        %v2061 = vld [vmem:[#allocation7 + $0x30] sm:$0xff]
        %v2062 = vld [vmem:[#allocation7 + $0x38] sm:$0xff]
        %v2063 = vld [vmem:[#allocation7 + $0x40] sm:$0xff]
        %v2064 = vld [vmem:[#allocation7 + $0x48] sm:$0xff]
        %v2065 = vld [vmem:[#allocation7 + $0x50] sm:$0xff]
        %v2066 = vld [vmem:[#allocation7 + $0x58] sm:$0xff]
        %v2067 = vld [vmem:[#allocation7 + $0x60] sm:$0xff]
        %v2068 = vld [vmem:[#allocation7 + $0x68] sm:$0xff]
        %v2069 = vld [vmem:[#allocation7 + $0x70] sm:$0xff]
        %v2070 = vld [vmem:[#allocation7 + $0x78] sm:$0xff]
        %v2071 = vld [vmem:[#allocation7 + $0x80] sm:$0xff]
        %v2072 = vld [vmem:[#allocation7 + $0x88] sm:$0xff]
        %v2073 = vld [vmem:[#allocation7 + $0x90] sm:$0xff]
        %v2074 = vld [vmem:[#allocation7 + $0x98] sm:$0xff]
        %v2075 = vld [vmem:[#allocation7 + $0xa0] sm:$0xff]
        %v2076 = vld [vmem:[#allocation7 + $0xa8] sm:$0xff]
        %v2077 = vld [vmem:[#allocation7 + $0xb0] sm:$0xff]
        %v2078 = vld [vmem:[#allocation7 + $0xb8] sm:$0xff]
        %v2079 = vld [vmem:[#allocation7 + $0xc0] sm:$0xff]
        %v2080 = vld [vmem:[#allocation7 + $0xc8] sm:$0xff]
        %v2081 = vld [vmem:[#allocation7 + $0xd0] sm:$0xff]
        %v2082 = vld [vmem:[#allocation7 + $0xd8] sm:$0xff]
        %v2083 = vld [vmem:[#allocation7 + $0xe0] sm:$0xff]
        %v2084 = vld [vmem:[#allocation7 + $0xe8] sm:$0xff]
        %v2085 = vld [vmem:[#allocation7 + $0xf0] sm:$0xff]
        %v2086 = vld [vmem:[#allocation7 + $0xf8] sm:$0xff]
        %v2087 = vld [vmem:[#allocation7 + $0x100] sm:$0xff]
        %v2088 = vld [vmem:[#allocation7 + $0x108] sm:$0xff]
        %v2089 = vld [vmem:[#allocation7 + $0x110] sm:$0xff]
        %v2090 = vld [vmem:[#allocation7 + $0x118] sm:$0xff]
        %v2091 = vld [vmem:[#allocation7 + $0x120] sm:$0xff]
        %v2092 = vld [vmem:[#allocation7 + $0x128] sm:$0xff]
        %v2093 = vld [vmem:[#allocation7 + $0x130] sm:$0xff]
        %v2094 = vld [vmem:[#allocation7 + $0x138] sm:$0xff]
        %v2095 = vld [vmem:[#allocation7 + $0x140] sm:$0xff]
        %v2096 = vld [vmem:[#allocation7 + $0x148] sm:$0xff]
        %v2097 = vld [vmem:[#allocation7 + $0x150] sm:$0xff]
        %v2098 = vld [vmem:[#allocation7 + $0x158] sm:$0xff]
        %v2099 = vld [vmem:[#allocation7 + $0x160] sm:$0xff]
        %v2100 = vld [vmem:[#allocation7 + $0x168] sm:$0xff]
        %v2101 = vld [vmem:[#allocation7 + $0x170] sm:$0xff]
        %v2102 = vld [vmem:[#allocation7 + $0x178] sm:$0xff]
        %v2103 = vld [vmem:[#allocation7 + $0x180] sm:$0xff]
        %v2104 = vld [vmem:[#allocation7 + $0x188] sm:$0xff]
        %v2105 = vld [vmem:[#allocation7 + $0x190] sm:$0xff]
        %v2106 = vld [vmem:[#allocation7 + $0x198] sm:$0xff]
        %v2107 = vld [vmem:[#allocation7 + $0x1a0] sm:$0xff]
        %v2108 = vld [vmem:[#allocation7 + $0x1a8] sm:$0xff]
        %v2109 = vld [vmem:[#allocation7 + $0x1b0] sm:$0xff]
        %v2110 = vld [vmem:[#allocation7 + $0x1b8] sm:$0xff]
        %v2111 = vld [vmem:[#allocation7 + $0x1c0] sm:$0xff]
        %v2112 = vld [vmem:[#allocation7 + $0x1c8] sm:$0xff]
        %v2113 = vld [vmem:[#allocation7 + $0x1d0] sm:$0xff]
        %v2114 = vld [vmem:[#allocation7 + $0x1d8] sm:$0xff]
        %v2115 = vld [vmem:[#allocation7 + $0x1e0] sm:$0xff]
        %v2116 = vld [vmem:[#allocation7 + $0x1e8] sm:$0xff]
        %v2117 = vld [vmem:[#allocation7 + $0x1f0] sm:$0xff]
        %v2118 = vld [vmem:[#allocation7 + $0x1f8] sm:$0xff]
        %v2119 = vld [vmem:[#allocation7 + $0x200] sm:$0xff]
        %v2120 = vld [vmem:[#allocation7 + $0x208] sm:$0xff]
        %v2121 = vld [vmem:[#allocation7 + $0x210] sm:$0xff]
        %v2122 = vld [vmem:[#allocation7 + $0x218] sm:$0xff]
        %v2123 = vld [vmem:[#allocation7 + $0x220] sm:$0xff]
        %v2124 = vld [vmem:[#allocation7 + $0x228] sm:$0xff]
        %v2125 = vld [vmem:[#allocation7 + $0x230] sm:$0xff]
        %v2126 = vld [vmem:[#allocation7 + $0x238] sm:$0xff]
        %v2127 = vld [vmem:[#allocation7 + $0x240] sm:$0xff]
        %v2128 = vld [vmem:[#allocation7 + $0x248] sm:$0xff]
        %v2129 = vld [vmem:[#allocation7 + $0x250] sm:$0xff]
        %v2130 = vld [vmem:[#allocation7 + $0x258] sm:$0xff]
        %v2131 = vld [vmem:[#allocation7 + $0x260] sm:$0xff]
        %v2132 = vld [vmem:[#allocation7 + $0x268] sm:$0xff]
        %v2133 = vld [vmem:[#allocation7 + $0x270] sm:$0xff]
        %v2134 = vld [vmem:[#allocation7 + $0x278] sm:$0xff]
        %v2135 = vld [vmem:[#allocation7 + $0x280] sm:$0xff]
        %v2136 = vld [vmem:[#allocation7 + $0x288] sm:$0xff]
        %v2137 = vld [vmem:[#allocation7 + $0x290] sm:$0xff]
        %v2138 = vld [vmem:[#allocation7 + $0x298] sm:$0xff]
        %v2139 = vld [vmem:[#allocation7 + $0x2a0] sm:$0xff]
        %v2140 = vld [vmem:[#allocation7 + $0x2a8] sm:$0xff]
        %v2141 = vld [vmem:[#allocation7 + $0x2b0] sm:$0xff]
        %v2142 = vld [vmem:[#allocation7 + $0x2b8] sm:$0xff]
        %v2143 = vld [vmem:[#allocation7 + $0x2c0] sm:$0xff]
        %v2144 = vld [vmem:[#allocation7 + $0x2c8] sm:$0xff]
        %v2145 = vld [vmem:[#allocation7 + $0x2d0] sm:$0xff]
        %v2146 = vld [vmem:[#allocation7 + $0x2d8] sm:$0xff]
        %v2147 = vld [vmem:[#allocation7 + $0x2e0] sm:$0xff]
        %v2148 = vld [vmem:[#allocation7 + $0x2e8] sm:$0xff]
        %v2149 = vld [vmem:[#allocation7 + $0x2f0] sm:$0xff]
        %v2150 = vld [vmem:[#allocation7 + $0x2f8] sm:$0xff]
        %v2151 = vld [vmem:[#allocation7 + $0x300] sm:$0xff]
        %v2152 = vld [vmem:[#allocation7 + $0x308] sm:$0xff]
        %v2153 = vld [vmem:[#allocation7 + $0x310] sm:$0xff]
        %v2154 = vld [vmem:[#allocation7 + $0x318] sm:$0xff]
        %v2155 = vld [vmem:[#allocation7 + $0x320] sm:$0xff]
        %v2156 = vld [vmem:[#allocation7 + $0x328] sm:$0xff]
        %v2157 = vld [vmem:[#allocation7 + $0x330] sm:$0xff]
        %v2158 = vld [vmem:[#allocation7 + $0x338] sm:$0xff]
        %v2159 = vld [vmem:[#allocation7 + $0x340] sm:$0xff]
        %v2160 = vld [vmem:[#allocation7 + $0x348] sm:$0xff]
        %v2161 = vld [vmem:[#allocation7 + $0x350] sm:$0xff]
        %v2162 = vld [vmem:[#allocation7 + $0x358] sm:$0xff]
        %v2163 = vld [vmem:[#allocation7 + $0x360] sm:$0xff]
        %v2164 = vld [vmem:[#allocation7 + $0x368] sm:$0xff]
        %v2165 = vld [vmem:[#allocation7 + $0x370] sm:$0xff]
        %v2166 = vld [vmem:[#allocation7 + $0x378] sm:$0xff]
        %v2167 = vld [vmem:[#allocation7 + $0x380] sm:$0xff]
        %v2168 = vld [vmem:[#allocation7 + $0x388] sm:$0xff]
        %v2169 = vld [vmem:[#allocation7 + $0x390] sm:$0xff]
        %v2170 = vld [vmem:[#allocation7 + $0x398] sm:$0xff]
        %v2171 = vld [vmem:[#allocation7 + $0x3a0] sm:$0xff]
        %v2172 = vld [vmem:[#allocation7 + $0x3a8] sm:$0xff]
        %v2173 = vld [vmem:[#allocation7 + $0x3b0] sm:$0xff]
        %v2174 = vld [vmem:[#allocation7 + $0x3b8] sm:$0xff]
        %v2175 = vld [vmem:[#allocation7 + $0x3c0] sm:$0xff]
        %v2176 = vld [vmem:[#allocation7 + $0x3c8] sm:$0xff]
        %v2177 = vld [vmem:[#allocation7 + $0x3d0] sm:$0xff]
        %v2178 = vld [vmem:[#allocation7 + $0x3d8] sm:$0xff]
        %v2179 = vld [vmem:[#allocation7 + $0x3e0] sm:$0xff]
        %v2180 = vld [vmem:[#allocation7 + $0x3e8] sm:$0xff]
        %v2181 = vld [vmem:[#allocation7 + $0x3f0] sm:$0xff]
        %v2182 = vld [vmem:[#allocation7 + $0x3f8] sm:$0xff]
        %v2183 = vld [vmem:[#allocation7 + $0x400] sm:$0xff]
        %v2184 = vld [vmem:[#allocation7 + $0x408] sm:$0xff]
        %v2185 = vld [vmem:[#allocation7 + $0x410] sm:$0xff]
        %v2186 = vld [vmem:[#allocation7 + $0x418] sm:$0xff]
        %v2187 = vld [vmem:[#allocation7 + $0x420] sm:$0xff]
        %v2188 = vld [vmem:[#allocation7 + $0x428] sm:$0xff]
        %v2189 = vld [vmem:[#allocation7 + $0x430] sm:$0xff]
        %v2190 = vld [vmem:[#allocation7 + $0x438] sm:$0xff]
        %v2191 = vld [vmem:[#allocation7 + $0x440] sm:$0xff]
        %v2192 = vld [vmem:[#allocation7 + $0x448] sm:$0xff]
        %v2193 = vld [vmem:[#allocation7 + $0x450] sm:$0xff]
        %v2194 = vld [vmem:[#allocation7 + $0x458] sm:$0xff]
        %v2195 = vld [vmem:[#allocation7 + $0x460] sm:$0xff]
        %v2196 = vld [vmem:[#allocation7 + $0x468] sm:$0xff]
        %v2197 = vld [vmem:[#allocation7 + $0x470] sm:$0xff]
        %v2198 = vld [vmem:[#allocation7 + $0x478] sm:$0xff]
        %v2199 = vld [vmem:[#allocation7 + $0x480] sm:$0xff]
        %v2200 = vld [vmem:[#allocation7 + $0x488] sm:$0xff]
        %v2201 = vld [vmem:[#allocation7 + $0x490] sm:$0xff]
        %v2202 = vld [vmem:[#allocation7 + $0x498] sm:$0xff]
        %v2203 = vld [vmem:[#allocation7 + $0x4a0] sm:$0xff]
        %v2204 = vld [vmem:[#allocation7 + $0x4a8] sm:$0xff]
        %v2205 = vld [vmem:[#allocation7 + $0x4b0] sm:$0xff]
        %v2206 = vld [vmem:[#allocation7 + $0x4b8] sm:$0xff]
        %v2207 = vld [vmem:[#allocation7 + $0x4c0] sm:$0xff]
        %v2208 = vld [vmem:[#allocation7 + $0x4c8] sm:$0xff]
        %v2209 = vld [vmem:[#allocation7 + $0x4d0] sm:$0xff]
        %v2210 = vld [vmem:[#allocation7 + $0x4d8] sm:$0xff]
        %v2211 = vld [vmem:[#allocation7 + $0x4e0] sm:$0xff]
        %v2212 = vld [vmem:[#allocation7 + $0x4e8] sm:$0xff]
        %v2213 = vld [vmem:[#allocation7 + $0x4f0] sm:$0xff]
        %v2214 = vld [vmem:[#allocation7 + $0x4f8] sm:$0xff]
        %v2215 = vld [vmem:[#allocation7 + $0x500] sm:$0xff]
        %v2216 = vld [vmem:[#allocation7 + $0x508] sm:$0xff]
        %v2217 = vld [vmem:[#allocation7 + $0x510] sm:$0xff]
        %v2218 = vld [vmem:[#allocation7 + $0x518] sm:$0xff]
        %v2219 = vld [vmem:[#allocation7 + $0x520] sm:$0xff]
        %v2220 = vld [vmem:[#allocation7 + $0x528] sm:$0xff]
        %v2221 = vld [vmem:[#allocation7 + $0x530] sm:$0xff]
        %v2222 = vld [vmem:[#allocation7 + $0x538] sm:$0xff]
        %v2223 = vld [vmem:[#allocation7 + $0x540] sm:$0xff]
        %v2224 = vld [vmem:[#allocation7 + $0x548] sm:$0xff]
        %v2225 = vld [vmem:[#allocation7 + $0x550] sm:$0xff]
        %v2226 = vld [vmem:[#allocation7 + $0x558] sm:$0xff]
        %v2227 = vld [vmem:[#allocation7 + $0x560] sm:$0xff]
        %v2228 = vld [vmem:[#allocation7 + $0x568] sm:$0xff]
        %v2229 = vld [vmem:[#allocation7 + $0x570] sm:$0xff]
        %v2230 = vld [vmem:[#allocation7 + $0x578] sm:$0xff]
        %v2231 = vld [vmem:[#allocation7 + $0x580] sm:$0xff]
        %v2232 = vld [vmem:[#allocation7 + $0x588] sm:$0xff]
        %v2233 = vld [vmem:[#allocation7 + $0x590] sm:$0xff]
        %v2234 = vld [vmem:[#allocation7 + $0x598] sm:$0xff]
        %v2235 = vld [vmem:[#allocation7 + $0x5a0] sm:$0xff]
        %v2236 = vld [vmem:[#allocation7 + $0x5a8] sm:$0xff]
        %v2237 = vld [vmem:[#allocation7 + $0x5b0] sm:$0xff]
        %v2238 = vld [vmem:[#allocation7 + $0x5b8] sm:$0xff]
        %v2239 = vld [vmem:[#allocation7 + $0x5c0] sm:$0xff]
        %v2240 = vld [vmem:[#allocation7 + $0x5c8] sm:$0xff]
        %v2241 = vld [vmem:[#allocation7 + $0x5d0] sm:$0xff]
        %v2242 = vld [vmem:[#allocation7 + $0x5d8] sm:$0xff]
        %v2243 = vld [vmem:[#allocation7 + $0x5e0] sm:$0xff]
        %v2244 = vld [vmem:[#allocation7 + $0x5e8] sm:$0xff]
        %v2245 = vld [vmem:[#allocation7 + $0x5f0] sm:$0xff]
        %v2246 = vld [vmem:[#allocation7 + $0x5f8] sm:$0xff]
        %v2247 = vld [vmem:[#allocation7 + $0x600] sm:$0xff]
        %v2248 = vld [vmem:[#allocation7 + $0x608] sm:$0xff]
        %v2249 = vld [vmem:[#allocation7 + $0x610] sm:$0xff]
        %v2250 = vld [vmem:[#allocation7 + $0x618] sm:$0xff]
        %v2251 = vld [vmem:[#allocation7 + $0x620] sm:$0xff]
        %v2252 = vld [vmem:[#allocation7 + $0x628] sm:$0xff]
        %v2253 = vld [vmem:[#allocation7 + $0x630] sm:$0xff]
        %v2254 = vld [vmem:[#allocation7 + $0x638] sm:$0xff]
        %v2255 = vld [vmem:[#allocation7 + $0x640] sm:$0xff]
        %v2256 = vld [vmem:[#allocation7 + $0x648] sm:$0xff]
        %v2257 = vld [vmem:[#allocation7 + $0x650] sm:$0xff]
        %v2258 = vld [vmem:[#allocation7 + $0x658] sm:$0xff]
        %v2259 = vld [vmem:[#allocation7 + $0x660] sm:$0xff]
        %v2260 = vld [vmem:[#allocation7 + $0x668] sm:$0xff]
        %v2261 = vld [vmem:[#allocation7 + $0x670] sm:$0xff]
        %v2262 = vld [vmem:[#allocation7 + $0x678] sm:$0xff]
        %v2263 = vld [vmem:[#allocation7 + $0x680] sm:$0xff]
        %v2264 = vld [vmem:[#allocation7 + $0x688] sm:$0xff]
        %v2265 = vld [vmem:[#allocation7 + $0x690] sm:$0xff]
        %v2266 = vld [vmem:[#allocation7 + $0x698] sm:$0xff]
        %v2267 = vld [vmem:[#allocation7 + $0x6a0] sm:$0xff]
        %v2268 = vld [vmem:[#allocation7 + $0x6a8] sm:$0xff]
        %v2269 = vld [vmem:[#allocation7 + $0x6b0] sm:$0xff]
        %v2270 = vld [vmem:[#allocation7 + $0x6b8] sm:$0xff]
        %v2271 = vld [vmem:[#allocation7 + $0x6c0] sm:$0xff]
        %v2272 = vld [vmem:[#allocation7 + $0x6c8] sm:$0xff]
        %v2273 = vld [vmem:[#allocation7 + $0x6d0] sm:$0xff]
        %v2274 = vld [vmem:[#allocation7 + $0x6d8] sm:$0xff]
        %v2275 = vld [vmem:[#allocation7 + $0x6e0] sm:$0xff]
        %v2276 = vld [vmem:[#allocation7 + $0x6e8] sm:$0xff]
        %v2277 = vld [vmem:[#allocation7 + $0x6f0] sm:$0xff]
        %v2278 = vld [vmem:[#allocation7 + $0x6f8] sm:$0xff]
        %v2279 = vld [vmem:[#allocation7 + $0x700] sm:$0xff]
        %v2280 = vld [vmem:[#allocation7 + $0x708] sm:$0xff]
        %v2281 = vld [vmem:[#allocation7 + $0x710] sm:$0xff]
        %v2282 = vld [vmem:[#allocation7 + $0x718] sm:$0xff]
        %v2283 = vld [vmem:[#allocation7 + $0x720] sm:$0xff]
        %v2284 = vld [vmem:[#allocation7 + $0x728] sm:$0xff]
        %v2285 = vld [vmem:[#allocation7 + $0x730] sm:$0xff]
        %v2286 = vld [vmem:[#allocation7 + $0x738] sm:$0xff]
        %v2287 = vld [vmem:[#allocation7 + $0x740] sm:$0xff]
        %v2288 = vld [vmem:[#allocation7 + $0x748] sm:$0xff]
        %v2289 = vld [vmem:[#allocation7 + $0x750] sm:$0xff]
        %v2290 = vld [vmem:[#allocation7 + $0x758] sm:$0xff]
        %v2291 = vld [vmem:[#allocation7 + $0x760] sm:$0xff]
        %v2292 = vld [vmem:[#allocation7 + $0x768] sm:$0xff]
        %v2293 = vld [vmem:[#allocation7 + $0x770] sm:$0xff]
        %v2294 = vld [vmem:[#allocation7 + $0x778] sm:$0xff]
        %v2295 = vld [vmem:[#allocation7 + $0x780] sm:$0xff]
        %v2296 = vld [vmem:[#allocation7 + $0x788] sm:$0xff]
        %v2297 = vld [vmem:[#allocation7 + $0x790] sm:$0xff]
        %v2298 = vld [vmem:[#allocation7 + $0x798] sm:$0xff]
        %v2299 = vld [vmem:[#allocation7 + $0x7a0] sm:$0xff]
        %v2300 = vld [vmem:[#allocation7 + $0x7a8] sm:$0xff]
        %v2301 = vld [vmem:[#allocation7 + $0x7b0] sm:$0xff]
        %v2302 = vld [vmem:[#allocation7 + $0x7b8] sm:$0xff]
        %v2303 = vld [vmem:[#allocation7 + $0x7c0] sm:$0xff]
        %v2304 = vld [vmem:[#allocation7 + $0x7c8] sm:$0xff]
        %v2305 = vld [vmem:[#allocation7 + $0x7d0] sm:$0xff]
        %v2306 = vld [vmem:[#allocation7 + $0x7d8] sm:$0xff]
        %v2307 = vld [vmem:[#allocation7 + $0x7e0] sm:$0xff]
        %v2308 = vld [vmem:[#allocation7 + $0x7e8] sm:$0xff]
        %v2309 = vld [vmem:[#allocation7 + $0x7f0] sm:$0xff]
        %v2310 = vld [vmem:[#allocation7 + $0x7f8] sm:$0xff]
        %v2311 = vld [vmem:[#allocation7 + $0x800] sm:$0xff]
        %v2312 = vld [vmem:[#allocation7 + $0x808] sm:$0xff]
        %v2313 = vld [vmem:[#allocation7 + $0x810] sm:$0xff]
        %v2314 = vld [vmem:[#allocation7 + $0x818] sm:$0xff]
        %v2315 = vld [vmem:[#allocation7 + $0x820] sm:$0xff]
        %v2316 = vld [vmem:[#allocation7 + $0x828] sm:$0xff]
        %v2317 = vld [vmem:[#allocation7 + $0x830] sm:$0xff]
        %v2318 = vld [vmem:[#allocation7 + $0x838] sm:$0xff]
        %v2319 = vld [vmem:[#allocation7 + $0x840] sm:$0xff]
        %v2320 = vld [vmem:[#allocation7 + $0x848] sm:$0xff]
        %v2321 = vld [vmem:[#allocation7 + $0x850] sm:$0xff]
        %v2322 = vld [vmem:[#allocation7 + $0x858] sm:$0xff]
        %v2323 = vld [vmem:[#allocation7 + $0x860] sm:$0xff]
        %v2324 = vld [vmem:[#allocation7 + $0x868] sm:$0xff]
        %v2325 = vld [vmem:[#allocation7 + $0x870] sm:$0xff]
        %v2326 = vld [vmem:[#allocation7 + $0x878] sm:$0xff]
        %v2327 = vld [vmem:[#allocation7 + $0x880] sm:$0xff]
        %v2328 = vld [vmem:[#allocation7 + $0x888] sm:$0xff]
        %v2329 = vld [vmem:[#allocation7 + $0x890] sm:$0xff]
        %v2330 = vld [vmem:[#allocation7 + $0x898] sm:$0xff]
        %v2331 = vld [vmem:[#allocation7 + $0x8a0] sm:$0xff]
        %v2332 = vld [vmem:[#allocation7 + $0x8a8] sm:$0xff]
        %v2333 = vld [vmem:[#allocation7 + $0x8b0] sm:$0xff]
        %v2334 = vld [vmem:[#allocation7 + $0x8b8] sm:$0xff]
        %v2335 = vld [vmem:[#allocation7 + $0x8c0] sm:$0xff]
        %v2336 = vld [vmem:[#allocation7 + $0x8c8] sm:$0xff]
        %v2337 = vld [vmem:[#allocation7 + $0x8d0] sm:$0xff]
        %v2338 = vld [vmem:[#allocation7 + $0x8d8] sm:$0xff]
        %v2339 = vld [vmem:[#allocation7 + $0x8e0] sm:$0xff]
        %v2340 = vld [vmem:[#allocation7 + $0x8e8] sm:$0xff]
        %v2341 = vld [vmem:[#allocation7 + $0x8f0] sm:$0xff]
        %v2342 = vld [vmem:[#allocation7 + $0x8f8] sm:$0xff]
        %2343 = vmatprep.subr.mxu0 %v2056
        %2344 = vmatpush1.msra.mxu0 %v2055
        %2345 = vmatprep.subr.mxu0 %v2059
        %2346 = vmatpush1.msra.mxu0 %v2058
        %2347 = vmatprep.subr.mxu0 %v2062
        %2348 = vmatpush1.msra.mxu0 %v2061
        %2349 = vmatprep.subr.mxu0 %v2065
        %2350 = vmatpush1.msra.mxu0 %v2064
        %2351 = vmatprep.subr.mxu0 %v2068
        %2352 = vmatpush1.msra.mxu0 %v2067
        %2353 = vmatprep.subr.mxu0 %v2071
        %2354 = vmatpush1.msra.mxu0 %v2070
        %2355 = vmatprep.subr.mxu0 %v2074
        %2356 = vmatpush1.msra.mxu0 %v2073
        %2357 = vmatprep.subr.mxu0 %v2077
        %2358 = vmatpush1.msra.mxu0 %v2076
        %2359 = vmatprep.subr.mxu0 %v2080
        %2360 = vmatpush1.msra.mxu0 %v2079
        %2361 = vmatprep.subr.mxu0 %v2083
        %2362 = vmatpush1.msra.mxu0 %v2082
        %2363 = vmatprep.subr.mxu0 %v2086
        %2364 = vmatpush1.msra.mxu0 %v2085
        %2365 = vmatprep.subr.mxu0 %v2089
        %2366 = vmatpush1.msra.mxu0 %v2088
        %2367 = vmatprep.subr.mxu0 %v2092
        %2368 = vmatpush1.msra.mxu0 %v2091
        %2369 = vmatprep.subr.mxu0 %v2095
        %2370 = vmatpush1.msra.mxu0 %v2094
        %2371 = vmatprep.subr.mxu0 %v2098
        %2372 = vmatpush1.msra.mxu0 %v2097
        %2373 = vmatprep.subr.mxu0 %v2101
        %2374 = vmatpush1.msra.mxu0 %v2100
        %2375 = vmatprep.subr.mxu0 %v2104
        %2376 = vmatpush1.msra.mxu0 %v2103
        %2377 = vmatprep.subr.mxu0 %v2107
        %2378 = vmatpush1.msra.mxu0 %v2106
        %2379 = vmatprep.subr.mxu0 %v2110
        %2380 = vmatpush1.msra.mxu0 %v2109
        %2381 = vmatprep.subr.mxu0 %v2113
        %2382 = vmatpush1.msra.mxu0 %v2112
        %2383 = vmatprep.subr.mxu0 %v2116
        %2384 = vmatpush1.msra.mxu0 %v2115
        %2385 = vmatprep.subr.mxu0 %v2119
        %2386 = vmatpush1.msra.mxu0 %v2118
        %2387 = vmatprep.subr.mxu0 %v2122
        %2388 = vmatpush1.msra.mxu0 %v2121
        %2389 = vmatprep.subr.mxu0 %v2125
        %2390 = vmatpush1.msra.mxu0 %v2124
        %2391 = vmatprep.subr.mxu0 %v2128
        %2392 = vmatpush1.msra.mxu0 %v2127
        %2393 = vmatprep.subr.mxu0 %v2131
        %2394 = vmatpush1.msra.mxu0 %v2130
        %2395 = vmatprep.subr.mxu0 %v2134
        %2396 = vmatpush1.msra.mxu0 %v2133
        %2397 = vmatprep.subr.mxu0 %v2137
        %2398 = vmatpush1.msra.mxu0 %v2136
        %2399 = vmatprep.subr.mxu0 %v2140
        %2400 = vmatpush1.msra.mxu0 %v2139
        %2401 = vmatprep.subr.mxu0 %v2143
        %2402 = vmatpush1.msra.mxu0 %v2142
        %2403 = vmatprep.subr.mxu0 %v2146
        %2404 = vmatpush1.msra.mxu0 %v2145
        %2405 = vmatprep.subr.mxu0 %v2149
        %2406 = vmatpush1.msra.mxu0 %v2148
        %2407 = vmatprep.mubr.f32.mxu0 %v2038
        %2408 = vmatmul.mubr.f32.gmra.mrb[0].mxu0 %v2037
        %v2409 = vpop.f32.mrb[0].mxu0
        %v2410 = vadd.f32 0.0, %v2409
        %v2411 = vpop.f32.mrb[0].mxu0
        %v2412 = vadd.f32 0.0, %v2411
        %2413 = vmatprep.mubr.f32.mxu0 %v2044
        %2414 = vmatmul.mubr.f32.gmra.mrb[0].mxu0 %v2043
        %v2415 = vpop.f32.mrb[0].mxu0
        %v2416 = vadd.f32 0.0, %v2415
        %v2417 = vpop.f32.mrb[0].mxu0
        %v2418 = vadd.f32 0.0, %v2417
        %2419 = vmatprep.mubr.f32.mxu0 %v2050
        %2420 = vmatmul.mubr.f32.gmra.mrb[0].mxu0 %v2049
        %v2421 = vpop.f32.mrb[0].mxu0
        %v2422 = vadd.f32 0.0, %v2421
        %v2423 = vpop.f32.mrb[0].mxu0
        %v2424 = vadd.f32 0.0, %v2423
        %2425 = vdwg.mxu0
        %2426 = vmatprep.subr.mxu0 %v2152
        %2427 = vmatpush1.msra.mxu0 %v2151
        %2428 = vmatprep.subr.mxu0 %v2155
        %2429 = vmatpush1.msra.mxu0 %v2154
        %2430 = vmatprep.subr.mxu0 %v2158
        %2431 = vmatpush1.msra.mxu0 %v2157
        %2432 = vmatprep.subr.mxu0 %v2161
        %2433 = vmatpush1.msra.mxu0 %v2160
        %2434 = vmatprep.subr.mxu0 %v2164
        %2435 = vmatpush1.msra.mxu0 %v2163
        %2436 = vmatprep.subr.mxu0 %v2167
        %2437 = vmatpush1.msra.mxu0 %v2166
        %2438 = vmatprep.subr.mxu0 %v2170
        %2439 = vmatpush1.msra.mxu0 %v2169
        %2440 = vmatprep.subr.mxu0 %v2173
        %2441 = vmatpush1.msra.mxu0 %v2172
        %2442 = vmatprep.subr.mxu0 %v2176
        %2443 = vmatpush1.msra.mxu0 %v2175
        %2444 = vmatprep.subr.mxu0 %v2179
        %2445 = vmatpush1.msra.mxu0 %v2178
        %2446 = vmatprep.subr.mxu0 %v2182
        %2447 = vmatpush1.msra.mxu0 %v2181
        %2448 = vmatprep.subr.mxu0 %v2185
        %2449 = vmatpush1.msra.mxu0 %v2184
        %2450 = vmatprep.subr.mxu0 %v2188
        %2451 = vmatpush1.msra.mxu0 %v2187
        %2452 = vmatprep.subr.mxu0 %v2191
        %2453 = vmatpush1.msra.mxu0 %v2190
        %2454 = vmatprep.subr.mxu0 %v2194
        %2455 = vmatpush1.msra.mxu0 %v2193
        %2456 = vmatprep.subr.mxu0 %v2197
        %2457 = vmatpush1.msra.mxu0 %v2196
        %2458 = vmatprep.subr.mxu0 %v2200
        %2459 = vmatpush1.msra.mxu0 %v2199
        %2460 = vmatprep.subr.mxu0 %v2203
        %2461 = vmatpush1.msra.mxu0 %v2202
        %2462 = vmatprep.subr.mxu0 %v2206
        %2463 = vmatpush1.msra.mxu0 %v2205
        %2464 = vmatprep.subr.mxu0 %v2209
        %2465 = vmatpush1.msra.mxu0 %v2208
        %2466 = vmatprep.subr.mxu0 %v2212
        %2467 = vmatpush1.msra.mxu0 %v2211
        %2468 = vmatprep.subr.mxu0 %v2215
        %2469 = vmatpush1.msra.mxu0 %v2214
        %2470 = vmatprep.subr.mxu0 %v2218
        %2471 = vmatpush1.msra.mxu0 %v2217
        %2472 = vmatprep.subr.mxu0 %v2221
        %2473 = vmatpush1.msra.mxu0 %v2220
        %2474 = vmatprep.subr.mxu0 %v2224
        %2475 = vmatpush1.msra.mxu0 %v2223
        %2476 = vmatprep.subr.mxu0 %v2227
        %2477 = vmatpush1.msra.mxu0 %v2226
        %2478 = vmatprep.subr.mxu0 %v2230
        %2479 = vmatpush1.msra.mxu0 %v2229
        %2480 = vmatprep.subr.mxu0 %v2233
        %2481 = vmatpush1.msra.mxu0 %v2232
        %2482 = vmatprep.subr.mxu0 %v2236
        %2483 = vmatpush1.msra.mxu0 %v2235
        %2484 = vmatprep.subr.mxu0 %v2239
        %2485 = vmatpush1.msra.mxu0 %v2238
        %2486 = vmatprep.subr.mxu0 %v2242
        %2487 = vmatpush1.msra.mxu0 %v2241
        %2488 = vmatprep.subr.mxu0 %v2245
        %2489 = vmatpush1.msra.mxu0 %v2244
        %2490 = vmatprep.mubr.f32.mxu0 %v2040
        %2491 = vmatmul.mubr.f32.gmra.mrb[0].mxu0 %v2039
        %v2492 = vpop.f32.mrb[0].mxu0
        %v2493 = vadd.f32 %v2410, %v2492
        %v2494 = vpop.f32.mrb[0].mxu0
        %v2495 = vadd.f32 %v2412, %v2494
        %2496 = vmatprep.mubr.f32.mxu0 %v2046
        %2497 = vmatmul.mubr.f32.gmra.mrb[0].mxu0 %v2045
        %v2498 = vpop.f32.mrb[0].mxu0
        %v2499 = vadd.f32 %v2416, %v2498
        %v2500 = vpop.f32.mrb[0].mxu0
        %v2501 = vadd.f32 %v2418, %v2500
        %2502 = vmatprep.mubr.f32.mxu0 %v2052
        %2503 = vmatmul.mubr.f32.gmra.mrb[0].mxu0 %v2051
        %v2504 = vpop.f32.mrb[0].mxu0
        %v2505 = vadd.f32 %v2422, %v2504
        %v2506 = vpop.f32.mrb[0].mxu0
        %v2507 = vadd.f32 %v2424, %v2506
        %2508 = vdwg.mxu0
        %2509 = vmatprep.subr.mxu0 %v2248
        %2510 = vmatpush1.msra.mxu0 %v2247
        %2511 = vmatprep.subr.mxu0 %v2251
        %2512 = vmatpush1.msra.mxu0 %v2250
        %2513 = vmatprep.subr.mxu0 %v2254
        %2514 = vmatpush1.msra.mxu0 %v2253
        %2515 = vmatprep.subr.mxu0 %v2257
        %2516 = vmatpush1.msra.mxu0 %v2256
        %2517 = vmatprep.subr.mxu0 %v2260
        %2518 = vmatpush1.msra.mxu0 %v2259
        %2519 = vmatprep.subr.mxu0 %v2263
        %2520 = vmatpush1.msra.mxu0 %v2262
        %2521 = vmatprep.subr.mxu0 %v2266
        %2522 = vmatpush1.msra.mxu0 %v2265
        %2523 = vmatprep.subr.mxu0 %v2269
        %2524 = vmatpush1.msra.mxu0 %v2268
        %2525 = vmatprep.subr.mxu0 %v2272
        %2526 = vmatpush1.msra.mxu0 %v2271
        %2527 = vmatprep.subr.mxu0 %v2275
        %2528 = vmatpush1.msra.mxu0 %v2274
        %2529 = vmatprep.subr.mxu0 %v2278
        %2530 = vmatpush1.msra.mxu0 %v2277
        %2531 = vmatprep.subr.mxu0 %v2281
        %2532 = vmatpush1.msra.mxu0 %v2280
        %2533 = vmatprep.subr.mxu0 %v2284
        %2534 = vmatpush1.msra.mxu0 %v2283
        %2535 = vmatprep.subr.mxu0 %v2287
        %2536 = vmatpush1.msra.mxu0 %v2286
        %2537 = vmatprep.subr.mxu0 %v2290
        %2538 = vmatpush1.msra.mxu0 %v2289
        %2539 = vmatprep.subr.mxu0 %v2293
        %2540 = vmatpush1.msra.mxu0 %v2292
        %2541 = vmatprep.subr.mxu0 %v2296
        %2542 = vmatpush1.msra.mxu0 %v2295
        %2543 = vmatprep.subr.mxu0 %v2299
        %2544 = vmatpush1.msra.mxu0 %v2298
        %2545 = vmatprep.subr.mxu0 %v2302
        %2546 = vmatpush1.msra.mxu0 %v2301
        %2547 = vmatprep.subr.mxu0 %v2305
        %2548 = vmatpush1.msra.mxu0 %v2304
        %2549 = vmatprep.subr.mxu0 %v2308
        %2550 = vmatpush1.msra.mxu0 %v2307
        %2551 = vmatprep.subr.mxu0 %v2311
        %2552 = vmatpush1.msra.mxu0 %v2310
        %2553 = vmatprep.subr.mxu0 %v2314
        %2554 = vmatpush1.msra.mxu0 %v2313
        %2555 = vmatprep.subr.mxu0 %v2317
        %2556 = vmatpush1.msra.mxu0 %v2316
        %2557 = vmatprep.subr.mxu0 %v2320
        %2558 = vmatpush1.msra.mxu0 %v2319
        %2559 = vmatprep.subr.mxu0 %v2323
        %2560 = vmatpush1.msra.mxu0 %v2322
        %2561 = vmatprep.subr.mxu0 %v2326
        %2562 = vmatpush1.msra.mxu0 %v2325
        %2563 = vmatprep.subr.mxu0 %v2329
        %2564 = vmatpush1.msra.mxu0 %v2328
        %2565 = vmatprep.subr.mxu0 %v2332
        %2566 = vmatpush1.msra.mxu0 %v2331
        %2567 = vmatprep.subr.mxu0 %v2335
        %2568 = vmatpush1.msra.mxu0 %v2334
        %2569 = vmatprep.subr.mxu0 %v2338
        %2570 = vmatpush1.msra.mxu0 %v2337
        %2571 = vmatprep.subr.mxu0 %v2341
        %2572 = vmatpush1.msra.mxu0 %v2340
        %2573 = vmatprep.mubr.f32.mxu0 %v2042
        %2574 = vmatmul.mubr.f32.gmra.mrb[0].mxu0 %v2041
        %v2575 = vpop.f32.mrb[0].mxu0
        %v2576 = vadd.f32 %v2493, %v2575
        %v2577 = vpop.f32.mrb[0].mxu0
        %v2578 = vadd.f32 %v2495, %v2577
        %2579 = vmatprep.mubr.f32.mxu0 %v2048
        %2580 = vmatmul.mubr.f32.gmra.mrb[0].mxu0 %v2047
        %v2581 = vpop.f32.mrb[0].mxu0
        %v2582 = vadd.f32 %v2499, %v2581
        %v2583 = vpop.f32.mrb[0].mxu0
        %v2584 = vadd.f32 %v2501, %v2583
        %2585 = vmatprep.mubr.f32.mxu0 %v2054
        %2586 = vmatmul.mubr.f32.gmra.mrb[0].mxu0 %v2053
        %v2587 = vpop.f32.mrb[0].mxu0
        %v2588 = vadd.f32 %v2505, %v2587
        %v2589 = vpop.f32.mrb[0].mxu0
        %v2590 = vadd.f32 %v2507, %v2589
        %2591 = vdwg.mxu0
        %2592 = vmatprep.subr.mxu0 0.0
        %2593 = vmatpush1.msra.mxu0 %v2057
        %2594 = vmatprep.subr.mxu0 0.0
        %2595 = vmatpush1.msra.mxu0 %v2060
        %2596 = vmatprep.subr.mxu0 0.0
        %2597 = vmatpush1.msra.mxu0 %v2063
        %2598 = vmatprep.subr.mxu0 0.0
        %2599 = vmatpush1.msra.mxu0 %v2066
        %2600 = vmatprep.subr.mxu0 0.0
        %2601 = vmatpush1.msra.mxu0 %v2069
        %2602 = vmatprep.subr.mxu0 0.0
        %2603 = vmatpush1.msra.mxu0 %v2072
        %2604 = vmatprep.subr.mxu0 0.0
        %2605 = vmatpush1.msra.mxu0 %v2075
        %2606 = vmatprep.subr.mxu0 0.0
        %2607 = vmatpush1.msra.mxu0 %v2078
        %2608 = vmatprep.subr.mxu0 0.0
        %2609 = vmatpush1.msra.mxu0 %v2081
        %2610 = vmatprep.subr.mxu0 0.0
        %2611 = vmatpush1.msra.mxu0 %v2084
        %2612 = vmatprep.subr.mxu0 0.0
        %2613 = vmatpush1.msra.mxu0 %v2087
        %2614 = vmatprep.subr.mxu0 0.0
        %2615 = vmatpush1.msra.mxu0 %v2090
        %2616 = vmatprep.subr.mxu0 0.0
        %2617 = vmatpush1.msra.mxu0 %v2093
        %2618 = vmatprep.subr.mxu0 0.0
        %2619 = vmatpush1.msra.mxu0 %v2096
        %2620 = vmatprep.subr.mxu0 0.0
        %2621 = vmatpush1.msra.mxu0 %v2099
        %2622 = vmatprep.subr.mxu0 0.0
        %2623 = vmatpush1.msra.mxu0 %v2102
        %2624 = vmatprep.subr.mxu0 0.0
        %2625 = vmatpush1.msra.mxu0 %v2105
        %2626 = vmatprep.subr.mxu0 0.0
        %2627 = vmatpush1.msra.mxu0 %v2108
        %2628 = vmatprep.subr.mxu0 0.0
        %2629 = vmatpush1.msra.mxu0 %v2111
        %2630 = vmatprep.subr.mxu0 0.0
        %2631 = vmatpush1.msra.mxu0 %v2114
        %2632 = vmatprep.subr.mxu0 0.0
        %2633 = vmatpush1.msra.mxu0 %v2117
        %2634 = vmatprep.subr.mxu0 0.0
        %2635 = vmatpush1.msra.mxu0 %v2120
        %2636 = vmatprep.subr.mxu0 0.0
        %2637 = vmatpush1.msra.mxu0 %v2123
        %2638 = vmatprep.subr.mxu0 0.0
        %2639 = vmatpush1.msra.mxu0 %v2126
        %2640 = vmatprep.subr.mxu0 0.0
        %2641 = vmatpush1.msra.mxu0 %v2129
        %2642 = vmatprep.subr.mxu0 0.0
        %2643 = vmatpush1.msra.mxu0 %v2132
        %2644 = vmatprep.subr.mxu0 0.0
        %2645 = vmatpush1.msra.mxu0 %v2135
        %2646 = vmatprep.subr.mxu0 0.0
        %2647 = vmatpush1.msra.mxu0 %v2138
        %2648 = vmatprep.subr.mxu0 0.0
        %2649 = vmatpush1.msra.mxu0 %v2141
        %2650 = vmatprep.subr.mxu0 0.0
        %2651 = vmatpush1.msra.mxu0 %v2144
        %2652 = vmatprep.subr.mxu0 0.0
        %2653 = vmatpush1.msra.mxu0 %v2147
        %2654 = vmatprep.subr.mxu0 0.0
        %2655 = vmatpush1.msra.mxu0 %v2150
        %2656 = vmatprep.mubr.f32.mxu0 %v2038
        %2657 = vmatmul.mubr.f32.gmra.mrb[0].mxu0 %v2037
        %v2658 = vpop.f32.mrb[0].mxu0
        %v2659 = vadd.f32 0.0, %v2658
        %v2660 = vpop.f32.mrb[0].mxu0
        %2661 = vmatprep.mubr.f32.mxu0 %v2044
        %2662 = vmatmul.mubr.f32.gmra.mrb[0].mxu0 %v2043
        %v2663 = vpop.f32.mrb[0].mxu0
        %v2664 = vadd.f32 0.0, %v2663
        %v2665 = vpop.f32.mrb[0].mxu0
        %2666 = vmatprep.mubr.f32.mxu0 %v2050
        %2667 = vmatmul.mubr.f32.gmra.mrb[0].mxu0 %v2049
        %v2668 = vpop.f32.mrb[0].mxu0
        %v2669 = vadd.f32 0.0, %v2668
        %v2670 = vpop.f32.mrb[0].mxu0
        %2671 = vdwg.mxu0
        %2672 = vmatprep.subr.mxu0 0.0
        %2673 = vmatpush1.msra.mxu0 %v2153
        %2674 = vmatprep.subr.mxu0 0.0
        %2675 = vmatpush1.msra.mxu0 %v2156
        %2676 = vmatprep.subr.mxu0 0.0
        %2677 = vmatpush1.msra.mxu0 %v2159
        %2678 = vmatprep.subr.mxu0 0.0
        %2679 = vmatpush1.msra.mxu0 %v2162
        %2680 = vmatprep.subr.mxu0 0.0
        %2681 = vmatpush1.msra.mxu0 %v2165
        %2682 = vmatprep.subr.mxu0 0.0
        %2683 = vmatpush1.msra.mxu0 %v2168
        %2684 = vmatprep.subr.mxu0 0.0
        %2685 = vmatpush1.msra.mxu0 %v2171
        %2686 = vmatprep.subr.mxu0 0.0
        %2687 = vmatpush1.msra.mxu0 %v2174
        %2688 = vmatprep.subr.mxu0 0.0
        %2689 = vmatpush1.msra.mxu0 %v2177
        %2690 = vmatprep.subr.mxu0 0.0
        %2691 = vmatpush1.msra.mxu0 %v2180
        %2692 = vmatprep.subr.mxu0 0.0
        %2693 = vmatpush1.msra.mxu0 %v2183
        %2694 = vmatprep.subr.mxu0 0.0
        %2695 = vmatpush1.msra.mxu0 %v2186
        %2696 = vmatprep.subr.mxu0 0.0
        %2697 = vmatpush1.msra.mxu0 %v2189
        %2698 = vmatprep.subr.mxu0 0.0
        %2699 = vmatpush1.msra.mxu0 %v2192
        %2700 = vmatprep.subr.mxu0 0.0
        %2701 = vmatpush1.msra.mxu0 %v2195
        %2702 = vmatprep.subr.mxu0 0.0
        %2703 = vmatpush1.msra.mxu0 %v2198
        %2704 = vmatprep.subr.mxu0 0.0
        %2705 = vmatpush1.msra.mxu0 %v2201
        %2706 = vmatprep.subr.mxu0 0.0
        %2707 = vmatpush1.msra.mxu0 %v2204
        %2708 = vmatprep.subr.mxu0 0.0
        %2709 = vmatpush1.msra.mxu0 %v2207
        %2710 = vmatprep.subr.mxu0 0.0
        %2711 = vmatpush1.msra.mxu0 %v2210
        %2712 = vmatprep.subr.mxu0 0.0
        %2713 = vmatpush1.msra.mxu0 %v2213
        %2714 = vmatprep.subr.mxu0 0.0
        %2715 = vmatpush1.msra.mxu0 %v2216
        %2716 = vmatprep.subr.mxu0 0.0
        %2717 = vmatpush1.msra.mxu0 %v2219
        %2718 = vmatprep.subr.mxu0 0.0
        %2719 = vmatpush1.msra.mxu0 %v2222
        %2720 = vmatprep.subr.mxu0 0.0
        %2721 = vmatpush1.msra.mxu0 %v2225
        %2722 = vmatprep.subr.mxu0 0.0
        %2723 = vmatpush1.msra.mxu0 %v2228
        %2724 = vmatprep.subr.mxu0 0.0
        %2725 = vmatpush1.msra.mxu0 %v2231
        %2726 = vmatprep.subr.mxu0 0.0
        %2727 = vmatpush1.msra.mxu0 %v2234
        %2728 = vmatprep.subr.mxu0 0.0
        %2729 = vmatpush1.msra.mxu0 %v2237
        %2730 = vmatprep.subr.mxu0 0.0
        %2731 = vmatpush1.msra.mxu0 %v2240
        %2732 = vmatprep.subr.mxu0 0.0
        %2733 = vmatpush1.msra.mxu0 %v2243
        %2734 = vmatprep.subr.mxu0 0.0
        %2735 = vmatpush1.msra.mxu0 %v2246
        %2736 = vmatprep.mubr.f32.mxu0 %v2040
        %2737 = vmatmul.mubr.f32.gmra.mrb[0].mxu0 %v2039
        %v2738 = vpop.f32.mrb[0].mxu0
        %v2739 = vadd.f32 %v2659, %v2738
        %v2740 = vpop.f32.mrb[0].mxu0
        %2741 = vmatprep.mubr.f32.mxu0 %v2046
        %2742 = vmatmul.mubr.f32.gmra.mrb[0].mxu0 %v2045
        %v2743 = vpop.f32.mrb[0].mxu0
        %v2744 = vadd.f32 %v2664, %v2743
        %v2745 = vpop.f32.mrb[0].mxu0
        %2746 = vmatprep.mubr.f32.mxu0 %v2052
        %2747 = vmatmul.mubr.f32.gmra.mrb[0].mxu0 %v2051
        %v2748 = vpop.f32.mrb[0].mxu0
        %v2749 = vadd.f32 %v2669, %v2748
        %v2750 = vpop.f32.mrb[0].mxu0
        %2751 = vdwg.mxu0
        %2752 = vmatprep.subr.mxu0 0.0
        %2753 = vmatpush1.msra.mxu0 %v2249
        %2754 = vmatprep.subr.mxu0 0.0
        %2755 = vmatpush1.msra.mxu0 %v2252
        %2756 = vmatprep.subr.mxu0 0.0
        %2757 = vmatpush1.msra.mxu0 %v2255
        %2758 = vmatprep.subr.mxu0 0.0
        %2759 = vmatpush1.msra.mxu0 %v2258
        %2760 = vmatprep.subr.mxu0 0.0
        %2761 = vmatpush1.msra.mxu0 %v2261
        %2762 = vmatprep.subr.mxu0 0.0
        %2763 = vmatpush1.msra.mxu0 %v2264
        %2764 = vmatprep.subr.mxu0 0.0
        %2765 = vmatpush1.msra.mxu0 %v2267
        %2766 = vmatprep.subr.mxu0 0.0
        %2767 = vmatpush1.msra.mxu0 %v2270
        %2768 = vmatprep.subr.mxu0 0.0
        %2769 = vmatpush1.msra.mxu0 %v2273
        %2770 = vmatprep.subr.mxu0 0.0
        %2771 = vmatpush1.msra.mxu0 %v2276
        %2772 = vmatprep.subr.mxu0 0.0
        %2773 = vmatpush1.msra.mxu0 %v2279
        %2774 = vmatprep.subr.mxu0 0.0
        %2775 = vmatpush1.msra.mxu0 %v2282
        %2776 = vmatprep.subr.mxu0 0.0
        %2777 = vmatpush1.msra.mxu0 %v2285
        %2778 = vmatprep.subr.mxu0 0.0
        %2779 = vmatpush1.msra.mxu0 %v2288
        %2780 = vmatprep.subr.mxu0 0.0
        %2781 = vmatpush1.msra.mxu0 %v2291
        %2782 = vmatprep.subr.mxu0 0.0
        %2783 = vmatpush1.msra.mxu0 %v2294
        %2784 = vmatprep.subr.mxu0 0.0
        %2785 = vmatpush1.msra.mxu0 %v2297
        %2786 = vmatprep.subr.mxu0 0.0
        %2787 = vmatpush1.msra.mxu0 %v2300
        %2788 = vmatprep.subr.mxu0 0.0
        %2789 = vmatpush1.msra.mxu0 %v2303
        %2790 = vmatprep.subr.mxu0 0.0
        %2791 = vmatpush1.msra.mxu0 %v2306
        %2792 = vmatprep.subr.mxu0 0.0
        %2793 = vmatpush1.msra.mxu0 %v2309
        %2794 = vmatprep.subr.mxu0 0.0
        %2795 = vmatpush1.msra.mxu0 %v2312
        %2796 = vmatprep.subr.mxu0 0.0
        %2797 = vmatpush1.msra.mxu0 %v2315
        %2798 = vmatprep.subr.mxu0 0.0
        %2799 = vmatpush1.msra.mxu0 %v2318
        %2800 = vmatprep.subr.mxu0 0.0
        %2801 = vmatpush1.msra.mxu0 %v2321
        %2802 = vmatprep.subr.mxu0 0.0
        %2803 = vmatpush1.msra.mxu0 %v2324
        %2804 = vmatprep.subr.mxu0 0.0
        %2805 = vmatpush1.msra.mxu0 %v2327
        %2806 = vmatprep.subr.mxu0 0.0
        %2807 = vmatpush1.msra.mxu0 %v2330
        %2808 = vmatprep.subr.mxu0 0.0
        %2809 = vmatpush1.msra.mxu0 %v2333
        %2810 = vmatprep.subr.mxu0 0.0
        %2811 = vmatpush1.msra.mxu0 %v2336
        %2812 = vmatprep.subr.mxu0 0.0
        %2813 = vmatpush1.msra.mxu0 %v2339
        %2814 = vmatprep.subr.mxu0 0.0
        %2815 = vmatpush1.msra.mxu0 %v2342
        %2816 = vmatprep.mubr.f32.mxu0 %v2042
        %2817 = vmatmul.mubr.f32.gmra.mrb[0].mxu0 %v2041
        %v2818 = vpop.f32.mrb[0].mxu0
        %v2819 = vadd.f32 %v2739, %v2818
        %v2820 = vpop.f32.mrb[0].mxu0
        %2821 = vmatprep.mubr.f32.mxu0 %v2048
        %2822 = vmatmul.mubr.f32.gmra.mrb[0].mxu0 %v2047
        %v2823 = vpop.f32.mrb[0].mxu0
        %v2824 = vadd.f32 %v2744, %v2823
        %v2825 = vpop.f32.mrb[0].mxu0
        %2826 = vmatprep.mubr.f32.mxu0 %v2054
        %2827 = vmatmul.mubr.f32.gmra.mrb[0].mxu0 %v2053
        %v2828 = vpop.f32.mrb[0].mxu0
        %v2829 = vadd.f32 %v2749, %v2828
        %v2830 = vpop.f32.mrb[0].mxu0
        %2831 = vdwg.mxu0
        %s2832 = scalar_lea.vmem [#allocation7], 2304
        %v2833 = vld [vmem:[%s2832] sm:$0xff]
        %v2834 = vld [vmem:[%s2832 + $0x8] sm:$0xff]
        %v2835 = vld [vmem:[%s2832 + $0x10] sm:$0xff]
        %v2836 = vld [vmem:[%s2832 + $0x18] sm:$0xff]
        %v2837 = vld [vmem:[%s2832 + $0x20] sm:$0xff]
        %v2838 = vld [vmem:[%s2832 + $0x28] sm:$0xff]
        %v2839 = vld [vmem:[%s2832 + $0x30] sm:$0xff]
        %v2840 = vld [vmem:[%s2832 + $0x38] sm:$0xff]
        %v2841 = vld [vmem:[%s2832 + $0x40] sm:$0xff]
        %v2842 = vld [vmem:[%s2832 + $0x48] sm:$0xff]
        %v2843 = vld [vmem:[%s2832 + $0x50] sm:$0xff]
        %v2844 = vld [vmem:[%s2832 + $0x58] sm:$0xff]
        %v2845 = vld [vmem:[%s2832 + $0x60] sm:$0xff]
        %v2846 = vld [vmem:[%s2832 + $0x68] sm:$0xff]
        %v2847 = vld [vmem:[%s2832 + $0x70] sm:$0xff]
        %v2848 = vld [vmem:[%s2832 + $0x78] sm:$0xff]
        %v2849 = vld [vmem:[%s2832 + $0x80] sm:$0xff]
        %v2850 = vld [vmem:[%s2832 + $0x88] sm:$0xff]
        %v2851 = vld [vmem:[%s2832 + $0x90] sm:$0xff]
        %v2852 = vld [vmem:[%s2832 + $0x98] sm:$0xff]
        %v2853 = vld [vmem:[%s2832 + $0xa0] sm:$0xff]
        %v2854 = vld [vmem:[%s2832 + $0xa8] sm:$0xff]
        %v2855 = vld [vmem:[%s2832 + $0xb0] sm:$0xff]
        %v2856 = vld [vmem:[%s2832 + $0xb8] sm:$0xff]
        %v2857 = vld [vmem:[%s2832 + $0xc0] sm:$0xff]
        %v2858 = vld [vmem:[%s2832 + $0xc8] sm:$0xff]
        %v2859 = vld [vmem:[%s2832 + $0xd0] sm:$0xff]
        %v2860 = vld [vmem:[%s2832 + $0xd8] sm:$0xff]
        %v2861 = vld [vmem:[%s2832 + $0xe0] sm:$0xff]
        %v2862 = vld [vmem:[%s2832 + $0xe8] sm:$0xff]
        %v2863 = vld [vmem:[%s2832 + $0xf0] sm:$0xff]
        %v2864 = vld [vmem:[%s2832 + $0xf8] sm:$0xff]
        %v2865 = vld [vmem:[%s2832 + $0x100] sm:$0xff]
        %v2866 = vld [vmem:[%s2832 + $0x108] sm:$0xff]
        %v2867 = vld [vmem:[%s2832 + $0x110] sm:$0xff]
        %v2868 = vld [vmem:[%s2832 + $0x118] sm:$0xff]
        %v2869 = vld [vmem:[%s2832 + $0x120] sm:$0xff]
        %v2870 = vld [vmem:[%s2832 + $0x128] sm:$0xff]
        %v2871 = vld [vmem:[%s2832 + $0x130] sm:$0xff]
        %v2872 = vld [vmem:[%s2832 + $0x138] sm:$0xff]
        %v2873 = vld [vmem:[%s2832 + $0x140] sm:$0xff]
        %v2874 = vld [vmem:[%s2832 + $0x148] sm:$0xff]
        %v2875 = vld [vmem:[%s2832 + $0x150] sm:$0xff]
        %v2876 = vld [vmem:[%s2832 + $0x158] sm:$0xff]
        %v2877 = vld [vmem:[%s2832 + $0x160] sm:$0xff]
        %v2878 = vld [vmem:[%s2832 + $0x168] sm:$0xff]
        %v2879 = vld [vmem:[%s2832 + $0x170] sm:$0xff]
        %v2880 = vld [vmem:[%s2832 + $0x178] sm:$0xff]
        %v2881 = vld [vmem:[%s2832 + $0x180] sm:$0xff]
        %v2882 = vld [vmem:[%s2832 + $0x188] sm:$0xff]
        %v2883 = vld [vmem:[%s2832 + $0x190] sm:$0xff]
        %v2884 = vld [vmem:[%s2832 + $0x198] sm:$0xff]
        %v2885 = vld [vmem:[%s2832 + $0x1a0] sm:$0xff]
        %v2886 = vld [vmem:[%s2832 + $0x1a8] sm:$0xff]
        %v2887 = vld [vmem:[%s2832 + $0x1b0] sm:$0xff]
        %v2888 = vld [vmem:[%s2832 + $0x1b8] sm:$0xff]
        %v2889 = vld [vmem:[%s2832 + $0x1c0] sm:$0xff]
        %v2890 = vld [vmem:[%s2832 + $0x1c8] sm:$0xff]
        %v2891 = vld [vmem:[%s2832 + $0x1d0] sm:$0xff]
        %v2892 = vld [vmem:[%s2832 + $0x1d8] sm:$0xff]
        %v2893 = vld [vmem:[%s2832 + $0x1e0] sm:$0xff]
        %v2894 = vld [vmem:[%s2832 + $0x1e8] sm:$0xff]
        %v2895 = vld [vmem:[%s2832 + $0x1f0] sm:$0xff]
        %v2896 = vld [vmem:[%s2832 + $0x1f8] sm:$0xff]
        %v2897 = vld [vmem:[%s2832 + $0x200] sm:$0xff]
        %v2898 = vld [vmem:[%s2832 + $0x208] sm:$0xff]
        %v2899 = vld [vmem:[%s2832 + $0x210] sm:$0xff]
        %v2900 = vld [vmem:[%s2832 + $0x218] sm:$0xff]
        %v2901 = vld [vmem:[%s2832 + $0x220] sm:$0xff]
        %v2902 = vld [vmem:[%s2832 + $0x228] sm:$0xff]
        %v2903 = vld [vmem:[%s2832 + $0x230] sm:$0xff]
        %v2904 = vld [vmem:[%s2832 + $0x238] sm:$0xff]
        %v2905 = vld [vmem:[%s2832 + $0x240] sm:$0xff]
        %v2906 = vld [vmem:[%s2832 + $0x248] sm:$0xff]
        %v2907 = vld [vmem:[%s2832 + $0x250] sm:$0xff]
        %v2908 = vld [vmem:[%s2832 + $0x258] sm:$0xff]
        %v2909 = vld [vmem:[%s2832 + $0x260] sm:$0xff]
        %v2910 = vld [vmem:[%s2832 + $0x268] sm:$0xff]
        %v2911 = vld [vmem:[%s2832 + $0x270] sm:$0xff]
        %v2912 = vld [vmem:[%s2832 + $0x278] sm:$0xff]
        %v2913 = vld [vmem:[%s2832 + $0x280] sm:$0xff]
        %v2914 = vld [vmem:[%s2832 + $0x288] sm:$0xff]
        %v2915 = vld [vmem:[%s2832 + $0x290] sm:$0xff]
        %v2916 = vld [vmem:[%s2832 + $0x298] sm:$0xff]
        %v2917 = vld [vmem:[%s2832 + $0x2a0] sm:$0xff]
        %v2918 = vld [vmem:[%s2832 + $0x2a8] sm:$0xff]
        %v2919 = vld [vmem:[%s2832 + $0x2b0] sm:$0xff]
        %v2920 = vld [vmem:[%s2832 + $0x2b8] sm:$0xff]
        %v2921 = vld [vmem:[%s2832 + $0x2c0] sm:$0xff]
        %v2922 = vld [vmem:[%s2832 + $0x2c8] sm:$0xff]
        %v2923 = vld [vmem:[%s2832 + $0x2d0] sm:$0xff]
        %v2924 = vld [vmem:[%s2832 + $0x2d8] sm:$0xff]
        %v2925 = vld [vmem:[%s2832 + $0x2e0] sm:$0xff]
        %v2926 = vld [vmem:[%s2832 + $0x2e8] sm:$0xff]
        %v2927 = vld [vmem:[%s2832 + $0x2f0] sm:$0xff]
        %v2928 = vld [vmem:[%s2832 + $0x2f8] sm:$0xff]
        %v2929 = vld [vmem:[%s2832 + $0x300] sm:$0xff]
        %v2930 = vld [vmem:[%s2832 + $0x308] sm:$0xff]
        %v2931 = vld [vmem:[%s2832 + $0x310] sm:$0xff]
        %v2932 = vld [vmem:[%s2832 + $0x318] sm:$0xff]
        %v2933 = vld [vmem:[%s2832 + $0x320] sm:$0xff]
        %v2934 = vld [vmem:[%s2832 + $0x328] sm:$0xff]
        %v2935 = vld [vmem:[%s2832 + $0x330] sm:$0xff]
        %v2936 = vld [vmem:[%s2832 + $0x338] sm:$0xff]
        %v2937 = vld [vmem:[%s2832 + $0x340] sm:$0xff]
        %v2938 = vld [vmem:[%s2832 + $0x348] sm:$0xff]
        %v2939 = vld [vmem:[%s2832 + $0x350] sm:$0xff]
        %v2940 = vld [vmem:[%s2832 + $0x358] sm:$0xff]
        %v2941 = vld [vmem:[%s2832 + $0x360] sm:$0xff]
        %v2942 = vld [vmem:[%s2832 + $0x368] sm:$0xff]
        %v2943 = vld [vmem:[%s2832 + $0x370] sm:$0xff]
        %v2944 = vld [vmem:[%s2832 + $0x378] sm:$0xff]
        %v2945 = vld [vmem:[%s2832 + $0x380] sm:$0xff]
        %v2946 = vld [vmem:[%s2832 + $0x388] sm:$0xff]
        %v2947 = vld [vmem:[%s2832 + $0x390] sm:$0xff]
        %v2948 = vld [vmem:[%s2832 + $0x398] sm:$0xff]
        %v2949 = vld [vmem:[%s2832 + $0x3a0] sm:$0xff]
        %v2950 = vld [vmem:[%s2832 + $0x3a8] sm:$0xff]
        %v2951 = vld [vmem:[%s2832 + $0x3b0] sm:$0xff]
        %v2952 = vld [vmem:[%s2832 + $0x3b8] sm:$0xff]
        %v2953 = vld [vmem:[%s2832 + $0x3c0] sm:$0xff]
        %v2954 = vld [vmem:[%s2832 + $0x3c8] sm:$0xff]
        %v2955 = vld [vmem:[%s2832 + $0x3d0] sm:$0xff]
        %v2956 = vld [vmem:[%s2832 + $0x3d8] sm:$0xff]
        %v2957 = vld [vmem:[%s2832 + $0x3e0] sm:$0xff]
        %v2958 = vld [vmem:[%s2832 + $0x3e8] sm:$0xff]
        %v2959 = vld [vmem:[%s2832 + $0x3f0] sm:$0xff]
        %v2960 = vld [vmem:[%s2832 + $0x3f8] sm:$0xff]
        %v2961 = vld [vmem:[%s2832 + $0x400] sm:$0xff]
        %v2962 = vld [vmem:[%s2832 + $0x408] sm:$0xff]
        %v2963 = vld [vmem:[%s2832 + $0x410] sm:$0xff]
        %v2964 = vld [vmem:[%s2832 + $0x418] sm:$0xff]
        %v2965 = vld [vmem:[%s2832 + $0x420] sm:$0xff]
        %v2966 = vld [vmem:[%s2832 + $0x428] sm:$0xff]
        %v2967 = vld [vmem:[%s2832 + $0x430] sm:$0xff]
        %v2968 = vld [vmem:[%s2832 + $0x438] sm:$0xff]
        %v2969 = vld [vmem:[%s2832 + $0x440] sm:$0xff]
        %v2970 = vld [vmem:[%s2832 + $0x448] sm:$0xff]
        %v2971 = vld [vmem:[%s2832 + $0x450] sm:$0xff]
        %v2972 = vld [vmem:[%s2832 + $0x458] sm:$0xff]
        %v2973 = vld [vmem:[%s2832 + $0x460] sm:$0xff]
        %v2974 = vld [vmem:[%s2832 + $0x468] sm:$0xff]
        %v2975 = vld [vmem:[%s2832 + $0x470] sm:$0xff]
        %v2976 = vld [vmem:[%s2832 + $0x478] sm:$0xff]
        %v2977 = vld [vmem:[%s2832 + $0x480] sm:$0xff]
        %v2978 = vld [vmem:[%s2832 + $0x488] sm:$0xff]
        %v2979 = vld [vmem:[%s2832 + $0x490] sm:$0xff]
        %v2980 = vld [vmem:[%s2832 + $0x498] sm:$0xff]
        %v2981 = vld [vmem:[%s2832 + $0x4a0] sm:$0xff]
        %v2982 = vld [vmem:[%s2832 + $0x4a8] sm:$0xff]
        %v2983 = vld [vmem:[%s2832 + $0x4b0] sm:$0xff]
        %v2984 = vld [vmem:[%s2832 + $0x4b8] sm:$0xff]
        %v2985 = vld [vmem:[%s2832 + $0x4c0] sm:$0xff]
        %v2986 = vld [vmem:[%s2832 + $0x4c8] sm:$0xff]
        %v2987 = vld [vmem:[%s2832 + $0x4d0] sm:$0xff]
        %v2988 = vld [vmem:[%s2832 + $0x4d8] sm:$0xff]
        %v2989 = vld [vmem:[%s2832 + $0x4e0] sm:$0xff]
        %v2990 = vld [vmem:[%s2832 + $0x4e8] sm:$0xff]
        %v2991 = vld [vmem:[%s2832 + $0x4f0] sm:$0xff]
        %v2992 = vld [vmem:[%s2832 + $0x4f8] sm:$0xff]
        %v2993 = vld [vmem:[%s2832 + $0x500] sm:$0xff]
        %v2994 = vld [vmem:[%s2832 + $0x508] sm:$0xff]
        %v2995 = vld [vmem:[%s2832 + $0x510] sm:$0xff]
        %v2996 = vld [vmem:[%s2832 + $0x518] sm:$0xff]
        %v2997 = vld [vmem:[%s2832 + $0x520] sm:$0xff]
        %v2998 = vld [vmem:[%s2832 + $0x528] sm:$0xff]
        %v2999 = vld [vmem:[%s2832 + $0x530] sm:$0xff]
        %v3000 = vld [vmem:[%s2832 + $0x538] sm:$0xff]
        %v3001 = vld [vmem:[%s2832 + $0x540] sm:$0xff]
        %v3002 = vld [vmem:[%s2832 + $0x548] sm:$0xff]
        %v3003 = vld [vmem:[%s2832 + $0x550] sm:$0xff]
        %v3004 = vld [vmem:[%s2832 + $0x558] sm:$0xff]
        %v3005 = vld [vmem:[%s2832 + $0x560] sm:$0xff]
        %v3006 = vld [vmem:[%s2832 + $0x568] sm:$0xff]
        %v3007 = vld [vmem:[%s2832 + $0x570] sm:$0xff]
        %v3008 = vld [vmem:[%s2832 + $0x578] sm:$0xff]
        %v3009 = vld [vmem:[%s2832 + $0x580] sm:$0xff]
        %v3010 = vld [vmem:[%s2832 + $0x588] sm:$0xff]
        %v3011 = vld [vmem:[%s2832 + $0x590] sm:$0xff]
        %v3012 = vld [vmem:[%s2832 + $0x598] sm:$0xff]
        %v3013 = vld [vmem:[%s2832 + $0x5a0] sm:$0xff]
        %v3014 = vld [vmem:[%s2832 + $0x5a8] sm:$0xff]
        %v3015 = vld [vmem:[%s2832 + $0x5b0] sm:$0xff]
        %v3016 = vld [vmem:[%s2832 + $0x5b8] sm:$0xff]
        %v3017 = vld [vmem:[%s2832 + $0x5c0] sm:$0xff]
        %v3018 = vld [vmem:[%s2832 + $0x5c8] sm:$0xff]
        %v3019 = vld [vmem:[%s2832 + $0x5d0] sm:$0xff]
        %v3020 = vld [vmem:[%s2832 + $0x5d8] sm:$0xff]
        %v3021 = vld [vmem:[%s2832 + $0x5e0] sm:$0xff]
        %v3022 = vld [vmem:[%s2832 + $0x5e8] sm:$0xff]
        %v3023 = vld [vmem:[%s2832 + $0x5f0] sm:$0xff]
        %v3024 = vld [vmem:[%s2832 + $0x5f8] sm:$0xff]
        %v3025 = vld [vmem:[%s2832 + $0x600] sm:$0xff]
        %v3026 = vld [vmem:[%s2832 + $0x608] sm:$0xff]
        %v3027 = vld [vmem:[%s2832 + $0x610] sm:$0xff]
        %v3028 = vld [vmem:[%s2832 + $0x618] sm:$0xff]
        %v3029 = vld [vmem:[%s2832 + $0x620] sm:$0xff]
        %v3030 = vld [vmem:[%s2832 + $0x628] sm:$0xff]
        %v3031 = vld [vmem:[%s2832 + $0x630] sm:$0xff]
        %v3032 = vld [vmem:[%s2832 + $0x638] sm:$0xff]
        %v3033 = vld [vmem:[%s2832 + $0x640] sm:$0xff]
        %v3034 = vld [vmem:[%s2832 + $0x648] sm:$0xff]
        %v3035 = vld [vmem:[%s2832 + $0x650] sm:$0xff]
        %v3036 = vld [vmem:[%s2832 + $0x658] sm:$0xff]
        %v3037 = vld [vmem:[%s2832 + $0x660] sm:$0xff]
        %v3038 = vld [vmem:[%s2832 + $0x668] sm:$0xff]
        %v3039 = vld [vmem:[%s2832 + $0x670] sm:$0xff]
        %v3040 = vld [vmem:[%s2832 + $0x678] sm:$0xff]
        %v3041 = vld [vmem:[%s2832 + $0x680] sm:$0xff]
        %v3042 = vld [vmem:[%s2832 + $0x688] sm:$0xff]
        %v3043 = vld [vmem:[%s2832 + $0x690] sm:$0xff]
        %v3044 = vld [vmem:[%s2832 + $0x698] sm:$0xff]
        %v3045 = vld [vmem:[%s2832 + $0x6a0] sm:$0xff]
        %v3046 = vld [vmem:[%s2832 + $0x6a8] sm:$0xff]
        %v3047 = vld [vmem:[%s2832 + $0x6b0] sm:$0xff]
        %v3048 = vld [vmem:[%s2832 + $0x6b8] sm:$0xff]
        %v3049 = vld [vmem:[%s2832 + $0x6c0] sm:$0xff]
        %v3050 = vld [vmem:[%s2832 + $0x6c8] sm:$0xff]
        %v3051 = vld [vmem:[%s2832 + $0x6d0] sm:$0xff]
        %v3052 = vld [vmem:[%s2832 + $0x6d8] sm:$0xff]
        %v3053 = vld [vmem:[%s2832 + $0x6e0] sm:$0xff]
        %v3054 = vld [vmem:[%s2832 + $0x6e8] sm:$0xff]
        %v3055 = vld [vmem:[%s2832 + $0x6f0] sm:$0xff]
        %v3056 = vld [vmem:[%s2832 + $0x6f8] sm:$0xff]
        %v3057 = vld [vmem:[%s2832 + $0x700] sm:$0xff]
        %v3058 = vld [vmem:[%s2832 + $0x708] sm:$0xff]
        %v3059 = vld [vmem:[%s2832 + $0x710] sm:$0xff]
        %v3060 = vld [vmem:[%s2832 + $0x718] sm:$0xff]
        %v3061 = vld [vmem:[%s2832 + $0x720] sm:$0xff]
        %v3062 = vld [vmem:[%s2832 + $0x728] sm:$0xff]
        %v3063 = vld [vmem:[%s2832 + $0x730] sm:$0xff]
        %v3064 = vld [vmem:[%s2832 + $0x738] sm:$0xff]
        %v3065 = vld [vmem:[%s2832 + $0x740] sm:$0xff]
        %v3066 = vld [vmem:[%s2832 + $0x748] sm:$0xff]
        %v3067 = vld [vmem:[%s2832 + $0x750] sm:$0xff]
        %v3068 = vld [vmem:[%s2832 + $0x758] sm:$0xff]
        %v3069 = vld [vmem:[%s2832 + $0x760] sm:$0xff]
        %v3070 = vld [vmem:[%s2832 + $0x768] sm:$0xff]
        %v3071 = vld [vmem:[%s2832 + $0x770] sm:$0xff]
        %v3072 = vld [vmem:[%s2832 + $0x778] sm:$0xff]
        %v3073 = vld [vmem:[%s2832 + $0x780] sm:$0xff]
        %v3074 = vld [vmem:[%s2832 + $0x788] sm:$0xff]
        %v3075 = vld [vmem:[%s2832 + $0x790] sm:$0xff]
        %v3076 = vld [vmem:[%s2832 + $0x798] sm:$0xff]
        %v3077 = vld [vmem:[%s2832 + $0x7a0] sm:$0xff]
        %v3078 = vld [vmem:[%s2832 + $0x7a8] sm:$0xff]
        %v3079 = vld [vmem:[%s2832 + $0x7b0] sm:$0xff]
        %v3080 = vld [vmem:[%s2832 + $0x7b8] sm:$0xff]
        %v3081 = vld [vmem:[%s2832 + $0x7c0] sm:$0xff]
        %v3082 = vld [vmem:[%s2832 + $0x7c8] sm:$0xff]
        %v3083 = vld [vmem:[%s2832 + $0x7d0] sm:$0xff]
        %v3084 = vld [vmem:[%s2832 + $0x7d8] sm:$0xff]
        %v3085 = vld [vmem:[%s2832 + $0x7e0] sm:$0xff]
        %v3086 = vld [vmem:[%s2832 + $0x7e8] sm:$0xff]
        %v3087 = vld [vmem:[%s2832 + $0x7f0] sm:$0xff]
        %v3088 = vld [vmem:[%s2832 + $0x7f8] sm:$0xff]
        %v3089 = vld [vmem:[%s2832 + $0x800] sm:$0xff]
        %v3090 = vld [vmem:[%s2832 + $0x808] sm:$0xff]
        %v3091 = vld [vmem:[%s2832 + $0x810] sm:$0xff]
        %v3092 = vld [vmem:[%s2832 + $0x818] sm:$0xff]
        %v3093 = vld [vmem:[%s2832 + $0x820] sm:$0xff]
        %v3094 = vld [vmem:[%s2832 + $0x828] sm:$0xff]
        %v3095 = vld [vmem:[%s2832 + $0x830] sm:$0xff]
        %v3096 = vld [vmem:[%s2832 + $0x838] sm:$0xff]
        %v3097 = vld [vmem:[%s2832 + $0x840] sm:$0xff]
        %v3098 = vld [vmem:[%s2832 + $0x848] sm:$0xff]
        %v3099 = vld [vmem:[%s2832 + $0x850] sm:$0xff]
        %v3100 = vld [vmem:[%s2832 + $0x858] sm:$0xff]
        %v3101 = vld [vmem:[%s2832 + $0x860] sm:$0xff]
        %v3102 = vld [vmem:[%s2832 + $0x868] sm:$0xff]
        %v3103 = vld [vmem:[%s2832 + $0x870] sm:$0xff]
        %v3104 = vld [vmem:[%s2832 + $0x878] sm:$0xff]
        %v3105 = vld [vmem:[%s2832 + $0x880] sm:$0xff]
        %v3106 = vld [vmem:[%s2832 + $0x888] sm:$0xff]
        %v3107 = vld [vmem:[%s2832 + $0x890] sm:$0xff]
        %v3108 = vld [vmem:[%s2832 + $0x898] sm:$0xff]
        %v3109 = vld [vmem:[%s2832 + $0x8a0] sm:$0xff]
        %v3110 = vld [vmem:[%s2832 + $0x8a8] sm:$0xff]
        %v3111 = vld [vmem:[%s2832 + $0x8b0] sm:$0xff]
        %v3112 = vld [vmem:[%s2832 + $0x8b8] sm:$0xff]
        %v3113 = vld [vmem:[%s2832 + $0x8c0] sm:$0xff]
        %v3114 = vld [vmem:[%s2832 + $0x8c8] sm:$0xff]
        %v3115 = vld [vmem:[%s2832 + $0x8d0] sm:$0xff]
        %v3116 = vld [vmem:[%s2832 + $0x8d8] sm:$0xff]
        %v3117 = vld [vmem:[%s2832 + $0x8e0] sm:$0xff]
        %v3118 = vld [vmem:[%s2832 + $0x8e8] sm:$0xff]
        %v3119 = vld [vmem:[%s2832 + $0x8f0] sm:$0xff]
        %v3120 = vld [vmem:[%s2832 + $0x8f8] sm:$0xff]
        %3121 = vmatprep.subr.mxu0 %v2834
        %3122 = vmatpush1.msra.mxu0 %v2833
        %3123 = vmatprep.subr.mxu0 %v2837
        %3124 = vmatpush1.msra.mxu0 %v2836
        %3125 = vmatprep.subr.mxu0 %v2840
        %3126 = vmatpush1.msra.mxu0 %v2839
        %3127 = vmatprep.subr.mxu0 %v2843
        %3128 = vmatpush1.msra.mxu0 %v2842
        %3129 = vmatprep.subr.mxu0 %v2846
        %3130 = vmatpush1.msra.mxu0 %v2845
        %3131 = vmatprep.subr.mxu0 %v2849
        %3132 = vmatpush1.msra.mxu0 %v2848
        %3133 = vmatprep.subr.mxu0 %v2852
        %3134 = vmatpush1.msra.mxu0 %v2851
        %3135 = vmatprep.subr.mxu0 %v2855
        %3136 = vmatpush1.msra.mxu0 %v2854
        %3137 = vmatprep.subr.mxu0 %v2858
        %3138 = vmatpush1.msra.mxu0 %v2857
        %3139 = vmatprep.subr.mxu0 %v2861
        %3140 = vmatpush1.msra.mxu0 %v2860
        %3141 = vmatprep.subr.mxu0 %v2864
        %3142 = vmatpush1.msra.mxu0 %v2863
        %3143 = vmatprep.subr.mxu0 %v2867
        %3144 = vmatpush1.msra.mxu0 %v2866
        %3145 = vmatprep.subr.mxu0 %v2870
        %3146 = vmatpush1.msra.mxu0 %v2869
        %3147 = vmatprep.subr.mxu0 %v2873
        %3148 = vmatpush1.msra.mxu0 %v2872
        %3149 = vmatprep.subr.mxu0 %v2876
        %3150 = vmatpush1.msra.mxu0 %v2875
        %3151 = vmatprep.subr.mxu0 %v2879
        %3152 = vmatpush1.msra.mxu0 %v2878
        %3153 = vmatprep.subr.mxu0 %v2882
        %3154 = vmatpush1.msra.mxu0 %v2881
        %3155 = vmatprep.subr.mxu0 %v2885
        %3156 = vmatpush1.msra.mxu0 %v2884
        %3157 = vmatprep.subr.mxu0 %v2888
        %3158 = vmatpush1.msra.mxu0 %v2887
        %3159 = vmatprep.subr.mxu0 %v2891
        %3160 = vmatpush1.msra.mxu0 %v2890
        %3161 = vmatprep.subr.mxu0 %v2894
        %3162 = vmatpush1.msra.mxu0 %v2893
        %3163 = vmatprep.subr.mxu0 %v2897
        %3164 = vmatpush1.msra.mxu0 %v2896
        %3165 = vmatprep.subr.mxu0 %v2900
        %3166 = vmatpush1.msra.mxu0 %v2899
        %3167 = vmatprep.subr.mxu0 %v2903
        %3168 = vmatpush1.msra.mxu0 %v2902
        %3169 = vmatprep.subr.mxu0 %v2906
        %3170 = vmatpush1.msra.mxu0 %v2905
        %3171 = vmatprep.subr.mxu0 %v2909
        %3172 = vmatpush1.msra.mxu0 %v2908
        %3173 = vmatprep.subr.mxu0 %v2912
        %3174 = vmatpush1.msra.mxu0 %v2911
        %3175 = vmatprep.subr.mxu0 %v2915
        %3176 = vmatpush1.msra.mxu0 %v2914
        %3177 = vmatprep.subr.mxu0 %v2918
        %3178 = vmatpush1.msra.mxu0 %v2917
        %3179 = vmatprep.subr.mxu0 %v2921
        %3180 = vmatpush1.msra.mxu0 %v2920
        %3181 = vmatprep.subr.mxu0 %v2924
        %3182 = vmatpush1.msra.mxu0 %v2923
        %3183 = vmatprep.subr.mxu0 %v2927
        %3184 = vmatpush1.msra.mxu0 %v2926
        %3185 = vmatprep.mubr.f32.mxu0 %v2038
        %3186 = vmatmul.mubr.f32.gmra.mrb[0].mxu0 %v2037
        %v3187 = vpop.f32.mrb[0].mxu0
        %v3188 = vadd.f32 0.0, %v3187
        %v3189 = vpop.f32.mrb[0].mxu0
        %v3190 = vadd.f32 0.0, %v3189
        %3191 = vmatprep.mubr.f32.mxu0 %v2044
        %3192 = vmatmul.mubr.f32.gmra.mrb[0].mxu0 %v2043
        %v3193 = vpop.f32.mrb[0].mxu0
        %v3194 = vadd.f32 0.0, %v3193
        %v3195 = vpop.f32.mrb[0].mxu0
        %v3196 = vadd.f32 0.0, %v3195
        %3197 = vmatprep.mubr.f32.mxu0 %v2050
        %3198 = vmatmul.mubr.f32.gmra.mrb[0].mxu0 %v2049
        %v3199 = vpop.f32.mrb[0].mxu0
        %v3200 = vadd.f32 0.0, %v3199
        %v3201 = vpop.f32.mrb[0].mxu0
        %v3202 = vadd.f32 0.0, %v3201
        %3203 = vdwg.mxu0
        %3204 = vmatprep.subr.mxu0 %v2930
        %3205 = vmatpush1.msra.mxu0 %v2929
        %3206 = vmatprep.subr.mxu0 %v2933
        %3207 = vmatpush1.msra.mxu0 %v2932
        %3208 = vmatprep.subr.mxu0 %v2936
        %3209 = vmatpush1.msra.mxu0 %v2935
        %3210 = vmatprep.subr.mxu0 %v2939
        %3211 = vmatpush1.msra.mxu0 %v2938
        %3212 = vmatprep.subr.mxu0 %v2942
        %3213 = vmatpush1.msra.mxu0 %v2941
        %3214 = vmatprep.subr.mxu0 %v2945
        %3215 = vmatpush1.msra.mxu0 %v2944
        %3216 = vmatprep.subr.mxu0 %v2948
        %3217 = vmatpush1.msra.mxu0 %v2947
        %3218 = vmatprep.subr.mxu0 %v2951
        %3219 = vmatpush1.msra.mxu0 %v2950
        %3220 = vmatprep.subr.mxu0 %v2954
        %3221 = vmatpush1.msra.mxu0 %v2953
        %3222 = vmatprep.subr.mxu0 %v2957
        %3223 = vmatpush1.msra.mxu0 %v2956
        %3224 = vmatprep.subr.mxu0 %v2960
        %3225 = vmatpush1.msra.mxu0 %v2959
        %3226 = vmatprep.subr.mxu0 %v2963
        %3227 = vmatpush1.msra.mxu0 %v2962
        %3228 = vmatprep.subr.mxu0 %v2966
        %3229 = vmatpush1.msra.mxu0 %v2965
        %3230 = vmatprep.subr.mxu0 %v2969
        %3231 = vmatpush1.msra.mxu0 %v2968
        %3232 = vmatprep.subr.mxu0 %v2972
        %3233 = vmatpush1.msra.mxu0 %v2971
        %3234 = vmatprep.subr.mxu0 %v2975
        %3235 = vmatpush1.msra.mxu0 %v2974
        %3236 = vmatprep.subr.mxu0 %v2978
        %3237 = vmatpush1.msra.mxu0 %v2977
        %3238 = vmatprep.subr.mxu0 %v2981
        %3239 = vmatpush1.msra.mxu0 %v2980
        %3240 = vmatprep.subr.mxu0 %v2984
        %3241 = vmatpush1.msra.mxu0 %v2983
        %3242 = vmatprep.subr.mxu0 %v2987
        %3243 = vmatpush1.msra.mxu0 %v2986
        %3244 = vmatprep.subr.mxu0 %v2990
        %3245 = vmatpush1.msra.mxu0 %v2989
        %3246 = vmatprep.subr.mxu0 %v2993
        %3247 = vmatpush1.msra.mxu0 %v2992
        %3248 = vmatprep.subr.mxu0 %v2996
        %3249 = vmatpush1.msra.mxu0 %v2995
        %3250 = vmatprep.subr.mxu0 %v2999
        %3251 = vmatpush1.msra.mxu0 %v2998
        %3252 = vmatprep.subr.mxu0 %v3002
        %3253 = vmatpush1.msra.mxu0 %v3001
        %3254 = vmatprep.subr.mxu0 %v3005
        %3255 = vmatpush1.msra.mxu0 %v3004
        %3256 = vmatprep.subr.mxu0 %v3008
        %3257 = vmatpush1.msra.mxu0 %v3007
        %3258 = vmatprep.subr.mxu0 %v3011
        %3259 = vmatpush1.msra.mxu0 %v3010
        %3260 = vmatprep.subr.mxu0 %v3014
        %3261 = vmatpush1.msra.mxu0 %v3013
        %3262 = vmatprep.subr.mxu0 %v3017
        %3263 = vmatpush1.msra.mxu0 %v3016
        %3264 = vmatprep.subr.mxu0 %v3020
        %3265 = vmatpush1.msra.mxu0 %v3019
        %3266 = vmatprep.subr.mxu0 %v3023
        %3267 = vmatpush1.msra.mxu0 %v3022
        %3268 = vmatprep.mubr.f32.mxu0 %v2040
        %3269 = vmatmul.mubr.f32.gmra.mrb[0].mxu0 %v2039
        %v3270 = vpop.f32.mrb[0].mxu0
        %v3271 = vadd.f32 %v3188, %v3270
        %v3272 = vpop.f32.mrb[0].mxu0
        %v3273 = vadd.f32 %v3190, %v3272
        %3274 = vmatprep.mubr.f32.mxu0 %v2046
        %3275 = vmatmul.mubr.f32.gmra.mrb[0].mxu0 %v2045
        %v3276 = vpop.f32.mrb[0].mxu0
        %v3277 = vadd.f32 %v3194, %v3276
        %v3278 = vpop.f32.mrb[0].mxu0
        %v3279 = vadd.f32 %v3196, %v3278
        %3280 = vmatprep.mubr.f32.mxu0 %v2052
        %3281 = vmatmul.mubr.f32.gmra.mrb[0].mxu0 %v2051
        %v3282 = vpop.f32.mrb[0].mxu0
        %v3283 = vadd.f32 %v3200, %v3282
        %v3284 = vpop.f32.mrb[0].mxu0
        %v3285 = vadd.f32 %v3202, %v3284
        %3286 = vdwg.mxu0
        %3287 = vmatprep.subr.mxu0 %v3026
        %3288 = vmatpush1.msra.mxu0 %v3025
        %3289 = vmatprep.subr.mxu0 %v3029
        %3290 = vmatpush1.msra.mxu0 %v3028
        %3291 = vmatprep.subr.mxu0 %v3032
        %3292 = vmatpush1.msra.mxu0 %v3031
        %3293 = vmatprep.subr.mxu0 %v3035
        %3294 = vmatpush1.msra.mxu0 %v3034
        %3295 = vmatprep.subr.mxu0 %v3038
        %3296 = vmatpush1.msra.mxu0 %v3037
        %3297 = vmatprep.subr.mxu0 %v3041
        %3298 = vmatpush1.msra.mxu0 %v3040
        %3299 = vmatprep.subr.mxu0 %v3044
        %3300 = vmatpush1.msra.mxu0 %v3043
        %3301 = vmatprep.subr.mxu0 %v3047
        %3302 = vmatpush1.msra.mxu0 %v3046
        %3303 = vmatprep.subr.mxu0 %v3050
        %3304 = vmatpush1.msra.mxu0 %v3049
        %3305 = vmatprep.subr.mxu0 %v3053
        %3306 = vmatpush1.msra.mxu0 %v3052
        %3307 = vmatprep.subr.mxu0 %v3056
        %3308 = vmatpush1.msra.mxu0 %v3055
        %3309 = vmatprep.subr.mxu0 %v3059
        %3310 = vmatpush1.msra.mxu0 %v3058
        %3311 = vmatprep.subr.mxu0 %v3062
        %3312 = vmatpush1.msra.mxu0 %v3061
        %3313 = vmatprep.subr.mxu0 %v3065
        %3314 = vmatpush1.msra.mxu0 %v3064
        %3315 = vmatprep.subr.mxu0 %v3068
        %3316 = vmatpush1.msra.mxu0 %v3067
        %3317 = vmatprep.subr.mxu0 %v3071
        %3318 = vmatpush1.msra.mxu0 %v3070
        %3319 = vmatprep.subr.mxu0 %v3074
        %3320 = vmatpush1.msra.mxu0 %v3073
        %3321 = vmatprep.subr.mxu0 %v3077
        %3322 = vmatpush1.msra.mxu0 %v3076
        %3323 = vmatprep.subr.mxu0 %v3080
        %3324 = vmatpush1.msra.mxu0 %v3079
        %3325 = vmatprep.subr.mxu0 %v3083
        %3326 = vmatpush1.msra.mxu0 %v3082
        %3327 = vmatprep.subr.mxu0 %v3086
        %3328 = vmatpush1.msra.mxu0 %v3085
        %3329 = vmatprep.subr.mxu0 %v3089
        %3330 = vmatpush1.msra.mxu0 %v3088
        %3331 = vmatprep.subr.mxu0 %v3092
        %3332 = vmatpush1.msra.mxu0 %v3091
        %3333 = vmatprep.subr.mxu0 %v3095
        %3334 = vmatpush1.msra.mxu0 %v3094
        %3335 = vmatprep.subr.mxu0 %v3098
        %3336 = vmatpush1.msra.mxu0 %v3097
        %3337 = vmatprep.subr.mxu0 %v3101
        %3338 = vmatpush1.msra.mxu0 %v3100
        %3339 = vmatprep.subr.mxu0 %v3104
        %3340 = vmatpush1.msra.mxu0 %v3103
        %3341 = vmatprep.subr.mxu0 %v3107
        %3342 = vmatpush1.msra.mxu0 %v3106
        %3343 = vmatprep.subr.mxu0 %v3110
        %3344 = vmatpush1.msra.mxu0 %v3109
        %3345 = vmatprep.subr.mxu0 %v3113
        %3346 = vmatpush1.msra.mxu0 %v3112
        %3347 = vmatprep.subr.mxu0 %v3116
        %3348 = vmatpush1.msra.mxu0 %v3115
        %3349 = vmatprep.subr.mxu0 %v3119
        %3350 = vmatpush1.msra.mxu0 %v3118
        %3351 = vmatprep.mubr.f32.mxu0 %v2042
        %3352 = vmatmul.mubr.f32.gmra.mrb[0].mxu0 %v2041
        %v3353 = vpop.f32.mrb[0].mxu0
        %v3354 = vadd.f32 %v3271, %v3353
        %v3355 = vpop.f32.mrb[0].mxu0
        %v3356 = vadd.f32 %v3273, %v3355
        %3357 = vmatprep.mubr.f32.mxu0 %v2048
        %3358 = vmatmul.mubr.f32.gmra.mrb[0].mxu0 %v2047
        %v3359 = vpop.f32.mrb[0].mxu0
        %v3360 = vadd.f32 %v3277, %v3359
        %v3361 = vpop.f32.mrb[0].mxu0
        %v3362 = vadd.f32 %v3279, %v3361
        %3363 = vmatprep.mubr.f32.mxu0 %v2054
        %3364 = vmatmul.mubr.f32.gmra.mrb[0].mxu0 %v2053
        %v3365 = vpop.f32.mrb[0].mxu0
        %v3366 = vadd.f32 %v3283, %v3365
        %v3367 = vpop.f32.mrb[0].mxu0
        %v3368 = vadd.f32 %v3285, %v3367
        %3369 = vdwg.mxu0
        %3370 = vmatprep.subr.mxu0 0.0
        %3371 = vmatpush1.msra.mxu0 %v2835
        %3372 = vmatprep.subr.mxu0 0.0
        %3373 = vmatpush1.msra.mxu0 %v2838
        %3374 = vmatprep.subr.mxu0 0.0
        %3375 = vmatpush1.msra.mxu0 %v2841
        %3376 = vmatprep.subr.mxu0 0.0
        %3377 = vmatpush1.msra.mxu0 %v2844
        %3378 = vmatprep.subr.mxu0 0.0
        %3379 = vmatpush1.msra.mxu0 %v2847
        %3380 = vmatprep.subr.mxu0 0.0
        %3381 = vmatpush1.msra.mxu0 %v2850
        %3382 = vmatprep.subr.mxu0 0.0
        %3383 = vmatpush1.msra.mxu0 %v2853
        %3384 = vmatprep.subr.mxu0 0.0
        %3385 = vmatpush1.msra.mxu0 %v2856
        %3386 = vmatprep.subr.mxu0 0.0
        %3387 = vmatpush1.msra.mxu0 %v2859
        %3388 = vmatprep.subr.mxu0 0.0
        %3389 = vmatpush1.msra.mxu0 %v2862
        %3390 = vmatprep.subr.mxu0 0.0
        %3391 = vmatpush1.msra.mxu0 %v2865
        %3392 = vmatprep.subr.mxu0 0.0
        %3393 = vmatpush1.msra.mxu0 %v2868
        %3394 = vmatprep.subr.mxu0 0.0
        %3395 = vmatpush1.msra.mxu0 %v2871
        %3396 = vmatprep.subr.mxu0 0.0
        %3397 = vmatpush1.msra.mxu0 %v2874
        %3398 = vmatprep.subr.mxu0 0.0
        %3399 = vmatpush1.msra.mxu0 %v2877
        %3400 = vmatprep.subr.mxu0 0.0
        %3401 = vmatpush1.msra.mxu0 %v2880
        %3402 = vmatprep.subr.mxu0 0.0
        %3403 = vmatpush1.msra.mxu0 %v2883
        %3404 = vmatprep.subr.mxu0 0.0
        %3405 = vmatpush1.msra.mxu0 %v2886
        %3406 = vmatprep.subr.mxu0 0.0
        %3407 = vmatpush1.msra.mxu0 %v2889
        %3408 = vmatprep.subr.mxu0 0.0
        %3409 = vmatpush1.msra.mxu0 %v2892
        %3410 = vmatprep.subr.mxu0 0.0
        %3411 = vmatpush1.msra.mxu0 %v2895
        %3412 = vmatprep.subr.mxu0 0.0
        %3413 = vmatpush1.msra.mxu0 %v2898
        %3414 = vmatprep.subr.mxu0 0.0
        %3415 = vmatpush1.msra.mxu0 %v2901
        %3416 = vmatprep.subr.mxu0 0.0
        %3417 = vmatpush1.msra.mxu0 %v2904
        %3418 = vmatprep.subr.mxu0 0.0
        %3419 = vmatpush1.msra.mxu0 %v2907
        %3420 = vmatprep.subr.mxu0 0.0
        %3421 = vmatpush1.msra.mxu0 %v2910
        %3422 = vmatprep.subr.mxu0 0.0
        %3423 = vmatpush1.msra.mxu0 %v2913
        %3424 = vmatprep.subr.mxu0 0.0
        %3425 = vmatpush1.msra.mxu0 %v2916
        %3426 = vmatprep.subr.mxu0 0.0
        %3427 = vmatpush1.msra.mxu0 %v2919
        %3428 = vmatprep.subr.mxu0 0.0
        %3429 = vmatpush1.msra.mxu0 %v2922
        %3430 = vmatprep.subr.mxu0 0.0
        %3431 = vmatpush1.msra.mxu0 %v2925
        %3432 = vmatprep.subr.mxu0 0.0
        %3433 = vmatpush1.msra.mxu0 %v2928
        %3434 = vmatprep.mubr.f32.mxu0 %v2038
        %3435 = vmatmul.mubr.f32.gmra.mrb[0].mxu0 %v2037
        %v3436 = vpop.f32.mrb[0].mxu0
        %v3437 = vadd.f32 0.0, %v3436
        %v3438 = vpop.f32.mrb[0].mxu0
        %3439 = vmatprep.mubr.f32.mxu0 %v2044
        %3440 = vmatmul.mubr.f32.gmra.mrb[0].mxu0 %v2043
        %v3441 = vpop.f32.mrb[0].mxu0
        %v3442 = vadd.f32 0.0, %v3441
        %v3443 = vpop.f32.mrb[0].mxu0
        %3444 = vmatprep.mubr.f32.mxu0 %v2050
        %3445 = vmatmul.mubr.f32.gmra.mrb[0].mxu0 %v2049
        %v3446 = vpop.f32.mrb[0].mxu0
        %v3447 = vadd.f32 0.0, %v3446
        %v3448 = vpop.f32.mrb[0].mxu0
        %3449 = vdwg.mxu0
        %3450 = vmatprep.subr.mxu0 0.0
        %3451 = vmatpush1.msra.mxu0 %v2931
        %3452 = vmatprep.subr.mxu0 0.0
        %3453 = vmatpush1.msra.mxu0 %v2934
        %3454 = vmatprep.subr.mxu0 0.0
        %3455 = vmatpush1.msra.mxu0 %v2937
        %3456 = vmatprep.subr.mxu0 0.0
        %3457 = vmatpush1.msra.mxu0 %v2940
        %3458 = vmatprep.subr.mxu0 0.0
        %3459 = vmatpush1.msra.mxu0 %v2943
        %3460 = vmatprep.subr.mxu0 0.0
        %3461 = vmatpush1.msra.mxu0 %v2946
        %3462 = vmatprep.subr.mxu0 0.0
        %3463 = vmatpush1.msra.mxu0 %v2949
        %3464 = vmatprep.subr.mxu0 0.0
        %3465 = vmatpush1.msra.mxu0 %v2952
        %3466 = vmatprep.subr.mxu0 0.0
        %3467 = vmatpush1.msra.mxu0 %v2955
        %3468 = vmatprep.subr.mxu0 0.0
        %3469 = vmatpush1.msra.mxu0 %v2958
        %3470 = vmatprep.subr.mxu0 0.0
        %3471 = vmatpush1.msra.mxu0 %v2961
        %3472 = vmatprep.subr.mxu0 0.0
        %3473 = vmatpush1.msra.mxu0 %v2964
        %3474 = vmatprep.subr.mxu0 0.0
        %3475 = vmatpush1.msra.mxu0 %v2967
        %3476 = vmatprep.subr.mxu0 0.0
        %3477 = vmatpush1.msra.mxu0 %v2970
        %3478 = vmatprep.subr.mxu0 0.0
        %3479 = vmatpush1.msra.mxu0 %v2973
        %3480 = vmatprep.subr.mxu0 0.0
        %3481 = vmatpush1.msra.mxu0 %v2976
        %3482 = vmatprep.subr.mxu0 0.0
        %3483 = vmatpush1.msra.mxu0 %v2979
        %3484 = vmatprep.subr.mxu0 0.0
        %3485 = vmatpush1.msra.mxu0 %v2982
        %3486 = vmatprep.subr.mxu0 0.0
        %3487 = vmatpush1.msra.mxu0 %v2985
        %3488 = vmatprep.subr.mxu0 0.0
        %3489 = vmatpush1.msra.mxu0 %v2988
        %3490 = vmatprep.subr.mxu0 0.0
        %3491 = vmatpush1.msra.mxu0 %v2991
        %3492 = vmatprep.subr.mxu0 0.0
        %3493 = vmatpush1.msra.mxu0 %v2994
        %3494 = vmatprep.subr.mxu0 0.0
        %3495 = vmatpush1.msra.mxu0 %v2997
        %3496 = vmatprep.subr.mxu0 0.0
        %3497 = vmatpush1.msra.mxu0 %v3000
        %3498 = vmatprep.subr.mxu0 0.0
        %3499 = vmatpush1.msra.mxu0 %v3003
        %3500 = vmatprep.subr.mxu0 0.0
        %3501 = vmatpush1.msra.mxu0 %v3006
        %3502 = vmatprep.subr.mxu0 0.0
        %3503 = vmatpush1.msra.mxu0 %v3009
        %3504 = vmatprep.subr.mxu0 0.0
        %3505 = vmatpush1.msra.mxu0 %v3012
        %3506 = vmatprep.subr.mxu0 0.0
        %3507 = vmatpush1.msra.mxu0 %v3015
        %3508 = vmatprep.subr.mxu0 0.0
        %3509 = vmatpush1.msra.mxu0 %v3018
        %3510 = vmatprep.subr.mxu0 0.0
        %3511 = vmatpush1.msra.mxu0 %v3021
        %3512 = vmatprep.subr.mxu0 0.0
        %3513 = vmatpush1.msra.mxu0 %v3024
        %3514 = vmatprep.mubr.f32.mxu0 %v2040
        %3515 = vmatmul.mubr.f32.gmra.mrb[0].mxu0 %v2039
        %v3516 = vpop.f32.mrb[0].mxu0
        %v3517 = vadd.f32 %v3437, %v3516
        %v3518 = vpop.f32.mrb[0].mxu0
        %3519 = vmatprep.mubr.f32.mxu0 %v2046
        %3520 = vmatmul.mubr.f32.gmra.mrb[0].mxu0 %v2045
        %v3521 = vpop.f32.mrb[0].mxu0
        %v3522 = vadd.f32 %v3442, %v3521
        %v3523 = vpop.f32.mrb[0].mxu0
        %3524 = vmatprep.mubr.f32.mxu0 %v2052
        %3525 = vmatmul.mubr.f32.gmra.mrb[0].mxu0 %v2051
        %v3526 = vpop.f32.mrb[0].mxu0
        %v3527 = vadd.f32 %v3447, %v3526
        %v3528 = vpop.f32.mrb[0].mxu0
        %3529 = vdwg.mxu0
        %3530 = vmatprep.subr.mxu0 0.0
        %3531 = vmatpush1.msra.mxu0 %v3027
        %3532 = vmatprep.subr.mxu0 0.0
        %3533 = vmatpush1.msra.mxu0 %v3030
        %3534 = vmatprep.subr.mxu0 0.0
        %3535 = vmatpush1.msra.mxu0 %v3033
        %3536 = vmatprep.subr.mxu0 0.0
        %3537 = vmatpush1.msra.mxu0 %v3036
        %3538 = vmatprep.subr.mxu0 0.0
        %3539 = vmatpush1.msra.mxu0 %v3039
        %3540 = vmatprep.subr.mxu0 0.0
        %3541 = vmatpush1.msra.mxu0 %v3042
        %3542 = vmatprep.subr.mxu0 0.0
        %3543 = vmatpush1.msra.mxu0 %v3045
        %3544 = vmatprep.subr.mxu0 0.0
        %3545 = vmatpush1.msra.mxu0 %v3048
        %3546 = vmatprep.subr.mxu0 0.0
        %3547 = vmatpush1.msra.mxu0 %v3051
        %3548 = vmatprep.subr.mxu0 0.0
        %3549 = vmatpush1.msra.mxu0 %v3054
        %3550 = vmatprep.subr.mxu0 0.0
        %3551 = vmatpush1.msra.mxu0 %v3057
        %3552 = vmatprep.subr.mxu0 0.0
        %3553 = vmatpush1.msra.mxu0 %v3060
        %3554 = vmatprep.subr.mxu0 0.0
        %3555 = vmatpush1.msra.mxu0 %v3063
        %3556 = vmatprep.subr.mxu0 0.0
        %3557 = vmatpush1.msra.mxu0 %v3066
        %3558 = vmatprep.subr.mxu0 0.0
        %3559 = vmatpush1.msra.mxu0 %v3069
        %3560 = vmatprep.subr.mxu0 0.0
        %3561 = vmatpush1.msra.mxu0 %v3072
        %3562 = vmatprep.subr.mxu0 0.0
        %3563 = vmatpush1.msra.mxu0 %v3075
        %3564 = vmatprep.subr.mxu0 0.0
        %3565 = vmatpush1.msra.mxu0 %v3078
        %3566 = vmatprep.subr.mxu0 0.0
        %3567 = vmatpush1.msra.mxu0 %v3081
        %3568 = vmatprep.subr.mxu0 0.0
        %3569 = vmatpush1.msra.mxu0 %v3084
        %3570 = vmatprep.subr.mxu0 0.0
        %3571 = vmatpush1.msra.mxu0 %v3087
        %3572 = vmatprep.subr.mxu0 0.0
        %3573 = vmatpush1.msra.mxu0 %v3090
        %3574 = vmatprep.subr.mxu0 0.0
        %3575 = vmatpush1.msra.mxu0 %v3093
        %3576 = vmatprep.subr.mxu0 0.0
        %3577 = vmatpush1.msra.mxu0 %v3096
        %3578 = vmatprep.subr.mxu0 0.0
        %3579 = vmatpush1.msra.mxu0 %v3099
        %3580 = vmatprep.subr.mxu0 0.0
        %3581 = vmatpush1.msra.mxu0 %v3102
        %3582 = vmatprep.subr.mxu0 0.0
        %3583 = vmatpush1.msra.mxu0 %v3105
        %3584 = vmatprep.subr.mxu0 0.0
        %3585 = vmatpush1.msra.mxu0 %v3108
        %3586 = vmatprep.subr.mxu0 0.0
        %3587 = vmatpush1.msra.mxu0 %v3111
        %3588 = vmatprep.subr.mxu0 0.0
        %3589 = vmatpush1.msra.mxu0 %v3114
        %3590 = vmatprep.subr.mxu0 0.0
        %3591 = vmatpush1.msra.mxu0 %v3117
        %3592 = vmatprep.subr.mxu0 0.0
        %3593 = vmatpush1.msra.mxu0 %v3120
        %3594 = vmatprep.mubr.f32.mxu0 %v2042
        %3595 = vmatmul.mubr.f32.gmra.mrb[0].mxu0 %v2041
        %v3596 = vpop.f32.mrb[0].mxu0
        %v3597 = vadd.f32 %v3517, %v3596
        %v3598 = vpop.f32.mrb[0].mxu0
        %3599 = vmatprep.mubr.f32.mxu0 %v2048
        %3600 = vmatmul.mubr.f32.gmra.mrb[0].mxu0 %v2047
        %v3601 = vpop.f32.mrb[0].mxu0
        %v3602 = vadd.f32 %v3522, %v3601
        %v3603 = vpop.f32.mrb[0].mxu0
        %3604 = vmatprep.mubr.f32.mxu0 %v2054
        %3605 = vmatmul.mubr.f32.gmra.mrb[0].mxu0 %v2053
        %v3606 = vpop.f32.mrb[0].mxu0
        %v3607 = vadd.f32 %v3527, %v3606
        %v3608 = vpop.f32.mrb[0].mxu0
        %3609 = vdwg.mxu0
        %v3610 = vmax.f32 %v2576, %v3354
        %v3611 = vmax.f32 %v2578, %v3356
        %v3612 = vmax.f32 %v2819, %v3597
        %v3613 = vmax.f32 %v2582, %v3360
        %v3614 = vmax.f32 %v2584, %v3362
        %v3615 = vmax.f32 %v2824, %v3602
        %v3616 = vmax.f32 %v2588, %v3366
        %v3617 = vmax.f32 %v2590, %v3368
        %v3618 = vmax.f32 %v2829, %v3607
        %v3619 = vld [vmem:[%s4] sm:$0xff]
        %v3620 = vld [vmem:[%s4 + $0x8] sm:$0xf]
        %vm3621 = vcmask 195584
        %v3623 = vsel %vm3621, %v3619, 0
        %v3626 = vsel %vm3621, %v3620, 0
        %3628 = vmatprep.subr.mxu0 %v3611
        %3629 = vmatpush1.msra.mxu0 %v3610
        %3630 = vmatprep.subr.mxu0 %v3614
        %3631 = vmatpush1.msra.mxu0 %v3613
        %3632 = vmatprep.subr.mxu0 %v3617
        %3633 = vmatpush1.msra.mxu0 %v3616
        %3634 = vmatprep.subr.mxu0 0.0
        %3635 = vmatpush1.msra.mxu0 0.0
        %3636 = vmatprep.subr.mxu0 0.0
        %3637 = vmatpush1.msra.mxu0 0.0
        %3638 = vmatprep.subr.mxu0 0.0
        %3639 = vmatpush1.msra.mxu0 0.0
        %3640 = vmatprep.subr.mxu0 0.0
        %3641 = vmatpush1.msra.mxu0 0.0
        %3642 = vmatprep.subr.mxu0 0.0
        %3643 = vmatpush1.msra.mxu0 0.0
        %3644 = vmatprep.subr.mxu0 0.0
        %3645 = vmatpush1.msra.mxu0 0.0
        %3646 = vmatprep.subr.mxu0 0.0
        %3647 = vmatpush1.msra.mxu0 0.0
        %3648 = vmatprep.subr.mxu0 0.0
        %3649 = vmatpush1.msra.mxu0 0.0
        %3650 = vmatprep.subr.mxu0 0.0
        %3651 = vmatpush1.msra.mxu0 0.0
        %3652 = vmatprep.subr.mxu0 0.0
        %3653 = vmatpush1.msra.mxu0 0.0
        %3654 = vmatprep.subr.mxu0 0.0
        %3655 = vmatpush1.msra.mxu0 0.0
        %3656 = vmatprep.subr.mxu0 0.0
        %3657 = vmatpush1.msra.mxu0 0.0
        %3658 = vmatprep.subr.mxu0 0.0
        %3659 = vmatpush1.msra.mxu0 0.0
        %3660 = vmatprep.subr.mxu0 0.0
        %3661 = vmatpush1.msra.mxu0 0.0
        %3662 = vmatprep.subr.mxu0 0.0
        %3663 = vmatpush1.msra.mxu0 0.0
        %3664 = vmatprep.subr.mxu0 0.0
        %3665 = vmatpush1.msra.mxu0 0.0
        %3666 = vmatprep.subr.mxu0 0.0
        %3667 = vmatpush1.msra.mxu0 0.0
        %3668 = vmatprep.subr.mxu0 0.0
        %3669 = vmatpush1.msra.mxu0 0.0
        %3670 = vmatprep.subr.mxu0 0.0
        %3671 = vmatpush1.msra.mxu0 0.0
        %3672 = vmatprep.subr.mxu0 0.0
        %3673 = vmatpush1.msra.mxu0 0.0
        %3674 = vmatprep.subr.mxu0 0.0
        %3675 = vmatpush1.msra.mxu0 0.0
        %3676 = vmatprep.subr.mxu0 0.0
        %3677 = vmatpush1.msra.mxu0 0.0
        %3678 = vmatprep.subr.mxu0 0.0
        %3679 = vmatpush1.msra.mxu0 0.0
        %3680 = vmatprep.subr.mxu0 0.0
        %3681 = vmatpush1.msra.mxu0 0.0
        %3682 = vmatprep.subr.mxu0 0.0
        %3683 = vmatpush1.msra.mxu0 0.0
        %3684 = vmatprep.subr.mxu0 0.0
        %3685 = vmatpush1.msra.mxu0 0.0
        %3686 = vmatprep.subr.mxu0 0.0
        %3687 = vmatpush1.msra.mxu0 0.0
        %3688 = vmatprep.subr.mxu0 0.0
        %3689 = vmatpush1.msra.mxu0 0.0
        %3690 = vmatprep.subr.mxu0 0.0
        %3691 = vmatpush1.msra.mxu0 0.0
        %3692 = vmatprep.mubr.f32.mxu0 0.0
        %3693 = vmatmul.mubr.f32.gmra.mrb[0].mxu0 %v3623
        %v3694 = vpop.f32.mrb[0].mxu0
        %v3695 = vadd.f32 0.0, %v3694
        %v3696 = vpop.f32.mrb[0].mxu0
        %v3697 = vadd.f32 0.0, %v3696
        %3698 = vmatprep.mubr.f32.mxu0 0.0
        %3699 = vmatmul.mubr.f32.gmra.mrb[0].mxu0 %v3626
        %v3700 = vpop.f32.mrb[0].mxu0
        %v3701 = vadd.f32 0.0, %v3700
        %v3702 = vpop.f32.mrb[0].mxu0
        %v3703 = vadd.f32 0.0, %v3702
        %3704 = vdwg.mxu0
        %3705 = vmatprep.subr.mxu0 0.0
        %3706 = vmatpush1.msra.mxu0 %v3612
        %3707 = vmatprep.subr.mxu0 0.0
        %3708 = vmatpush1.msra.mxu0 %v3615
        %3709 = vmatprep.subr.mxu0 0.0
        %3710 = vmatpush1.msra.mxu0 %v3618
        %3711 = vmatprep.subr.mxu0 0.0
        %3712 = vmatpush1.msra.mxu0 0.0
        %3713 = vmatprep.subr.mxu0 0.0
        %3714 = vmatpush1.msra.mxu0 0.0
        %3715 = vmatprep.subr.mxu0 0.0
        %3716 = vmatpush1.msra.mxu0 0.0
        %3717 = vmatprep.subr.mxu0 0.0
        %3718 = vmatpush1.msra.mxu0 0.0
        %3719 = vmatprep.subr.mxu0 0.0
        %3720 = vmatpush1.msra.mxu0 0.0
        %3721 = vmatprep.subr.mxu0 0.0
        %3722 = vmatpush1.msra.mxu0 0.0
        %3723 = vmatprep.subr.mxu0 0.0
        %3724 = vmatpush1.msra.mxu0 0.0
        %3725 = vmatprep.subr.mxu0 0.0
        %3726 = vmatpush1.msra.mxu0 0.0
        %3727 = vmatprep.subr.mxu0 0.0
        %3728 = vmatpush1.msra.mxu0 0.0
        %3729 = vmatprep.subr.mxu0 0.0
        %3730 = vmatpush1.msra.mxu0 0.0
        %3731 = vmatprep.subr.mxu0 0.0
        %3732 = vmatpush1.msra.mxu0 0.0
        %3733 = vmatprep.subr.mxu0 0.0
        %3734 = vmatpush1.msra.mxu0 0.0
        %3735 = vmatprep.subr.mxu0 0.0
        %3736 = vmatpush1.msra.mxu0 0.0
        %3737 = vmatprep.subr.mxu0 0.0
        %3738 = vmatpush1.msra.mxu0 0.0
        %3739 = vmatprep.subr.mxu0 0.0
        %3740 = vmatpush1.msra.mxu0 0.0
        %3741 = vmatprep.subr.mxu0 0.0
        %3742 = vmatpush1.msra.mxu0 0.0
        %3743 = vmatprep.subr.mxu0 0.0
        %3744 = vmatpush1.msra.mxu0 0.0
        %3745 = vmatprep.subr.mxu0 0.0
        %3746 = vmatpush1.msra.mxu0 0.0
        %3747 = vmatprep.subr.mxu0 0.0
        %3748 = vmatpush1.msra.mxu0 0.0
        %3749 = vmatprep.subr.mxu0 0.0
        %3750 = vmatpush1.msra.mxu0 0.0
        %3751 = vmatprep.subr.mxu0 0.0
        %3752 = vmatpush1.msra.mxu0 0.0
        %3753 = vmatprep.subr.mxu0 0.0
        %3754 = vmatpush1.msra.mxu0 0.0
        %3755 = vmatprep.subr.mxu0 0.0
        %3756 = vmatpush1.msra.mxu0 0.0
        %3757 = vmatprep.subr.mxu0 0.0
        %3758 = vmatpush1.msra.mxu0 0.0
        %3759 = vmatprep.subr.mxu0 0.0
        %3760 = vmatpush1.msra.mxu0 0.0
        %3761 = vmatprep.subr.mxu0 0.0
        %3762 = vmatpush1.msra.mxu0 0.0
        %3763 = vmatprep.subr.mxu0 0.0
        %3764 = vmatpush1.msra.mxu0 0.0
        %3765 = vmatprep.subr.mxu0 0.0
        %3766 = vmatpush1.msra.mxu0 0.0
        %3767 = vmatprep.subr.mxu0 0.0
        %3768 = vmatpush1.msra.mxu0 0.0
        %3769 = vmatprep.mubr.f32.mxu0 0.0
        %3770 = vmatmul.mubr.f32.gmra.mrb[0].mxu0 %v3623
        %v3771 = vpop.f32.mrb[0].mxu0
        %v3772 = vadd.f32 0.0, %v3771
        %v3773 = vpop.f32.mrb[0].mxu0
        %3774 = vmatprep.mubr.f32.mxu0 0.0
        %3775 = vmatmul.mubr.f32.gmra.mrb[0].mxu0 %v3626
        %v3776 = vpop.f32.mrb[0].mxu0
        %v3777 = vadd.f32 0.0, %v3776
        %v3778 = vpop.f32.mrb[0].mxu0
        %3779 = vdwg.mxu0
        %s3780 = scalar_lea.vmem %s4, 16
        %v3781 = vld [vmem:[%s3780] sm:$0xff]
        %v3782 = vld [vmem:[%s3780 + $0x8] sm:$0xf]
        %v3784 = vsel %vm3621, %v3781, 0
        %v3787 = vsel %vm3621, %v3782, 0
        %3789 = vmatprep.subr.mxu0 %v3611
        %3790 = vmatpush1.msra.mxu0 %v3610
        %3791 = vmatprep.subr.mxu0 %v3614
        %3792 = vmatpush1.msra.mxu0 %v3613
        %3793 = vmatprep.subr.mxu0 %v3617
        %3794 = vmatpush1.msra.mxu0 %v3616
        %3795 = vmatprep.subr.mxu0 0.0
        %3796 = vmatpush1.msra.mxu0 0.0
        %3797 = vmatprep.subr.mxu0 0.0
        %3798 = vmatpush1.msra.mxu0 0.0
        %3799 = vmatprep.subr.mxu0 0.0
        %3800 = vmatpush1.msra.mxu0 0.0
        %3801 = vmatprep.subr.mxu0 0.0
        %3802 = vmatpush1.msra.mxu0 0.0
        %3803 = vmatprep.subr.mxu0 0.0
        %3804 = vmatpush1.msra.mxu0 0.0
        %3805 = vmatprep.subr.mxu0 0.0
        %3806 = vmatpush1.msra.mxu0 0.0
        %3807 = vmatprep.subr.mxu0 0.0
        %3808 = vmatpush1.msra.mxu0 0.0
        %3809 = vmatprep.subr.mxu0 0.0
        %3810 = vmatpush1.msra.mxu0 0.0
        %3811 = vmatprep.subr.mxu0 0.0
        %3812 = vmatpush1.msra.mxu0 0.0
        %3813 = vmatprep.subr.mxu0 0.0
        %3814 = vmatpush1.msra.mxu0 0.0
        %3815 = vmatprep.subr.mxu0 0.0
        %3816 = vmatpush1.msra.mxu0 0.0
        %3817 = vmatprep.subr.mxu0 0.0
        %3818 = vmatpush1.msra.mxu0 0.0
        %3819 = vmatprep.subr.mxu0 0.0
        %3820 = vmatpush1.msra.mxu0 0.0
        %3821 = vmatprep.subr.mxu0 0.0
        %3822 = vmatpush1.msra.mxu0 0.0
        %3823 = vmatprep.subr.mxu0 0.0
        %3824 = vmatpush1.msra.mxu0 0.0
        %3825 = vmatprep.subr.mxu0 0.0
        %3826 = vmatpush1.msra.mxu0 0.0
        %3827 = vmatprep.subr.mxu0 0.0
        %3828 = vmatpush1.msra.mxu0 0.0
        %3829 = vmatprep.subr.mxu0 0.0
        %3830 = vmatpush1.msra.mxu0 0.0
        %3831 = vmatprep.subr.mxu0 0.0
        %3832 = vmatpush1.msra.mxu0 0.0
        %3833 = vmatprep.subr.mxu0 0.0
        %3834 = vmatpush1.msra.mxu0 0.0
        %3835 = vmatprep.subr.mxu0 0.0
        %3836 = vmatpush1.msra.mxu0 0.0
        %3837 = vmatprep.subr.mxu0 0.0
        %3838 = vmatpush1.msra.mxu0 0.0
        %3839 = vmatprep.subr.mxu0 0.0
        %3840 = vmatpush1.msra.mxu0 0.0
        %3841 = vmatprep.subr.mxu0 0.0
        %3842 = vmatpush1.msra.mxu0 0.0
        %3843 = vmatprep.subr.mxu0 0.0
        %3844 = vmatpush1.msra.mxu0 0.0
        %3845 = vmatprep.subr.mxu0 0.0
        %3846 = vmatpush1.msra.mxu0 0.0
        %3847 = vmatprep.subr.mxu0 0.0
        %3848 = vmatpush1.msra.mxu0 0.0
        %3849 = vmatprep.subr.mxu0 0.0
        %3850 = vmatpush1.msra.mxu0 0.0
        %3851 = vmatprep.subr.mxu0 0.0
        %3852 = vmatpush1.msra.mxu0 0.0
        %3853 = vmatprep.mubr.f32.mxu0 0.0
        %3854 = vmatmul.mubr.f32.gmra.mrb[0].mxu0 %v3784
        %v3855 = vpop.f32.mrb[0].mxu0
        %v3856 = vadd.f32 0.0, %v3855
        %v3857 = vpop.f32.mrb[0].mxu0
        %v3858 = vadd.f32 0.0, %v3857
        %3859 = vmatprep.mubr.f32.mxu0 0.0
        %3860 = vmatmul.mubr.f32.gmra.mrb[0].mxu0 %v3787
        %v3861 = vpop.f32.mrb[0].mxu0
        %v3862 = vadd.f32 0.0, %v3861
        %v3863 = vpop.f32.mrb[0].mxu0
        %v3864 = vadd.f32 0.0, %v3863
        %3865 = vdwg.mxu0
        %3866 = vmatprep.subr.mxu0 0.0
        %3867 = vmatpush1.msra.mxu0 %v3612
        %3868 = vmatprep.subr.mxu0 0.0
        %3869 = vmatpush1.msra.mxu0 %v3615
        %3870 = vmatprep.subr.mxu0 0.0
        %3871 = vmatpush1.msra.mxu0 %v3618
        %3872 = vmatprep.subr.mxu0 0.0
        %3873 = vmatpush1.msra.mxu0 0.0
        %3874 = vmatprep.subr.mxu0 0.0
        %3875 = vmatpush1.msra.mxu0 0.0
        %3876 = vmatprep.subr.mxu0 0.0
        %3877 = vmatpush1.msra.mxu0 0.0
        %3878 = vmatprep.subr.mxu0 0.0
        %3879 = vmatpush1.msra.mxu0 0.0
        %3880 = vmatprep.subr.mxu0 0.0
        %3881 = vmatpush1.msra.mxu0 0.0
        %3882 = vmatprep.subr.mxu0 0.0
        %3883 = vmatpush1.msra.mxu0 0.0
        %3884 = vmatprep.subr.mxu0 0.0
        %3885 = vmatpush1.msra.mxu0 0.0
        %3886 = vmatprep.subr.mxu0 0.0
        %3887 = vmatpush1.msra.mxu0 0.0
        %3888 = vmatprep.subr.mxu0 0.0
        %3889 = vmatpush1.msra.mxu0 0.0
        %3890 = vmatprep.subr.mxu0 0.0
        %3891 = vmatpush1.msra.mxu0 0.0
        %3892 = vmatprep.subr.mxu0 0.0
        %3893 = vmatpush1.msra.mxu0 0.0
        %3894 = vmatprep.subr.mxu0 0.0
        %3895 = vmatpush1.msra.mxu0 0.0
        %3896 = vmatprep.subr.mxu0 0.0
        %3897 = vmatpush1.msra.mxu0 0.0
        %3898 = vmatprep.subr.mxu0 0.0
        %3899 = vmatpush1.msra.mxu0 0.0
        %3900 = vmatprep.subr.mxu0 0.0
        %3901 = vmatpush1.msra.mxu0 0.0
        %3902 = vmatprep.subr.mxu0 0.0
        %3903 = vmatpush1.msra.mxu0 0.0
        %3904 = vmatprep.subr.mxu0 0.0
        %3905 = vmatpush1.msra.mxu0 0.0
        %3906 = vmatprep.subr.mxu0 0.0
        %3907 = vmatpush1.msra.mxu0 0.0
        %3908 = vmatprep.subr.mxu0 0.0
        %3909 = vmatpush1.msra.mxu0 0.0
        %3910 = vmatprep.subr.mxu0 0.0
        %3911 = vmatpush1.msra.mxu0 0.0
        %3912 = vmatprep.subr.mxu0 0.0
        %3913 = vmatpush1.msra.mxu0 0.0
        %3914 = vmatprep.subr.mxu0 0.0
        %3915 = vmatpush1.msra.mxu0 0.0
        %3916 = vmatprep.subr.mxu0 0.0
        %3917 = vmatpush1.msra.mxu0 0.0
        %3918 = vmatprep.subr.mxu0 0.0
        %3919 = vmatpush1.msra.mxu0 0.0
        %3920 = vmatprep.subr.mxu0 0.0
        %3921 = vmatpush1.msra.mxu0 0.0
        %3922 = vmatprep.subr.mxu0 0.0
        %3923 = vmatpush1.msra.mxu0 0.0
        %3924 = vmatprep.subr.mxu0 0.0
        %3925 = vmatpush1.msra.mxu0 0.0
        %3926 = vmatprep.subr.mxu0 0.0
        %3927 = vmatpush1.msra.mxu0 0.0
        %3928 = vmatprep.subr.mxu0 0.0
        %3929 = vmatpush1.msra.mxu0 0.0
        %3930 = vmatprep.mubr.f32.mxu0 0.0
        %3931 = vmatmul.mubr.f32.gmra.mrb[0].mxu0 %v3784
        %v3932 = vpop.f32.mrb[0].mxu0
        %v3933 = vadd.f32 0.0, %v3932
        %v3934 = vpop.f32.mrb[0].mxu0
        %3935 = vmatprep.mubr.f32.mxu0 0.0
        %3936 = vmatmul.mubr.f32.gmra.mrb[0].mxu0 %v3787
        %v3937 = vpop.f32.mrb[0].mxu0
        %v3938 = vadd.f32 0.0, %v3937
        %v3939 = vpop.f32.mrb[0].mxu0
        %3940 = vdwg.mxu0
        %v3941 = vmax.f32 %v3695, %v3856
        %v3942 = vmax.f32 %v3697, %v3858
        %v3943 = vmax.f32 %v3772, %v3933
        %v3944 = vmax.f32 %v3701, %v3862
        %v3945 = vmax.f32 %v3703, %v3864
        %v3946 = vmax.f32 %v3777, %v3938
        %v3947 = vpack.c.bf16 %v3941, %v3941
        %v3948 = vpack.c.bf16 %v3942, %v3942
        %v3949 = vpack.c.bf16 %v3943, %v3943
        %v3950 = vld [vmem:[#allocation8] sm:$0xff]
        %v3951 = vld [vmem:[#allocation8 + $0x8] sm:$0xff]
        %v3952 = vld [vmem:[#allocation8 + $0x10] sm:$0xff]
        %v3953 = vld [vmem:[#allocation8 + $0x18] sm:$0xff]
        %v3954 = vld [vmem:[#allocation8 + $0x20] sm:$0xff]
        %v3955 = vld [vmem:[#allocation8 + $0x28] sm:$0xff]
        %v3956 = vld [vmem:[#allocation8 + $0x30] sm:$0xff]
        %v3957 = vld [vmem:[#allocation8 + $0x38] sm:$0xff]
        %v3958 = vld [vmem:[#allocation8 + $0x40] sm:$0xff]
        %v3959 = vld [vmem:[#allocation8 + $0x48] sm:$0xff]
        %v3960 = vld [vmem:[#allocation8 + $0x50] sm:$0xff]
        %v3961 = vld [vmem:[#allocation8 + $0x58] sm:$0xff]
        %v3962 = vld [vmem:[#allocation8 + $0x60] sm:$0xff]
        %v3963 = vld [vmem:[#allocation8 + $0x68] sm:$0xff]
        %v3964 = vld [vmem:[#allocation8 + $0x70] sm:$0xff]
        %v3965 = vld [vmem:[#allocation8 + $0x78] sm:$0xff]
        %v3966 = vld [vmem:[#allocation8 + $0x80] sm:$0xff]
        %v3967 = vld [vmem:[#allocation8 + $0x88] sm:$0xff]
        %v3968 = vld [vmem:[#allocation8 + $0x90] sm:$0xff]
        %v3969 = vld [vmem:[#allocation8 + $0x98] sm:$0xff]
        %v3970 = vld [vmem:[#allocation8 + $0xa0] sm:$0xff]
        %v3971 = vld [vmem:[#allocation8 + $0xa8] sm:$0xff]
        %v3972 = vld [vmem:[#allocation8 + $0xb0] sm:$0xff]
        %v3973 = vld [vmem:[#allocation8 + $0xb8] sm:$0xff]
        %v3974 = vld [vmem:[#allocation8 + $0xc0] sm:$0xff]
        %v3975 = vld [vmem:[#allocation8 + $0xc8] sm:$0xff]
        %v3976 = vld [vmem:[#allocation8 + $0xd0] sm:$0xff]
        %v3977 = vld [vmem:[#allocation8 + $0xd8] sm:$0xff]
        %v3978 = vld [vmem:[#allocation8 + $0xe0] sm:$0xff]
        %v3979 = vld [vmem:[#allocation8 + $0xe8] sm:$0xff]
        %v3980 = vld [vmem:[#allocation8 + $0xf0] sm:$0xff]
        %v3981 = vld [vmem:[#allocation8 + $0xf8] sm:$0xff]
        %v3982 = vld [vmem:[#allocation8 + $0x100] sm:$0xff]
        %v3983 = vld [vmem:[#allocation8 + $0x108] sm:$0xff]
        %v3984 = vld [vmem:[#allocation8 + $0x110] sm:$0xff]
        %v3985 = vld [vmem:[#allocation8 + $0x118] sm:$0xff]
        %v3986 = vld [vmem:[#allocation8 + $0x120] sm:$0xff]
        %v3987 = vld [vmem:[#allocation8 + $0x128] sm:$0xff]
        %v3988 = vld [vmem:[#allocation8 + $0x130] sm:$0xff]
        %v3989 = vld [vmem:[#allocation8 + $0x138] sm:$0xff]
        %v3990 = vld [vmem:[#allocation8 + $0x140] sm:$0xff]
        %v3991 = vld [vmem:[#allocation8 + $0x148] sm:$0xff]
        %v3992 = vld [vmem:[#allocation8 + $0x150] sm:$0xff]
        %v3993 = vld [vmem:[#allocation8 + $0x158] sm:$0xff]
        %v3994 = vld [vmem:[#allocation8 + $0x160] sm:$0xff]
        %v3995 = vld [vmem:[#allocation8 + $0x168] sm:$0xff]
        %v3996 = vld [vmem:[#allocation8 + $0x170] sm:$0xff]
        %v3997 = vld [vmem:[#allocation8 + $0x178] sm:$0xff]
        %v3998 = vld [vmem:[#allocation8 + $0x180] sm:$0xff]
        %v3999 = vld [vmem:[#allocation8 + $0x188] sm:$0xff]
        %v4000 = vld [vmem:[#allocation8 + $0x190] sm:$0xff]
        %v4001 = vld [vmem:[#allocation8 + $0x198] sm:$0xff]
        %v4002 = vld [vmem:[#allocation8 + $0x1a0] sm:$0xff]
        %v4003 = vld [vmem:[#allocation8 + $0x1a8] sm:$0xff]
        %v4004 = vld [vmem:[#allocation8 + $0x1b0] sm:$0xff]
        %v4005 = vld [vmem:[#allocation8 + $0x1b8] sm:$0xff]
        %v4006 = vld [vmem:[#allocation8 + $0x1c0] sm:$0xff]
        %v4007 = vld [vmem:[#allocation8 + $0x1c8] sm:$0xff]
        %v4008 = vld [vmem:[#allocation8 + $0x1d0] sm:$0xff]
        %v4009 = vld [vmem:[#allocation8 + $0x1d8] sm:$0xff]
        %v4010 = vld [vmem:[#allocation8 + $0x1e0] sm:$0xff]
        %v4011 = vld [vmem:[#allocation8 + $0x1e8] sm:$0xff]
        %v4012 = vld [vmem:[#allocation8 + $0x1f0] sm:$0xff]
        %v4013 = vld [vmem:[#allocation8 + $0x1f8] sm:$0xff]
        %v4014 = vld [vmem:[#allocation8 + $0x200] sm:$0xff]
        %v4015 = vld [vmem:[#allocation8 + $0x208] sm:$0xff]
        %v4016 = vld [vmem:[#allocation8 + $0x210] sm:$0xff]
        %v4017 = vld [vmem:[#allocation8 + $0x218] sm:$0xff]
        %v4018 = vld [vmem:[#allocation8 + $0x220] sm:$0xff]
        %v4019 = vld [vmem:[#allocation8 + $0x228] sm:$0xff]
        %v4020 = vld [vmem:[#allocation8 + $0x230] sm:$0xff]
        %v4021 = vld [vmem:[#allocation8 + $0x238] sm:$0xff]
        %v4022 = vld [vmem:[#allocation8 + $0x240] sm:$0xff]
        %v4023 = vld [vmem:[#allocation8 + $0x248] sm:$0xff]
        %v4024 = vld [vmem:[#allocation8 + $0x250] sm:$0xff]
        %v4025 = vld [vmem:[#allocation8 + $0x258] sm:$0xff]
        %v4026 = vld [vmem:[#allocation8 + $0x260] sm:$0xff]
        %v4027 = vld [vmem:[#allocation8 + $0x268] sm:$0xff]
        %v4028 = vld [vmem:[#allocation8 + $0x270] sm:$0xff]
        %v4029 = vld [vmem:[#allocation8 + $0x278] sm:$0xff]
        %v4030 = vld [vmem:[#allocation8 + $0x280] sm:$0xff]
        %v4031 = vld [vmem:[#allocation8 + $0x288] sm:$0xff]
        %v4032 = vld [vmem:[#allocation8 + $0x290] sm:$0xff]
        %v4033 = vld [vmem:[#allocation8 + $0x298] sm:$0xff]
        %v4034 = vld [vmem:[#allocation8 + $0x2a0] sm:$0xff]
        %v4035 = vld [vmem:[#allocation8 + $0x2a8] sm:$0xff]
        %v4036 = vld [vmem:[#allocation8 + $0x2b0] sm:$0xff]
        %v4037 = vld [vmem:[#allocation8 + $0x2b8] sm:$0xff]
        %v4038 = vld [vmem:[#allocation8 + $0x2c0] sm:$0xff]
        %v4039 = vld [vmem:[#allocation8 + $0x2c8] sm:$0xff]
        %v4040 = vld [vmem:[#allocation8 + $0x2d0] sm:$0xff]
        %v4041 = vld [vmem:[#allocation8 + $0x2d8] sm:$0xff]
        %v4042 = vld [vmem:[#allocation8 + $0x2e0] sm:$0xff]
        %v4043 = vld [vmem:[#allocation8 + $0x2e8] sm:$0xff]
        %v4044 = vld [vmem:[#allocation8 + $0x2f0] sm:$0xff]
        %v4045 = vld [vmem:[#allocation8 + $0x2f8] sm:$0xff]
        %v4046 = vpack.c.bf16 %v3944, %v3941
        %v4047 = vpack.c.bf16 %v3945, %v3942
        %v4048 = vpack.c.bf16 %v3946, %v3943
        %s4049 = scalar_lea.vmem [#allocation8], 768
        %v4050 = vld [vmem:[%s4049] sm:$0xff]
        %v4051 = vld [vmem:[%s4049 + $0x8] sm:$0xff]
        %v4052 = vld [vmem:[%s4049 + $0x10] sm:$0xff]
        %v4053 = vld [vmem:[%s4049 + $0x18] sm:$0xff]
        %v4054 = vld [vmem:[%s4049 + $0x20] sm:$0xff]
        %v4055 = vld [vmem:[%s4049 + $0x28] sm:$0xff]
        %v4056 = vld [vmem:[%s4049 + $0x30] sm:$0xff]
        %v4057 = vld [vmem:[%s4049 + $0x38] sm:$0xff]
        %v4058 = vld [vmem:[%s4049 + $0x40] sm:$0xff]
        %v4059 = vld [vmem:[%s4049 + $0x48] sm:$0xff]
        %v4060 = vld [vmem:[%s4049 + $0x50] sm:$0xff]
        %v4061 = vld [vmem:[%s4049 + $0x58] sm:$0xff]
        %v4062 = vld [vmem:[%s4049 + $0x60] sm:$0xff]
        %v4063 = vld [vmem:[%s4049 + $0x68] sm:$0xff]
        %v4064 = vld [vmem:[%s4049 + $0x70] sm:$0xff]
        %v4065 = vld [vmem:[%s4049 + $0x78] sm:$0xff]
        %v4066 = vld [vmem:[%s4049 + $0x80] sm:$0xff]
        %v4067 = vld [vmem:[%s4049 + $0x88] sm:$0xff]
        %v4068 = vld [vmem:[%s4049 + $0x90] sm:$0xff]
        %v4069 = vld [vmem:[%s4049 + $0x98] sm:$0xff]
        %v4070 = vld [vmem:[%s4049 + $0xa0] sm:$0xff]
        %v4071 = vld [vmem:[%s4049 + $0xa8] sm:$0xff]
        %v4072 = vld [vmem:[%s4049 + $0xb0] sm:$0xff]
        %v4073 = vld [vmem:[%s4049 + $0xb8] sm:$0xff]
        %v4074 = vld [vmem:[%s4049 + $0xc0] sm:$0xff]
        %v4075 = vld [vmem:[%s4049 + $0xc8] sm:$0xff]
        %v4076 = vld [vmem:[%s4049 + $0xd0] sm:$0xff]
        %v4077 = vld [vmem:[%s4049 + $0xd8] sm:$0xff]
        %v4078 = vld [vmem:[%s4049 + $0xe0] sm:$0xff]
        %v4079 = vld [vmem:[%s4049 + $0xe8] sm:$0xff]
        %v4080 = vld [vmem:[%s4049 + $0xf0] sm:$0xff]
        %v4081 = vld [vmem:[%s4049 + $0xf8] sm:$0xff]
        %v4082 = vld [vmem:[%s4049 + $0x100] sm:$0xff]
        %v4083 = vld [vmem:[%s4049 + $0x108] sm:$0xff]
        %v4084 = vld [vmem:[%s4049 + $0x110] sm:$0xff]
        %v4085 = vld [vmem:[%s4049 + $0x118] sm:$0xff]
        %v4086 = vld [vmem:[%s4049 + $0x120] sm:$0xff]
        %v4087 = vld [vmem:[%s4049 + $0x128] sm:$0xff]
        %v4088 = vld [vmem:[%s4049 + $0x130] sm:$0xff]
        %v4089 = vld [vmem:[%s4049 + $0x138] sm:$0xff]
        %v4090 = vld [vmem:[%s4049 + $0x140] sm:$0xff]
        %v4091 = vld [vmem:[%s4049 + $0x148] sm:$0xff]
        %v4092 = vld [vmem:[%s4049 + $0x150] sm:$0xff]
        %v4093 = vld [vmem:[%s4049 + $0x158] sm:$0xff]
        %v4094 = vld [vmem:[%s4049 + $0x160] sm:$0xff]
        %v4095 = vld [vmem:[%s4049 + $0x168] sm:$0xff]
        %v4096 = vld [vmem:[%s4049 + $0x170] sm:$0xff]
        %v4097 = vld [vmem:[%s4049 + $0x178] sm:$0xff]
        %v4098 = vld [vmem:[%s4049 + $0x180] sm:$0xff]
        %v4099 = vld [vmem:[%s4049 + $0x188] sm:$0xff]
        %v4100 = vld [vmem:[%s4049 + $0x190] sm:$0xff]
        %v4101 = vld [vmem:[%s4049 + $0x198] sm:$0xff]
        %v4102 = vld [vmem:[%s4049 + $0x1a0] sm:$0xff]
        %v4103 = vld [vmem:[%s4049 + $0x1a8] sm:$0xff]
        %v4104 = vld [vmem:[%s4049 + $0x1b0] sm:$0xff]
        %v4105 = vld [vmem:[%s4049 + $0x1b8] sm:$0xff]
        %v4106 = vld [vmem:[%s4049 + $0x1c0] sm:$0xff]
        %v4107 = vld [vmem:[%s4049 + $0x1c8] sm:$0xff]
        %v4108 = vld [vmem:[%s4049 + $0x1d0] sm:$0xff]
        %v4109 = vld [vmem:[%s4049 + $0x1d8] sm:$0xff]
        %v4110 = vld [vmem:[%s4049 + $0x1e0] sm:$0xff]
        %v4111 = vld [vmem:[%s4049 + $0x1e8] sm:$0xff]
        %v4112 = vld [vmem:[%s4049 + $0x1f0] sm:$0xff]
        %v4113 = vld [vmem:[%s4049 + $0x1f8] sm:$0xff]
        %v4114 = vld [vmem:[%s4049 + $0x200] sm:$0xff]
        %v4115 = vld [vmem:[%s4049 + $0x208] sm:$0xff]
        %v4116 = vld [vmem:[%s4049 + $0x210] sm:$0xff]
        %v4117 = vld [vmem:[%s4049 + $0x218] sm:$0xff]
        %v4118 = vld [vmem:[%s4049 + $0x220] sm:$0xff]
        %v4119 = vld [vmem:[%s4049 + $0x228] sm:$0xff]
        %v4120 = vld [vmem:[%s4049 + $0x230] sm:$0xff]
        %v4121 = vld [vmem:[%s4049 + $0x238] sm:$0xff]
        %v4122 = vld [vmem:[%s4049 + $0x240] sm:$0xff]
        %v4123 = vld [vmem:[%s4049 + $0x248] sm:$0xff]
        %v4124 = vld [vmem:[%s4049 + $0x250] sm:$0xff]
        %v4125 = vld [vmem:[%s4049 + $0x258] sm:$0xff]
        %v4126 = vld [vmem:[%s4049 + $0x260] sm:$0xff]
        %v4127 = vld [vmem:[%s4049 + $0x268] sm:$0xff]
        %v4128 = vld [vmem:[%s4049 + $0x270] sm:$0xff]
        %v4129 = vld [vmem:[%s4049 + $0x278] sm:$0xff]
        %v4130 = vld [vmem:[%s4049 + $0x280] sm:$0xff]
        %v4131 = vld [vmem:[%s4049 + $0x288] sm:$0xff]
        %v4132 = vld [vmem:[%s4049 + $0x290] sm:$0xff]
        %v4133 = vld [vmem:[%s4049 + $0x298] sm:$0xff]
        %v4134 = vld [vmem:[%s4049 + $0x2a0] sm:$0xff]
        %v4135 = vld [vmem:[%s4049 + $0x2a8] sm:$0xff]
        %v4136 = vld [vmem:[%s4049 + $0x2b0] sm:$0xff]
        %v4137 = vld [vmem:[%s4049 + $0x2b8] sm:$0xff]
        %v4138 = vld [vmem:[%s4049 + $0x2c0] sm:$0xff]
        %v4139 = vld [vmem:[%s4049 + $0x2c8] sm:$0xff]
        %v4140 = vld [vmem:[%s4049 + $0x2d0] sm:$0xff]
        %v4141 = vld [vmem:[%s4049 + $0x2d8] sm:$0xff]
        %v4142 = vld [vmem:[%s4049 + $0x2e0] sm:$0xff]
        %v4143 = vld [vmem:[%s4049 + $0x2e8] sm:$0xff]
        %v4144 = vld [vmem:[%s4049 + $0x2f0] sm:$0xff]
        %v4145 = vld [vmem:[%s4049 + $0x2f8] sm:$0xff]
        %v4147 = vshrl.u32 %v4046, 16
        %v4149 = vshll.u32 %v4046, 16
        %v4151 = vrot.slane %v4149, 1
        %v4152 = vor.u32 %v4147, %v4151
        %v4154 = vshrl.u32 %v4047, 16
        %v4156 = vshll.u32 %v4047, 16
        %v4158 = vrot.slane %v4156, 1
        %v4159 = vor.u32 %v4154, %v4158
        %v4161 = vshrl.u32 %v4048, 16
        %v4163 = vshll.u32 %v4048, 16
        %v4165 = vrot.slane %v4163, 1
        %v4166 = vor.u32 %v4161, %v4165
        %v4266 = vunpack.c.l.b16 %v4050
        %v4267 = vunpack.c.h.b16 %v4050
        %v4268 = vunpack.c.l.b16 %v4051
        %v4269 = vunpack.c.h.b16 %v4051
        %v4270 = vunpack.c.l.b16 %v4052
        %v4271 = vunpack.c.h.b16 %v4052
        %v4272 = vunpack.c.l.b16 %v4053
        %v4273 = vunpack.c.h.b16 %v4053
        %v4274 = vunpack.c.l.b16 %v4054
        %v4275 = vunpack.c.h.b16 %v4054
        %v4276 = vunpack.c.l.b16 %v4055
        %v4277 = vunpack.c.h.b16 %v4055
        %v4278 = vunpack.c.l.b16 %v4056
        %v4279 = vunpack.c.h.b16 %v4056
        %v4280 = vunpack.c.l.b16 %v4057
        %v4281 = vunpack.c.h.b16 %v4057
        %v4282 = vunpack.c.l.b16 %v4058
        %v4283 = vunpack.c.h.b16 %v4058
        %v4284 = vunpack.c.l.b16 %v4059
        %v4285 = vunpack.c.h.b16 %v4059
        %v4286 = vunpack.c.l.b16 %v4060
        %v4287 = vunpack.c.h.b16 %v4060
        %v4288 = vunpack.c.l.b16 %v4061
        %v4289 = vunpack.c.h.b16 %v4061
        %v4290 = vunpack.c.l.b16 %v4062
        %v4291 = vunpack.c.h.b16 %v4062
        %v4292 = vunpack.c.l.b16 %v4063
        %v4293 = vunpack.c.h.b16 %v4063
        %v4294 = vunpack.c.l.b16 %v4064
        %v4295 = vunpack.c.h.b16 %v4064
        %v4296 = vunpack.c.l.b16 %v4065
        %v4297 = vunpack.c.h.b16 %v4065
        %v4298 = vunpack.c.l.b16 %v4066
        %v4299 = vunpack.c.h.b16 %v4066
        %v4300 = vunpack.c.l.b16 %v4067
        %v4301 = vunpack.c.h.b16 %v4067
        %v4302 = vunpack.c.l.b16 %v4068
        %v4303 = vunpack.c.h.b16 %v4068
        %v4304 = vunpack.c.l.b16 %v4069
        %v4305 = vunpack.c.h.b16 %v4069
        %v4306 = vunpack.c.l.b16 %v4070
        %v4307 = vunpack.c.h.b16 %v4070
        %v4308 = vunpack.c.l.b16 %v4071
        %v4309 = vunpack.c.h.b16 %v4071
        %v4310 = vunpack.c.l.b16 %v4072
        %v4311 = vunpack.c.h.b16 %v4072
        %v4312 = vunpack.c.l.b16 %v4073
        %v4313 = vunpack.c.h.b16 %v4073
        %v4314 = vunpack.c.l.b16 %v4074
        %v4315 = vunpack.c.h.b16 %v4074
        %v4316 = vunpack.c.l.b16 %v4075
        %v4317 = vunpack.c.h.b16 %v4075
        %v4318 = vunpack.c.l.b16 %v4076
        %v4319 = vunpack.c.h.b16 %v4076
        %v4320 = vunpack.c.l.b16 %v4077
        %v4321 = vunpack.c.h.b16 %v4077
        %v4322 = vunpack.c.l.b16 %v4078
        %v4323 = vunpack.c.h.b16 %v4078
        %v4324 = vunpack.c.l.b16 %v4079
        %v4325 = vunpack.c.h.b16 %v4079
        %v4326 = vunpack.c.l.b16 %v4080
        %v4327 = vunpack.c.h.b16 %v4080
        %v4328 = vunpack.c.l.b16 %v4081
        %v4329 = vunpack.c.h.b16 %v4081
        %v4330 = vunpack.c.l.b16 %v4082
        %v4331 = vunpack.c.h.b16 %v4082
        %v4332 = vunpack.c.l.b16 %v4083
        %v4333 = vunpack.c.h.b16 %v4083
        %v4334 = vunpack.c.l.b16 %v4084
        %v4335 = vunpack.c.h.b16 %v4084
        %v4336 = vunpack.c.l.b16 %v4085
        %v4337 = vunpack.c.h.b16 %v4085
        %v4338 = vunpack.c.l.b16 %v4086
        %v4339 = vunpack.c.h.b16 %v4086
        %v4340 = vunpack.c.l.b16 %v4087
        %v4341 = vunpack.c.h.b16 %v4087
        %v4342 = vunpack.c.l.b16 %v4088
        %v4343 = vunpack.c.h.b16 %v4088
        %v4344 = vunpack.c.l.b16 %v4089
        %v4345 = vunpack.c.h.b16 %v4089
        %v4346 = vunpack.c.l.b16 %v4090
        %v4347 = vunpack.c.h.b16 %v4090
        %v4348 = vunpack.c.l.b16 %v4091
        %v4349 = vunpack.c.h.b16 %v4091
        %v4350 = vunpack.c.l.b16 %v4092
        %v4351 = vunpack.c.h.b16 %v4092
        %v4352 = vunpack.c.l.b16 %v4093
        %v4353 = vunpack.c.h.b16 %v4093
        %v4354 = vunpack.c.l.b16 %v4094
        %v4355 = vunpack.c.h.b16 %v4094
        %v4356 = vunpack.c.l.b16 %v4095
        %v4357 = vunpack.c.h.b16 %v4095
        %v4358 = vunpack.c.l.b16 %v4096
        %v4359 = vunpack.c.h.b16 %v4096
        %v4360 = vunpack.c.l.b16 %v4097
        %v4361 = vunpack.c.h.b16 %v4097
        %v4362 = vunpack.c.l.b16 %v4098
        %v4363 = vunpack.c.h.b16 %v4098
        %v4364 = vunpack.c.l.b16 %v4099
        %v4365 = vunpack.c.h.b16 %v4099
        %v4366 = vunpack.c.l.b16 %v4100
        %v4367 = vunpack.c.h.b16 %v4100
        %v4368 = vunpack.c.l.b16 %v4101
        %v4369 = vunpack.c.h.b16 %v4101
        %v4370 = vunpack.c.l.b16 %v4102
        %v4371 = vunpack.c.h.b16 %v4102
        %v4372 = vunpack.c.l.b16 %v4103
        %v4373 = vunpack.c.h.b16 %v4103
        %v4374 = vunpack.c.l.b16 %v4104
        %v4375 = vunpack.c.h.b16 %v4104
        %v4376 = vunpack.c.l.b16 %v4105
        %v4377 = vunpack.c.h.b16 %v4105
        %v4378 = vunpack.c.l.b16 %v4106
        %v4379 = vunpack.c.h.b16 %v4106
        %v4380 = vunpack.c.l.b16 %v4107
        %v4381 = vunpack.c.h.b16 %v4107
        %v4382 = vunpack.c.l.b16 %v4108
        %v4383 = vunpack.c.h.b16 %v4108
        %v4384 = vunpack.c.l.b16 %v4109
        %v4385 = vunpack.c.h.b16 %v4109
        %v4386 = vunpack.c.l.b16 %v4110
        %v4387 = vunpack.c.h.b16 %v4110
        %v4388 = vunpack.c.l.b16 %v4111
        %v4389 = vunpack.c.h.b16 %v4111
        %v4390 = vunpack.c.l.b16 %v4112
        %v4391 = vunpack.c.h.b16 %v4112
        %v4392 = vunpack.c.l.b16 %v4113
        %v4393 = vunpack.c.h.b16 %v4113
        %v4394 = vunpack.c.l.b16 %v4114
        %v4395 = vunpack.c.h.b16 %v4114
        %v4396 = vunpack.c.l.b16 %v4115
        %v4397 = vunpack.c.h.b16 %v4115
        %v4398 = vunpack.c.l.b16 %v4116
        %v4399 = vunpack.c.h.b16 %v4116
        %v4400 = vunpack.c.l.b16 %v4117
        %v4401 = vunpack.c.h.b16 %v4117
        %v4402 = vunpack.c.l.b16 %v4118
        %v4403 = vunpack.c.h.b16 %v4118
        %v4404 = vunpack.c.l.b16 %v4119
        %v4405 = vunpack.c.h.b16 %v4119
        %v4406 = vunpack.c.l.b16 %v4120
        %v4407 = vunpack.c.h.b16 %v4120
        %v4408 = vunpack.c.l.b16 %v4121
        %v4409 = vunpack.c.h.b16 %v4121
        %v4410 = vunpack.c.l.b16 %v4122
        %v4411 = vunpack.c.h.b16 %v4122
        %v4412 = vunpack.c.l.b16 %v4123
        %v4413 = vunpack.c.h.b16 %v4123
        %v4414 = vunpack.c.l.b16 %v4124
        %v4415 = vunpack.c.h.b16 %v4124
        %v4416 = vunpack.c.l.b16 %v4125
        %v4417 = vunpack.c.h.b16 %v4125
        %v4418 = vunpack.c.l.b16 %v4126
        %v4419 = vunpack.c.h.b16 %v4126
        %v4420 = vunpack.c.l.b16 %v4127
        %v4421 = vunpack.c.h.b16 %v4127
        %v4422 = vunpack.c.l.b16 %v4128
        %v4423 = vunpack.c.h.b16 %v4128
        %v4424 = vunpack.c.l.b16 %v4129
        %v4425 = vunpack.c.h.b16 %v4129
        %v4426 = vunpack.c.l.b16 %v4130
        %v4427 = vunpack.c.h.b16 %v4130
        %v4428 = vunpack.c.l.b16 %v4131
        %v4429 = vunpack.c.h.b16 %v4131
        %v4430 = vunpack.c.l.b16 %v4132
        %v4431 = vunpack.c.h.b16 %v4132
        %v4432 = vunpack.c.l.b16 %v4133
        %v4433 = vunpack.c.h.b16 %v4133
        %v4434 = vunpack.c.l.b16 %v4134
        %v4435 = vunpack.c.h.b16 %v4134
        %v4436 = vunpack.c.l.b16 %v4135
        %v4437 = vunpack.c.h.b16 %v4135
        %v4438 = vunpack.c.l.b16 %v4136
        %v4439 = vunpack.c.h.b16 %v4136
        %v4440 = vunpack.c.l.b16 %v4137
        %v4441 = vunpack.c.h.b16 %v4137
        %v4442 = vunpack.c.l.b16 %v4138
        %v4443 = vunpack.c.h.b16 %v4138
        %v4444 = vunpack.c.l.b16 %v4139
        %v4445 = vunpack.c.h.b16 %v4139
        %v4446 = vunpack.c.l.b16 %v4140
        %v4447 = vunpack.c.h.b16 %v4140
        %v4448 = vunpack.c.l.b16 %v4141
        %v4449 = vunpack.c.h.b16 %v4141
        %v4450 = vunpack.c.l.b16 %v4142
        %v4451 = vunpack.c.h.b16 %v4142
        %v4452 = vunpack.c.l.b16 %v4143
        %v4453 = vunpack.c.h.b16 %v4143
        %v4454 = vunpack.c.l.b16 %v4144
        %v4455 = vunpack.c.h.b16 %v4144
        %v4456 = vunpack.c.l.b16 %v4145
        %v4457 = vunpack.c.h.b16 %v4145
        %v4458 = vpack.c.b16 %v4270, %v4266
        %v4459 = vpack.c.b16 %v4271, %v4267
        %v4460 = vpack.c.b16 %v4272, %v4268
        %v4461 = vpack.c.b16 %v4273, %v4269
        %v4462 = vpack.c.b16 %v4278, %v4274
        %v4463 = vpack.c.b16 %v4279, %v4275
        %v4464 = vpack.c.b16 %v4280, %v4276
        %v4465 = vpack.c.b16 %v4281, %v4277
        %v4466 = vpack.c.b16 %v4286, %v4282
        %v4467 = vpack.c.b16 %v4287, %v4283
        %v4468 = vpack.c.b16 %v4288, %v4284
        %v4469 = vpack.c.b16 %v4289, %v4285
        %v4470 = vpack.c.b16 %v4294, %v4290
        %v4471 = vpack.c.b16 %v4295, %v4291
        %v4472 = vpack.c.b16 %v4296, %v4292
        %v4473 = vpack.c.b16 %v4297, %v4293
        %v4474 = vpack.c.b16 %v4302, %v4298
        %v4475 = vpack.c.b16 %v4303, %v4299
        %v4476 = vpack.c.b16 %v4304, %v4300
        %v4477 = vpack.c.b16 %v4305, %v4301
        %v4478 = vpack.c.b16 %v4310, %v4306
        %v4479 = vpack.c.b16 %v4311, %v4307
        %v4480 = vpack.c.b16 %v4312, %v4308
        %v4481 = vpack.c.b16 %v4313, %v4309
        %v4482 = vpack.c.b16 %v4318, %v4314
        %v4483 = vpack.c.b16 %v4319, %v4315
        %v4484 = vpack.c.b16 %v4320, %v4316
        %v4485 = vpack.c.b16 %v4321, %v4317
        %v4486 = vpack.c.b16 %v4326, %v4322
        %v4487 = vpack.c.b16 %v4327, %v4323
        %v4488 = vpack.c.b16 %v4328, %v4324
        %v4489 = vpack.c.b16 %v4329, %v4325
        %v4490 = vpack.c.b16 %v4334, %v4330
        %v4491 = vpack.c.b16 %v4335, %v4331
        %v4492 = vpack.c.b16 %v4336, %v4332
        %v4493 = vpack.c.b16 %v4337, %v4333
        %v4494 = vpack.c.b16 %v4342, %v4338
        %v4495 = vpack.c.b16 %v4343, %v4339
        %v4496 = vpack.c.b16 %v4344, %v4340
        %v4497 = vpack.c.b16 %v4345, %v4341
        %v4498 = vpack.c.b16 %v4350, %v4346
        %v4499 = vpack.c.b16 %v4351, %v4347
        %v4500 = vpack.c.b16 %v4352, %v4348
        %v4501 = vpack.c.b16 %v4353, %v4349
        %v4502 = vpack.c.b16 %v4358, %v4354
        %v4503 = vpack.c.b16 %v4359, %v4355
        %v4504 = vpack.c.b16 %v4360, %v4356
        %v4505 = vpack.c.b16 %v4361, %v4357
        %v4506 = vpack.c.b16 %v4366, %v4362
        %v4507 = vpack.c.b16 %v4367, %v4363
        %v4508 = vpack.c.b16 %v4368, %v4364
        %v4509 = vpack.c.b16 %v4369, %v4365
        %v4510 = vpack.c.b16 %v4374, %v4370
        %v4511 = vpack.c.b16 %v4375, %v4371
        %v4512 = vpack.c.b16 %v4376, %v4372
        %v4513 = vpack.c.b16 %v4377, %v4373
        %v4514 = vpack.c.b16 %v4382, %v4378
        %v4515 = vpack.c.b16 %v4383, %v4379
        %v4516 = vpack.c.b16 %v4384, %v4380
        %v4517 = vpack.c.b16 %v4385, %v4381
        %v4518 = vpack.c.b16 %v4390, %v4386
        %v4519 = vpack.c.b16 %v4391, %v4387
        %v4520 = vpack.c.b16 %v4392, %v4388
        %v4521 = vpack.c.b16 %v4393, %v4389
        %v4522 = vpack.c.b16 %v4398, %v4394
        %v4523 = vpack.c.b16 %v4399, %v4395
        %v4524 = vpack.c.b16 %v4400, %v4396
        %v4525 = vpack.c.b16 %v4401, %v4397
        %v4526 = vpack.c.b16 %v4406, %v4402
        %v4527 = vpack.c.b16 %v4407, %v4403
        %v4528 = vpack.c.b16 %v4408, %v4404
        %v4529 = vpack.c.b16 %v4409, %v4405
        %v4530 = vpack.c.b16 %v4414, %v4410
        %v4531 = vpack.c.b16 %v4415, %v4411
        %v4532 = vpack.c.b16 %v4416, %v4412
        %v4533 = vpack.c.b16 %v4417, %v4413
        %v4534 = vpack.c.b16 %v4422, %v4418
        %v4535 = vpack.c.b16 %v4423, %v4419
        %v4536 = vpack.c.b16 %v4424, %v4420
        %v4537 = vpack.c.b16 %v4425, %v4421
        %v4538 = vpack.c.b16 %v4430, %v4426
        %v4539 = vpack.c.b16 %v4431, %v4427
        %v4540 = vpack.c.b16 %v4432, %v4428
        %v4541 = vpack.c.b16 %v4433, %v4429
        %v4542 = vpack.c.b16 %v4438, %v4434
        %v4543 = vpack.c.b16 %v4439, %v4435
        %v4544 = vpack.c.b16 %v4440, %v4436
        %v4545 = vpack.c.b16 %v4441, %v4437
        %v4546 = vpack.c.b16 %v4446, %v4442
        %v4547 = vpack.c.b16 %v4447, %v4443
        %v4548 = vpack.c.b16 %v4448, %v4444
        %v4549 = vpack.c.b16 %v4449, %v4445
        %v4550 = vpack.c.b16 %v4454, %v4450
        %v4551 = vpack.c.b16 %v4455, %v4451
        %v4552 = vpack.c.b16 %v4456, %v4452
        %v4553 = vpack.c.b16 %v4457, %v4453
        %4650 = vmatprep.subr.bf16.mxu0 %v4459
        %4651 = vmatpush1.bf16.msra.mxu0 %v4458
        %4652 = vmatprep.subr.bf16.mxu0 %v4463
        %4653 = vmatpush1.bf16.msra.mxu0 %v4462
        %4654 = vmatprep.subr.bf16.mxu0 %v4467
        %4655 = vmatpush1.bf16.msra.mxu0 %v4466
        %4656 = vmatprep.subr.bf16.mxu0 %v4471
        %4657 = vmatpush1.bf16.msra.mxu0 %v4470
        %4658 = vmatprep.subr.bf16.mxu0 %v4475
        %4659 = vmatpush1.bf16.msra.mxu0 %v4474
        %4660 = vmatprep.subr.bf16.mxu0 %v4479
        %4661 = vmatpush1.bf16.msra.mxu0 %v4478
        %4662 = vmatprep.subr.bf16.mxu0 %v4483
        %4663 = vmatpush1.bf16.msra.mxu0 %v4482
        %4664 = vmatprep.subr.bf16.mxu0 %v4487
        %4665 = vmatpush1.bf16.msra.mxu0 %v4486
        %4666 = vmatprep.subr.bf16.mxu0 %v4491
        %4667 = vmatpush1.bf16.msra.mxu0 %v4490
        %4668 = vmatprep.subr.bf16.mxu0 %v4495
        %4669 = vmatpush1.bf16.msra.mxu0 %v4494
        %4670 = vmatprep.subr.bf16.mxu0 %v4499
        %4671 = vmatpush1.bf16.msra.mxu0 %v4498
        %4672 = vmatprep.subr.bf16.mxu0 %v4503
        %4673 = vmatpush1.bf16.msra.mxu0 %v4502
        %4674 = vmatprep.subr.bf16.mxu0 %v4507
        %4675 = vmatpush1.bf16.msra.mxu0 %v4506
        %4676 = vmatprep.subr.bf16.mxu0 %v4511
        %4677 = vmatpush1.bf16.msra.mxu0 %v4510
        %4678 = vmatprep.subr.bf16.mxu0 %v4515
        %4679 = vmatpush1.bf16.msra.mxu0 %v4514
        %4680 = vmatprep.subr.bf16.mxu0 %v4519
        %4681 = vmatpush1.bf16.msra.mxu0 %v4518
        %4682 = vmatprep.mubr.bf16.mxu0 %v4159
        %4683 = vmatmul.mubr.bf16.gmra.mrb[0].mxu0 %v4152
        %v4684 = vpop.f32.mrb[0].mxu0
        %v4685 = vadd.f32 0.0, %v4684
        %v4686 = vpop.f32.mrb[0].mxu0
        %v4687 = vadd.f32 0.0, %v4686
        %v4688 = vpop.f32.mrb[0].mxu0
        %v4689 = vpop.f32.mrb[0].mxu0
        %4690 = vdwg.mxu0
        %4691 = vmatprep.subr.bf16.mxu0 %v4523
        %4692 = vmatpush1.bf16.msra.mxu0 %v4522
        %4693 = vmatprep.subr.bf16.mxu0 %v4527
        %4694 = vmatpush1.bf16.msra.mxu0 %v4526
        %4695 = vmatprep.subr.bf16.mxu0 %v4531
        %4696 = vmatpush1.bf16.msra.mxu0 %v4530
        %4697 = vmatprep.subr.bf16.mxu0 %v4535
        %4698 = vmatpush1.bf16.msra.mxu0 %v4534
        %4699 = vmatprep.subr.bf16.mxu0 %v4539
        %4700 = vmatpush1.bf16.msra.mxu0 %v4538
        %4701 = vmatprep.subr.bf16.mxu0 %v4543
        %4702 = vmatpush1.bf16.msra.mxu0 %v4542
        %4703 = vmatprep.subr.bf16.mxu0 %v4547
        %4704 = vmatpush1.bf16.msra.mxu0 %v4546
        %4705 = vmatprep.subr.bf16.mxu0 %v4551
        %4706 = vmatpush1.bf16.msra.mxu0 %v4550
        %4707 = vmatprep.subr.bf16.mxu0 0
        %4708 = vmatpush1.bf16.msra.mxu0 0
        %4709 = vmatprep.subr.bf16.mxu0 0
        %4710 = vmatpush1.bf16.msra.mxu0 0
        %4711 = vmatprep.subr.bf16.mxu0 0
        %4712 = vmatpush1.bf16.msra.mxu0 0
        %4713 = vmatprep.subr.bf16.mxu0 0
        %4714 = vmatpush1.bf16.msra.mxu0 0
        %4715 = vmatprep.subr.bf16.mxu0 0
        %4716 = vmatpush1.bf16.msra.mxu0 0
        %4717 = vmatprep.subr.bf16.mxu0 0
        %4718 = vmatpush1.bf16.msra.mxu0 0
        %4719 = vmatprep.subr.bf16.mxu0 0
        %4720 = vmatpush1.bf16.msra.mxu0 0
        %4721 = vmatprep.subr.bf16.mxu0 0
        %4722 = vmatpush1.bf16.msra.mxu0 0
        %4723 = vmatprep.mubr.bf16.mxu0 0
        %4724 = vmatmul.mubr.bf16.gmra.mrb[0].mxu0 %v4166
        %v4725 = vpop.f32.mrb[0].mxu0
        %v4726 = vadd.f32 %v4685, %v4725
        %v4727 = vpop.f32.mrb[0].mxu0
        %v4728 = vadd.f32 %v4687, %v4727
        %v4729 = vpop.f32.mrb[0].mxu0
        %v4730 = vpop.f32.mrb[0].mxu0
        %4731 = vdwg.mxu0
        %4732 = vmatprep.subr.bf16.mxu0 %v4461
        %4733 = vmatpush1.bf16.msra.mxu0 %v4460
        %4734 = vmatprep.subr.bf16.mxu0 %v4465
        %4735 = vmatpush1.bf16.msra.mxu0 %v4464
        %4736 = vmatprep.subr.bf16.mxu0 %v4469
        %4737 = vmatpush1.bf16.msra.mxu0 %v4468
        %4738 = vmatprep.subr.bf16.mxu0 %v4473
        %4739 = vmatpush1.bf16.msra.mxu0 %v4472
        %4740 = vmatprep.subr.bf16.mxu0 %v4477
        %4741 = vmatpush1.bf16.msra.mxu0 %v4476
        %4742 = vmatprep.subr.bf16.mxu0 %v4481
        %4743 = vmatpush1.bf16.msra.mxu0 %v4480
        %4744 = vmatprep.subr.bf16.mxu0 %v4485
        %4745 = vmatpush1.bf16.msra.mxu0 %v4484
        %4746 = vmatprep.subr.bf16.mxu0 %v4489
        %4747 = vmatpush1.bf16.msra.mxu0 %v4488
        %4748 = vmatprep.subr.bf16.mxu0 %v4493
        %4749 = vmatpush1.bf16.msra.mxu0 %v4492
        %4750 = vmatprep.subr.bf16.mxu0 %v4497
        %4751 = vmatpush1.bf16.msra.mxu0 %v4496
        %4752 = vmatprep.subr.bf16.mxu0 %v4501
        %4753 = vmatpush1.bf16.msra.mxu0 %v4500
        %4754 = vmatprep.subr.bf16.mxu0 %v4505
        %4755 = vmatpush1.bf16.msra.mxu0 %v4504
        %4756 = vmatprep.subr.bf16.mxu0 %v4509
        %4757 = vmatpush1.bf16.msra.mxu0 %v4508
        %4758 = vmatprep.subr.bf16.mxu0 %v4513
        %4759 = vmatpush1.bf16.msra.mxu0 %v4512
        %4760 = vmatprep.subr.bf16.mxu0 %v4517
        %4761 = vmatpush1.bf16.msra.mxu0 %v4516
        %4762 = vmatprep.subr.bf16.mxu0 %v4521
        %4763 = vmatpush1.bf16.msra.mxu0 %v4520
        %4764 = vmatprep.mubr.bf16.mxu0 %v4159
        %4765 = vmatmul.mubr.bf16.gmra.mrb[0].mxu0 %v4152
        %v4766 = vpop.f32.mrb[0].mxu0
        %v4767 = vadd.f32 0.0, %v4766
        %v4768 = vpop.f32.mrb[0].mxu0
        %v4769 = vadd.f32 0.0, %v4768
        %v4770 = vpop.f32.mrb[0].mxu0
        %v4771 = vpop.f32.mrb[0].mxu0
        %4772 = vdwg.mxu0
        %4773 = vmatprep.subr.bf16.mxu0 %v4525
        %4774 = vmatpush1.bf16.msra.mxu0 %v4524
        %4775 = vmatprep.subr.bf16.mxu0 %v4529
        %4776 = vmatpush1.bf16.msra.mxu0 %v4528
        %4777 = vmatprep.subr.bf16.mxu0 %v4533
        %4778 = vmatpush1.bf16.msra.mxu0 %v4532
        %4779 = vmatprep.subr.bf16.mxu0 %v4537
        %4780 = vmatpush1.bf16.msra.mxu0 %v4536
        %4781 = vmatprep.subr.bf16.mxu0 %v4541
        %4782 = vmatpush1.bf16.msra.mxu0 %v4540
        %4783 = vmatprep.subr.bf16.mxu0 %v4545
        %4784 = vmatpush1.bf16.msra.mxu0 %v4544
        %4785 = vmatprep.subr.bf16.mxu0 %v4549
        %4786 = vmatpush1.bf16.msra.mxu0 %v4548
        %4787 = vmatprep.subr.bf16.mxu0 %v4553
        %4788 = vmatpush1.bf16.msra.mxu0 %v4552
        %4789 = vmatprep.subr.bf16.mxu0 0
        %4790 = vmatpush1.bf16.msra.mxu0 0
        %4791 = vmatprep.subr.bf16.mxu0 0
        %4792 = vmatpush1.bf16.msra.mxu0 0
        %4793 = vmatprep.subr.bf16.mxu0 0
        %4794 = vmatpush1.bf16.msra.mxu0 0
        %4795 = vmatprep.subr.bf16.mxu0 0
        %4796 = vmatpush1.bf16.msra.mxu0 0
        %4797 = vmatprep.subr.bf16.mxu0 0
        %4798 = vmatpush1.bf16.msra.mxu0 0
        %4799 = vmatprep.subr.bf16.mxu0 0
        %4800 = vmatpush1.bf16.msra.mxu0 0
        %4801 = vmatprep.subr.bf16.mxu0 0
        %4802 = vmatpush1.bf16.msra.mxu0 0
        %4803 = vmatprep.subr.bf16.mxu0 0
        %4804 = vmatpush1.bf16.msra.mxu0 0
        %4805 = vmatprep.mubr.bf16.mxu0 0
        %4806 = vmatmul.mubr.bf16.gmra.mrb[0].mxu0 %v4166
        %v4807 = vpop.f32.mrb[0].mxu0
        %v4808 = vadd.f32 %v4767, %v4807
        %v4809 = vpop.f32.mrb[0].mxu0
        %v4810 = vadd.f32 %v4769, %v4809
        %v4811 = vpop.f32.mrb[0].mxu0
        %v4812 = vpop.f32.mrb[0].mxu0
        %4813 = vdwg.mxu0
        %v4910 = vunpack.c.l.b16 %v3950
        %v4911 = vunpack.c.h.b16 %v3950
        %v4912 = vunpack.c.l.b16 %v3951
        %v4913 = vunpack.c.h.b16 %v3951
        %v4914 = vunpack.c.l.b16 %v3952
        %v4915 = vunpack.c.h.b16 %v3952
        %v4916 = vunpack.c.l.b16 %v3953
        %v4917 = vunpack.c.h.b16 %v3953
        %v4918 = vunpack.c.l.b16 %v3954
        %v4919 = vunpack.c.h.b16 %v3954
        %v4920 = vunpack.c.l.b16 %v3955
        %v4921 = vunpack.c.h.b16 %v3955
        %v4922 = vunpack.c.l.b16 %v3956
        %v4923 = vunpack.c.h.b16 %v3956
        %v4924 = vunpack.c.l.b16 %v3957
        %v4925 = vunpack.c.h.b16 %v3957
        %v4926 = vunpack.c.l.b16 %v3958
        %v4927 = vunpack.c.h.b16 %v3958
        %v4928 = vunpack.c.l.b16 %v3959
        %v4929 = vunpack.c.h.b16 %v3959
        %v4930 = vunpack.c.l.b16 %v3960
        %v4931 = vunpack.c.h.b16 %v3960
        %v4932 = vunpack.c.l.b16 %v3961
        %v4933 = vunpack.c.h.b16 %v3961
        %v4934 = vunpack.c.l.b16 %v3962
        %v4935 = vunpack.c.h.b16 %v3962
        %v4936 = vunpack.c.l.b16 %v3963
        %v4937 = vunpack.c.h.b16 %v3963
        %v4938 = vunpack.c.l.b16 %v3964
        %v4939 = vunpack.c.h.b16 %v3964
        %v4940 = vunpack.c.l.b16 %v3965
        %v4941 = vunpack.c.h.b16 %v3965
        %v4942 = vunpack.c.l.b16 %v3966
        %v4943 = vunpack.c.h.b16 %v3966
        %v4944 = vunpack.c.l.b16 %v3967
        %v4945 = vunpack.c.h.b16 %v3967
        %v4946 = vunpack.c.l.b16 %v3968
        %v4947 = vunpack.c.h.b16 %v3968
        %v4948 = vunpack.c.l.b16 %v3969
        %v4949 = vunpack.c.h.b16 %v3969
        %v4950 = vunpack.c.l.b16 %v3970
        %v4951 = vunpack.c.h.b16 %v3970
        %v4952 = vunpack.c.l.b16 %v3971
        %v4953 = vunpack.c.h.b16 %v3971
        %v4954 = vunpack.c.l.b16 %v3972
        %v4955 = vunpack.c.h.b16 %v3972
        %v4956 = vunpack.c.l.b16 %v3973
        %v4957 = vunpack.c.h.b16 %v3973
        %v4958 = vunpack.c.l.b16 %v3974
        %v4959 = vunpack.c.h.b16 %v3974
        %v4960 = vunpack.c.l.b16 %v3975
        %v4961 = vunpack.c.h.b16 %v3975
        %v4962 = vunpack.c.l.b16 %v3976
        %v4963 = vunpack.c.h.b16 %v3976
        %v4964 = vunpack.c.l.b16 %v3977
        %v4965 = vunpack.c.h.b16 %v3977
        %v4966 = vunpack.c.l.b16 %v3978
        %v4967 = vunpack.c.h.b16 %v3978
        %v4968 = vunpack.c.l.b16 %v3979
        %v4969 = vunpack.c.h.b16 %v3979
        %v4970 = vunpack.c.l.b16 %v3980
        %v4971 = vunpack.c.h.b16 %v3980
        %v4972 = vunpack.c.l.b16 %v3981
        %v4973 = vunpack.c.h.b16 %v3981
        %v4974 = vunpack.c.l.b16 %v3982
        %v4975 = vunpack.c.h.b16 %v3982
        %v4976 = vunpack.c.l.b16 %v3983
        %v4977 = vunpack.c.h.b16 %v3983
        %v4978 = vunpack.c.l.b16 %v3984
        %v4979 = vunpack.c.h.b16 %v3984
        %v4980 = vunpack.c.l.b16 %v3985
        %v4981 = vunpack.c.h.b16 %v3985
        %v4982 = vunpack.c.l.b16 %v3986
        %v4983 = vunpack.c.h.b16 %v3986
        %v4984 = vunpack.c.l.b16 %v3987
        %v4985 = vunpack.c.h.b16 %v3987
        %v4986 = vunpack.c.l.b16 %v3988
        %v4987 = vunpack.c.h.b16 %v3988
        %v4988 = vunpack.c.l.b16 %v3989
        %v4989 = vunpack.c.h.b16 %v3989
        %v4990 = vunpack.c.l.b16 %v3990
        %v4991 = vunpack.c.h.b16 %v3990
        %v4992 = vunpack.c.l.b16 %v3991
        %v4993 = vunpack.c.h.b16 %v3991
        %v4994 = vunpack.c.l.b16 %v3992
        %v4995 = vunpack.c.h.b16 %v3992
        %v4996 = vunpack.c.l.b16 %v3993
        %v4997 = vunpack.c.h.b16 %v3993
        %v4998 = vunpack.c.l.b16 %v3994
        %v4999 = vunpack.c.h.b16 %v3994
        %v5000 = vunpack.c.l.b16 %v3995
        %v5001 = vunpack.c.h.b16 %v3995
        %v5002 = vunpack.c.l.b16 %v3996
        %v5003 = vunpack.c.h.b16 %v3996
        %v5004 = vunpack.c.l.b16 %v3997
        %v5005 = vunpack.c.h.b16 %v3997
        %v5006 = vunpack.c.l.b16 %v3998
        %v5007 = vunpack.c.h.b16 %v3998
        %v5008 = vunpack.c.l.b16 %v3999
        %v5009 = vunpack.c.h.b16 %v3999
        %v5010 = vunpack.c.l.b16 %v4000
        %v5011 = vunpack.c.h.b16 %v4000
        %v5012 = vunpack.c.l.b16 %v4001
        %v5013 = vunpack.c.h.b16 %v4001
        %v5014 = vunpack.c.l.b16 %v4002
        %v5015 = vunpack.c.h.b16 %v4002
        %v5016 = vunpack.c.l.b16 %v4003
        %v5017 = vunpack.c.h.b16 %v4003
        %v5018 = vunpack.c.l.b16 %v4004
        %v5019 = vunpack.c.h.b16 %v4004
        %v5020 = vunpack.c.l.b16 %v4005
        %v5021 = vunpack.c.h.b16 %v4005
        %v5022 = vunpack.c.l.b16 %v4006
        %v5023 = vunpack.c.h.b16 %v4006
        %v5024 = vunpack.c.l.b16 %v4007
        %v5025 = vunpack.c.h.b16 %v4007
        %v5026 = vunpack.c.l.b16 %v4008
        %v5027 = vunpack.c.h.b16 %v4008
        %v5028 = vunpack.c.l.b16 %v4009
        %v5029 = vunpack.c.h.b16 %v4009
        %v5030 = vunpack.c.l.b16 %v4010
        %v5031 = vunpack.c.h.b16 %v4010
        %v5032 = vunpack.c.l.b16 %v4011
        %v5033 = vunpack.c.h.b16 %v4011
        %v5034 = vunpack.c.l.b16 %v4012
        %v5035 = vunpack.c.h.b16 %v4012
        %v5036 = vunpack.c.l.b16 %v4013
        %v5037 = vunpack.c.h.b16 %v4013
        %v5038 = vunpack.c.l.b16 %v4014
        %v5039 = vunpack.c.h.b16 %v4014
        %v5040 = vunpack.c.l.b16 %v4015
        %v5041 = vunpack.c.h.b16 %v4015
        %v5042 = vunpack.c.l.b16 %v4016
        %v5043 = vunpack.c.h.b16 %v4016
        %v5044 = vunpack.c.l.b16 %v4017
        %v5045 = vunpack.c.h.b16 %v4017
        %v5046 = vunpack.c.l.b16 %v4018
        %v5047 = vunpack.c.h.b16 %v4018
        %v5048 = vunpack.c.l.b16 %v4019
        %v5049 = vunpack.c.h.b16 %v4019
        %v5050 = vunpack.c.l.b16 %v4020
        %v5051 = vunpack.c.h.b16 %v4020
        %v5052 = vunpack.c.l.b16 %v4021
        %v5053 = vunpack.c.h.b16 %v4021
        %v5054 = vunpack.c.l.b16 %v4022
        %v5055 = vunpack.c.h.b16 %v4022
        %v5056 = vunpack.c.l.b16 %v4023
        %v5057 = vunpack.c.h.b16 %v4023
        %v5058 = vunpack.c.l.b16 %v4024
        %v5059 = vunpack.c.h.b16 %v4024
        %v5060 = vunpack.c.l.b16 %v4025
        %v5061 = vunpack.c.h.b16 %v4025
        %v5062 = vunpack.c.l.b16 %v4026
        %v5063 = vunpack.c.h.b16 %v4026
        %v5064 = vunpack.c.l.b16 %v4027
        %v5065 = vunpack.c.h.b16 %v4027
        %v5066 = vunpack.c.l.b16 %v4028
        %v5067 = vunpack.c.h.b16 %v4028
        %v5068 = vunpack.c.l.b16 %v4029
        %v5069 = vunpack.c.h.b16 %v4029
        %v5070 = vunpack.c.l.b16 %v4030
        %v5071 = vunpack.c.h.b16 %v4030
        %v5072 = vunpack.c.l.b16 %v4031
        %v5073 = vunpack.c.h.b16 %v4031
        %v5074 = vunpack.c.l.b16 %v4032
        %v5075 = vunpack.c.h.b16 %v4032
        %v5076 = vunpack.c.l.b16 %v4033
        %v5077 = vunpack.c.h.b16 %v4033
        %v5078 = vunpack.c.l.b16 %v4034
        %v5079 = vunpack.c.h.b16 %v4034
        %v5080 = vunpack.c.l.b16 %v4035
        %v5081 = vunpack.c.h.b16 %v4035
        %v5082 = vunpack.c.l.b16 %v4036
        %v5083 = vunpack.c.h.b16 %v4036
        %v5084 = vunpack.c.l.b16 %v4037
        %v5085 = vunpack.c.h.b16 %v4037
        %v5086 = vunpack.c.l.b16 %v4038
        %v5087 = vunpack.c.h.b16 %v4038
        %v5088 = vunpack.c.l.b16 %v4039
        %v5089 = vunpack.c.h.b16 %v4039
        %v5090 = vunpack.c.l.b16 %v4040
        %v5091 = vunpack.c.h.b16 %v4040
        %v5092 = vunpack.c.l.b16 %v4041
        %v5093 = vunpack.c.h.b16 %v4041
        %v5094 = vunpack.c.l.b16 %v4042
        %v5095 = vunpack.c.h.b16 %v4042
        %v5096 = vunpack.c.l.b16 %v4043
        %v5097 = vunpack.c.h.b16 %v4043
        %v5098 = vunpack.c.l.b16 %v4044
        %v5099 = vunpack.c.h.b16 %v4044
        %v5100 = vunpack.c.l.b16 %v4045
        %v5101 = vunpack.c.h.b16 %v4045
        %v5102 = vpack.c.b16 %v4914, %v4910
        %v5103 = vpack.c.b16 %v4915, %v4911
        %v5104 = vpack.c.b16 %v4916, %v4912
        %v5105 = vpack.c.b16 %v4917, %v4913
        %v5106 = vpack.c.b16 %v4922, %v4918
        %v5107 = vpack.c.b16 %v4923, %v4919
        %v5108 = vpack.c.b16 %v4924, %v4920
        %v5109 = vpack.c.b16 %v4925, %v4921
        %v5110 = vpack.c.b16 %v4930, %v4926
        %v5111 = vpack.c.b16 %v4931, %v4927
        %v5112 = vpack.c.b16 %v4932, %v4928
        %v5113 = vpack.c.b16 %v4933, %v4929
        %v5114 = vpack.c.b16 %v4938, %v4934
        %v5115 = vpack.c.b16 %v4939, %v4935
        %v5116 = vpack.c.b16 %v4940, %v4936
        %v5117 = vpack.c.b16 %v4941, %v4937
        %v5118 = vpack.c.b16 %v4946, %v4942
        %v5119 = vpack.c.b16 %v4947, %v4943
        %v5120 = vpack.c.b16 %v4948, %v4944
        %v5121 = vpack.c.b16 %v4949, %v4945
        %v5122 = vpack.c.b16 %v4954, %v4950
        %v5123 = vpack.c.b16 %v4955, %v4951
        %v5124 = vpack.c.b16 %v4956, %v4952
        %v5125 = vpack.c.b16 %v4957, %v4953
        %v5126 = vpack.c.b16 %v4962, %v4958
        %v5127 = vpack.c.b16 %v4963, %v4959
        %v5128 = vpack.c.b16 %v4964, %v4960
        %v5129 = vpack.c.b16 %v4965, %v4961
        %v5130 = vpack.c.b16 %v4970, %v4966
        %v5131 = vpack.c.b16 %v4971, %v4967
        %v5132 = vpack.c.b16 %v4972, %v4968
        %v5133 = vpack.c.b16 %v4973, %v4969
        %v5134 = vpack.c.b16 %v4978, %v4974
        %v5135 = vpack.c.b16 %v4979, %v4975
        %v5136 = vpack.c.b16 %v4980, %v4976
        %v5137 = vpack.c.b16 %v4981, %v4977
        %v5138 = vpack.c.b16 %v4986, %v4982
        %v5139 = vpack.c.b16 %v4987, %v4983
        %v5140 = vpack.c.b16 %v4988, %v4984
        %v5141 = vpack.c.b16 %v4989, %v4985
        %v5142 = vpack.c.b16 %v4994, %v4990
        %v5143 = vpack.c.b16 %v4995, %v4991
        %v5144 = vpack.c.b16 %v4996, %v4992
        %v5145 = vpack.c.b16 %v4997, %v4993
        %v5146 = vpack.c.b16 %v5002, %v4998
        %v5147 = vpack.c.b16 %v5003, %v4999
        %v5148 = vpack.c.b16 %v5004, %v5000
        %v5149 = vpack.c.b16 %v5005, %v5001
        %v5150 = vpack.c.b16 %v5010, %v5006
        %v5151 = vpack.c.b16 %v5011, %v5007
        %v5152 = vpack.c.b16 %v5012, %v5008
        %v5153 = vpack.c.b16 %v5013, %v5009
        %v5154 = vpack.c.b16 %v5018, %v5014
        %v5155 = vpack.c.b16 %v5019, %v5015
        %v5156 = vpack.c.b16 %v5020, %v5016
        %v5157 = vpack.c.b16 %v5021, %v5017
        %v5158 = vpack.c.b16 %v5026, %v5022
        %v5159 = vpack.c.b16 %v5027, %v5023
        %v5160 = vpack.c.b16 %v5028, %v5024
        %v5161 = vpack.c.b16 %v5029, %v5025
        %v5162 = vpack.c.b16 %v5034, %v5030
        %v5163 = vpack.c.b16 %v5035, %v5031
        %v5164 = vpack.c.b16 %v5036, %v5032
        %v5165 = vpack.c.b16 %v5037, %v5033
        %v5166 = vpack.c.b16 %v5042, %v5038
        %v5167 = vpack.c.b16 %v5043, %v5039
        %v5168 = vpack.c.b16 %v5044, %v5040
        %v5169 = vpack.c.b16 %v5045, %v5041
        %v5170 = vpack.c.b16 %v5050, %v5046
        %v5171 = vpack.c.b16 %v5051, %v5047
        %v5172 = vpack.c.b16 %v5052, %v5048
        %v5173 = vpack.c.b16 %v5053, %v5049
        %v5174 = vpack.c.b16 %v5058, %v5054
        %v5175 = vpack.c.b16 %v5059, %v5055
        %v5176 = vpack.c.b16 %v5060, %v5056
        %v5177 = vpack.c.b16 %v5061, %v5057
        %v5178 = vpack.c.b16 %v5066, %v5062
        %v5179 = vpack.c.b16 %v5067, %v5063
        %v5180 = vpack.c.b16 %v5068, %v5064
        %v5181 = vpack.c.b16 %v5069, %v5065
        %v5182 = vpack.c.b16 %v5074, %v5070
        %v5183 = vpack.c.b16 %v5075, %v5071
        %v5184 = vpack.c.b16 %v5076, %v5072
        %v5185 = vpack.c.b16 %v5077, %v5073
        %v5186 = vpack.c.b16 %v5082, %v5078
        %v5187 = vpack.c.b16 %v5083, %v5079
        %v5188 = vpack.c.b16 %v5084, %v5080
        %v5189 = vpack.c.b16 %v5085, %v5081
        %v5190 = vpack.c.b16 %v5090, %v5086
        %v5191 = vpack.c.b16 %v5091, %v5087
        %v5192 = vpack.c.b16 %v5092, %v5088
        %v5193 = vpack.c.b16 %v5093, %v5089
        %v5194 = vpack.c.b16 %v5098, %v5094
        %v5195 = vpack.c.b16 %v5099, %v5095
        %v5196 = vpack.c.b16 %v5100, %v5096
        %v5197 = vpack.c.b16 %v5101, %v5097
        %5294 = vmatprep.subr.bf16.mxu0 %v5103
        %5295 = vmatpush1.bf16.msra.mxu0 %v5102
        %5296 = vmatprep.subr.bf16.mxu0 %v5107
        %5297 = vmatpush1.bf16.msra.mxu0 %v5106
        %5298 = vmatprep.subr.bf16.mxu0 %v5111
        %5299 = vmatpush1.bf16.msra.mxu0 %v5110
        %5300 = vmatprep.subr.bf16.mxu0 %v5115
        %5301 = vmatpush1.bf16.msra.mxu0 %v5114
        %5302 = vmatprep.subr.bf16.mxu0 %v5119
        %5303 = vmatpush1.bf16.msra.mxu0 %v5118
        %5304 = vmatprep.subr.bf16.mxu0 %v5123
        %5305 = vmatpush1.bf16.msra.mxu0 %v5122
        %5306 = vmatprep.subr.bf16.mxu0 %v5127
        %5307 = vmatpush1.bf16.msra.mxu0 %v5126
        %5308 = vmatprep.subr.bf16.mxu0 %v5131
        %5309 = vmatpush1.bf16.msra.mxu0 %v5130
        %5310 = vmatprep.subr.bf16.mxu0 %v5135
        %5311 = vmatpush1.bf16.msra.mxu0 %v5134
        %5312 = vmatprep.subr.bf16.mxu0 %v5139
        %5313 = vmatpush1.bf16.msra.mxu0 %v5138
        %5314 = vmatprep.subr.bf16.mxu0 %v5143
        %5315 = vmatpush1.bf16.msra.mxu0 %v5142
        %5316 = vmatprep.subr.bf16.mxu0 %v5147
        %5317 = vmatpush1.bf16.msra.mxu0 %v5146
        %5318 = vmatprep.subr.bf16.mxu0 %v5151
        %5319 = vmatpush1.bf16.msra.mxu0 %v5150
        %5320 = vmatprep.subr.bf16.mxu0 %v5155
        %5321 = vmatpush1.bf16.msra.mxu0 %v5154
        %5322 = vmatprep.subr.bf16.mxu0 %v5159
        %5323 = vmatpush1.bf16.msra.mxu0 %v5158
        %5324 = vmatprep.subr.bf16.mxu0 %v5163
        %5325 = vmatpush1.bf16.msra.mxu0 %v5162
        %5326 = vmatprep.mubr.bf16.mxu0 %v3948
        %5327 = vmatmul.mubr.bf16.gmra.mrb[0].mxu0 %v3947
        %v5328 = vpop.f32.mrb[0].mxu0
        %v5329 = vadd.f32 %v4726, %v5328
        %v5330 = vpop.f32.mrb[0].mxu0
        %v5331 = vadd.f32 %v4728, %v5330
        %v5332 = vpop.f32.mrb[0].mxu0
        %v5333 = vpop.f32.mrb[0].mxu0
        %5334 = vdwg.mxu0
        %5335 = vmatprep.subr.bf16.mxu0 %v5167
        %5336 = vmatpush1.bf16.msra.mxu0 %v5166
        %5337 = vmatprep.subr.bf16.mxu0 %v5171
        %5338 = vmatpush1.bf16.msra.mxu0 %v5170
        %5339 = vmatprep.subr.bf16.mxu0 %v5175
        %5340 = vmatpush1.bf16.msra.mxu0 %v5174
        %5341 = vmatprep.subr.bf16.mxu0 %v5179
        %5342 = vmatpush1.bf16.msra.mxu0 %v5178
        %5343 = vmatprep.subr.bf16.mxu0 %v5183
        %5344 = vmatpush1.bf16.msra.mxu0 %v5182
        %5345 = vmatprep.subr.bf16.mxu0 %v5187
        %5346 = vmatpush1.bf16.msra.mxu0 %v5186
        %5347 = vmatprep.subr.bf16.mxu0 %v5191
        %5348 = vmatpush1.bf16.msra.mxu0 %v5190
        %5349 = vmatprep.subr.bf16.mxu0 %v5195
        %5350 = vmatpush1.bf16.msra.mxu0 %v5194
        %5351 = vmatprep.subr.bf16.mxu0 0
        %5352 = vmatpush1.bf16.msra.mxu0 0
        %5353 = vmatprep.subr.bf16.mxu0 0
        %5354 = vmatpush1.bf16.msra.mxu0 0
        %5355 = vmatprep.subr.bf16.mxu0 0
        %5356 = vmatpush1.bf16.msra.mxu0 0
        %5357 = vmatprep.subr.bf16.mxu0 0
        %5358 = vmatpush1.bf16.msra.mxu0 0
        %5359 = vmatprep.subr.bf16.mxu0 0
        %5360 = vmatpush1.bf16.msra.mxu0 0
        %5361 = vmatprep.subr.bf16.mxu0 0
        %5362 = vmatpush1.bf16.msra.mxu0 0
        %5363 = vmatprep.subr.bf16.mxu0 0
        %5364 = vmatpush1.bf16.msra.mxu0 0
        %5365 = vmatprep.subr.bf16.mxu0 0
        %5366 = vmatpush1.bf16.msra.mxu0 0
        %5367 = vmatprep.mubr.bf16.mxu0 0
        %5368 = vmatmul.mubr.bf16.gmra.mrb[0].mxu0 %v3949
        %v5369 = vpop.f32.mrb[0].mxu0
        %v5370 = vadd.f32 %v5329, %v5369
        %v5371 = vpop.f32.mrb[0].mxu0
        %v5372 = vadd.f32 %v5331, %v5371
        %v5373 = vpop.f32.mrb[0].mxu0
        %v5374 = vpop.f32.mrb[0].mxu0
        %5375 = vdwg.mxu0
        %5376 = vmatprep.subr.bf16.mxu0 %v5105
        %5377 = vmatpush1.bf16.msra.mxu0 %v5104
        %5378 = vmatprep.subr.bf16.mxu0 %v5109
        %5379 = vmatpush1.bf16.msra.mxu0 %v5108
        %5380 = vmatprep.subr.bf16.mxu0 %v5113
        %5381 = vmatpush1.bf16.msra.mxu0 %v5112
        %5382 = vmatprep.subr.bf16.mxu0 %v5117
        %5383 = vmatpush1.bf16.msra.mxu0 %v5116
        %5384 = vmatprep.subr.bf16.mxu0 %v5121
        %5385 = vmatpush1.bf16.msra.mxu0 %v5120
        %5386 = vmatprep.subr.bf16.mxu0 %v5125
        %5387 = vmatpush1.bf16.msra.mxu0 %v5124
        %5388 = vmatprep.subr.bf16.mxu0 %v5129
        %5389 = vmatpush1.bf16.msra.mxu0 %v5128
        %5390 = vmatprep.subr.bf16.mxu0 %v5133
        %5391 = vmatpush1.bf16.msra.mxu0 %v5132
        %5392 = vmatprep.subr.bf16.mxu0 %v5137
        %5393 = vmatpush1.bf16.msra.mxu0 %v5136
        %5394 = vmatprep.subr.bf16.mxu0 %v5141
        %5395 = vmatpush1.bf16.msra.mxu0 %v5140
        %5396 = vmatprep.subr.bf16.mxu0 %v5145
        %5397 = vmatpush1.bf16.msra.mxu0 %v5144
        %5398 = vmatprep.subr.bf16.mxu0 %v5149
        %5399 = vmatpush1.bf16.msra.mxu0 %v5148
        %5400 = vmatprep.subr.bf16.mxu0 %v5153
        %5401 = vmatpush1.bf16.msra.mxu0 %v5152
        %5402 = vmatprep.subr.bf16.mxu0 %v5157
        %5403 = vmatpush1.bf16.msra.mxu0 %v5156
        %5404 = vmatprep.subr.bf16.mxu0 %v5161
        %5405 = vmatpush1.bf16.msra.mxu0 %v5160
        %5406 = vmatprep.subr.bf16.mxu0 %v5165
        %5407 = vmatpush1.bf16.msra.mxu0 %v5164
        %5408 = vmatprep.mubr.bf16.mxu0 %v3948
        %5409 = vmatmul.mubr.bf16.gmra.mrb[0].mxu0 %v3947
        %v5410 = vpop.f32.mrb[0].mxu0
        %v5411 = vadd.f32 %v4808, %v5410
        %v5412 = vpop.f32.mrb[0].mxu0
        %v5413 = vadd.f32 %v4810, %v5412
        %v5414 = vpop.f32.mrb[0].mxu0
        %v5415 = vpop.f32.mrb[0].mxu0
        %5416 = vdwg.mxu0
        %5417 = vmatprep.subr.bf16.mxu0 %v5169
        %5418 = vmatpush1.bf16.msra.mxu0 %v5168
        %5419 = vmatprep.subr.bf16.mxu0 %v5173
        %5420 = vmatpush1.bf16.msra.mxu0 %v5172
        %5421 = vmatprep.subr.bf16.mxu0 %v5177
        %5422 = vmatpush1.bf16.msra.mxu0 %v5176
        %5423 = vmatprep.subr.bf16.mxu0 %v5181
        %5424 = vmatpush1.bf16.msra.mxu0 %v5180
        %5425 = vmatprep.subr.bf16.mxu0 %v5185
        %5426 = vmatpush1.bf16.msra.mxu0 %v5184
        %5427 = vmatprep.subr.bf16.mxu0 %v5189
        %5428 = vmatpush1.bf16.msra.mxu0 %v5188
        %5429 = vmatprep.subr.bf16.mxu0 %v5193
        %5430 = vmatpush1.bf16.msra.mxu0 %v5192
        %5431 = vmatprep.subr.bf16.mxu0 %v5197
        %5432 = vmatpush1.bf16.msra.mxu0 %v5196
        %5433 = vmatprep.subr.bf16.mxu0 0
        %5434 = vmatpush1.bf16.msra.mxu0 0
        %5435 = vmatprep.subr.bf16.mxu0 0
        %5436 = vmatpush1.bf16.msra.mxu0 0
        %5437 = vmatprep.subr.bf16.mxu0 0
        %5438 = vmatpush1.bf16.msra.mxu0 0
        %5439 = vmatprep.subr.bf16.mxu0 0
        %5440 = vmatpush1.bf16.msra.mxu0 0
        %5441 = vmatprep.subr.bf16.mxu0 0
        %5442 = vmatpush1.bf16.msra.mxu0 0
        %5443 = vmatprep.subr.bf16.mxu0 0
        %5444 = vmatpush1.bf16.msra.mxu0 0
        %5445 = vmatprep.subr.bf16.mxu0 0
        %5446 = vmatpush1.bf16.msra.mxu0 0
        %5447 = vmatprep.subr.bf16.mxu0 0
        %5448 = vmatpush1.bf16.msra.mxu0 0
        %5449 = vmatprep.mubr.bf16.mxu0 0
        %5450 = vmatmul.mubr.bf16.gmra.mrb[0].mxu0 %v3949
        %v5451 = vpop.f32.mrb[0].mxu0
        %v5452 = vadd.f32 %v5411, %v5451
        %v5453 = vpop.f32.mrb[0].mxu0
        %v5454 = vadd.f32 %v5413, %v5453
        %v5455 = vpop.f32.mrb[0].mxu0
        %v5456 = vpop.f32.mrb[0].mxu0
        %5457 = vdwg.mxu0
        %s5458 = scalar_lea.vmem [#allocation8], 1536
        %v5459 = vld [vmem:[%s5458] sm:$0xff]
        %v5460 = vld [vmem:[%s5458 + $0x8] sm:$0xff]
        %v5461 = vld [vmem:[%s5458 + $0x10] sm:$0xff]
        %v5462 = vld [vmem:[%s5458 + $0x18] sm:$0xff]
        %v5463 = vld [vmem:[%s5458 + $0x20] sm:$0xff]
        %v5464 = vld [vmem:[%s5458 + $0x28] sm:$0xff]
        %v5465 = vld [vmem:[%s5458 + $0x30] sm:$0xff]
        %v5466 = vld [vmem:[%s5458 + $0x38] sm:$0xff]
        %v5467 = vld [vmem:[%s5458 + $0x40] sm:$0xff]
        %v5468 = vld [vmem:[%s5458 + $0x48] sm:$0xff]
        %v5469 = vld [vmem:[%s5458 + $0x50] sm:$0xff]
        %v5470 = vld [vmem:[%s5458 + $0x58] sm:$0xff]
        %v5471 = vld [vmem:[%s5458 + $0x60] sm:$0xff]
        %v5472 = vld [vmem:[%s5458 + $0x68] sm:$0xff]
        %v5473 = vld [vmem:[%s5458 + $0x70] sm:$0xff]
        %v5474 = vld [vmem:[%s5458 + $0x78] sm:$0xff]
        %v5475 = vld [vmem:[%s5458 + $0x80] sm:$0xff]
        %v5476 = vld [vmem:[%s5458 + $0x88] sm:$0xff]
        %v5477 = vld [vmem:[%s5458 + $0x90] sm:$0xff]
        %v5478 = vld [vmem:[%s5458 + $0x98] sm:$0xff]
        %v5479 = vld [vmem:[%s5458 + $0xa0] sm:$0xff]
        %v5480 = vld [vmem:[%s5458 + $0xa8] sm:$0xff]
        %v5481 = vld [vmem:[%s5458 + $0xb0] sm:$0xff]
        %v5482 = vld [vmem:[%s5458 + $0xb8] sm:$0xff]
        %v5483 = vld [vmem:[%s5458 + $0xc0] sm:$0xff]
        %v5484 = vld [vmem:[%s5458 + $0xc8] sm:$0xff]
        %v5485 = vld [vmem:[%s5458 + $0xd0] sm:$0xff]
        %v5486 = vld [vmem:[%s5458 + $0xd8] sm:$0xff]
        %v5487 = vld [vmem:[%s5458 + $0xe0] sm:$0xff]
        %v5488 = vld [vmem:[%s5458 + $0xe8] sm:$0xff]
        %v5489 = vld [vmem:[%s5458 + $0xf0] sm:$0xff]
        %v5490 = vld [vmem:[%s5458 + $0xf8] sm:$0xff]
        %v5491 = vld [vmem:[%s5458 + $0x100] sm:$0xff]
        %v5492 = vld [vmem:[%s5458 + $0x108] sm:$0xff]
        %v5493 = vld [vmem:[%s5458 + $0x110] sm:$0xff]
        %v5494 = vld [vmem:[%s5458 + $0x118] sm:$0xff]
        %v5495 = vld [vmem:[%s5458 + $0x120] sm:$0xff]
        %v5496 = vld [vmem:[%s5458 + $0x128] sm:$0xff]
        %v5497 = vld [vmem:[%s5458 + $0x130] sm:$0xff]
        %v5498 = vld [vmem:[%s5458 + $0x138] sm:$0xff]
        %v5499 = vld [vmem:[%s5458 + $0x140] sm:$0xff]
        %v5500 = vld [vmem:[%s5458 + $0x148] sm:$0xff]
        %v5501 = vld [vmem:[%s5458 + $0x150] sm:$0xff]
        %v5502 = vld [vmem:[%s5458 + $0x158] sm:$0xff]
        %v5503 = vld [vmem:[%s5458 + $0x160] sm:$0xff]
        %v5504 = vld [vmem:[%s5458 + $0x168] sm:$0xff]
        %v5505 = vld [vmem:[%s5458 + $0x170] sm:$0xff]
        %v5506 = vld [vmem:[%s5458 + $0x178] sm:$0xff]
        %v5507 = vld [vmem:[%s5458 + $0x180] sm:$0xff]
        %v5508 = vld [vmem:[%s5458 + $0x188] sm:$0xff]
        %v5509 = vld [vmem:[%s5458 + $0x190] sm:$0xff]
        %v5510 = vld [vmem:[%s5458 + $0x198] sm:$0xff]
        %v5511 = vld [vmem:[%s5458 + $0x1a0] sm:$0xff]
        %v5512 = vld [vmem:[%s5458 + $0x1a8] sm:$0xff]
        %v5513 = vld [vmem:[%s5458 + $0x1b0] sm:$0xff]
        %v5514 = vld [vmem:[%s5458 + $0x1b8] sm:$0xff]
        %v5515 = vld [vmem:[%s5458 + $0x1c0] sm:$0xff]
        %v5516 = vld [vmem:[%s5458 + $0x1c8] sm:$0xff]
        %v5517 = vld [vmem:[%s5458 + $0x1d0] sm:$0xff]
        %v5518 = vld [vmem:[%s5458 + $0x1d8] sm:$0xff]
        %v5519 = vld [vmem:[%s5458 + $0x1e0] sm:$0xff]
        %v5520 = vld [vmem:[%s5458 + $0x1e8] sm:$0xff]
        %v5521 = vld [vmem:[%s5458 + $0x1f0] sm:$0xff]
        %v5522 = vld [vmem:[%s5458 + $0x1f8] sm:$0xff]
        %v5523 = vld [vmem:[%s5458 + $0x200] sm:$0xff]
        %v5524 = vld [vmem:[%s5458 + $0x208] sm:$0xff]
        %v5525 = vld [vmem:[%s5458 + $0x210] sm:$0xff]
        %v5526 = vld [vmem:[%s5458 + $0x218] sm:$0xff]
        %v5527 = vld [vmem:[%s5458 + $0x220] sm:$0xff]
        %v5528 = vld [vmem:[%s5458 + $0x228] sm:$0xff]
        %v5529 = vld [vmem:[%s5458 + $0x230] sm:$0xff]
        %v5530 = vld [vmem:[%s5458 + $0x238] sm:$0xff]
        %v5531 = vld [vmem:[%s5458 + $0x240] sm:$0xff]
        %v5532 = vld [vmem:[%s5458 + $0x248] sm:$0xff]
        %v5533 = vld [vmem:[%s5458 + $0x250] sm:$0xff]
        %v5534 = vld [vmem:[%s5458 + $0x258] sm:$0xff]
        %v5535 = vld [vmem:[%s5458 + $0x260] sm:$0xff]
        %v5536 = vld [vmem:[%s5458 + $0x268] sm:$0xff]
        %v5537 = vld [vmem:[%s5458 + $0x270] sm:$0xff]
        %v5538 = vld [vmem:[%s5458 + $0x278] sm:$0xff]
        %v5539 = vld [vmem:[%s5458 + $0x280] sm:$0xff]
        %v5540 = vld [vmem:[%s5458 + $0x288] sm:$0xff]
        %v5541 = vld [vmem:[%s5458 + $0x290] sm:$0xff]
        %v5542 = vld [vmem:[%s5458 + $0x298] sm:$0xff]
        %v5543 = vld [vmem:[%s5458 + $0x2a0] sm:$0xff]
        %v5544 = vld [vmem:[%s5458 + $0x2a8] sm:$0xff]
        %v5545 = vld [vmem:[%s5458 + $0x2b0] sm:$0xff]
        %v5546 = vld [vmem:[%s5458 + $0x2b8] sm:$0xff]
        %v5547 = vld [vmem:[%s5458 + $0x2c0] sm:$0xff]
        %v5548 = vld [vmem:[%s5458 + $0x2c8] sm:$0xff]
        %v5549 = vld [vmem:[%s5458 + $0x2d0] sm:$0xff]
        %v5550 = vld [vmem:[%s5458 + $0x2d8] sm:$0xff]
        %v5551 = vld [vmem:[%s5458 + $0x2e0] sm:$0xff]
        %v5552 = vld [vmem:[%s5458 + $0x2e8] sm:$0xff]
        %v5553 = vld [vmem:[%s5458 + $0x2f0] sm:$0xff]
        %v5554 = vld [vmem:[%s5458 + $0x2f8] sm:$0xff]
        %v5558 = vrot.slane %v4046, 1
        %v5559 = vrot.slane %v4047, 1
        %v5560 = vrot.slane %v4048, 1
        %v5660 = vunpack.c.l.b16 %v5459
        %v5661 = vunpack.c.h.b16 %v5459
        %v5662 = vunpack.c.l.b16 %v5460
        %v5663 = vunpack.c.h.b16 %v5460
        %v5664 = vunpack.c.l.b16 %v5461
        %v5665 = vunpack.c.h.b16 %v5461
        %v5666 = vunpack.c.l.b16 %v5462
        %v5667 = vunpack.c.h.b16 %v5462
        %v5668 = vunpack.c.l.b16 %v5463
        %v5669 = vunpack.c.h.b16 %v5463
        %v5670 = vunpack.c.l.b16 %v5464
        %v5671 = vunpack.c.h.b16 %v5464
        %v5672 = vunpack.c.l.b16 %v5465
        %v5673 = vunpack.c.h.b16 %v5465
        %v5674 = vunpack.c.l.b16 %v5466
        %v5675 = vunpack.c.h.b16 %v5466
        %v5676 = vunpack.c.l.b16 %v5467
        %v5677 = vunpack.c.h.b16 %v5467
        %v5678 = vunpack.c.l.b16 %v5468
        %v5679 = vunpack.c.h.b16 %v5468
        %v5680 = vunpack.c.l.b16 %v5469
        %v5681 = vunpack.c.h.b16 %v5469
        %v5682 = vunpack.c.l.b16 %v5470
        %v5683 = vunpack.c.h.b16 %v5470
        %v5684 = vunpack.c.l.b16 %v5471
        %v5685 = vunpack.c.h.b16 %v5471
        %v5686 = vunpack.c.l.b16 %v5472
        %v5687 = vunpack.c.h.b16 %v5472
        %v5688 = vunpack.c.l.b16 %v5473
        %v5689 = vunpack.c.h.b16 %v5473
        %v5690 = vunpack.c.l.b16 %v5474
        %v5691 = vunpack.c.h.b16 %v5474
        %v5692 = vunpack.c.l.b16 %v5475
        %v5693 = vunpack.c.h.b16 %v5475
        %v5694 = vunpack.c.l.b16 %v5476
        %v5695 = vunpack.c.h.b16 %v5476
        %v5696 = vunpack.c.l.b16 %v5477
        %v5697 = vunpack.c.h.b16 %v5477
        %v5698 = vunpack.c.l.b16 %v5478
        %v5699 = vunpack.c.h.b16 %v5478
        %v5700 = vunpack.c.l.b16 %v5479
        %v5701 = vunpack.c.h.b16 %v5479
        %v5702 = vunpack.c.l.b16 %v5480
        %v5703 = vunpack.c.h.b16 %v5480
        %v5704 = vunpack.c.l.b16 %v5481
        %v5705 = vunpack.c.h.b16 %v5481
        %v5706 = vunpack.c.l.b16 %v5482
        %v5707 = vunpack.c.h.b16 %v5482
        %v5708 = vunpack.c.l.b16 %v5483
        %v5709 = vunpack.c.h.b16 %v5483
        %v5710 = vunpack.c.l.b16 %v5484
        %v5711 = vunpack.c.h.b16 %v5484
        %v5712 = vunpack.c.l.b16 %v5485
        %v5713 = vunpack.c.h.b16 %v5485
        %v5714 = vunpack.c.l.b16 %v5486
        %v5715 = vunpack.c.h.b16 %v5486
        %v5716 = vunpack.c.l.b16 %v5487
        %v5717 = vunpack.c.h.b16 %v5487
        %v5718 = vunpack.c.l.b16 %v5488
        %v5719 = vunpack.c.h.b16 %v5488
        %v5720 = vunpack.c.l.b16 %v5489
        %v5721 = vunpack.c.h.b16 %v5489
        %v5722 = vunpack.c.l.b16 %v5490
        %v5723 = vunpack.c.h.b16 %v5490
        %v5724 = vunpack.c.l.b16 %v5491
        %v5725 = vunpack.c.h.b16 %v5491
        %v5726 = vunpack.c.l.b16 %v5492
        %v5727 = vunpack.c.h.b16 %v5492
        %v5728 = vunpack.c.l.b16 %v5493
        %v5729 = vunpack.c.h.b16 %v5493
        %v5730 = vunpack.c.l.b16 %v5494
        %v5731 = vunpack.c.h.b16 %v5494
        %v5732 = vunpack.c.l.b16 %v5495
        %v5733 = vunpack.c.h.b16 %v5495
        %v5734 = vunpack.c.l.b16 %v5496
        %v5735 = vunpack.c.h.b16 %v5496
        %v5736 = vunpack.c.l.b16 %v5497
        %v5737 = vunpack.c.h.b16 %v5497
        %v5738 = vunpack.c.l.b16 %v5498
        %v5739 = vunpack.c.h.b16 %v5498
        %v5740 = vunpack.c.l.b16 %v5499
        %v5741 = vunpack.c.h.b16 %v5499
        %v5742 = vunpack.c.l.b16 %v5500
        %v5743 = vunpack.c.h.b16 %v5500
        %v5744 = vunpack.c.l.b16 %v5501
        %v5745 = vunpack.c.h.b16 %v5501
        %v5746 = vunpack.c.l.b16 %v5502
        %v5747 = vunpack.c.h.b16 %v5502
        %v5748 = vunpack.c.l.b16 %v5503
        %v5749 = vunpack.c.h.b16 %v5503
        %v5750 = vunpack.c.l.b16 %v5504
        %v5751 = vunpack.c.h.b16 %v5504
        %v5752 = vunpack.c.l.b16 %v5505
        %v5753 = vunpack.c.h.b16 %v5505
        %v5754 = vunpack.c.l.b16 %v5506
        %v5755 = vunpack.c.h.b16 %v5506
        %v5756 = vunpack.c.l.b16 %v5507
        %v5757 = vunpack.c.h.b16 %v5507
        %v5758 = vunpack.c.l.b16 %v5508
        %v5759 = vunpack.c.h.b16 %v5508
        %v5760 = vunpack.c.l.b16 %v5509
        %v5761 = vunpack.c.h.b16 %v5509
        %v5762 = vunpack.c.l.b16 %v5510
        %v5763 = vunpack.c.h.b16 %v5510
        %v5764 = vunpack.c.l.b16 %v5511
        %v5765 = vunpack.c.h.b16 %v5511
        %v5766 = vunpack.c.l.b16 %v5512
        %v5767 = vunpack.c.h.b16 %v5512
        %v5768 = vunpack.c.l.b16 %v5513
        %v5769 = vunpack.c.h.b16 %v5513
        %v5770 = vunpack.c.l.b16 %v5514
        %v5771 = vunpack.c.h.b16 %v5514
        %v5772 = vunpack.c.l.b16 %v5515
        %v5773 = vunpack.c.h.b16 %v5515
        %v5774 = vunpack.c.l.b16 %v5516
        %v5775 = vunpack.c.h.b16 %v5516
        %v5776 = vunpack.c.l.b16 %v5517
        %v5777 = vunpack.c.h.b16 %v5517
        %v5778 = vunpack.c.l.b16 %v5518
        %v5779 = vunpack.c.h.b16 %v5518
        %v5780 = vunpack.c.l.b16 %v5519
        %v5781 = vunpack.c.h.b16 %v5519
        %v5782 = vunpack.c.l.b16 %v5520
        %v5783 = vunpack.c.h.b16 %v5520
        %v5784 = vunpack.c.l.b16 %v5521
        %v5785 = vunpack.c.h.b16 %v5521
        %v5786 = vunpack.c.l.b16 %v5522
        %v5787 = vunpack.c.h.b16 %v5522
        %v5788 = vunpack.c.l.b16 %v5523
        %v5789 = vunpack.c.h.b16 %v5523
        %v5790 = vunpack.c.l.b16 %v5524
        %v5791 = vunpack.c.h.b16 %v5524
        %v5792 = vunpack.c.l.b16 %v5525
        %v5793 = vunpack.c.h.b16 %v5525
        %v5794 = vunpack.c.l.b16 %v5526
        %v5795 = vunpack.c.h.b16 %v5526
        %v5796 = vunpack.c.l.b16 %v5527
        %v5797 = vunpack.c.h.b16 %v5527
        %v5798 = vunpack.c.l.b16 %v5528
        %v5799 = vunpack.c.h.b16 %v5528
        %v5800 = vunpack.c.l.b16 %v5529
        %v5801 = vunpack.c.h.b16 %v5529
        %v5802 = vunpack.c.l.b16 %v5530
        %v5803 = vunpack.c.h.b16 %v5530
        %v5804 = vunpack.c.l.b16 %v5531
        %v5805 = vunpack.c.h.b16 %v5531
        %v5806 = vunpack.c.l.b16 %v5532
        %v5807 = vunpack.c.h.b16 %v5532
        %v5808 = vunpack.c.l.b16 %v5533
        %v5809 = vunpack.c.h.b16 %v5533
        %v5810 = vunpack.c.l.b16 %v5534
        %v5811 = vunpack.c.h.b16 %v5534
        %v5812 = vunpack.c.l.b16 %v5535
        %v5813 = vunpack.c.h.b16 %v5535
        %v5814 = vunpack.c.l.b16 %v5536
        %v5815 = vunpack.c.h.b16 %v5536
        %v5816 = vunpack.c.l.b16 %v5537
        %v5817 = vunpack.c.h.b16 %v5537
        %v5818 = vunpack.c.l.b16 %v5538
        %v5819 = vunpack.c.h.b16 %v5538
        %v5820 = vunpack.c.l.b16 %v5539
        %v5821 = vunpack.c.h.b16 %v5539
        %v5822 = vunpack.c.l.b16 %v5540
        %v5823 = vunpack.c.h.b16 %v5540
        %v5824 = vunpack.c.l.b16 %v5541
        %v5825 = vunpack.c.h.b16 %v5541
        %v5826 = vunpack.c.l.b16 %v5542
        %v5827 = vunpack.c.h.b16 %v5542
        %v5828 = vunpack.c.l.b16 %v5543
        %v5829 = vunpack.c.h.b16 %v5543
        %v5830 = vunpack.c.l.b16 %v5544
        %v5831 = vunpack.c.h.b16 %v5544
        %v5832 = vunpack.c.l.b16 %v5545
        %v5833 = vunpack.c.h.b16 %v5545
        %v5834 = vunpack.c.l.b16 %v5546
        %v5835 = vunpack.c.h.b16 %v5546
        %v5836 = vunpack.c.l.b16 %v5547
        %v5837 = vunpack.c.h.b16 %v5547
        %v5838 = vunpack.c.l.b16 %v5548
        %v5839 = vunpack.c.h.b16 %v5548
        %v5840 = vunpack.c.l.b16 %v5549
        %v5841 = vunpack.c.h.b16 %v5549
        %v5842 = vunpack.c.l.b16 %v5550
        %v5843 = vunpack.c.h.b16 %v5550
        %v5844 = vunpack.c.l.b16 %v5551
        %v5845 = vunpack.c.h.b16 %v5551
        %v5846 = vunpack.c.l.b16 %v5552
        %v5847 = vunpack.c.h.b16 %v5552
        %v5848 = vunpack.c.l.b16 %v5553
        %v5849 = vunpack.c.h.b16 %v5553
        %v5850 = vunpack.c.l.b16 %v5554
        %v5851 = vunpack.c.h.b16 %v5554
        %v5852 = vpack.c.b16 %v5664, %v5660
        %v5853 = vpack.c.b16 %v5665, %v5661
        %v5854 = vpack.c.b16 %v5666, %v5662
        %v5855 = vpack.c.b16 %v5667, %v5663
        %v5856 = vpack.c.b16 %v5672, %v5668
        %v5857 = vpack.c.b16 %v5673, %v5669
        %v5858 = vpack.c.b16 %v5674, %v5670
        %v5859 = vpack.c.b16 %v5675, %v5671
        %v5860 = vpack.c.b16 %v5680, %v5676
        %v5861 = vpack.c.b16 %v5681, %v5677
        %v5862 = vpack.c.b16 %v5682, %v5678
        %v5863 = vpack.c.b16 %v5683, %v5679
        %v5864 = vpack.c.b16 %v5688, %v5684
        %v5865 = vpack.c.b16 %v5689, %v5685
        %v5866 = vpack.c.b16 %v5690, %v5686
        %v5867 = vpack.c.b16 %v5691, %v5687
        %v5868 = vpack.c.b16 %v5696, %v5692
        %v5869 = vpack.c.b16 %v5697, %v5693
        %v5870 = vpack.c.b16 %v5698, %v5694
        %v5871 = vpack.c.b16 %v5699, %v5695
        %v5872 = vpack.c.b16 %v5704, %v5700
        %v5873 = vpack.c.b16 %v5705, %v5701
        %v5874 = vpack.c.b16 %v5706, %v5702
        %v5875 = vpack.c.b16 %v5707, %v5703
        %v5876 = vpack.c.b16 %v5712, %v5708
        %v5877 = vpack.c.b16 %v5713, %v5709
        %v5878 = vpack.c.b16 %v5714, %v5710
        %v5879 = vpack.c.b16 %v5715, %v5711
        %v5880 = vpack.c.b16 %v5720, %v5716
        %v5881 = vpack.c.b16 %v5721, %v5717
        %v5882 = vpack.c.b16 %v5722, %v5718
        %v5883 = vpack.c.b16 %v5723, %v5719
        %v5884 = vpack.c.b16 %v5728, %v5724
        %v5885 = vpack.c.b16 %v5729, %v5725
        %v5886 = vpack.c.b16 %v5730, %v5726
        %v5887 = vpack.c.b16 %v5731, %v5727
        %v5888 = vpack.c.b16 %v5736, %v5732
        %v5889 = vpack.c.b16 %v5737, %v5733
        %v5890 = vpack.c.b16 %v5738, %v5734
        %v5891 = vpack.c.b16 %v5739, %v5735
        %v5892 = vpack.c.b16 %v5744, %v5740
        %v5893 = vpack.c.b16 %v5745, %v5741
        %v5894 = vpack.c.b16 %v5746, %v5742
        %v5895 = vpack.c.b16 %v5747, %v5743
        %v5896 = vpack.c.b16 %v5752, %v5748
        %v5897 = vpack.c.b16 %v5753, %v5749
        %v5898 = vpack.c.b16 %v5754, %v5750
        %v5899 = vpack.c.b16 %v5755, %v5751
        %v5900 = vpack.c.b16 %v5760, %v5756
        %v5901 = vpack.c.b16 %v5761, %v5757
        %v5902 = vpack.c.b16 %v5762, %v5758
        %v5903 = vpack.c.b16 %v5763, %v5759
        %v5904 = vpack.c.b16 %v5768, %v5764
        %v5905 = vpack.c.b16 %v5769, %v5765
        %v5906 = vpack.c.b16 %v5770, %v5766
        %v5907 = vpack.c.b16 %v5771, %v5767
        %v5908 = vpack.c.b16 %v5776, %v5772
        %v5909 = vpack.c.b16 %v5777, %v5773
        %v5910 = vpack.c.b16 %v5778, %v5774
        %v5911 = vpack.c.b16 %v5779, %v5775
        %v5912 = vpack.c.b16 %v5784, %v5780
        %v5913 = vpack.c.b16 %v5785, %v5781
        %v5914 = vpack.c.b16 %v5786, %v5782
        %v5915 = vpack.c.b16 %v5787, %v5783
        %v5916 = vpack.c.b16 %v5792, %v5788
        %v5917 = vpack.c.b16 %v5793, %v5789
        %v5918 = vpack.c.b16 %v5794, %v5790
        %v5919 = vpack.c.b16 %v5795, %v5791
        %v5920 = vpack.c.b16 %v5800, %v5796
        %v5921 = vpack.c.b16 %v5801, %v5797
        %v5922 = vpack.c.b16 %v5802, %v5798
        %v5923 = vpack.c.b16 %v5803, %v5799
        %v5924 = vpack.c.b16 %v5808, %v5804
        %v5925 = vpack.c.b16 %v5809, %v5805
        %v5926 = vpack.c.b16 %v5810, %v5806
        %v5927 = vpack.c.b16 %v5811, %v5807
        %v5928 = vpack.c.b16 %v5816, %v5812
        %v5929 = vpack.c.b16 %v5817, %v5813
        %v5930 = vpack.c.b16 %v5818, %v5814
        %v5931 = vpack.c.b16 %v5819, %v5815
        %v5932 = vpack.c.b16 %v5824, %v5820
        %v5933 = vpack.c.b16 %v5825, %v5821
        %v5934 = vpack.c.b16 %v5826, %v5822
        %v5935 = vpack.c.b16 %v5827, %v5823
        %v5936 = vpack.c.b16 %v5832, %v5828
        %v5937 = vpack.c.b16 %v5833, %v5829
        %v5938 = vpack.c.b16 %v5834, %v5830
        %v5939 = vpack.c.b16 %v5835, %v5831
        %v5940 = vpack.c.b16 %v5840, %v5836
        %v5941 = vpack.c.b16 %v5841, %v5837
        %v5942 = vpack.c.b16 %v5842, %v5838
        %v5943 = vpack.c.b16 %v5843, %v5839
        %v5944 = vpack.c.b16 %v5848, %v5844
        %v5945 = vpack.c.b16 %v5849, %v5845
        %v5946 = vpack.c.b16 %v5850, %v5846
        %v5947 = vpack.c.b16 %v5851, %v5847
        %6044 = vmatprep.subr.bf16.mxu0 %v5853
        %6045 = vmatpush1.bf16.msra.mxu0 %v5852
        %6046 = vmatprep.subr.bf16.mxu0 %v5857
        %6047 = vmatpush1.bf16.msra.mxu0 %v5856
        %6048 = vmatprep.subr.bf16.mxu0 %v5861
        %6049 = vmatpush1.bf16.msra.mxu0 %v5860
        %6050 = vmatprep.subr.bf16.mxu0 %v5865
        %6051 = vmatpush1.bf16.msra.mxu0 %v5864
        %6052 = vmatprep.subr.bf16.mxu0 %v5869
        %6053 = vmatpush1.bf16.msra.mxu0 %v5868
        %6054 = vmatprep.subr.bf16.mxu0 %v5873
        %6055 = vmatpush1.bf16.msra.mxu0 %v5872
        %6056 = vmatprep.subr.bf16.mxu0 %v5877
        %6057 = vmatpush1.bf16.msra.mxu0 %v5876
        %6058 = vmatprep.subr.bf16.mxu0 %v5881
        %6059 = vmatpush1.bf16.msra.mxu0 %v5880
        %6060 = vmatprep.subr.bf16.mxu0 %v5885
        %6061 = vmatpush1.bf16.msra.mxu0 %v5884
        %6062 = vmatprep.subr.bf16.mxu0 %v5889
        %6063 = vmatpush1.bf16.msra.mxu0 %v5888
        %6064 = vmatprep.subr.bf16.mxu0 %v5893
        %6065 = vmatpush1.bf16.msra.mxu0 %v5892
        %6066 = vmatprep.subr.bf16.mxu0 %v5897
        %6067 = vmatpush1.bf16.msra.mxu0 %v5896
        %6068 = vmatprep.subr.bf16.mxu0 %v5901
        %6069 = vmatpush1.bf16.msra.mxu0 %v5900
        %6070 = vmatprep.subr.bf16.mxu0 %v5905
        %6071 = vmatpush1.bf16.msra.mxu0 %v5904
        %6072 = vmatprep.subr.bf16.mxu0 %v5909
        %6073 = vmatpush1.bf16.msra.mxu0 %v5908
        %6074 = vmatprep.subr.bf16.mxu0 %v5913
        %6075 = vmatpush1.bf16.msra.mxu0 %v5912
        %6076 = vmatprep.mubr.bf16.mxu0 %v5559
        %6077 = vmatmul.mubr.bf16.gmra.mrb[0].mxu0 %v5558
        %v6078 = vpop.f32.mrb[0].mxu0
        %v6079 = vadd.f32 0.0, %v6078
        %v6080 = vpop.f32.mrb[0].mxu0
        %v6081 = vadd.f32 0.0, %v6080
        %v6082 = vpop.f32.mrb[0].mxu0
        %v6083 = vpop.f32.mrb[0].mxu0
        %6084 = vdwg.mxu0
        %6085 = vmatprep.subr.bf16.mxu0 %v5917
        %6086 = vmatpush1.bf16.msra.mxu0 %v5916
        %6087 = vmatprep.subr.bf16.mxu0 %v5921
        %6088 = vmatpush1.bf16.msra.mxu0 %v5920
        %6089 = vmatprep.subr.bf16.mxu0 %v5925
        %6090 = vmatpush1.bf16.msra.mxu0 %v5924
        %6091 = vmatprep.subr.bf16.mxu0 %v5929
        %6092 = vmatpush1.bf16.msra.mxu0 %v5928
        %6093 = vmatprep.subr.bf16.mxu0 %v5933
        %6094 = vmatpush1.bf16.msra.mxu0 %v5932
        %6095 = vmatprep.subr.bf16.mxu0 %v5937
        %6096 = vmatpush1.bf16.msra.mxu0 %v5936
        %6097 = vmatprep.subr.bf16.mxu0 %v5941
        %6098 = vmatpush1.bf16.msra.mxu0 %v5940
        %6099 = vmatprep.subr.bf16.mxu0 %v5945
        %6100 = vmatpush1.bf16.msra.mxu0 %v5944
        %6101 = vmatprep.subr.bf16.mxu0 0
        %6102 = vmatpush1.bf16.msra.mxu0 0
        %6103 = vmatprep.subr.bf16.mxu0 0
        %6104 = vmatpush1.bf16.msra.mxu0 0
        %6105 = vmatprep.subr.bf16.mxu0 0
        %6106 = vmatpush1.bf16.msra.mxu0 0
        %6107 = vmatprep.subr.bf16.mxu0 0
        %6108 = vmatpush1.bf16.msra.mxu0 0
        %6109 = vmatprep.subr.bf16.mxu0 0
        %6110 = vmatpush1.bf16.msra.mxu0 0
        %6111 = vmatprep.subr.bf16.mxu0 0
        %6112 = vmatpush1.bf16.msra.mxu0 0
        %6113 = vmatprep.subr.bf16.mxu0 0
        %6114 = vmatpush1.bf16.msra.mxu0 0
        %6115 = vmatprep.subr.bf16.mxu0 0
        %6116 = vmatpush1.bf16.msra.mxu0 0
        %6117 = vmatprep.mubr.bf16.mxu0 0
        %6118 = vmatmul.mubr.bf16.gmra.mrb[0].mxu0 %v5560
        %v6119 = vpop.f32.mrb[0].mxu0
        %v6120 = vadd.f32 %v6079, %v6119
        %v6121 = vpop.f32.mrb[0].mxu0
        %v6122 = vadd.f32 %v6081, %v6121
        %v6123 = vpop.f32.mrb[0].mxu0
        %v6124 = vpop.f32.mrb[0].mxu0
        %6125 = vdwg.mxu0
        %6126 = vmatprep.subr.bf16.mxu0 %v5855
        %6127 = vmatpush1.bf16.msra.mxu0 %v5854
        %6128 = vmatprep.subr.bf16.mxu0 %v5859
        %6129 = vmatpush1.bf16.msra.mxu0 %v5858
        %6130 = vmatprep.subr.bf16.mxu0 %v5863
        %6131 = vmatpush1.bf16.msra.mxu0 %v5862
        %6132 = vmatprep.subr.bf16.mxu0 %v5867
        %6133 = vmatpush1.bf16.msra.mxu0 %v5866
        %6134 = vmatprep.subr.bf16.mxu0 %v5871
        %6135 = vmatpush1.bf16.msra.mxu0 %v5870
        %6136 = vmatprep.subr.bf16.mxu0 %v5875
        %6137 = vmatpush1.bf16.msra.mxu0 %v5874
        %6138 = vmatprep.subr.bf16.mxu0 %v5879
        %6139 = vmatpush1.bf16.msra.mxu0 %v5878
        %6140 = vmatprep.subr.bf16.mxu0 %v5883
        %6141 = vmatpush1.bf16.msra.mxu0 %v5882
        %6142 = vmatprep.subr.bf16.mxu0 %v5887
        %6143 = vmatpush1.bf16.msra.mxu0 %v5886
        %6144 = vmatprep.subr.bf16.mxu0 %v5891
        %6145 = vmatpush1.bf16.msra.mxu0 %v5890
        %6146 = vmatprep.subr.bf16.mxu0 %v5895
        %6147 = vmatpush1.bf16.msra.mxu0 %v5894
        %6148 = vmatprep.subr.bf16.mxu0 %v5899
        %6149 = vmatpush1.bf16.msra.mxu0 %v5898
        %6150 = vmatprep.subr.bf16.mxu0 %v5903
        %6151 = vmatpush1.bf16.msra.mxu0 %v5902
        %6152 = vmatprep.subr.bf16.mxu0 %v5907
        %6153 = vmatpush1.bf16.msra.mxu0 %v5906
        %6154 = vmatprep.subr.bf16.mxu0 %v5911
        %6155 = vmatpush1.bf16.msra.mxu0 %v5910
        %6156 = vmatprep.subr.bf16.mxu0 %v5915
        %6157 = vmatpush1.bf16.msra.mxu0 %v5914
        %6158 = vmatprep.mubr.bf16.mxu0 %v5559
        %6159 = vmatmul.mubr.bf16.gmra.mrb[0].mxu0 %v5558
        %v6160 = vpop.f32.mrb[0].mxu0
        %v6161 = vadd.f32 0.0, %v6160
        %v6162 = vpop.f32.mrb[0].mxu0
        %v6163 = vadd.f32 0.0, %v6162
        %v6164 = vpop.f32.mrb[0].mxu0
        %v6165 = vpop.f32.mrb[0].mxu0
        %6166 = vdwg.mxu0
        %6167 = vmatprep.subr.bf16.mxu0 %v5919
        %6168 = vmatpush1.bf16.msra.mxu0 %v5918
        %6169 = vmatprep.subr.bf16.mxu0 %v5923
        %6170 = vmatpush1.bf16.msra.mxu0 %v5922
        %6171 = vmatprep.subr.bf16.mxu0 %v5927
        %6172 = vmatpush1.bf16.msra.mxu0 %v5926
        %6173 = vmatprep.subr.bf16.mxu0 %v5931
        %6174 = vmatpush1.bf16.msra.mxu0 %v5930
        %6175 = vmatprep.subr.bf16.mxu0 %v5935
        %6176 = vmatpush1.bf16.msra.mxu0 %v5934
        %6177 = vmatprep.subr.bf16.mxu0 %v5939
        %6178 = vmatpush1.bf16.msra.mxu0 %v5938
        %6179 = vmatprep.subr.bf16.mxu0 %v5943
        %6180 = vmatpush1.bf16.msra.mxu0 %v5942
        %6181 = vmatprep.subr.bf16.mxu0 %v5947
        %6182 = vmatpush1.bf16.msra.mxu0 %v5946
        %6183 = vmatprep.subr.bf16.mxu0 0
        %6184 = vmatpush1.bf16.msra.mxu0 0
        %6185 = vmatprep.subr.bf16.mxu0 0
        %6186 = vmatpush1.bf16.msra.mxu0 0
        %6187 = vmatprep.subr.bf16.mxu0 0
        %6188 = vmatpush1.bf16.msra.mxu0 0
        %6189 = vmatprep.subr.bf16.mxu0 0
        %6190 = vmatpush1.bf16.msra.mxu0 0
        %6191 = vmatprep.subr.bf16.mxu0 0
        %6192 = vmatpush1.bf16.msra.mxu0 0
        %6193 = vmatprep.subr.bf16.mxu0 0
        %6194 = vmatpush1.bf16.msra.mxu0 0
        %6195 = vmatprep.subr.bf16.mxu0 0
        %6196 = vmatpush1.bf16.msra.mxu0 0
        %6197 = vmatprep.subr.bf16.mxu0 0
        %6198 = vmatpush1.bf16.msra.mxu0 0
        %6199 = vmatprep.mubr.bf16.mxu0 0
        %6200 = vmatmul.mubr.bf16.gmra.mrb[0].mxu0 %v5560
        %v6201 = vpop.f32.mrb[0].mxu0
        %v6202 = vadd.f32 %v6161, %v6201
        %v6203 = vpop.f32.mrb[0].mxu0
        %v6204 = vadd.f32 %v6163, %v6203
        %v6205 = vpop.f32.mrb[0].mxu0
        %v6206 = vpop.f32.mrb[0].mxu0
        %6207 = vdwg.mxu0
        %v6208 = vadd.f32 %v5370, %v6120
        %v6209 = vadd.f32 %v5372, %v6122
        %v6210 = vadd.f32 %v5452, %v6202
        %v6211 = vadd.f32 %v5454, %v6204
        %s6212 = scalar_lea.vmem [#allocation8], 2304
        %v6213 = vld [vmem:[%s6212] sm:$0xff]
        %v6214 = vld [vmem:[%s6212 + $0x8] sm:$0xff]
        %v6215 = vld [vmem:[%s6212 + $0x10] sm:$0xff]
        %v6216 = vld [vmem:[%s6212 + $0x18] sm:$0xff]
        %v6217 = vld [vmem:[%s6212 + $0x20] sm:$0xff]
        %v6218 = vld [vmem:[%s6212 + $0x28] sm:$0xff]
        %v6219 = vld [vmem:[%s6212 + $0x30] sm:$0xff]
        %v6220 = vld [vmem:[%s6212 + $0x38] sm:$0xff]
        %v6221 = vld [vmem:[%s6212 + $0x40] sm:$0xff]
        %v6222 = vld [vmem:[%s6212 + $0x48] sm:$0xff]
        %v6223 = vld [vmem:[%s6212 + $0x50] sm:$0xff]
        %v6224 = vld [vmem:[%s6212 + $0x58] sm:$0xff]
        %v6225 = vld [vmem:[%s6212 + $0x60] sm:$0xff]
        %v6226 = vld [vmem:[%s6212 + $0x68] sm:$0xff]
        %v6227 = vld [vmem:[%s6212 + $0x70] sm:$0xff]
        %v6228 = vld [vmem:[%s6212 + $0x78] sm:$0xff]
        %v6229 = vld [vmem:[%s6212 + $0x80] sm:$0xff]
        %v6230 = vld [vmem:[%s6212 + $0x88] sm:$0xff]
        %v6231 = vld [vmem:[%s6212 + $0x90] sm:$0xff]
        %v6232 = vld [vmem:[%s6212 + $0x98] sm:$0xff]
        %v6233 = vld [vmem:[%s6212 + $0xa0] sm:$0xff]
        %v6234 = vld [vmem:[%s6212 + $0xa8] sm:$0xff]
        %v6235 = vld [vmem:[%s6212 + $0xb0] sm:$0xff]
        %v6236 = vld [vmem:[%s6212 + $0xb8] sm:$0xff]
        %v6237 = vld [vmem:[%s6212 + $0xc0] sm:$0xff]
        %v6238 = vld [vmem:[%s6212 + $0xc8] sm:$0xff]
        %v6239 = vld [vmem:[%s6212 + $0xd0] sm:$0xff]
        %v6240 = vld [vmem:[%s6212 + $0xd8] sm:$0xff]
        %v6241 = vld [vmem:[%s6212 + $0xe0] sm:$0xff]
        %v6242 = vld [vmem:[%s6212 + $0xe8] sm:$0xff]
        %v6243 = vld [vmem:[%s6212 + $0xf0] sm:$0xff]
        %v6244 = vld [vmem:[%s6212 + $0xf8] sm:$0xff]
        %v6245 = vld [vmem:[%s6212 + $0x100] sm:$0xff]
        %v6246 = vld [vmem:[%s6212 + $0x108] sm:$0xff]
        %v6247 = vld [vmem:[%s6212 + $0x110] sm:$0xff]
        %v6248 = vld [vmem:[%s6212 + $0x118] sm:$0xff]
        %v6249 = vld [vmem:[%s6212 + $0x120] sm:$0xff]
        %v6250 = vld [vmem:[%s6212 + $0x128] sm:$0xff]
        %v6251 = vld [vmem:[%s6212 + $0x130] sm:$0xff]
        %v6252 = vld [vmem:[%s6212 + $0x138] sm:$0xff]
        %v6253 = vld [vmem:[%s6212 + $0x140] sm:$0xff]
        %v6254 = vld [vmem:[%s6212 + $0x148] sm:$0xff]
        %v6255 = vld [vmem:[%s6212 + $0x150] sm:$0xff]
        %v6256 = vld [vmem:[%s6212 + $0x158] sm:$0xff]
        %v6257 = vld [vmem:[%s6212 + $0x160] sm:$0xff]
        %v6258 = vld [vmem:[%s6212 + $0x168] sm:$0xff]
        %v6259 = vld [vmem:[%s6212 + $0x170] sm:$0xff]
        %v6260 = vld [vmem:[%s6212 + $0x178] sm:$0xff]
        %v6261 = vld [vmem:[%s6212 + $0x180] sm:$0xff]
        %v6262 = vld [vmem:[%s6212 + $0x188] sm:$0xff]
        %v6263 = vld [vmem:[%s6212 + $0x190] sm:$0xff]
        %v6264 = vld [vmem:[%s6212 + $0x198] sm:$0xff]
        %v6265 = vld [vmem:[%s6212 + $0x1a0] sm:$0xff]
        %v6266 = vld [vmem:[%s6212 + $0x1a8] sm:$0xff]
        %v6267 = vld [vmem:[%s6212 + $0x1b0] sm:$0xff]
        %v6268 = vld [vmem:[%s6212 + $0x1b8] sm:$0xff]
        %v6269 = vld [vmem:[%s6212 + $0x1c0] sm:$0xff]
        %v6270 = vld [vmem:[%s6212 + $0x1c8] sm:$0xff]
        %v6271 = vld [vmem:[%s6212 + $0x1d0] sm:$0xff]
        %v6272 = vld [vmem:[%s6212 + $0x1d8] sm:$0xff]
        %v6273 = vld [vmem:[%s6212 + $0x1e0] sm:$0xff]
        %v6274 = vld [vmem:[%s6212 + $0x1e8] sm:$0xff]
        %v6275 = vld [vmem:[%s6212 + $0x1f0] sm:$0xff]
        %v6276 = vld [vmem:[%s6212 + $0x1f8] sm:$0xff]
        %v6277 = vld [vmem:[%s6212 + $0x200] sm:$0xff]
        %v6278 = vld [vmem:[%s6212 + $0x208] sm:$0xff]
        %v6279 = vld [vmem:[%s6212 + $0x210] sm:$0xff]
        %v6280 = vld [vmem:[%s6212 + $0x218] sm:$0xff]
        %v6281 = vld [vmem:[%s6212 + $0x220] sm:$0xff]
        %v6282 = vld [vmem:[%s6212 + $0x228] sm:$0xff]
        %v6283 = vld [vmem:[%s6212 + $0x230] sm:$0xff]
        %v6284 = vld [vmem:[%s6212 + $0x238] sm:$0xff]
        %v6285 = vld [vmem:[%s6212 + $0x240] sm:$0xff]
        %v6286 = vld [vmem:[%s6212 + $0x248] sm:$0xff]
        %v6287 = vld [vmem:[%s6212 + $0x250] sm:$0xff]
        %v6288 = vld [vmem:[%s6212 + $0x258] sm:$0xff]
        %v6289 = vld [vmem:[%s6212 + $0x260] sm:$0xff]
        %v6290 = vld [vmem:[%s6212 + $0x268] sm:$0xff]
        %v6291 = vld [vmem:[%s6212 + $0x270] sm:$0xff]
        %v6292 = vld [vmem:[%s6212 + $0x278] sm:$0xff]
        %v6293 = vld [vmem:[%s6212 + $0x280] sm:$0xff]
        %v6294 = vld [vmem:[%s6212 + $0x288] sm:$0xff]
        %v6295 = vld [vmem:[%s6212 + $0x290] sm:$0xff]
        %v6296 = vld [vmem:[%s6212 + $0x298] sm:$0xff]
        %v6297 = vld [vmem:[%s6212 + $0x2a0] sm:$0xff]
        %v6298 = vld [vmem:[%s6212 + $0x2a8] sm:$0xff]
        %v6299 = vld [vmem:[%s6212 + $0x2b0] sm:$0xff]
        %v6300 = vld [vmem:[%s6212 + $0x2b8] sm:$0xff]
        %v6301 = vld [vmem:[%s6212 + $0x2c0] sm:$0xff]
        %v6302 = vld [vmem:[%s6212 + $0x2c8] sm:$0xff]
        %v6303 = vld [vmem:[%s6212 + $0x2d0] sm:$0xff]
        %v6304 = vld [vmem:[%s6212 + $0x2d8] sm:$0xff]
        %v6305 = vld [vmem:[%s6212 + $0x2e0] sm:$0xff]
        %v6306 = vld [vmem:[%s6212 + $0x2e8] sm:$0xff]
        %v6307 = vld [vmem:[%s6212 + $0x2f0] sm:$0xff]
        %v6308 = vld [vmem:[%s6212 + $0x2f8] sm:$0xff]
        %v6309 = vrot.slane %v4147, 1
        %v6310 = vrot.slane %v4149, 2
        %v6311 = vor.u32 %v6309, %v6310
        %v6312 = vrot.slane %v4154, 1
        %v6313 = vrot.slane %v4156, 2
        %v6314 = vor.u32 %v6312, %v6313
        %v6315 = vrot.slane %v4161, 1
        %v6316 = vrot.slane %v4163, 2
        %v6317 = vor.u32 %v6315, %v6316
        %v6417 = vunpack.c.l.b16 %v6213
        %v6418 = vunpack.c.h.b16 %v6213
        %v6419 = vunpack.c.l.b16 %v6214
        %v6420 = vunpack.c.h.b16 %v6214
        %v6421 = vunpack.c.l.b16 %v6215
        %v6422 = vunpack.c.h.b16 %v6215
        %v6423 = vunpack.c.l.b16 %v6216
        %v6424 = vunpack.c.h.b16 %v6216
        %v6425 = vunpack.c.l.b16 %v6217
        %v6426 = vunpack.c.h.b16 %v6217
        %v6427 = vunpack.c.l.b16 %v6218
        %v6428 = vunpack.c.h.b16 %v6218
        %v6429 = vunpack.c.l.b16 %v6219
        %v6430 = vunpack.c.h.b16 %v6219
        %v6431 = vunpack.c.l.b16 %v6220
        %v6432 = vunpack.c.h.b16 %v6220
        %v6433 = vunpack.c.l.b16 %v6221
        %v6434 = vunpack.c.h.b16 %v6221
        %v6435 = vunpack.c.l.b16 %v6222
        %v6436 = vunpack.c.h.b16 %v6222
        %v6437 = vunpack.c.l.b16 %v6223
        %v6438 = vunpack.c.h.b16 %v6223
        %v6439 = vunpack.c.l.b16 %v6224
        %v6440 = vunpack.c.h.b16 %v6224
        %v6441 = vunpack.c.l.b16 %v6225
        %v6442 = vunpack.c.h.b16 %v6225
        %v6443 = vunpack.c.l.b16 %v6226
        %v6444 = vunpack.c.h.b16 %v6226
        %v6445 = vunpack.c.l.b16 %v6227
        %v6446 = vunpack.c.h.b16 %v6227
        %v6447 = vunpack.c.l.b16 %v6228
        %v6448 = vunpack.c.h.b16 %v6228
        %v6449 = vunpack.c.l.b16 %v6229
        %v6450 = vunpack.c.h.b16 %v6229
        %v6451 = vunpack.c.l.b16 %v6230
        %v6452 = vunpack.c.h.b16 %v6230
        %v6453 = vunpack.c.l.b16 %v6231
        %v6454 = vunpack.c.h.b16 %v6231
        %v6455 = vunpack.c.l.b16 %v6232
        %v6456 = vunpack.c.h.b16 %v6232
        %v6457 = vunpack.c.l.b16 %v6233
        %v6458 = vunpack.c.h.b16 %v6233
        %v6459 = vunpack.c.l.b16 %v6234
        %v6460 = vunpack.c.h.b16 %v6234
        %v6461 = vunpack.c.l.b16 %v6235
        %v6462 = vunpack.c.h.b16 %v6235
        %v6463 = vunpack.c.l.b16 %v6236
        %v6464 = vunpack.c.h.b16 %v6236
        %v6465 = vunpack.c.l.b16 %v6237
        %v6466 = vunpack.c.h.b16 %v6237
        %v6467 = vunpack.c.l.b16 %v6238
        %v6468 = vunpack.c.h.b16 %v6238
        %v6469 = vunpack.c.l.b16 %v6239
        %v6470 = vunpack.c.h.b16 %v6239
        %v6471 = vunpack.c.l.b16 %v6240
        %v6472 = vunpack.c.h.b16 %v6240
        %v6473 = vunpack.c.l.b16 %v6241
        %v6474 = vunpack.c.h.b16 %v6241
        %v6475 = vunpack.c.l.b16 %v6242
        %v6476 = vunpack.c.h.b16 %v6242
        %v6477 = vunpack.c.l.b16 %v6243
        %v6478 = vunpack.c.h.b16 %v6243
        %v6479 = vunpack.c.l.b16 %v6244
        %v6480 = vunpack.c.h.b16 %v6244
        %v6481 = vunpack.c.l.b16 %v6245
        %v6482 = vunpack.c.h.b16 %v6245
        %v6483 = vunpack.c.l.b16 %v6246
        %v6484 = vunpack.c.h.b16 %v6246
        %v6485 = vunpack.c.l.b16 %v6247
        %v6486 = vunpack.c.h.b16 %v6247
        %v6487 = vunpack.c.l.b16 %v6248
        %v6488 = vunpack.c.h.b16 %v6248
        %v6489 = vunpack.c.l.b16 %v6249
        %v6490 = vunpack.c.h.b16 %v6249
        %v6491 = vunpack.c.l.b16 %v6250
        %v6492 = vunpack.c.h.b16 %v6250
        %v6493 = vunpack.c.l.b16 %v6251
        %v6494 = vunpack.c.h.b16 %v6251
        %v6495 = vunpack.c.l.b16 %v6252
        %v6496 = vunpack.c.h.b16 %v6252
        %v6497 = vunpack.c.l.b16 %v6253
        %v6498 = vunpack.c.h.b16 %v6253
        %v6499 = vunpack.c.l.b16 %v6254
        %v6500 = vunpack.c.h.b16 %v6254
        %v6501 = vunpack.c.l.b16 %v6255
        %v6502 = vunpack.c.h.b16 %v6255
        %v6503 = vunpack.c.l.b16 %v6256
        %v6504 = vunpack.c.h.b16 %v6256
        %v6505 = vunpack.c.l.b16 %v6257
        %v6506 = vunpack.c.h.b16 %v6257
        %v6507 = vunpack.c.l.b16 %v6258
        %v6508 = vunpack.c.h.b16 %v6258
        %v6509 = vunpack.c.l.b16 %v6259
        %v6510 = vunpack.c.h.b16 %v6259
        %v6511 = vunpack.c.l.b16 %v6260
        %v6512 = vunpack.c.h.b16 %v6260
        %v6513 = vunpack.c.l.b16 %v6261
        %v6514 = vunpack.c.h.b16 %v6261
        %v6515 = vunpack.c.l.b16 %v6262
        %v6516 = vunpack.c.h.b16 %v6262
        %v6517 = vunpack.c.l.b16 %v6263
        %v6518 = vunpack.c.h.b16 %v6263
        %v6519 = vunpack.c.l.b16 %v6264
        %v6520 = vunpack.c.h.b16 %v6264
        %v6521 = vunpack.c.l.b16 %v6265
        %v6522 = vunpack.c.h.b16 %v6265
        %v6523 = vunpack.c.l.b16 %v6266
        %v6524 = vunpack.c.h.b16 %v6266
        %v6525 = vunpack.c.l.b16 %v6267
        %v6526 = vunpack.c.h.b16 %v6267
        %v6527 = vunpack.c.l.b16 %v6268
        %v6528 = vunpack.c.h.b16 %v6268
        %v6529 = vunpack.c.l.b16 %v6269
        %v6530 = vunpack.c.h.b16 %v6269
        %v6531 = vunpack.c.l.b16 %v6270
        %v6532 = vunpack.c.h.b16 %v6270
        %v6533 = vunpack.c.l.b16 %v6271
        %v6534 = vunpack.c.h.b16 %v6271
        %v6535 = vunpack.c.l.b16 %v6272
        %v6536 = vunpack.c.h.b16 %v6272
        %v6537 = vunpack.c.l.b16 %v6273
        %v6538 = vunpack.c.h.b16 %v6273
        %v6539 = vunpack.c.l.b16 %v6274
        %v6540 = vunpack.c.h.b16 %v6274
        %v6541 = vunpack.c.l.b16 %v6275
        %v6542 = vunpack.c.h.b16 %v6275
        %v6543 = vunpack.c.l.b16 %v6276
        %v6544 = vunpack.c.h.b16 %v6276
        %v6545 = vunpack.c.l.b16 %v6277
        %v6546 = vunpack.c.h.b16 %v6277
        %v6547 = vunpack.c.l.b16 %v6278
        %v6548 = vunpack.c.h.b16 %v6278
        %v6549 = vunpack.c.l.b16 %v6279
        %v6550 = vunpack.c.h.b16 %v6279
        %v6551 = vunpack.c.l.b16 %v6280
        %v6552 = vunpack.c.h.b16 %v6280
        %v6553 = vunpack.c.l.b16 %v6281
        %v6554 = vunpack.c.h.b16 %v6281
        %v6555 = vunpack.c.l.b16 %v6282
        %v6556 = vunpack.c.h.b16 %v6282
        %v6557 = vunpack.c.l.b16 %v6283
        %v6558 = vunpack.c.h.b16 %v6283
        %v6559 = vunpack.c.l.b16 %v6284
        %v6560 = vunpack.c.h.b16 %v6284
        %v6561 = vunpack.c.l.b16 %v6285
        %v6562 = vunpack.c.h.b16 %v6285
        %v6563 = vunpack.c.l.b16 %v6286
        %v6564 = vunpack.c.h.b16 %v6286
        %v6565 = vunpack.c.l.b16 %v6287
        %v6566 = vunpack.c.h.b16 %v6287
        %v6567 = vunpack.c.l.b16 %v6288
        %v6568 = vunpack.c.h.b16 %v6288
        %v6569 = vunpack.c.l.b16 %v6289
        %v6570 = vunpack.c.h.b16 %v6289
        %v6571 = vunpack.c.l.b16 %v6290
        %v6572 = vunpack.c.h.b16 %v6290
        %v6573 = vunpack.c.l.b16 %v6291
        %v6574 = vunpack.c.h.b16 %v6291
        %v6575 = vunpack.c.l.b16 %v6292
        %v6576 = vunpack.c.h.b16 %v6292
        %v6577 = vunpack.c.l.b16 %v6293
        %v6578 = vunpack.c.h.b16 %v6293
        %v6579 = vunpack.c.l.b16 %v6294
        %v6580 = vunpack.c.h.b16 %v6294
        %v6581 = vunpack.c.l.b16 %v6295
        %v6582 = vunpack.c.h.b16 %v6295
        %v6583 = vunpack.c.l.b16 %v6296
        %v6584 = vunpack.c.h.b16 %v6296
        %v6585 = vunpack.c.l.b16 %v6297
        %v6586 = vunpack.c.h.b16 %v6297
        %v6587 = vunpack.c.l.b16 %v6298
        %v6588 = vunpack.c.h.b16 %v6298
        %v6589 = vunpack.c.l.b16 %v6299
        %v6590 = vunpack.c.h.b16 %v6299
        %v6591 = vunpack.c.l.b16 %v6300
        %v6592 = vunpack.c.h.b16 %v6300
        %v6593 = vunpack.c.l.b16 %v6301
        %v6594 = vunpack.c.h.b16 %v6301
        %v6595 = vunpack.c.l.b16 %v6302
        %v6596 = vunpack.c.h.b16 %v6302
        %v6597 = vunpack.c.l.b16 %v6303
        %v6598 = vunpack.c.h.b16 %v6303
        %v6599 = vunpack.c.l.b16 %v6304
        %v6600 = vunpack.c.h.b16 %v6304
        %v6601 = vunpack.c.l.b16 %v6305
        %v6602 = vunpack.c.h.b16 %v6305
        %v6603 = vunpack.c.l.b16 %v6306
        %v6604 = vunpack.c.h.b16 %v6306
        %v6605 = vunpack.c.l.b16 %v6307
        %v6606 = vunpack.c.h.b16 %v6307
        %v6607 = vunpack.c.l.b16 %v6308
        %v6608 = vunpack.c.h.b16 %v6308
        %v6609 = vpack.c.b16 %v6421, %v6417
        %v6610 = vpack.c.b16 %v6422, %v6418
        %v6611 = vpack.c.b16 %v6423, %v6419
        %v6612 = vpack.c.b16 %v6424, %v6420
        %v6613 = vpack.c.b16 %v6429, %v6425
        %v6614 = vpack.c.b16 %v6430, %v6426
        %v6615 = vpack.c.b16 %v6431, %v6427
        %v6616 = vpack.c.b16 %v6432, %v6428
        %v6617 = vpack.c.b16 %v6437, %v6433
        %v6618 = vpack.c.b16 %v6438, %v6434
        %v6619 = vpack.c.b16 %v6439, %v6435
        %v6620 = vpack.c.b16 %v6440, %v6436
        %v6621 = vpack.c.b16 %v6445, %v6441
        %v6622 = vpack.c.b16 %v6446, %v6442
        %v6623 = vpack.c.b16 %v6447, %v6443
        %v6624 = vpack.c.b16 %v6448, %v6444
        %v6625 = vpack.c.b16 %v6453, %v6449
        %v6626 = vpack.c.b16 %v6454, %v6450
        %v6627 = vpack.c.b16 %v6455, %v6451
        %v6628 = vpack.c.b16 %v6456, %v6452
        %v6629 = vpack.c.b16 %v6461, %v6457
        %v6630 = vpack.c.b16 %v6462, %v6458
        %v6631 = vpack.c.b16 %v6463, %v6459
        %v6632 = vpack.c.b16 %v6464, %v6460
        %v6633 = vpack.c.b16 %v6469, %v6465
        %v6634 = vpack.c.b16 %v6470, %v6466
        %v6635 = vpack.c.b16 %v6471, %v6467
        %v6636 = vpack.c.b16 %v6472, %v6468
        %v6637 = vpack.c.b16 %v6477, %v6473
        %v6638 = vpack.c.b16 %v6478, %v6474
        %v6639 = vpack.c.b16 %v6479, %v6475
        %v6640 = vpack.c.b16 %v6480, %v6476
        %v6641 = vpack.c.b16 %v6485, %v6481
        %v6642 = vpack.c.b16 %v6486, %v6482
        %v6643 = vpack.c.b16 %v6487, %v6483
        %v6644 = vpack.c.b16 %v6488, %v6484
        %v6645 = vpack.c.b16 %v6493, %v6489
        %v6646 = vpack.c.b16 %v6494, %v6490
        %v6647 = vpack.c.b16 %v6495, %v6491
        %v6648 = vpack.c.b16 %v6496, %v6492
        %v6649 = vpack.c.b16 %v6501, %v6497
        %v6650 = vpack.c.b16 %v6502, %v6498
        %v6651 = vpack.c.b16 %v6503, %v6499
        %v6652 = vpack.c.b16 %v6504, %v6500
        %v6653 = vpack.c.b16 %v6509, %v6505
        %v6654 = vpack.c.b16 %v6510, %v6506
        %v6655 = vpack.c.b16 %v6511, %v6507
        %v6656 = vpack.c.b16 %v6512, %v6508
        %v6657 = vpack.c.b16 %v6517, %v6513
        %v6658 = vpack.c.b16 %v6518, %v6514
        %v6659 = vpack.c.b16 %v6519, %v6515
        %v6660 = vpack.c.b16 %v6520, %v6516
        %v6661 = vpack.c.b16 %v6525, %v6521
        %v6662 = vpack.c.b16 %v6526, %v6522
        %v6663 = vpack.c.b16 %v6527, %v6523
        %v6664 = vpack.c.b16 %v6528, %v6524
        %v6665 = vpack.c.b16 %v6533, %v6529
        %v6666 = vpack.c.b16 %v6534, %v6530
        %v6667 = vpack.c.b16 %v6535, %v6531
        %v6668 = vpack.c.b16 %v6536, %v6532
        %v6669 = vpack.c.b16 %v6541, %v6537
        %v6670 = vpack.c.b16 %v6542, %v6538
        %v6671 = vpack.c.b16 %v6543, %v6539
        %v6672 = vpack.c.b16 %v6544, %v6540
        %v6673 = vpack.c.b16 %v6549, %v6545
        %v6674 = vpack.c.b16 %v6550, %v6546
        %v6675 = vpack.c.b16 %v6551, %v6547
        %v6676 = vpack.c.b16 %v6552, %v6548
        %v6677 = vpack.c.b16 %v6557, %v6553
        %v6678 = vpack.c.b16 %v6558, %v6554
        %v6679 = vpack.c.b16 %v6559, %v6555
        %v6680 = vpack.c.b16 %v6560, %v6556
        %v6681 = vpack.c.b16 %v6565, %v6561
        %v6682 = vpack.c.b16 %v6566, %v6562
        %v6683 = vpack.c.b16 %v6567, %v6563
        %v6684 = vpack.c.b16 %v6568, %v6564
        %v6685 = vpack.c.b16 %v6573, %v6569
        %v6686 = vpack.c.b16 %v6574, %v6570
        %v6687 = vpack.c.b16 %v6575, %v6571
        %v6688 = vpack.c.b16 %v6576, %v6572
        %v6689 = vpack.c.b16 %v6581, %v6577
        %v6690 = vpack.c.b16 %v6582, %v6578
        %v6691 = vpack.c.b16 %v6583, %v6579
        %v6692 = vpack.c.b16 %v6584, %v6580
        %v6693 = vpack.c.b16 %v6589, %v6585
        %v6694 = vpack.c.b16 %v6590, %v6586
        %v6695 = vpack.c.b16 %v6591, %v6587
        %v6696 = vpack.c.b16 %v6592, %v6588
        %v6697 = vpack.c.b16 %v6597, %v6593
        %v6698 = vpack.c.b16 %v6598, %v6594
        %v6699 = vpack.c.b16 %v6599, %v6595
        %v6700 = vpack.c.b16 %v6600, %v6596
        %v6701 = vpack.c.b16 %v6605, %v6601
        %v6702 = vpack.c.b16 %v6606, %v6602
        %v6703 = vpack.c.b16 %v6607, %v6603
        %v6704 = vpack.c.b16 %v6608, %v6604
        %6801 = vmatprep.subr.bf16.mxu0 %v6610
        %6802 = vmatpush1.bf16.msra.mxu0 %v6609
        %6803 = vmatprep.subr.bf16.mxu0 %v6614
        %6804 = vmatpush1.bf16.msra.mxu0 %v6613
        %6805 = vmatprep.subr.bf16.mxu0 %v6618
        %6806 = vmatpush1.bf16.msra.mxu0 %v6617
        %6807 = vmatprep.subr.bf16.mxu0 %v6622
        %6808 = vmatpush1.bf16.msra.mxu0 %v6621
        %6809 = vmatprep.subr.bf16.mxu0 %v6626
        %6810 = vmatpush1.bf16.msra.mxu0 %v6625
        %6811 = vmatprep.subr.bf16.mxu0 %v6630
        %6812 = vmatpush1.bf16.msra.mxu0 %v6629
        %6813 = vmatprep.subr.bf16.mxu0 %v6634
        %6814 = vmatpush1.bf16.msra.mxu0 %v6633
        %6815 = vmatprep.subr.bf16.mxu0 %v6638
        %6816 = vmatpush1.bf16.msra.mxu0 %v6637
        %6817 = vmatprep.subr.bf16.mxu0 %v6642
        %6818 = vmatpush1.bf16.msra.mxu0 %v6641
        %6819 = vmatprep.subr.bf16.mxu0 %v6646
        %6820 = vmatpush1.bf16.msra.mxu0 %v6645
        %6821 = vmatprep.subr.bf16.mxu0 %v6650
        %6822 = vmatpush1.bf16.msra.mxu0 %v6649
        %6823 = vmatprep.subr.bf16.mxu0 %v6654
        %6824 = vmatpush1.bf16.msra.mxu0 %v6653
        %6825 = vmatprep.subr.bf16.mxu0 %v6658
        %6826 = vmatpush1.bf16.msra.mxu0 %v6657
        %6827 = vmatprep.subr.bf16.mxu0 %v6662
        %6828 = vmatpush1.bf16.msra.mxu0 %v6661
        %6829 = vmatprep.subr.bf16.mxu0 %v6666
        %6830 = vmatpush1.bf16.msra.mxu0 %v6665
        %6831 = vmatprep.subr.bf16.mxu0 %v6670
        %6832 = vmatpush1.bf16.msra.mxu0 %v6669
        %6833 = vmatprep.mubr.bf16.mxu0 %v6314
        %6834 = vmatmul.mubr.bf16.gmra.mrb[0].mxu0 %v6311
        %v6835 = vpop.f32.mrb[0].mxu0
        %v6836 = vadd.f32 0.0, %v6835
        %v6837 = vpop.f32.mrb[0].mxu0
        %v6838 = vadd.f32 0.0, %v6837
        %v6839 = vpop.f32.mrb[0].mxu0
        %v6840 = vpop.f32.mrb[0].mxu0
        %6841 = vdwg.mxu0
        %6842 = vmatprep.subr.bf16.mxu0 %v6674
        %6843 = vmatpush1.bf16.msra.mxu0 %v6673
        %6844 = vmatprep.subr.bf16.mxu0 %v6678
        %6845 = vmatpush1.bf16.msra.mxu0 %v6677
        %6846 = vmatprep.subr.bf16.mxu0 %v6682
        %6847 = vmatpush1.bf16.msra.mxu0 %v6681
        %6848 = vmatprep.subr.bf16.mxu0 %v6686
        %6849 = vmatpush1.bf16.msra.mxu0 %v6685
        %6850 = vmatprep.subr.bf16.mxu0 %v6690
        %6851 = vmatpush1.bf16.msra.mxu0 %v6689
        %6852 = vmatprep.subr.bf16.mxu0 %v6694
        %6853 = vmatpush1.bf16.msra.mxu0 %v6693
        %6854 = vmatprep.subr.bf16.mxu0 %v6698
        %6855 = vmatpush1.bf16.msra.mxu0 %v6697
        %6856 = vmatprep.subr.bf16.mxu0 %v6702
        %6857 = vmatpush1.bf16.msra.mxu0 %v6701
        %6858 = vmatprep.subr.bf16.mxu0 0
        %6859 = vmatpush1.bf16.msra.mxu0 0
        %6860 = vmatprep.subr.bf16.mxu0 0
        %6861 = vmatpush1.bf16.msra.mxu0 0
        %6862 = vmatprep.subr.bf16.mxu0 0
        %6863 = vmatpush1.bf16.msra.mxu0 0
        %6864 = vmatprep.subr.bf16.mxu0 0
        %6865 = vmatpush1.bf16.msra.mxu0 0
        %6866 = vmatprep.subr.bf16.mxu0 0
        %6867 = vmatpush1.bf16.msra.mxu0 0
        %6868 = vmatprep.subr.bf16.mxu0 0
        %6869 = vmatpush1.bf16.msra.mxu0 0
        %6870 = vmatprep.subr.bf16.mxu0 0
        %6871 = vmatpush1.bf16.msra.mxu0 0
        %6872 = vmatprep.subr.bf16.mxu0 0
        %6873 = vmatpush1.bf16.msra.mxu0 0
        %6874 = vmatprep.mubr.bf16.mxu0 0
        %6875 = vmatmul.mubr.bf16.gmra.mrb[0].mxu0 %v6317
        %v6876 = vpop.f32.mrb[0].mxu0
        %v6877 = vadd.f32 %v6836, %v6876
        %v6878 = vpop.f32.mrb[0].mxu0
        %v6879 = vadd.f32 %v6838, %v6878
        %v6880 = vpop.f32.mrb[0].mxu0
        %v6881 = vpop.f32.mrb[0].mxu0
        %6882 = vdwg.mxu0
        %6883 = vmatprep.subr.bf16.mxu0 %v6612
        %6884 = vmatpush1.bf16.msra.mxu0 %v6611
        %6885 = vmatprep.subr.bf16.mxu0 %v6616
        %6886 = vmatpush1.bf16.msra.mxu0 %v6615
        %6887 = vmatprep.subr.bf16.mxu0 %v6620
        %6888 = vmatpush1.bf16.msra.mxu0 %v6619
        %6889 = vmatprep.subr.bf16.mxu0 %v6624
        %6890 = vmatpush1.bf16.msra.mxu0 %v6623
        %6891 = vmatprep.subr.bf16.mxu0 %v6628
        %6892 = vmatpush1.bf16.msra.mxu0 %v6627
        %6893 = vmatprep.subr.bf16.mxu0 %v6632
        %6894 = vmatpush1.bf16.msra.mxu0 %v6631
        %6895 = vmatprep.subr.bf16.mxu0 %v6636
        %6896 = vmatpush1.bf16.msra.mxu0 %v6635
        %6897 = vmatprep.subr.bf16.mxu0 %v6640
        %6898 = vmatpush1.bf16.msra.mxu0 %v6639
        %6899 = vmatprep.subr.bf16.mxu0 %v6644
        %6900 = vmatpush1.bf16.msra.mxu0 %v6643
        %6901 = vmatprep.subr.bf16.mxu0 %v6648
        %6902 = vmatpush1.bf16.msra.mxu0 %v6647
        %6903 = vmatprep.subr.bf16.mxu0 %v6652
        %6904 = vmatpush1.bf16.msra.mxu0 %v6651
        %6905 = vmatprep.subr.bf16.mxu0 %v6656
        %6906 = vmatpush1.bf16.msra.mxu0 %v6655
        %6907 = vmatprep.subr.bf16.mxu0 %v6660
        %6908 = vmatpush1.bf16.msra.mxu0 %v6659
        %6909 = vmatprep.subr.bf16.mxu0 %v6664
        %6910 = vmatpush1.bf16.msra.mxu0 %v6663
        %6911 = vmatprep.subr.bf16.mxu0 %v6668
        %6912 = vmatpush1.bf16.msra.mxu0 %v6667
        %6913 = vmatprep.subr.bf16.mxu0 %v6672
        %6914 = vmatpush1.bf16.msra.mxu0 %v6671
        %6915 = vmatprep.mubr.bf16.mxu0 %v6314
        %6916 = vmatmul.mubr.bf16.gmra.mrb[0].mxu0 %v6311
        %v6917 = vpop.f32.mrb[0].mxu0
        %v6918 = vadd.f32 0.0, %v6917
        %v6919 = vpop.f32.mrb[0].mxu0
        %v6920 = vadd.f32 0.0, %v6919
        %v6921 = vpop.f32.mrb[0].mxu0
        %v6922 = vpop.f32.mrb[0].mxu0
        %6923 = vdwg.mxu0
        %6924 = vmatprep.subr.bf16.mxu0 %v6676
        %6925 = vmatpush1.bf16.msra.mxu0 %v6675
        %6926 = vmatprep.subr.bf16.mxu0 %v6680
        %6927 = vmatpush1.bf16.msra.mxu0 %v6679
        %6928 = vmatprep.subr.bf16.mxu0 %v6684
        %6929 = vmatpush1.bf16.msra.mxu0 %v6683
        %6930 = vmatprep.subr.bf16.mxu0 %v6688
        %6931 = vmatpush1.bf16.msra.mxu0 %v6687
        %6932 = vmatprep.subr.bf16.mxu0 %v6692
        %6933 = vmatpush1.bf16.msra.mxu0 %v6691
        %6934 = vmatprep.subr.bf16.mxu0 %v6696
        %6935 = vmatpush1.bf16.msra.mxu0 %v6695
        %6936 = vmatprep.subr.bf16.mxu0 %v6700
        %6937 = vmatpush1.bf16.msra.mxu0 %v6699
        %6938 = vmatprep.subr.bf16.mxu0 %v6704
        %6939 = vmatpush1.bf16.msra.mxu0 %v6703
        %6940 = vmatprep.subr.bf16.mxu0 0
        %6941 = vmatpush1.bf16.msra.mxu0 0
        %6942 = vmatprep.subr.bf16.mxu0 0
        %6943 = vmatpush1.bf16.msra.mxu0 0
        %6944 = vmatprep.subr.bf16.mxu0 0
        %6945 = vmatpush1.bf16.msra.mxu0 0
        %6946 = vmatprep.subr.bf16.mxu0 0
        %6947 = vmatpush1.bf16.msra.mxu0 0
        %6948 = vmatprep.subr.bf16.mxu0 0
        %6949 = vmatpush1.bf16.msra.mxu0 0
        %6950 = vmatprep.subr.bf16.mxu0 0
        %6951 = vmatpush1.bf16.msra.mxu0 0
        %6952 = vmatprep.subr.bf16.mxu0 0
        %6953 = vmatpush1.bf16.msra.mxu0 0
        %6954 = vmatprep.subr.bf16.mxu0 0
        %6955 = vmatpush1.bf16.msra.mxu0 0
        %6956 = vmatprep.mubr.bf16.mxu0 0
        %6957 = vmatmul.mubr.bf16.gmra.mrb[0].mxu0 %v6317
        %v6958 = vpop.f32.mrb[0].mxu0
        %v6959 = vadd.f32 %v6918, %v6958
        %v6960 = vpop.f32.mrb[0].mxu0
        %v6961 = vadd.f32 %v6920, %v6960
        %v6962 = vpop.f32.mrb[0].mxu0
        %v6963 = vpop.f32.mrb[0].mxu0
        %6964 = vdwg.mxu0
        %v6965 = vadd.f32 %v6208, %v6877
        %v6966 = vadd.f32 %v6209, %v6879
        %v6967 = vadd.f32 %v6210, %v6959
        %v6968 = vadd.f32 %v6211, %v6961
        %s6969 = scalar_lea.vmem [#allocation8], 3072
        %v6970 = vld [vmem:[%s6969] sm:$0xff]
        %v6971 = vld [vmem:[%s6969 + $0x8] sm:$0xff]
        %v6972 = vld [vmem:[%s6969 + $0x10] sm:$0xff]
        %v6973 = vld [vmem:[%s6969 + $0x18] sm:$0xff]
        %v6974 = vld [vmem:[%s6969 + $0x20] sm:$0xff]
        %v6975 = vld [vmem:[%s6969 + $0x28] sm:$0xff]
        %v6976 = vld [vmem:[%s6969 + $0x30] sm:$0xff]
        %v6977 = vld [vmem:[%s6969 + $0x38] sm:$0xff]
        %v6978 = vld [vmem:[%s6969 + $0x40] sm:$0xff]
        %v6979 = vld [vmem:[%s6969 + $0x48] sm:$0xff]
        %v6980 = vld [vmem:[%s6969 + $0x50] sm:$0xff]
        %v6981 = vld [vmem:[%s6969 + $0x58] sm:$0xff]
        %v6982 = vld [vmem:[%s6969 + $0x60] sm:$0xff]
        %v6983 = vld [vmem:[%s6969 + $0x68] sm:$0xff]
        %v6984 = vld [vmem:[%s6969 + $0x70] sm:$0xff]
        %v6985 = vld [vmem:[%s6969 + $0x78] sm:$0xff]
        %v6986 = vld [vmem:[%s6969 + $0x80] sm:$0xff]
        %v6987 = vld [vmem:[%s6969 + $0x88] sm:$0xff]
        %v6988 = vld [vmem:[%s6969 + $0x90] sm:$0xff]
        %v6989 = vld [vmem:[%s6969 + $0x98] sm:$0xff]
        %v6990 = vld [vmem:[%s6969 + $0xa0] sm:$0xff]
        %v6991 = vld [vmem:[%s6969 + $0xa8] sm:$0xff]
        %v6992 = vld [vmem:[%s6969 + $0xb0] sm:$0xff]
        %v6993 = vld [vmem:[%s6969 + $0xb8] sm:$0xff]
        %v6994 = vld [vmem:[%s6969 + $0xc0] sm:$0xff]
        %v6995 = vld [vmem:[%s6969 + $0xc8] sm:$0xff]
        %v6996 = vld [vmem:[%s6969 + $0xd0] sm:$0xff]
        %v6997 = vld [vmem:[%s6969 + $0xd8] sm:$0xff]
        %v6998 = vld [vmem:[%s6969 + $0xe0] sm:$0xff]
        %v6999 = vld [vmem:[%s6969 + $0xe8] sm:$0xff]
        %v7000 = vld [vmem:[%s6969 + $0xf0] sm:$0xff]
        %v7001 = vld [vmem:[%s6969 + $0xf8] sm:$0xff]
        %v7002 = vld [vmem:[%s6969 + $0x100] sm:$0xff]
        %v7003 = vld [vmem:[%s6969 + $0x108] sm:$0xff]
        %v7004 = vld [vmem:[%s6969 + $0x110] sm:$0xff]
        %v7005 = vld [vmem:[%s6969 + $0x118] sm:$0xff]
        %v7006 = vld [vmem:[%s6969 + $0x120] sm:$0xff]
        %v7007 = vld [vmem:[%s6969 + $0x128] sm:$0xff]
        %v7008 = vld [vmem:[%s6969 + $0x130] sm:$0xff]
        %v7009 = vld [vmem:[%s6969 + $0x138] sm:$0xff]
        %v7010 = vld [vmem:[%s6969 + $0x140] sm:$0xff]
        %v7011 = vld [vmem:[%s6969 + $0x148] sm:$0xff]
        %v7012 = vld [vmem:[%s6969 + $0x150] sm:$0xff]
        %v7013 = vld [vmem:[%s6969 + $0x158] sm:$0xff]
        %v7014 = vld [vmem:[%s6969 + $0x160] sm:$0xff]
        %v7015 = vld [vmem:[%s6969 + $0x168] sm:$0xff]
        %v7016 = vld [vmem:[%s6969 + $0x170] sm:$0xff]
        %v7017 = vld [vmem:[%s6969 + $0x178] sm:$0xff]
        %v7018 = vld [vmem:[%s6969 + $0x180] sm:$0xff]
        %v7019 = vld [vmem:[%s6969 + $0x188] sm:$0xff]
        %v7020 = vld [vmem:[%s6969 + $0x190] sm:$0xff]
        %v7021 = vld [vmem:[%s6969 + $0x198] sm:$0xff]
        %v7022 = vld [vmem:[%s6969 + $0x1a0] sm:$0xff]
        %v7023 = vld [vmem:[%s6969 + $0x1a8] sm:$0xff]
        %v7024 = vld [vmem:[%s6969 + $0x1b0] sm:$0xff]
        %v7025 = vld [vmem:[%s6969 + $0x1b8] sm:$0xff]
        %v7026 = vld [vmem:[%s6969 + $0x1c0] sm:$0xff]
        %v7027 = vld [vmem:[%s6969 + $0x1c8] sm:$0xff]
        %v7028 = vld [vmem:[%s6969 + $0x1d0] sm:$0xff]
        %v7029 = vld [vmem:[%s6969 + $0x1d8] sm:$0xff]
        %v7030 = vld [vmem:[%s6969 + $0x1e0] sm:$0xff]
        %v7031 = vld [vmem:[%s6969 + $0x1e8] sm:$0xff]
        %v7032 = vld [vmem:[%s6969 + $0x1f0] sm:$0xff]
        %v7033 = vld [vmem:[%s6969 + $0x1f8] sm:$0xff]
        %v7034 = vld [vmem:[%s6969 + $0x200] sm:$0xff]
        %v7035 = vld [vmem:[%s6969 + $0x208] sm:$0xff]
        %v7036 = vld [vmem:[%s6969 + $0x210] sm:$0xff]
        %v7037 = vld [vmem:[%s6969 + $0x218] sm:$0xff]
        %v7038 = vld [vmem:[%s6969 + $0x220] sm:$0xff]
        %v7039 = vld [vmem:[%s6969 + $0x228] sm:$0xff]
        %v7040 = vld [vmem:[%s6969 + $0x230] sm:$0xff]
        %v7041 = vld [vmem:[%s6969 + $0x238] sm:$0xff]
        %v7042 = vld [vmem:[%s6969 + $0x240] sm:$0xff]
        %v7043 = vld [vmem:[%s6969 + $0x248] sm:$0xff]
        %v7044 = vld [vmem:[%s6969 + $0x250] sm:$0xff]
        %v7045 = vld [vmem:[%s6969 + $0x258] sm:$0xff]
        %v7046 = vld [vmem:[%s6969 + $0x260] sm:$0xff]
        %v7047 = vld [vmem:[%s6969 + $0x268] sm:$0xff]
        %v7048 = vld [vmem:[%s6969 + $0x270] sm:$0xff]
        %v7049 = vld [vmem:[%s6969 + $0x278] sm:$0xff]
        %v7050 = vld [vmem:[%s6969 + $0x280] sm:$0xff]
        %v7051 = vld [vmem:[%s6969 + $0x288] sm:$0xff]
        %v7052 = vld [vmem:[%s6969 + $0x290] sm:$0xff]
        %v7053 = vld [vmem:[%s6969 + $0x298] sm:$0xff]
        %v7054 = vld [vmem:[%s6969 + $0x2a0] sm:$0xff]
        %v7055 = vld [vmem:[%s6969 + $0x2a8] sm:$0xff]
        %v7056 = vld [vmem:[%s6969 + $0x2b0] sm:$0xff]
        %v7057 = vld [vmem:[%s6969 + $0x2b8] sm:$0xff]
        %v7058 = vld [vmem:[%s6969 + $0x2c0] sm:$0xff]
        %v7059 = vld [vmem:[%s6969 + $0x2c8] sm:$0xff]
        %v7060 = vld [vmem:[%s6969 + $0x2d0] sm:$0xff]
        %v7061 = vld [vmem:[%s6969 + $0x2d8] sm:$0xff]
        %v7062 = vld [vmem:[%s6969 + $0x2e0] sm:$0xff]
        %v7063 = vld [vmem:[%s6969 + $0x2e8] sm:$0xff]
        %v7064 = vld [vmem:[%s6969 + $0x2f0] sm:$0xff]
        %v7065 = vld [vmem:[%s6969 + $0x2f8] sm:$0xff]
        %v7066 = vrot.slane %v4046, 2
        %v7067 = vrot.slane %v4047, 2
        %v7068 = vrot.slane %v4048, 2
        %v7168 = vunpack.c.l.b16 %v6970
        %v7169 = vunpack.c.h.b16 %v6970
        %v7170 = vunpack.c.l.b16 %v6971
        %v7171 = vunpack.c.h.b16 %v6971
        %v7172 = vunpack.c.l.b16 %v6972
        %v7173 = vunpack.c.h.b16 %v6972
        %v7174 = vunpack.c.l.b16 %v6973
        %v7175 = vunpack.c.h.b16 %v6973
        %v7176 = vunpack.c.l.b16 %v6974
        %v7177 = vunpack.c.h.b16 %v6974
        %v7178 = vunpack.c.l.b16 %v6975
        %v7179 = vunpack.c.h.b16 %v6975
        %v7180 = vunpack.c.l.b16 %v6976
        %v7181 = vunpack.c.h.b16 %v6976
        %v7182 = vunpack.c.l.b16 %v6977
        %v7183 = vunpack.c.h.b16 %v6977
        %v7184 = vunpack.c.l.b16 %v6978
        %v7185 = vunpack.c.h.b16 %v6978
        %v7186 = vunpack.c.l.b16 %v6979
        %v7187 = vunpack.c.h.b16 %v6979
        %v7188 = vunpack.c.l.b16 %v6980
        %v7189 = vunpack.c.h.b16 %v6980
        %v7190 = vunpack.c.l.b16 %v6981
        %v7191 = vunpack.c.h.b16 %v6981
        %v7192 = vunpack.c.l.b16 %v6982
        %v7193 = vunpack.c.h.b16 %v6982
        %v7194 = vunpack.c.l.b16 %v6983
        %v7195 = vunpack.c.h.b16 %v6983
        %v7196 = vunpack.c.l.b16 %v6984
        %v7197 = vunpack.c.h.b16 %v6984
        %v7198 = vunpack.c.l.b16 %v6985
        %v7199 = vunpack.c.h.b16 %v6985
        %v7200 = vunpack.c.l.b16 %v6986
        %v7201 = vunpack.c.h.b16 %v6986
        %v7202 = vunpack.c.l.b16 %v6987
        %v7203 = vunpack.c.h.b16 %v6987
        %v7204 = vunpack.c.l.b16 %v6988
        %v7205 = vunpack.c.h.b16 %v6988
        %v7206 = vunpack.c.l.b16 %v6989
        %v7207 = vunpack.c.h.b16 %v6989
        %v7208 = vunpack.c.l.b16 %v6990
        %v7209 = vunpack.c.h.b16 %v6990
        %v7210 = vunpack.c.l.b16 %v6991
        %v7211 = vunpack.c.h.b16 %v6991
        %v7212 = vunpack.c.l.b16 %v6992
        %v7213 = vunpack.c.h.b16 %v6992
        %v7214 = vunpack.c.l.b16 %v6993
        %v7215 = vunpack.c.h.b16 %v6993
        %v7216 = vunpack.c.l.b16 %v6994
        %v7217 = vunpack.c.h.b16 %v6994
        %v7218 = vunpack.c.l.b16 %v6995
        %v7219 = vunpack.c.h.b16 %v6995
        %v7220 = vunpack.c.l.b16 %v6996
        %v7221 = vunpack.c.h.b16 %v6996
        %v7222 = vunpack.c.l.b16 %v6997
        %v7223 = vunpack.c.h.b16 %v6997
        %v7224 = vunpack.c.l.b16 %v6998
        %v7225 = vunpack.c.h.b16 %v6998
        %v7226 = vunpack.c.l.b16 %v6999
        %v7227 = vunpack.c.h.b16 %v6999
        %v7228 = vunpack.c.l.b16 %v7000
        %v7229 = vunpack.c.h.b16 %v7000
        %v7230 = vunpack.c.l.b16 %v7001
        %v7231 = vunpack.c.h.b16 %v7001
        %v7232 = vunpack.c.l.b16 %v7002
        %v7233 = vunpack.c.h.b16 %v7002
        %v7234 = vunpack.c.l.b16 %v7003
        %v7235 = vunpack.c.h.b16 %v7003
        %v7236 = vunpack.c.l.b16 %v7004
        %v7237 = vunpack.c.h.b16 %v7004
        %v7238 = vunpack.c.l.b16 %v7005
        %v7239 = vunpack.c.h.b16 %v7005
        %v7240 = vunpack.c.l.b16 %v7006
        %v7241 = vunpack.c.h.b16 %v7006
        %v7242 = vunpack.c.l.b16 %v7007
        %v7243 = vunpack.c.h.b16 %v7007
        %v7244 = vunpack.c.l.b16 %v7008
        %v7245 = vunpack.c.h.b16 %v7008
        %v7246 = vunpack.c.l.b16 %v7009
        %v7247 = vunpack.c.h.b16 %v7009
        %v7248 = vunpack.c.l.b16 %v7010
        %v7249 = vunpack.c.h.b16 %v7010
        %v7250 = vunpack.c.l.b16 %v7011
        %v7251 = vunpack.c.h.b16 %v7011
        %v7252 = vunpack.c.l.b16 %v7012
        %v7253 = vunpack.c.h.b16 %v7012
        %v7254 = vunpack.c.l.b16 %v7013
        %v7255 = vunpack.c.h.b16 %v7013
        %v7256 = vunpack.c.l.b16 %v7014
        %v7257 = vunpack.c.h.b16 %v7014
        %v7258 = vunpack.c.l.b16 %v7015
        %v7259 = vunpack.c.h.b16 %v7015
        %v7260 = vunpack.c.l.b16 %v7016
        %v7261 = vunpack.c.h.b16 %v7016
        %v7262 = vunpack.c.l.b16 %v7017
        %v7263 = vunpack.c.h.b16 %v7017
        %v7264 = vunpack.c.l.b16 %v7018
        %v7265 = vunpack.c.h.b16 %v7018
        %v7266 = vunpack.c.l.b16 %v7019
        %v7267 = vunpack.c.h.b16 %v7019
        %v7268 = vunpack.c.l.b16 %v7020
        %v7269 = vunpack.c.h.b16 %v7020
        %v7270 = vunpack.c.l.b16 %v7021
        %v7271 = vunpack.c.h.b16 %v7021
        %v7272 = vunpack.c.l.b16 %v7022
        %v7273 = vunpack.c.h.b16 %v7022
        %v7274 = vunpack.c.l.b16 %v7023
        %v7275 = vunpack.c.h.b16 %v7023
        %v7276 = vunpack.c.l.b16 %v7024
        %v7277 = vunpack.c.h.b16 %v7024
        %v7278 = vunpack.c.l.b16 %v7025
        %v7279 = vunpack.c.h.b16 %v7025
        %v7280 = vunpack.c.l.b16 %v7026
        %v7281 = vunpack.c.h.b16 %v7026
        %v7282 = vunpack.c.l.b16 %v7027
        %v7283 = vunpack.c.h.b16 %v7027
        %v7284 = vunpack.c.l.b16 %v7028
        %v7285 = vunpack.c.h.b16 %v7028
        %v7286 = vunpack.c.l.b16 %v7029
        %v7287 = vunpack.c.h.b16 %v7029
        %v7288 = vunpack.c.l.b16 %v7030
        %v7289 = vunpack.c.h.b16 %v7030
        %v7290 = vunpack.c.l.b16 %v7031
        %v7291 = vunpack.c.h.b16 %v7031
        %v7292 = vunpack.c.l.b16 %v7032
        %v7293 = vunpack.c.h.b16 %v7032
        %v7294 = vunpack.c.l.b16 %v7033
        %v7295 = vunpack.c.h.b16 %v7033
        %v7296 = vunpack.c.l.b16 %v7034
        %v7297 = vunpack.c.h.b16 %v7034
        %v7298 = vunpack.c.l.b16 %v7035
        %v7299 = vunpack.c.h.b16 %v7035
        %v7300 = vunpack.c.l.b16 %v7036
        %v7301 = vunpack.c.h.b16 %v7036
        %v7302 = vunpack.c.l.b16 %v7037
        %v7303 = vunpack.c.h.b16 %v7037
        %v7304 = vunpack.c.l.b16 %v7038
        %v7305 = vunpack.c.h.b16 %v7038
        %v7306 = vunpack.c.l.b16 %v7039
        %v7307 = vunpack.c.h.b16 %v7039
        %v7308 = vunpack.c.l.b16 %v7040
        %v7309 = vunpack.c.h.b16 %v7040
        %v7310 = vunpack.c.l.b16 %v7041
        %v7311 = vunpack.c.h.b16 %v7041
        %v7312 = vunpack.c.l.b16 %v7042
        %v7313 = vunpack.c.h.b16 %v7042
        %v7314 = vunpack.c.l.b16 %v7043
        %v7315 = vunpack.c.h.b16 %v7043
        %v7316 = vunpack.c.l.b16 %v7044
        %v7317 = vunpack.c.h.b16 %v7044
        %v7318 = vunpack.c.l.b16 %v7045
        %v7319 = vunpack.c.h.b16 %v7045
        %v7320 = vunpack.c.l.b16 %v7046
        %v7321 = vunpack.c.h.b16 %v7046
        %v7322 = vunpack.c.l.b16 %v7047
        %v7323 = vunpack.c.h.b16 %v7047
        %v7324 = vunpack.c.l.b16 %v7048
        %v7325 = vunpack.c.h.b16 %v7048
        %v7326 = vunpack.c.l.b16 %v7049
        %v7327 = vunpack.c.h.b16 %v7049
        %v7328 = vunpack.c.l.b16 %v7050
        %v7329 = vunpack.c.h.b16 %v7050
        %v7330 = vunpack.c.l.b16 %v7051
        %v7331 = vunpack.c.h.b16 %v7051
        %v7332 = vunpack.c.l.b16 %v7052
        %v7333 = vunpack.c.h.b16 %v7052
        %v7334 = vunpack.c.l.b16 %v7053
        %v7335 = vunpack.c.h.b16 %v7053
        %v7336 = vunpack.c.l.b16 %v7054
        %v7337 = vunpack.c.h.b16 %v7054
        %v7338 = vunpack.c.l.b16 %v7055
        %v7339 = vunpack.c.h.b16 %v7055
        %v7340 = vunpack.c.l.b16 %v7056
        %v7341 = vunpack.c.h.b16 %v7056
        %v7342 = vunpack.c.l.b16 %v7057
        %v7343 = vunpack.c.h.b16 %v7057
        %v7344 = vunpack.c.l.b16 %v7058
        %v7345 = vunpack.c.h.b16 %v7058
        %v7346 = vunpack.c.l.b16 %v7059
        %v7347 = vunpack.c.h.b16 %v7059
        %v7348 = vunpack.c.l.b16 %v7060
        %v7349 = vunpack.c.h.b16 %v7060
        %v7350 = vunpack.c.l.b16 %v7061
        %v7351 = vunpack.c.h.b16 %v7061
        %v7352 = vunpack.c.l.b16 %v7062
        %v7353 = vunpack.c.h.b16 %v7062
        %v7354 = vunpack.c.l.b16 %v7063
        %v7355 = vunpack.c.h.b16 %v7063
        %v7356 = vunpack.c.l.b16 %v7064
        %v7357 = vunpack.c.h.b16 %v7064
        %v7358 = vunpack.c.l.b16 %v7065
        %v7359 = vunpack.c.h.b16 %v7065
        %v7360 = vpack.c.b16 %v7172, %v7168
        %v7361 = vpack.c.b16 %v7173, %v7169
        %v7362 = vpack.c.b16 %v7174, %v7170
        %v7363 = vpack.c.b16 %v7175, %v7171
        %v7364 = vpack.c.b16 %v7180, %v7176
        %v7365 = vpack.c.b16 %v7181, %v7177
        %v7366 = vpack.c.b16 %v7182, %v7178
        %v7367 = vpack.c.b16 %v7183, %v7179
        %v7368 = vpack.c.b16 %v7188, %v7184
        %v7369 = vpack.c.b16 %v7189, %v7185
        %v7370 = vpack.c.b16 %v7190, %v7186
        %v7371 = vpack.c.b16 %v7191, %v7187
        %v7372 = vpack.c.b16 %v7196, %v7192
        %v7373 = vpack.c.b16 %v7197, %v7193
        %v7374 = vpack.c.b16 %v7198, %v7194
        %v7375 = vpack.c.b16 %v7199, %v7195
        %v7376 = vpack.c.b16 %v7204, %v7200
        %v7377 = vpack.c.b16 %v7205, %v7201
        %v7378 = vpack.c.b16 %v7206, %v7202
        %v7379 = vpack.c.b16 %v7207, %v7203
        %v7380 = vpack.c.b16 %v7212, %v7208
        %v7381 = vpack.c.b16 %v7213, %v7209
        %v7382 = vpack.c.b16 %v7214, %v7210
        %v7383 = vpack.c.b16 %v7215, %v7211
        %v7384 = vpack.c.b16 %v7220, %v7216
        %v7385 = vpack.c.b16 %v7221, %v7217
        %v7386 = vpack.c.b16 %v7222, %v7218
        %v7387 = vpack.c.b16 %v7223, %v7219
        %v7388 = vpack.c.b16 %v7228, %v7224
        %v7389 = vpack.c.b16 %v7229, %v7225
        %v7390 = vpack.c.b16 %v7230, %v7226
        %v7391 = vpack.c.b16 %v7231, %v7227
        %v7392 = vpack.c.b16 %v7236, %v7232
        %v7393 = vpack.c.b16 %v7237, %v7233
        %v7394 = vpack.c.b16 %v7238, %v7234
        %v7395 = vpack.c.b16 %v7239, %v7235
        %v7396 = vpack.c.b16 %v7244, %v7240
        %v7397 = vpack.c.b16 %v7245, %v7241
        %v7398 = vpack.c.b16 %v7246, %v7242
        %v7399 = vpack.c.b16 %v7247, %v7243
        %v7400 = vpack.c.b16 %v7252, %v7248
        %v7401 = vpack.c.b16 %v7253, %v7249
        %v7402 = vpack.c.b16 %v7254, %v7250
        %v7403 = vpack.c.b16 %v7255, %v7251
        %v7404 = vpack.c.b16 %v7260, %v7256
        %v7405 = vpack.c.b16 %v7261, %v7257
        %v7406 = vpack.c.b16 %v7262, %v7258
        %v7407 = vpack.c.b16 %v7263, %v7259
        %v7408 = vpack.c.b16 %v7268, %v7264
        %v7409 = vpack.c.b16 %v7269, %v7265
        %v7410 = vpack.c.b16 %v7270, %v7266
        %v7411 = vpack.c.b16 %v7271, %v7267
        %v7412 = vpack.c.b16 %v7276, %v7272
        %v7413 = vpack.c.b16 %v7277, %v7273
        %v7414 = vpack.c.b16 %v7278, %v7274
        %v7415 = vpack.c.b16 %v7279, %v7275
        %v7416 = vpack.c.b16 %v7284, %v7280
        %v7417 = vpack.c.b16 %v7285, %v7281
        %v7418 = vpack.c.b16 %v7286, %v7282
        %v7419 = vpack.c.b16 %v7287, %v7283
        %v7420 = vpack.c.b16 %v7292, %v7288
        %v7421 = vpack.c.b16 %v7293, %v7289
        %v7422 = vpack.c.b16 %v7294, %v7290
        %v7423 = vpack.c.b16 %v7295, %v7291
        %v7424 = vpack.c.b16 %v7300, %v7296
        %v7425 = vpack.c.b16 %v7301, %v7297
        %v7426 = vpack.c.b16 %v7302, %v7298
        %v7427 = vpack.c.b16 %v7303, %v7299
        %v7428 = vpack.c.b16 %v7308, %v7304
        %v7429 = vpack.c.b16 %v7309, %v7305
        %v7430 = vpack.c.b16 %v7310, %v7306
        %v7431 = vpack.c.b16 %v7311, %v7307
        %v7432 = vpack.c.b16 %v7316, %v7312
        %v7433 = vpack.c.b16 %v7317, %v7313
        %v7434 = vpack.c.b16 %v7318, %v7314
        %v7435 = vpack.c.b16 %v7319, %v7315
        %v7436 = vpack.c.b16 %v7324, %v7320
        %v7437 = vpack.c.b16 %v7325, %v7321
        %v7438 = vpack.c.b16 %v7326, %v7322
        %v7439 = vpack.c.b16 %v7327, %v7323
        %v7440 = vpack.c.b16 %v7332, %v7328
        %v7441 = vpack.c.b16 %v7333, %v7329
        %v7442 = vpack.c.b16 %v7334, %v7330
        %v7443 = vpack.c.b16 %v7335, %v7331
        %v7444 = vpack.c.b16 %v7340, %v7336
        %v7445 = vpack.c.b16 %v7341, %v7337
        %v7446 = vpack.c.b16 %v7342, %v7338
        %v7447 = vpack.c.b16 %v7343, %v7339
        %v7448 = vpack.c.b16 %v7348, %v7344
        %v7449 = vpack.c.b16 %v7349, %v7345
        %v7450 = vpack.c.b16 %v7350, %v7346
        %v7451 = vpack.c.b16 %v7351, %v7347
        %v7452 = vpack.c.b16 %v7356, %v7352
        %v7453 = vpack.c.b16 %v7357, %v7353
        %v7454 = vpack.c.b16 %v7358, %v7354
        %v7455 = vpack.c.b16 %v7359, %v7355
        %7552 = vmatprep.subr.bf16.mxu0 %v7361
        %7553 = vmatpush1.bf16.msra.mxu0 %v7360
        %7554 = vmatprep.subr.bf16.mxu0 %v7365
        %7555 = vmatpush1.bf16.msra.mxu0 %v7364
        %7556 = vmatprep.subr.bf16.mxu0 %v7369
        %7557 = vmatpush1.bf16.msra.mxu0 %v7368
        %7558 = vmatprep.subr.bf16.mxu0 %v7373
        %7559 = vmatpush1.bf16.msra.mxu0 %v7372
        %7560 = vmatprep.subr.bf16.mxu0 %v7377
        %7561 = vmatpush1.bf16.msra.mxu0 %v7376
        %7562 = vmatprep.subr.bf16.mxu0 %v7381
        %7563 = vmatpush1.bf16.msra.mxu0 %v7380
        %7564 = vmatprep.subr.bf16.mxu0 %v7385
        %7565 = vmatpush1.bf16.msra.mxu0 %v7384
        %7566 = vmatprep.subr.bf16.mxu0 %v7389
        %7567 = vmatpush1.bf16.msra.mxu0 %v7388
        %7568 = vmatprep.subr.bf16.mxu0 %v7393
        %7569 = vmatpush1.bf16.msra.mxu0 %v7392
        %7570 = vmatprep.subr.bf16.mxu0 %v7397
        %7571 = vmatpush1.bf16.msra.mxu0 %v7396
        %7572 = vmatprep.subr.bf16.mxu0 %v7401
        %7573 = vmatpush1.bf16.msra.mxu0 %v7400
        %7574 = vmatprep.subr.bf16.mxu0 %v7405
        %7575 = vmatpush1.bf16.msra.mxu0 %v7404
        %7576 = vmatprep.subr.bf16.mxu0 %v7409
        %7577 = vmatpush1.bf16.msra.mxu0 %v7408
        %7578 = vmatprep.subr.bf16.mxu0 %v7413
        %7579 = vmatpush1.bf16.msra.mxu0 %v7412
        %7580 = vmatprep.subr.bf16.mxu0 %v7417
        %7581 = vmatpush1.bf16.msra.mxu0 %v7416
        %7582 = vmatprep.subr.bf16.mxu0 %v7421
        %7583 = vmatpush1.bf16.msra.mxu0 %v7420
        %7584 = vmatprep.mubr.bf16.mxu0 %v7067
        %7585 = vmatmul.mubr.bf16.gmra.mrb[0].mxu0 %v7066
        %v7586 = vpop.f32.mrb[0].mxu0
        %v7587 = vadd.f32 0.0, %v7586
        %v7588 = vpop.f32.mrb[0].mxu0
        %v7589 = vadd.f32 0.0, %v7588
        %v7590 = vpop.f32.mrb[0].mxu0
        %v7591 = vpop.f32.mrb[0].mxu0
        %7592 = vdwg.mxu0
        %7593 = vmatprep.subr.bf16.mxu0 %v7425
        %7594 = vmatpush1.bf16.msra.mxu0 %v7424
        %7595 = vmatprep.subr.bf16.mxu0 %v7429
        %7596 = vmatpush1.bf16.msra.mxu0 %v7428
        %7597 = vmatprep.subr.bf16.mxu0 %v7433
        %7598 = vmatpush1.bf16.msra.mxu0 %v7432
        %7599 = vmatprep.subr.bf16.mxu0 %v7437
        %7600 = vmatpush1.bf16.msra.mxu0 %v7436
        %7601 = vmatprep.subr.bf16.mxu0 %v7441
        %7602 = vmatpush1.bf16.msra.mxu0 %v7440
        %7603 = vmatprep.subr.bf16.mxu0 %v7445
        %7604 = vmatpush1.bf16.msra.mxu0 %v7444
        %7605 = vmatprep.subr.bf16.mxu0 %v7449
        %7606 = vmatpush1.bf16.msra.mxu0 %v7448
        %7607 = vmatprep.subr.bf16.mxu0 %v7453
        %7608 = vmatpush1.bf16.msra.mxu0 %v7452
        %7609 = vmatprep.subr.bf16.mxu0 0
        %7610 = vmatpush1.bf16.msra.mxu0 0
        %7611 = vmatprep.subr.bf16.mxu0 0
        %7612 = vmatpush1.bf16.msra.mxu0 0
        %7613 = vmatprep.subr.bf16.mxu0 0
        %7614 = vmatpush1.bf16.msra.mxu0 0
        %7615 = vmatprep.subr.bf16.mxu0 0
        %7616 = vmatpush1.bf16.msra.mxu0 0
        %7617 = vmatprep.subr.bf16.mxu0 0
        %7618 = vmatpush1.bf16.msra.mxu0 0
        %7619 = vmatprep.subr.bf16.mxu0 0
        %7620 = vmatpush1.bf16.msra.mxu0 0
        %7621 = vmatprep.subr.bf16.mxu0 0
        %7622 = vmatpush1.bf16.msra.mxu0 0
        %7623 = vmatprep.subr.bf16.mxu0 0
        %7624 = vmatpush1.bf16.msra.mxu0 0
        %7625 = vmatprep.mubr.bf16.mxu0 0
        %7626 = vmatmul.mubr.bf16.gmra.mrb[0].mxu0 %v7068
        %v7627 = vpop.f32.mrb[0].mxu0
        %v7628 = vadd.f32 %v7587, %v7627
        %v7629 = vpop.f32.mrb[0].mxu0
        %v7630 = vadd.f32 %v7589, %v7629
        %v7631 = vpop.f32.mrb[0].mxu0
        %v7632 = vpop.f32.mrb[0].mxu0
        %7633 = vdwg.mxu0
        %7634 = vmatprep.subr.bf16.mxu0 %v7363
        %7635 = vmatpush1.bf16.msra.mxu0 %v7362
        %7636 = vmatprep.subr.bf16.mxu0 %v7367
        %7637 = vmatpush1.bf16.msra.mxu0 %v7366
        %7638 = vmatprep.subr.bf16.mxu0 %v7371
        %7639 = vmatpush1.bf16.msra.mxu0 %v7370
        %7640 = vmatprep.subr.bf16.mxu0 %v7375
        %7641 = vmatpush1.bf16.msra.mxu0 %v7374
        %7642 = vmatprep.subr.bf16.mxu0 %v7379
        %7643 = vmatpush1.bf16.msra.mxu0 %v7378
        %7644 = vmatprep.subr.bf16.mxu0 %v7383
        %7645 = vmatpush1.bf16.msra.mxu0 %v7382
        %7646 = vmatprep.subr.bf16.mxu0 %v7387
        %7647 = vmatpush1.bf16.msra.mxu0 %v7386
        %7648 = vmatprep.subr.bf16.mxu0 %v7391
        %7649 = vmatpush1.bf16.msra.mxu0 %v7390
        %7650 = vmatprep.subr.bf16.mxu0 %v7395
        %7651 = vmatpush1.bf16.msra.mxu0 %v7394
        %7652 = vmatprep.subr.bf16.mxu0 %v7399
        %7653 = vmatpush1.bf16.msra.mxu0 %v7398
        %7654 = vmatprep.subr.bf16.mxu0 %v7403
        %7655 = vmatpush1.bf16.msra.mxu0 %v7402
        %7656 = vmatprep.subr.bf16.mxu0 %v7407
        %7657 = vmatpush1.bf16.msra.mxu0 %v7406
        %7658 = vmatprep.subr.bf16.mxu0 %v7411
        %7659 = vmatpush1.bf16.msra.mxu0 %v7410
        %7660 = vmatprep.subr.bf16.mxu0 %v7415
        %7661 = vmatpush1.bf16.msra.mxu0 %v7414
        %7662 = vmatprep.subr.bf16.mxu0 %v7419
        %7663 = vmatpush1.bf16.msra.mxu0 %v7418
        %7664 = vmatprep.subr.bf16.mxu0 %v7423
        %7665 = vmatpush1.bf16.msra.mxu0 %v7422
        %7666 = vmatprep.mubr.bf16.mxu0 %v7067
        %7667 = vmatmul.mubr.bf16.gmra.mrb[0].mxu0 %v7066
        %v7668 = vpop.f32.mrb[0].mxu0
        %v7669 = vadd.f32 0.0, %v7668
        %v7670 = vpop.f32.mrb[0].mxu0
        %v7671 = vadd.f32 0.0, %v7670
        %v7672 = vpop.f32.mrb[0].mxu0
        %v7673 = vpop.f32.mrb[0].mxu0
        %7674 = vdwg.mxu0
        %7675 = vmatprep.subr.bf16.mxu0 %v7427
        %7676 = vmatpush1.bf16.msra.mxu0 %v7426
        %7677 = vmatprep.subr.bf16.mxu0 %v7431
        %7678 = vmatpush1.bf16.msra.mxu0 %v7430
        %7679 = vmatprep.subr.bf16.mxu0 %v7435
        %7680 = vmatpush1.bf16.msra.mxu0 %v7434
        %7681 = vmatprep.subr.bf16.mxu0 %v7439
        %7682 = vmatpush1.bf16.msra.mxu0 %v7438
        %7683 = vmatprep.subr.bf16.mxu0 %v7443
        %7684 = vmatpush1.bf16.msra.mxu0 %v7442
        %7685 = vmatprep.subr.bf16.mxu0 %v7447
        %7686 = vmatpush1.bf16.msra.mxu0 %v7446
        %7687 = vmatprep.subr.bf16.mxu0 %v7451
        %7688 = vmatpush1.bf16.msra.mxu0 %v7450
        %7689 = vmatprep.subr.bf16.mxu0 %v7455
        %7690 = vmatpush1.bf16.msra.mxu0 %v7454
        %7691 = vmatprep.subr.bf16.mxu0 0
        %7692 = vmatpush1.bf16.msra.mxu0 0
        %7693 = vmatprep.subr.bf16.mxu0 0
        %7694 = vmatpush1.bf16.msra.mxu0 0
        %7695 = vmatprep.subr.bf16.mxu0 0
        %7696 = vmatpush1.bf16.msra.mxu0 0
        %7697 = vmatprep.subr.bf16.mxu0 0
        %7698 = vmatpush1.bf16.msra.mxu0 0
        %7699 = vmatprep.subr.bf16.mxu0 0
        %7700 = vmatpush1.bf16.msra.mxu0 0
        %7701 = vmatprep.subr.bf16.mxu0 0
        %7702 = vmatpush1.bf16.msra.mxu0 0
        %7703 = vmatprep.subr.bf16.mxu0 0
        %7704 = vmatpush1.bf16.msra.mxu0 0
        %7705 = vmatprep.subr.bf16.mxu0 0
        %7706 = vmatpush1.bf16.msra.mxu0 0
        %7707 = vmatprep.mubr.bf16.mxu0 0
        %7708 = vmatmul.mubr.bf16.gmra.mrb[0].mxu0 %v7068
        %v7709 = vpop.f32.mrb[0].mxu0
        %v7710 = vadd.f32 %v7669, %v7709
        %v7711 = vpop.f32.mrb[0].mxu0
        %v7712 = vadd.f32 %v7671, %v7711
        %v7713 = vpop.f32.mrb[0].mxu0
        %v7714 = vpop.f32.mrb[0].mxu0
        %7715 = vdwg.mxu0
        %v7716 = vadd.f32 %v6965, %v7628
        %v7717 = vadd.f32 %v6966, %v7630
        %v7718 = vadd.f32 %v6967, %v7710
        %v7719 = vadd.f32 %v6968, %v7712
        %v7720 = vld [vmem:[#allocation10] sm:$0xf]
        %v7722 = vlaneseq
        %v7723 = vshrl.u32 %v7722, 7
        %v7724 = vsub.s32 0, %v7723
        %v7725 = vrot.slane %v7720, %v7724
        %v7726 = vlaneseq
        %v7727 = vshrl.u32 %v7726, 7
        %v7728 = vsub.s32 1, %v7727
        %v7729 = vrot.slane %v7720, %v7728
        %v7730 = vlaneseq
        %v7731 = vshrl.u32 %v7730, 7
        %v7732 = vsub.s32 2, %v7731
        %v7733 = vrot.slane %v7720, %v7732
        %v7734 = vlaneseq
        %v7735 = vshrl.u32 %v7734, 7
        %v7736 = vsub.s32 3, %v7735
        %v7737 = vrot.slane %v7720, %v7736
        %v7742 = vadd.f32 %v7716, %v7725
        %v7743 = vadd.f32 %v7717, %v7729
        %v7744 = vadd.f32 %v7718, %v7733
        %v7745 = vadd.f32 %v7719, %v7737
        %v7746 = vmax.f32 %v7742, 0.0
        %v7747 = vmax.f32 %v7743, 0.0
        %v7748 = vmax.f32 %v7744, 0.0
        %v7749 = vmax.f32 %v7745, 0.0
        %v7750 = vld [vmem:[#allocation11] sm:$0xff]
        %v7751 = vld [vmem:[#allocation11 + $0x8] sm:$0xff]
        %v7752 = vld [vmem:[#allocation11 + $0x10] sm:$0xff]
        %v7753 = vld [vmem:[#allocation11 + $0x18] sm:$0xff]
        %v7754 = vld [vmem:[#allocation11 + $0x20] sm:$0xff]
        %v7755 = vld [vmem:[#allocation11 + $0x28] sm:$0xff]
        %v7756 = vld [vmem:[#allocation11 + $0x30] sm:$0xff]
        %v7757 = vld [vmem:[#allocation11 + $0x38] sm:$0xff]
        %v7758 = vld [vmem:[#allocation11 + $0x40] sm:$0xff]
        %v7759 = vld [vmem:[#allocation11 + $0x48] sm:$0xff]
        %v7760 = vld [vmem:[#allocation11 + $0x50] sm:$0xff]
        %v7761 = vld [vmem:[#allocation11 + $0x58] sm:$0xff]
        %v7762 = vld [vmem:[#allocation11 + $0x60] sm:$0xff]
        %v7763 = vld [vmem:[#allocation11 + $0x68] sm:$0xff]
        %v7764 = vld [vmem:[#allocation11 + $0x70] sm:$0xff]
        %v7765 = vld [vmem:[#allocation11 + $0x78] sm:$0xff]
        %v7766 = vld [vmem:[#allocation11 + $0x80] sm:$0xff]
        %v7767 = vld [vmem:[#allocation11 + $0x88] sm:$0xff]
        %v7768 = vld [vmem:[#allocation11 + $0x90] sm:$0xff]
        %v7769 = vld [vmem:[#allocation11 + $0x98] sm:$0xff]
        %v7770 = vld [vmem:[#allocation11 + $0xa0] sm:$0xff]
        %v7771 = vld [vmem:[#allocation11 + $0xa8] sm:$0xff]
        %v7772 = vld [vmem:[#allocation11 + $0xb0] sm:$0xff]
        %v7773 = vld [vmem:[#allocation11 + $0xb8] sm:$0xff]
        %v7774 = vld [vmem:[#allocation11 + $0xc0] sm:$0xff]
        %v7775 = vld [vmem:[#allocation11 + $0xc8] sm:$0xff]
        %v7776 = vld [vmem:[#allocation11 + $0xd0] sm:$0xff]
        %v7777 = vld [vmem:[#allocation11 + $0xd8] sm:$0xff]
        %v7778 = vld [vmem:[#allocation11 + $0xe0] sm:$0xff]
        %v7779 = vld [vmem:[#allocation11 + $0xe8] sm:$0xff]
        %v7780 = vld [vmem:[#allocation11 + $0xf0] sm:$0xff]
        %v7781 = vld [vmem:[#allocation11 + $0xf8] sm:$0xff]
        %v7782 = vld [vmem:[#allocation11 + $0x100] sm:$0xff]
        %v7783 = vld [vmem:[#allocation11 + $0x108] sm:$0xff]
        %v7784 = vld [vmem:[#allocation11 + $0x110] sm:$0xff]
        %v7785 = vld [vmem:[#allocation11 + $0x118] sm:$0xff]
        %v7786 = vld [vmem:[#allocation11 + $0x120] sm:$0xff]
        %v7787 = vld [vmem:[#allocation11 + $0x128] sm:$0xff]
        %v7788 = vld [vmem:[#allocation11 + $0x130] sm:$0xff]
        %v7789 = vld [vmem:[#allocation11 + $0x138] sm:$0xff]
        %v7790 = vld [vmem:[#allocation11 + $0x140] sm:$0xff]
        %v7791 = vld [vmem:[#allocation11 + $0x148] sm:$0xff]
        %v7792 = vld [vmem:[#allocation11 + $0x150] sm:$0xff]
        %v7793 = vld [vmem:[#allocation11 + $0x158] sm:$0xff]
        %v7794 = vld [vmem:[#allocation11 + $0x160] sm:$0xff]
        %v7795 = vld [vmem:[#allocation11 + $0x168] sm:$0xff]
        %v7796 = vld [vmem:[#allocation11 + $0x170] sm:$0xff]
        %v7797 = vld [vmem:[#allocation11 + $0x178] sm:$0xff]
        %v7798 = vld [vmem:[#allocation11 + $0x180] sm:$0xff]
        %v7799 = vld [vmem:[#allocation11 + $0x188] sm:$0xff]
        %v7800 = vld [vmem:[#allocation11 + $0x190] sm:$0xff]
        %v7801 = vld [vmem:[#allocation11 + $0x198] sm:$0xff]
        %v7802 = vld [vmem:[#allocation11 + $0x1a0] sm:$0xff]
        %v7803 = vld [vmem:[#allocation11 + $0x1a8] sm:$0xff]
        %v7804 = vld [vmem:[#allocation11 + $0x1b0] sm:$0xff]
        %v7805 = vld [vmem:[#allocation11 + $0x1b8] sm:$0xff]
        %v7806 = vld [vmem:[#allocation11 + $0x1c0] sm:$0xff]
        %v7807 = vld [vmem:[#allocation11 + $0x1c8] sm:$0xff]
        %v7808 = vld [vmem:[#allocation11 + $0x1d0] sm:$0xff]
        %v7809 = vld [vmem:[#allocation11 + $0x1d8] sm:$0xff]
        %v7810 = vld [vmem:[#allocation11 + $0x1e0] sm:$0xff]
        %v7811 = vld [vmem:[#allocation11 + $0x1e8] sm:$0xff]
        %v7812 = vld [vmem:[#allocation11 + $0x1f0] sm:$0xff]
        %v7813 = vld [vmem:[#allocation11 + $0x1f8] sm:$0xff]
        %v7814 = vld [vmem:[#allocation11 + $0x200] sm:$0xff]
        %v7815 = vld [vmem:[#allocation11 + $0x208] sm:$0xff]
        %v7816 = vld [vmem:[#allocation11 + $0x210] sm:$0xff]
        %v7817 = vld [vmem:[#allocation11 + $0x218] sm:$0xff]
        %v7818 = vld [vmem:[#allocation11 + $0x220] sm:$0xff]
        %v7819 = vld [vmem:[#allocation11 + $0x228] sm:$0xff]
        %v7820 = vld [vmem:[#allocation11 + $0x230] sm:$0xff]
        %v7821 = vld [vmem:[#allocation11 + $0x238] sm:$0xff]
        %v7822 = vld [vmem:[#allocation11 + $0x240] sm:$0xff]
        %v7823 = vld [vmem:[#allocation11 + $0x248] sm:$0xff]
        %v7824 = vld [vmem:[#allocation11 + $0x250] sm:$0xff]
        %v7825 = vld [vmem:[#allocation11 + $0x258] sm:$0xff]
        %v7826 = vld [vmem:[#allocation11 + $0x260] sm:$0xff]
        %v7827 = vld [vmem:[#allocation11 + $0x268] sm:$0xff]
        %v7828 = vld [vmem:[#allocation11 + $0x270] sm:$0xff]
        %v7829 = vld [vmem:[#allocation11 + $0x278] sm:$0xff]
        %v7830 = vld [vmem:[#allocation11 + $0x280] sm:$0xff]
        %v7831 = vld [vmem:[#allocation11 + $0x288] sm:$0xff]
        %v7832 = vld [vmem:[#allocation11 + $0x290] sm:$0xff]
        %v7833 = vld [vmem:[#allocation11 + $0x298] sm:$0xff]
        %v7834 = vld [vmem:[#allocation11 + $0x2a0] sm:$0xff]
        %v7835 = vld [vmem:[#allocation11 + $0x2a8] sm:$0xff]
        %v7836 = vld [vmem:[#allocation11 + $0x2b0] sm:$0xff]
        %v7837 = vld [vmem:[#allocation11 + $0x2b8] sm:$0xff]
        %v7838 = vld [vmem:[#allocation11 + $0x2c0] sm:$0xff]
        %v7839 = vld [vmem:[#allocation11 + $0x2c8] sm:$0xff]
        %v7840 = vld [vmem:[#allocation11 + $0x2d0] sm:$0xff]
        %v7841 = vld [vmem:[#allocation11 + $0x2d8] sm:$0xff]
        %v7842 = vld [vmem:[#allocation11 + $0x2e0] sm:$0xff]
        %v7843 = vld [vmem:[#allocation11 + $0x2e8] sm:$0xff]
        %v7844 = vld [vmem:[#allocation11 + $0x2f0] sm:$0xff]
        %v7845 = vld [vmem:[#allocation11 + $0x2f8] sm:$0xff]
        %v7846 = vld [vmem:[#allocation11 + $0x300] sm:$0xff]
        %v7847 = vld [vmem:[#allocation11 + $0x308] sm:$0xff]
        %v7848 = vld [vmem:[#allocation11 + $0x310] sm:$0xff]
        %v7849 = vld [vmem:[#allocation11 + $0x318] sm:$0xff]
        %v7850 = vld [vmem:[#allocation11 + $0x320] sm:$0xff]
        %v7851 = vld [vmem:[#allocation11 + $0x328] sm:$0xff]
        %v7852 = vld [vmem:[#allocation11 + $0x330] sm:$0xff]
        %v7853 = vld [vmem:[#allocation11 + $0x338] sm:$0xff]
        %v7854 = vld [vmem:[#allocation11 + $0x340] sm:$0xff]
        %v7855 = vld [vmem:[#allocation11 + $0x348] sm:$0xff]
        %v7856 = vld [vmem:[#allocation11 + $0x350] sm:$0xff]
        %v7857 = vld [vmem:[#allocation11 + $0x358] sm:$0xff]
        %v7858 = vld [vmem:[#allocation11 + $0x360] sm:$0xff]
        %v7859 = vld [vmem:[#allocation11 + $0x368] sm:$0xff]
        %v7860 = vld [vmem:[#allocation11 + $0x370] sm:$0xff]
        %v7861 = vld [vmem:[#allocation11 + $0x378] sm:$0xff]
        %v7862 = vld [vmem:[#allocation11 + $0x380] sm:$0xff]
        %v7863 = vld [vmem:[#allocation11 + $0x388] sm:$0xff]
        %v7864 = vld [vmem:[#allocation11 + $0x390] sm:$0xff]
        %v7865 = vld [vmem:[#allocation11 + $0x398] sm:$0xff]
        %v7866 = vld [vmem:[#allocation11 + $0x3a0] sm:$0xff]
        %v7867 = vld [vmem:[#allocation11 + $0x3a8] sm:$0xff]
        %v7868 = vld [vmem:[#allocation11 + $0x3b0] sm:$0xff]
        %v7869 = vld [vmem:[#allocation11 + $0x3b8] sm:$0xff]
        %v7870 = vld [vmem:[#allocation11 + $0x3c0] sm:$0xff]
        %v7871 = vld [vmem:[#allocation11 + $0x3c8] sm:$0xff]
        %v7872 = vld [vmem:[#allocation11 + $0x3d0] sm:$0xff]
        %v7873 = vld [vmem:[#allocation11 + $0x3d8] sm:$0xff]
        %v7874 = vld [vmem:[#allocation11 + $0x3e0] sm:$0xff]
        %v7875 = vld [vmem:[#allocation11 + $0x3e8] sm:$0xff]
        %v7876 = vld [vmem:[#allocation11 + $0x3f0] sm:$0xff]
        %v7877 = vld [vmem:[#allocation11 + $0x3f8] sm:$0xff]
        %7878 = vmatprep.subr.mxu0 %v7751
        %7879 = vmatpush1.msra.mxu0 %v7750
        %7880 = vmatprep.subr.mxu0 %v7753
        %7881 = vmatpush1.msra.mxu0 %v7752
        %7882 = vmatprep.subr.mxu0 %v7755
        %7883 = vmatpush1.msra.mxu0 %v7754
        %7884 = vmatprep.subr.mxu0 %v7757
        %7885 = vmatpush1.msra.mxu0 %v7756
        %7886 = vmatprep.subr.mxu0 %v7759
        %7887 = vmatpush1.msra.mxu0 %v7758
        %7888 = vmatprep.subr.mxu0 %v7761
        %7889 = vmatpush1.msra.mxu0 %v7760
        %7890 = vmatprep.subr.mxu0 %v7763
        %7891 = vmatpush1.msra.mxu0 %v7762
        %7892 = vmatprep.subr.mxu0 %v7765
        %7893 = vmatpush1.msra.mxu0 %v7764
        %7894 = vmatprep.subr.mxu0 %v7767
        %7895 = vmatpush1.msra.mxu0 %v7766
        %7896 = vmatprep.subr.mxu0 %v7769
        %7897 = vmatpush1.msra.mxu0 %v7768
        %7898 = vmatprep.subr.mxu0 %v7771
        %7899 = vmatpush1.msra.mxu0 %v7770
        %7900 = vmatprep.subr.mxu0 %v7773
        %7901 = vmatpush1.msra.mxu0 %v7772
        %7902 = vmatprep.subr.mxu0 %v7775
        %7903 = vmatpush1.msra.mxu0 %v7774
        %7904 = vmatprep.subr.mxu0 %v7777
        %7905 = vmatpush1.msra.mxu0 %v7776
        %7906 = vmatprep.subr.mxu0 %v7779
        %7907 = vmatpush1.msra.mxu0 %v7778
        %7908 = vmatprep.subr.mxu0 %v7781
        %7909 = vmatpush1.msra.mxu0 %v7780
        %7910 = vmatprep.subr.mxu0 %v7783
        %7911 = vmatpush1.msra.mxu0 %v7782
        %7912 = vmatprep.subr.mxu0 %v7785
        %7913 = vmatpush1.msra.mxu0 %v7784
        %7914 = vmatprep.subr.mxu0 %v7787
        %7915 = vmatpush1.msra.mxu0 %v7786
        %7916 = vmatprep.subr.mxu0 %v7789
        %7917 = vmatpush1.msra.mxu0 %v7788
        %7918 = vmatprep.subr.mxu0 %v7791
        %7919 = vmatpush1.msra.mxu0 %v7790
        %7920 = vmatprep.subr.mxu0 %v7793
        %7921 = vmatpush1.msra.mxu0 %v7792
        %7922 = vmatprep.subr.mxu0 %v7795
        %7923 = vmatpush1.msra.mxu0 %v7794
        %7924 = vmatprep.subr.mxu0 %v7797
        %7925 = vmatpush1.msra.mxu0 %v7796
        %7926 = vmatprep.subr.mxu0 %v7799
        %7927 = vmatpush1.msra.mxu0 %v7798
        %7928 = vmatprep.subr.mxu0 %v7801
        %7929 = vmatpush1.msra.mxu0 %v7800
        %7930 = vmatprep.subr.mxu0 %v7803
        %7931 = vmatpush1.msra.mxu0 %v7802
        %7932 = vmatprep.subr.mxu0 %v7805
        %7933 = vmatpush1.msra.mxu0 %v7804
        %7934 = vmatprep.subr.mxu0 %v7807
        %7935 = vmatpush1.msra.mxu0 %v7806
        %7936 = vmatprep.subr.mxu0 %v7809
        %7937 = vmatpush1.msra.mxu0 %v7808
        %7938 = vmatprep.subr.mxu0 %v7811
        %7939 = vmatpush1.msra.mxu0 %v7810
        %7940 = vmatprep.subr.mxu0 %v7813
        %7941 = vmatpush1.msra.mxu0 %v7812
        %7942 = vmatprep.mubr.f32.mxu0 %v7747
        %7943 = vmatmul.mubr.f32.gmra.mrb[0].mxu0 %v7746
        %v7944 = vpop.f32.mrb[0].mxu0
        %v7945 = vadd.f32 0.0, %v7944
        %v7946 = vpop.f32.mrb[0].mxu0
        %v7947 = vadd.f32 0.0, %v7946
        %7948 = vdwg.mxu0
        %7949 = vmatprep.subr.mxu0 %v7815
        %7950 = vmatpush1.msra.mxu0 %v7814
        %7951 = vmatprep.subr.mxu0 %v7817
        %7952 = vmatpush1.msra.mxu0 %v7816
        %7953 = vmatprep.subr.mxu0 %v7819
        %7954 = vmatpush1.msra.mxu0 %v7818
        %7955 = vmatprep.subr.mxu0 %v7821
        %7956 = vmatpush1.msra.mxu0 %v7820
        %7957 = vmatprep.subr.mxu0 %v7823
        %7958 = vmatpush1.msra.mxu0 %v7822
        %7959 = vmatprep.subr.mxu0 %v7825
        %7960 = vmatpush1.msra.mxu0 %v7824
        %7961 = vmatprep.subr.mxu0 %v7827
        %7962 = vmatpush1.msra.mxu0 %v7826
        %7963 = vmatprep.subr.mxu0 %v7829
        %7964 = vmatpush1.msra.mxu0 %v7828
        %7965 = vmatprep.subr.mxu0 %v7831
        %7966 = vmatpush1.msra.mxu0 %v7830
        %7967 = vmatprep.subr.mxu0 %v7833
        %7968 = vmatpush1.msra.mxu0 %v7832
        %7969 = vmatprep.subr.mxu0 %v7835
        %7970 = vmatpush1.msra.mxu0 %v7834
        %7971 = vmatprep.subr.mxu0 %v7837
        %7972 = vmatpush1.msra.mxu0 %v7836
        %7973 = vmatprep.subr.mxu0 %v7839
        %7974 = vmatpush1.msra.mxu0 %v7838
        %7975 = vmatprep.subr.mxu0 %v7841
        %7976 = vmatpush1.msra.mxu0 %v7840
        %7977 = vmatprep.subr.mxu0 %v7843
        %7978 = vmatpush1.msra.mxu0 %v7842
        %7979 = vmatprep.subr.mxu0 %v7845
        %7980 = vmatpush1.msra.mxu0 %v7844
        %7981 = vmatprep.subr.mxu0 %v7847
        %7982 = vmatpush1.msra.mxu0 %v7846
        %7983 = vmatprep.subr.mxu0 %v7849
        %7984 = vmatpush1.msra.mxu0 %v7848
        %7985 = vmatprep.subr.mxu0 %v7851
        %7986 = vmatpush1.msra.mxu0 %v7850
        %7987 = vmatprep.subr.mxu0 %v7853
        %7988 = vmatpush1.msra.mxu0 %v7852
        %7989 = vmatprep.subr.mxu0 %v7855
        %7990 = vmatpush1.msra.mxu0 %v7854
        %7991 = vmatprep.subr.mxu0 %v7857
        %7992 = vmatpush1.msra.mxu0 %v7856
        %7993 = vmatprep.subr.mxu0 %v7859
        %7994 = vmatpush1.msra.mxu0 %v7858
        %7995 = vmatprep.subr.mxu0 %v7861
        %7996 = vmatpush1.msra.mxu0 %v7860
        %7997 = vmatprep.subr.mxu0 %v7863
        %7998 = vmatpush1.msra.mxu0 %v7862
        %7999 = vmatprep.subr.mxu0 %v7865
        %8000 = vmatpush1.msra.mxu0 %v7864
        %8001 = vmatprep.subr.mxu0 %v7867
        %8002 = vmatpush1.msra.mxu0 %v7866
        %8003 = vmatprep.subr.mxu0 %v7869
        %8004 = vmatpush1.msra.mxu0 %v7868
        %8005 = vmatprep.subr.mxu0 %v7871
        %8006 = vmatpush1.msra.mxu0 %v7870
        %8007 = vmatprep.subr.mxu0 %v7873
        %8008 = vmatpush1.msra.mxu0 %v7872
        %8009 = vmatprep.subr.mxu0 %v7875
        %8010 = vmatpush1.msra.mxu0 %v7874
        %8011 = vmatprep.subr.mxu0 %v7877
        %8012 = vmatpush1.msra.mxu0 %v7876
        %8013 = vmatprep.mubr.f32.mxu0 %v7749
        %8014 = vmatmul.mubr.f32.gmra.mrb[0].mxu0 %v7748
        %v8015 = vpop.f32.mrb[0].mxu0
        %v8016 = vadd.f32 %v7945, %v8015
        %v8017 = vpop.f32.mrb[0].mxu0
        %v8018 = vadd.f32 %v7947, %v8017
        %8019 = vdwg.mxu0
        %s8020 = scalar_lea.vmem [#allocation11], 1024
        %v8021 = vld [vmem:[%s8020] sm:$0xff]
        %v8022 = vld [vmem:[%s8020 + $0x8] sm:$0xff]
        %v8023 = vld [vmem:[%s8020 + $0x10] sm:$0xff]
        %v8024 = vld [vmem:[%s8020 + $0x18] sm:$0xff]
        %v8025 = vld [vmem:[%s8020 + $0x20] sm:$0xff]
        %v8026 = vld [vmem:[%s8020 + $0x28] sm:$0xff]
        %v8027 = vld [vmem:[%s8020 + $0x30] sm:$0xff]
        %v8028 = vld [vmem:[%s8020 + $0x38] sm:$0xff]
        %v8029 = vld [vmem:[%s8020 + $0x40] sm:$0xff]
        %v8030 = vld [vmem:[%s8020 + $0x48] sm:$0xff]
        %v8031 = vld [vmem:[%s8020 + $0x50] sm:$0xff]
        %v8032 = vld [vmem:[%s8020 + $0x58] sm:$0xff]
        %v8033 = vld [vmem:[%s8020 + $0x60] sm:$0xff]
        %v8034 = vld [vmem:[%s8020 + $0x68] sm:$0xff]
        %v8035 = vld [vmem:[%s8020 + $0x70] sm:$0xff]
        %v8036 = vld [vmem:[%s8020 + $0x78] sm:$0xff]
        %v8037 = vld [vmem:[%s8020 + $0x80] sm:$0xff]
        %v8038 = vld [vmem:[%s8020 + $0x88] sm:$0xff]
        %v8039 = vld [vmem:[%s8020 + $0x90] sm:$0xff]
        %v8040 = vld [vmem:[%s8020 + $0x98] sm:$0xff]
        %v8041 = vld [vmem:[%s8020 + $0xa0] sm:$0xff]
        %v8042 = vld [vmem:[%s8020 + $0xa8] sm:$0xff]
        %v8043 = vld [vmem:[%s8020 + $0xb0] sm:$0xff]
        %v8044 = vld [vmem:[%s8020 + $0xb8] sm:$0xff]
        %v8045 = vld [vmem:[%s8020 + $0xc0] sm:$0xff]
        %v8046 = vld [vmem:[%s8020 + $0xc8] sm:$0xff]
        %v8047 = vld [vmem:[%s8020 + $0xd0] sm:$0xff]
        %v8048 = vld [vmem:[%s8020 + $0xd8] sm:$0xff]
        %v8049 = vld [vmem:[%s8020 + $0xe0] sm:$0xff]
        %v8050 = vld [vmem:[%s8020 + $0xe8] sm:$0xff]
        %v8051 = vld [vmem:[%s8020 + $0xf0] sm:$0xff]
        %v8052 = vld [vmem:[%s8020 + $0xf8] sm:$0xff]
        %v8053 = vld [vmem:[%s8020 + $0x100] sm:$0xff]
        %v8054 = vld [vmem:[%s8020 + $0x108] sm:$0xff]
        %v8055 = vld [vmem:[%s8020 + $0x110] sm:$0xff]
        %v8056 = vld [vmem:[%s8020 + $0x118] sm:$0xff]
        %v8057 = vld [vmem:[%s8020 + $0x120] sm:$0xff]
        %v8058 = vld [vmem:[%s8020 + $0x128] sm:$0xff]
        %v8059 = vld [vmem:[%s8020 + $0x130] sm:$0xff]
        %v8060 = vld [vmem:[%s8020 + $0x138] sm:$0xff]
        %v8061 = vld [vmem:[%s8020 + $0x140] sm:$0xff]
        %v8062 = vld [vmem:[%s8020 + $0x148] sm:$0xff]
        %v8063 = vld [vmem:[%s8020 + $0x150] sm:$0xff]
        %v8064 = vld [vmem:[%s8020 + $0x158] sm:$0xff]
        %v8065 = vld [vmem:[%s8020 + $0x160] sm:$0xff]
        %v8066 = vld [vmem:[%s8020 + $0x168] sm:$0xff]
        %v8067 = vld [vmem:[%s8020 + $0x170] sm:$0xff]
        %v8068 = vld [vmem:[%s8020 + $0x178] sm:$0xff]
        %v8069 = vld [vmem:[%s8020 + $0x180] sm:$0xff]
        %v8070 = vld [vmem:[%s8020 + $0x188] sm:$0xff]
        %v8071 = vld [vmem:[%s8020 + $0x190] sm:$0xff]
        %v8072 = vld [vmem:[%s8020 + $0x198] sm:$0xff]
        %v8073 = vld [vmem:[%s8020 + $0x1a0] sm:$0xff]
        %v8074 = vld [vmem:[%s8020 + $0x1a8] sm:$0xff]
        %v8075 = vld [vmem:[%s8020 + $0x1b0] sm:$0xff]
        %v8076 = vld [vmem:[%s8020 + $0x1b8] sm:$0xff]
        %v8077 = vld [vmem:[%s8020 + $0x1c0] sm:$0xff]
        %v8078 = vld [vmem:[%s8020 + $0x1c8] sm:$0xff]
        %v8079 = vld [vmem:[%s8020 + $0x1d0] sm:$0xff]
        %v8080 = vld [vmem:[%s8020 + $0x1d8] sm:$0xff]
        %v8081 = vld [vmem:[%s8020 + $0x1e0] sm:$0xff]
        %v8082 = vld [vmem:[%s8020 + $0x1e8] sm:$0xff]
        %v8083 = vld [vmem:[%s8020 + $0x1f0] sm:$0xff]
        %v8084 = vld [vmem:[%s8020 + $0x1f8] sm:$0xff]
        %v8085 = vld [vmem:[%s8020 + $0x200] sm:$0xff]
        %v8086 = vld [vmem:[%s8020 + $0x208] sm:$0xff]
        %v8087 = vld [vmem:[%s8020 + $0x210] sm:$0xff]
        %v8088 = vld [vmem:[%s8020 + $0x218] sm:$0xff]
        %v8089 = vld [vmem:[%s8020 + $0x220] sm:$0xff]
        %v8090 = vld [vmem:[%s8020 + $0x228] sm:$0xff]
        %v8091 = vld [vmem:[%s8020 + $0x230] sm:$0xff]
        %v8092 = vld [vmem:[%s8020 + $0x238] sm:$0xff]
        %v8093 = vld [vmem:[%s8020 + $0x240] sm:$0xff]
        %v8094 = vld [vmem:[%s8020 + $0x248] sm:$0xff]
        %v8095 = vld [vmem:[%s8020 + $0x250] sm:$0xff]
        %v8096 = vld [vmem:[%s8020 + $0x258] sm:$0xff]
        %v8097 = vld [vmem:[%s8020 + $0x260] sm:$0xff]
        %v8098 = vld [vmem:[%s8020 + $0x268] sm:$0xff]
        %v8099 = vld [vmem:[%s8020 + $0x270] sm:$0xff]
        %v8100 = vld [vmem:[%s8020 + $0x278] sm:$0xff]
        %v8101 = vld [vmem:[%s8020 + $0x280] sm:$0xff]
        %v8102 = vld [vmem:[%s8020 + $0x288] sm:$0xff]
        %v8103 = vld [vmem:[%s8020 + $0x290] sm:$0xff]
        %v8104 = vld [vmem:[%s8020 + $0x298] sm:$0xff]
        %v8105 = vld [vmem:[%s8020 + $0x2a0] sm:$0xff]
        %v8106 = vld [vmem:[%s8020 + $0x2a8] sm:$0xff]
        %v8107 = vld [vmem:[%s8020 + $0x2b0] sm:$0xff]
        %v8108 = vld [vmem:[%s8020 + $0x2b8] sm:$0xff]
        %v8109 = vld [vmem:[%s8020 + $0x2c0] sm:$0xff]
        %v8110 = vld [vmem:[%s8020 + $0x2c8] sm:$0xff]
        %v8111 = vld [vmem:[%s8020 + $0x2d0] sm:$0xff]
        %v8112 = vld [vmem:[%s8020 + $0x2d8] sm:$0xff]
        %v8113 = vld [vmem:[%s8020 + $0x2e0] sm:$0xff]
        %v8114 = vld [vmem:[%s8020 + $0x2e8] sm:$0xff]
        %v8115 = vld [vmem:[%s8020 + $0x2f0] sm:$0xff]
        %v8116 = vld [vmem:[%s8020 + $0x2f8] sm:$0xff]
        %v8117 = vld [vmem:[%s8020 + $0x300] sm:$0xff]
        %v8118 = vld [vmem:[%s8020 + $0x308] sm:$0xff]
        %v8119 = vld [vmem:[%s8020 + $0x310] sm:$0xff]
        %v8120 = vld [vmem:[%s8020 + $0x318] sm:$0xff]
        %v8121 = vld [vmem:[%s8020 + $0x320] sm:$0xff]
        %v8122 = vld [vmem:[%s8020 + $0x328] sm:$0xff]
        %v8123 = vld [vmem:[%s8020 + $0x330] sm:$0xff]
        %v8124 = vld [vmem:[%s8020 + $0x338] sm:$0xff]
        %v8125 = vld [vmem:[%s8020 + $0x340] sm:$0xff]
        %v8126 = vld [vmem:[%s8020 + $0x348] sm:$0xff]
        %v8127 = vld [vmem:[%s8020 + $0x350] sm:$0xff]
        %v8128 = vld [vmem:[%s8020 + $0x358] sm:$0xff]
        %v8129 = vld [vmem:[%s8020 + $0x360] sm:$0xff]
        %v8130 = vld [vmem:[%s8020 + $0x368] sm:$0xff]
        %v8131 = vld [vmem:[%s8020 + $0x370] sm:$0xff]
        %v8132 = vld [vmem:[%s8020 + $0x378] sm:$0xff]
        %v8133 = vld [vmem:[%s8020 + $0x380] sm:$0xff]
        %v8134 = vld [vmem:[%s8020 + $0x388] sm:$0xff]
        %v8135 = vld [vmem:[%s8020 + $0x390] sm:$0xff]
        %v8136 = vld [vmem:[%s8020 + $0x398] sm:$0xff]
        %v8137 = vld [vmem:[%s8020 + $0x3a0] sm:$0xff]
        %v8138 = vld [vmem:[%s8020 + $0x3a8] sm:$0xff]
        %v8139 = vld [vmem:[%s8020 + $0x3b0] sm:$0xff]
        %v8140 = vld [vmem:[%s8020 + $0x3b8] sm:$0xff]
        %v8141 = vld [vmem:[%s8020 + $0x3c0] sm:$0xff]
        %v8142 = vld [vmem:[%s8020 + $0x3c8] sm:$0xff]
        %v8143 = vld [vmem:[%s8020 + $0x3d0] sm:$0xff]
        %v8144 = vld [vmem:[%s8020 + $0x3d8] sm:$0xff]
        %v8145 = vld [vmem:[%s8020 + $0x3e0] sm:$0xff]
        %v8146 = vld [vmem:[%s8020 + $0x3e8] sm:$0xff]
        %v8147 = vld [vmem:[%s8020 + $0x3f0] sm:$0xff]
        %v8148 = vld [vmem:[%s8020 + $0x3f8] sm:$0xff]
        %8149 = vmatprep.subr.mxu0 %v8022
        %8150 = vmatpush1.msra.mxu0 %v8021
        %8151 = vmatprep.subr.mxu0 %v8024
        %8152 = vmatpush1.msra.mxu0 %v8023
        %8153 = vmatprep.subr.mxu0 %v8026
        %8154 = vmatpush1.msra.mxu0 %v8025
        %8155 = vmatprep.subr.mxu0 %v8028
        %8156 = vmatpush1.msra.mxu0 %v8027
        %8157 = vmatprep.subr.mxu0 %v8030
        %8158 = vmatpush1.msra.mxu0 %v8029
        %8159 = vmatprep.subr.mxu0 %v8032
        %8160 = vmatpush1.msra.mxu0 %v8031
        %8161 = vmatprep.subr.mxu0 %v8034
        %8162 = vmatpush1.msra.mxu0 %v8033
        %8163 = vmatprep.subr.mxu0 %v8036
        %8164 = vmatpush1.msra.mxu0 %v8035
        %8165 = vmatprep.subr.mxu0 %v8038
        %8166 = vmatpush1.msra.mxu0 %v8037
        %8167 = vmatprep.subr.mxu0 %v8040
        %8168 = vmatpush1.msra.mxu0 %v8039
        %8169 = vmatprep.subr.mxu0 %v8042
        %8170 = vmatpush1.msra.mxu0 %v8041
        %8171 = vmatprep.subr.mxu0 %v8044
        %8172 = vmatpush1.msra.mxu0 %v8043
        %8173 = vmatprep.subr.mxu0 %v8046
        %8174 = vmatpush1.msra.mxu0 %v8045
        %8175 = vmatprep.subr.mxu0 %v8048
        %8176 = vmatpush1.msra.mxu0 %v8047
        %8177 = vmatprep.subr.mxu0 %v8050
        %8178 = vmatpush1.msra.mxu0 %v8049
        %8179 = vmatprep.subr.mxu0 %v8052
        %8180 = vmatpush1.msra.mxu0 %v8051
        %8181 = vmatprep.subr.mxu0 %v8054
        %8182 = vmatpush1.msra.mxu0 %v8053
        %8183 = vmatprep.subr.mxu0 %v8056
        %8184 = vmatpush1.msra.mxu0 %v8055
        %8185 = vmatprep.subr.mxu0 %v8058
        %8186 = vmatpush1.msra.mxu0 %v8057
        %8187 = vmatprep.subr.mxu0 %v8060
        %8188 = vmatpush1.msra.mxu0 %v8059
        %8189 = vmatprep.subr.mxu0 %v8062
        %8190 = vmatpush1.msra.mxu0 %v8061
        %8191 = vmatprep.subr.mxu0 %v8064
        %8192 = vmatpush1.msra.mxu0 %v8063
        %8193 = vmatprep.subr.mxu0 %v8066
        %8194 = vmatpush1.msra.mxu0 %v8065
        %8195 = vmatprep.subr.mxu0 %v8068
        %8196 = vmatpush1.msra.mxu0 %v8067
        %8197 = vmatprep.subr.mxu0 %v8070
        %8198 = vmatpush1.msra.mxu0 %v8069
        %8199 = vmatprep.subr.mxu0 %v8072
        %8200 = vmatpush1.msra.mxu0 %v8071
        %8201 = vmatprep.subr.mxu0 %v8074
        %8202 = vmatpush1.msra.mxu0 %v8073
        %8203 = vmatprep.subr.mxu0 %v8076
        %8204 = vmatpush1.msra.mxu0 %v8075
        %8205 = vmatprep.subr.mxu0 %v8078
        %8206 = vmatpush1.msra.mxu0 %v8077
        %8207 = vmatprep.subr.mxu0 %v8080
        %8208 = vmatpush1.msra.mxu0 %v8079
        %8209 = vmatprep.subr.mxu0 %v8082
        %8210 = vmatpush1.msra.mxu0 %v8081
        %8211 = vmatprep.subr.mxu0 %v8084
        %8212 = vmatpush1.msra.mxu0 %v8083
        %8213 = vmatprep.mubr.f32.mxu0 %v7747
        %8214 = vmatmul.mubr.f32.gmra.mrb[0].mxu0 %v7746
        %v8215 = vpop.f32.mrb[0].mxu0
        %v8216 = vadd.f32 0.0, %v8215
        %v8217 = vpop.f32.mrb[0].mxu0
        %v8218 = vadd.f32 0.0, %v8217
        %8219 = vdwg.mxu0
        %8220 = vmatprep.subr.mxu0 %v8086
        %8221 = vmatpush1.msra.mxu0 %v8085
        %8222 = vmatprep.subr.mxu0 %v8088
        %8223 = vmatpush1.msra.mxu0 %v8087
        %8224 = vmatprep.subr.mxu0 %v8090
        %8225 = vmatpush1.msra.mxu0 %v8089
        %8226 = vmatprep.subr.mxu0 %v8092
        %8227 = vmatpush1.msra.mxu0 %v8091
        %8228 = vmatprep.subr.mxu0 %v8094
        %8229 = vmatpush1.msra.mxu0 %v8093
        %8230 = vmatprep.subr.mxu0 %v8096
        %8231 = vmatpush1.msra.mxu0 %v8095
        %8232 = vmatprep.subr.mxu0 %v8098
        %8233 = vmatpush1.msra.mxu0 %v8097
        %8234 = vmatprep.subr.mxu0 %v8100
        %8235 = vmatpush1.msra.mxu0 %v8099
        %8236 = vmatprep.subr.mxu0 %v8102
        %8237 = vmatpush1.msra.mxu0 %v8101
        %8238 = vmatprep.subr.mxu0 %v8104
        %8239 = vmatpush1.msra.mxu0 %v8103
        %8240 = vmatprep.subr.mxu0 %v8106
        %8241 = vmatpush1.msra.mxu0 %v8105
        %8242 = vmatprep.subr.mxu0 %v8108
        %8243 = vmatpush1.msra.mxu0 %v8107
        %8244 = vmatprep.subr.mxu0 %v8110
        %8245 = vmatpush1.msra.mxu0 %v8109
        %8246 = vmatprep.subr.mxu0 %v8112
        %8247 = vmatpush1.msra.mxu0 %v8111
        %8248 = vmatprep.subr.mxu0 %v8114
        %8249 = vmatpush1.msra.mxu0 %v8113
        %8250 = vmatprep.subr.mxu0 %v8116
        %8251 = vmatpush1.msra.mxu0 %v8115
        %8252 = vmatprep.subr.mxu0 %v8118
        %8253 = vmatpush1.msra.mxu0 %v8117
        %8254 = vmatprep.subr.mxu0 %v8120
        %8255 = vmatpush1.msra.mxu0 %v8119
        %8256 = vmatprep.subr.mxu0 %v8122
        %8257 = vmatpush1.msra.mxu0 %v8121
        %8258 = vmatprep.subr.mxu0 %v8124
        %8259 = vmatpush1.msra.mxu0 %v8123
        %8260 = vmatprep.subr.mxu0 %v8126
        %8261 = vmatpush1.msra.mxu0 %v8125
        %8262 = vmatprep.subr.mxu0 %v8128
        %8263 = vmatpush1.msra.mxu0 %v8127
        %8264 = vmatprep.subr.mxu0 %v8130
        %8265 = vmatpush1.msra.mxu0 %v8129
        %8266 = vmatprep.subr.mxu0 %v8132
        %8267 = vmatpush1.msra.mxu0 %v8131
        %8268 = vmatprep.subr.mxu0 %v8134
        %8269 = vmatpush1.msra.mxu0 %v8133
        %8270 = vmatprep.subr.mxu0 %v8136
        %8271 = vmatpush1.msra.mxu0 %v8135
        %8272 = vmatprep.subr.mxu0 %v8138
        %8273 = vmatpush1.msra.mxu0 %v8137
        %8274 = vmatprep.subr.mxu0 %v8140
        %8275 = vmatpush1.msra.mxu0 %v8139
        %8276 = vmatprep.subr.mxu0 %v8142
        %8277 = vmatpush1.msra.mxu0 %v8141
        %8278 = vmatprep.subr.mxu0 %v8144
        %8279 = vmatpush1.msra.mxu0 %v8143
        %8280 = vmatprep.subr.mxu0 %v8146
        %8281 = vmatpush1.msra.mxu0 %v8145
        %8282 = vmatprep.subr.mxu0 %v8148
        %8283 = vmatpush1.msra.mxu0 %v8147
        %8284 = vmatprep.mubr.f32.mxu0 %v7749
        %8285 = vmatmul.mubr.f32.gmra.mrb[0].mxu0 %v7748
        %v8286 = vpop.f32.mrb[0].mxu0
        %v8287 = vadd.f32 %v8216, %v8286
        %v8288 = vpop.f32.mrb[0].mxu0
        %v8289 = vadd.f32 %v8218, %v8288
        %8290 = vdwg.mxu0
        %v8291 = vmax.f32 %v8016, %v8287
        %v8292 = vmax.f32 %v8018, %v8289
        %v8293 = vld [vmem:[#allocation13] sm:$0xf]
        %vm8294 = vcmask 64512
        %v8296 = vsel %vm8294, %v8293, 0
        %8298 = vmatprep.subr.mxu0 %v8292
        %8299 = vmatpush1.msra.mxu0 %v8291
        %8300 = vmatprep.subr.mxu0 0.0
        %8301 = vmatpush1.msra.mxu0 0.0
        %8302 = vmatprep.subr.mxu0 0.0
        %8303 = vmatpush1.msra.mxu0 0.0
        %8304 = vmatprep.subr.mxu0 0.0
        %8305 = vmatpush1.msra.mxu0 0.0
        %8306 = vmatprep.subr.mxu0 0.0
        %8307 = vmatpush1.msra.mxu0 0.0
        %8308 = vmatprep.subr.mxu0 0.0
        %8309 = vmatpush1.msra.mxu0 0.0
        %8310 = vmatprep.subr.mxu0 0.0
        %8311 = vmatpush1.msra.mxu0 0.0
        %8312 = vmatprep.subr.mxu0 0.0
        %8313 = vmatpush1.msra.mxu0 0.0
        %8314 = vmatprep.subr.mxu0 0.0
        %8315 = vmatpush1.msra.mxu0 0.0
        %8316 = vmatprep.subr.mxu0 0.0
        %8317 = vmatpush1.msra.mxu0 0.0
        %8318 = vmatprep.subr.mxu0 0.0
        %8319 = vmatpush1.msra.mxu0 0.0
        %8320 = vmatprep.subr.mxu0 0.0
        %8321 = vmatpush1.msra.mxu0 0.0
        %8322 = vmatprep.subr.mxu0 0.0
        %8323 = vmatpush1.msra.mxu0 0.0
        %8324 = vmatprep.subr.mxu0 0.0
        %8325 = vmatpush1.msra.mxu0 0.0
        %8326 = vmatprep.subr.mxu0 0.0
        %8327 = vmatpush1.msra.mxu0 0.0
        %8328 = vmatprep.subr.mxu0 0.0
        %8329 = vmatpush1.msra.mxu0 0.0
        %8330 = vmatprep.subr.mxu0 0.0
        %8331 = vmatpush1.msra.mxu0 0.0
        %8332 = vmatprep.subr.mxu0 0.0
        %8333 = vmatpush1.msra.mxu0 0.0
        %8334 = vmatprep.subr.mxu0 0.0
        %8335 = vmatpush1.msra.mxu0 0.0
        %8336 = vmatprep.subr.mxu0 0.0
        %8337 = vmatpush1.msra.mxu0 0.0
        %8338 = vmatprep.subr.mxu0 0.0
        %8339 = vmatpush1.msra.mxu0 0.0
        %8340 = vmatprep.subr.mxu0 0.0
        %8341 = vmatpush1.msra.mxu0 0.0
        %8342 = vmatprep.subr.mxu0 0.0
        %8343 = vmatpush1.msra.mxu0 0.0
        %8344 = vmatprep.subr.mxu0 0.0
        %8345 = vmatpush1.msra.mxu0 0.0
        %8346 = vmatprep.subr.mxu0 0.0
        %8347 = vmatpush1.msra.mxu0 0.0
        %8348 = vmatprep.subr.mxu0 0.0
        %8349 = vmatpush1.msra.mxu0 0.0
        %8350 = vmatprep.subr.mxu0 0.0
        %8351 = vmatpush1.msra.mxu0 0.0
        %8352 = vmatprep.subr.mxu0 0.0
        %8353 = vmatpush1.msra.mxu0 0.0
        %8354 = vmatprep.subr.mxu0 0.0
        %8355 = vmatpush1.msra.mxu0 0.0
        %8356 = vmatprep.subr.mxu0 0.0
        %8357 = vmatpush1.msra.mxu0 0.0
        %8358 = vmatprep.subr.mxu0 0.0
        %8359 = vmatpush1.msra.mxu0 0.0
        %8360 = vmatprep.subr.mxu0 0.0
        %8361 = vmatpush1.msra.mxu0 0.0
        %8362 = vmatprep.mubr.f32.mxu0 0.0
        %8363 = vmatmul.mubr.f32.gmra.mrb[0].mxu0 %v8296
        %v8364 = vpop.f32.mrb[0].mxu0
        %v8365 = vadd.f32 0.0, %v8364
        %v8366 = vpop.f32.mrb[0].mxu0
        %v8367 = vadd.f32 0.0, %v8366
        %8368 = vdwg.mxu0
        %s8369 = scalar_lea.vmem [#allocation13], 4
        %v8370 = vld [vmem:[%s8369] sm:$0xf]
        %v8372 = vsel %vm8294, %v8370, 0
        %8374 = vmatprep.subr.mxu0 %v8292
        %8375 = vmatpush1.msra.mxu0 %v8291
        %8376 = vmatprep.subr.mxu0 0.0
        %8377 = vmatpush1.msra.mxu0 0.0
        %8378 = vmatprep.subr.mxu0 0.0
        %8379 = vmatpush1.msra.mxu0 0.0
        %8380 = vmatprep.subr.mxu0 0.0
        %8381 = vmatpush1.msra.mxu0 0.0
        %8382 = vmatprep.subr.mxu0 0.0
        %8383 = vmatpush1.msra.mxu0 0.0
        %8384 = vmatprep.subr.mxu0 0.0
        %8385 = vmatpush1.msra.mxu0 0.0
        %8386 = vmatprep.subr.mxu0 0.0
        %8387 = vmatpush1.msra.mxu0 0.0
        %8388 = vmatprep.subr.mxu0 0.0
        %8389 = vmatpush1.msra.mxu0 0.0
        %8390 = vmatprep.subr.mxu0 0.0
        %8391 = vmatpush1.msra.mxu0 0.0
        %8392 = vmatprep.subr.mxu0 0.0
        %8393 = vmatpush1.msra.mxu0 0.0
        %8394 = vmatprep.subr.mxu0 0.0
        %8395 = vmatpush1.msra.mxu0 0.0
        %8396 = vmatprep.subr.mxu0 0.0
        %8397 = vmatpush1.msra.mxu0 0.0
        %8398 = vmatprep.subr.mxu0 0.0
        %8399 = vmatpush1.msra.mxu0 0.0
        %8400 = vmatprep.subr.mxu0 0.0
        %8401 = vmatpush1.msra.mxu0 0.0
        %8402 = vmatprep.subr.mxu0 0.0
        %8403 = vmatpush1.msra.mxu0 0.0
        %8404 = vmatprep.subr.mxu0 0.0
        %8405 = vmatpush1.msra.mxu0 0.0
        %8406 = vmatprep.subr.mxu0 0.0
        %8407 = vmatpush1.msra.mxu0 0.0
        %8408 = vmatprep.subr.mxu0 0.0
        %8409 = vmatpush1.msra.mxu0 0.0
        %8410 = vmatprep.subr.mxu0 0.0
        %8411 = vmatpush1.msra.mxu0 0.0
        %8412 = vmatprep.subr.mxu0 0.0
        %8413 = vmatpush1.msra.mxu0 0.0
        %8414 = vmatprep.subr.mxu0 0.0
        %8415 = vmatpush1.msra.mxu0 0.0
        %8416 = vmatprep.subr.mxu0 0.0
        %8417 = vmatpush1.msra.mxu0 0.0
        %8418 = vmatprep.subr.mxu0 0.0
        %8419 = vmatpush1.msra.mxu0 0.0
        %8420 = vmatprep.subr.mxu0 0.0
        %8421 = vmatpush1.msra.mxu0 0.0
        %8422 = vmatprep.subr.mxu0 0.0
        %8423 = vmatpush1.msra.mxu0 0.0
        %8424 = vmatprep.subr.mxu0 0.0
        %8425 = vmatpush1.msra.mxu0 0.0
        %8426 = vmatprep.subr.mxu0 0.0
        %8427 = vmatpush1.msra.mxu0 0.0
        %8428 = vmatprep.subr.mxu0 0.0
        %8429 = vmatpush1.msra.mxu0 0.0
        %8430 = vmatprep.subr.mxu0 0.0
        %8431 = vmatpush1.msra.mxu0 0.0
        %8432 = vmatprep.subr.mxu0 0.0
        %8433 = vmatpush1.msra.mxu0 0.0
        %8434 = vmatprep.subr.mxu0 0.0
        %8435 = vmatpush1.msra.mxu0 0.0
        %8436 = vmatprep.subr.mxu0 0.0
        %8437 = vmatpush1.msra.mxu0 0.0
        %8438 = vmatprep.mubr.f32.mxu0 0.0
        %8439 = vmatmul.mubr.f32.gmra.mrb[0].mxu0 %v8372
        %v8440 = vpop.f32.mrb[0].mxu0
        %v8441 = vadd.f32 0.0, %v8440
        %v8442 = vpop.f32.mrb[0].mxu0
        %v8443 = vadd.f32 0.0, %v8442
        %8444 = vdwg.mxu0
        %v8445 = vmax.f32 %v8365, %v8441
        %v8446 = vmax.f32 %v8367, %v8443
        %v8447 = vpack.c.bf16 %v8445, %v8445
        %v8448 = vpack.c.bf16 %v8446, %v8446
        %v8449 = vld [vmem:[#allocation14] sm:$0xf]
        %v8450 = vld [vmem:[#allocation14 + $0x4] sm:$0xf]
        %v8451 = vld [vmem:[#allocation14 + $0x8] sm:$0xf]
        %v8452 = vld [vmem:[#allocation14 + $0xc] sm:$0xf]
        %v8453 = vld [vmem:[#allocation14 + $0x10] sm:$0xf]
        %v8454 = vld [vmem:[#allocation14 + $0x14] sm:$0xf]
        %v8455 = vld [vmem:[#allocation14 + $0x18] sm:$0xf]
        %v8456 = vld [vmem:[#allocation14 + $0x1c] sm:$0xf]
        %v8457 = vld [vmem:[#allocation14 + $0x20] sm:$0xf]
        %v8458 = vld [vmem:[#allocation14 + $0x24] sm:$0xf]
        %v8459 = vld [vmem:[#allocation14 + $0x28] sm:$0xf]
        %v8460 = vld [vmem:[#allocation14 + $0x2c] sm:$0xf]
        %v8461 = vld [vmem:[#allocation14 + $0x30] sm:$0xf]
        %v8462 = vld [vmem:[#allocation14 + $0x34] sm:$0xf]
        %v8463 = vld [vmem:[#allocation14 + $0x38] sm:$0xf]
        %v8464 = vld [vmem:[#allocation14 + $0x3c] sm:$0xf]
        %v8465 = vld [vmem:[#allocation14 + $0x40] sm:$0xf]
        %v8466 = vld [vmem:[#allocation14 + $0x44] sm:$0xf]
        %v8467 = vld [vmem:[#allocation14 + $0x48] sm:$0xf]
        %v8468 = vld [vmem:[#allocation14 + $0x4c] sm:$0xf]
        %v8469 = vld [vmem:[#allocation14 + $0x50] sm:$0xf]
        %v8470 = vld [vmem:[#allocation14 + $0x54] sm:$0xf]
        %v8471 = vld [vmem:[#allocation14 + $0x58] sm:$0xf]
        %v8472 = vld [vmem:[#allocation14 + $0x5c] sm:$0xf]
        %v8473 = vld [vmem:[#allocation14 + $0x60] sm:$0xf]
        %v8474 = vld [vmem:[#allocation14 + $0x64] sm:$0xf]
        %v8475 = vld [vmem:[#allocation14 + $0x68] sm:$0xf]
        %v8476 = vld [vmem:[#allocation14 + $0x6c] sm:$0xf]
        %v8477 = vld [vmem:[#allocation14 + $0x70] sm:$0xf]
        %v8478 = vld [vmem:[#allocation14 + $0x74] sm:$0xf]
        %v8479 = vld [vmem:[#allocation14 + $0x78] sm:$0xf]
        %v8480 = vld [vmem:[#allocation14 + $0x7c] sm:$0xf]
        %s8481 = scalar_lea.vmem [#allocation14], 128
        %v8482 = vld [vmem:[%s8481] sm:$0xf]
        %v8483 = vld [vmem:[%s8481 + $0x4] sm:$0xf]
        %v8484 = vld [vmem:[%s8481 + $0x8] sm:$0xf]
        %v8485 = vld [vmem:[%s8481 + $0xc] sm:$0xf]
        %v8486 = vld [vmem:[%s8481 + $0x10] sm:$0xf]
        %v8487 = vld [vmem:[%s8481 + $0x14] sm:$0xf]
        %v8488 = vld [vmem:[%s8481 + $0x18] sm:$0xf]
        %v8489 = vld [vmem:[%s8481 + $0x1c] sm:$0xf]
        %v8490 = vld [vmem:[%s8481 + $0x20] sm:$0xf]
        %v8491 = vld [vmem:[%s8481 + $0x24] sm:$0xf]
        %v8492 = vld [vmem:[%s8481 + $0x28] sm:$0xf]
        %v8493 = vld [vmem:[%s8481 + $0x2c] sm:$0xf]
        %v8494 = vld [vmem:[%s8481 + $0x30] sm:$0xf]
        %v8495 = vld [vmem:[%s8481 + $0x34] sm:$0xf]
        %v8496 = vld [vmem:[%s8481 + $0x38] sm:$0xf]
        %v8497 = vld [vmem:[%s8481 + $0x3c] sm:$0xf]
        %v8498 = vld [vmem:[%s8481 + $0x40] sm:$0xf]
        %v8499 = vld [vmem:[%s8481 + $0x44] sm:$0xf]
        %v8500 = vld [vmem:[%s8481 + $0x48] sm:$0xf]
        %v8501 = vld [vmem:[%s8481 + $0x4c] sm:$0xf]
        %v8502 = vld [vmem:[%s8481 + $0x50] sm:$0xf]
        %v8503 = vld [vmem:[%s8481 + $0x54] sm:$0xf]
        %v8504 = vld [vmem:[%s8481 + $0x58] sm:$0xf]
        %v8505 = vld [vmem:[%s8481 + $0x5c] sm:$0xf]
        %v8506 = vld [vmem:[%s8481 + $0x60] sm:$0xf]
        %v8507 = vld [vmem:[%s8481 + $0x64] sm:$0xf]
        %v8508 = vld [vmem:[%s8481 + $0x68] sm:$0xf]
        %v8509 = vld [vmem:[%s8481 + $0x6c] sm:$0xf]
        %v8510 = vld [vmem:[%s8481 + $0x70] sm:$0xf]
        %v8511 = vld [vmem:[%s8481 + $0x74] sm:$0xf]
        %v8512 = vld [vmem:[%s8481 + $0x78] sm:$0xf]
        %v8513 = vld [vmem:[%s8481 + $0x7c] sm:$0xf]
        %v8515 = vshrl.u32 %v8447, 16
        %v8518 = vshrl.u32 %v8448, 16
        %v8554 = vunpack.c.l.b16 %v8482
        %v8555 = vunpack.c.l.b16 %v8483
        %v8556 = vunpack.c.l.b16 %v8484
        %v8557 = vunpack.c.l.b16 %v8485
        %v8558 = vunpack.c.l.b16 %v8486
        %v8559 = vunpack.c.l.b16 %v8487
        %v8560 = vunpack.c.l.b16 %v8488
        %v8561 = vunpack.c.l.b16 %v8489
        %v8562 = vunpack.c.l.b16 %v8490
        %v8563 = vunpack.c.l.b16 %v8491
        %v8564 = vunpack.c.l.b16 %v8492
        %v8565 = vunpack.c.l.b16 %v8493
        %v8566 = vunpack.c.l.b16 %v8494
        %v8567 = vunpack.c.l.b16 %v8495
        %v8568 = vunpack.c.l.b16 %v8496
        %v8569 = vunpack.c.l.b16 %v8497
        %v8570 = vunpack.c.l.b16 %v8498
        %v8571 = vunpack.c.l.b16 %v8499
        %v8572 = vunpack.c.l.b16 %v8500
        %v8573 = vunpack.c.l.b16 %v8501
        %v8574 = vunpack.c.l.b16 %v8502
        %v8575 = vunpack.c.l.b16 %v8503
        %v8576 = vunpack.c.l.b16 %v8504
        %v8577 = vunpack.c.l.b16 %v8505
        %v8578 = vunpack.c.l.b16 %v8506
        %v8579 = vunpack.c.l.b16 %v8507
        %v8580 = vunpack.c.l.b16 %v8508
        %v8581 = vunpack.c.l.b16 %v8509
        %v8582 = vunpack.c.l.b16 %v8510
        %v8583 = vunpack.c.l.b16 %v8511
        %v8584 = vunpack.c.l.b16 %v8512
        %v8585 = vunpack.c.l.b16 %v8513
        %v8586 = vpack.c.b16 %v8555, %v8554
        %v8587 = vpack.c.b16 %v8557, %v8556
        %v8588 = vpack.c.b16 %v8559, %v8558
        %v8589 = vpack.c.b16 %v8561, %v8560
        %v8590 = vpack.c.b16 %v8563, %v8562
        %v8591 = vpack.c.b16 %v8565, %v8564
        %v8592 = vpack.c.b16 %v8567, %v8566
        %v8593 = vpack.c.b16 %v8569, %v8568
        %v8594 = vpack.c.b16 %v8571, %v8570
        %v8595 = vpack.c.b16 %v8573, %v8572
        %v8596 = vpack.c.b16 %v8575, %v8574
        %v8597 = vpack.c.b16 %v8577, %v8576
        %v8598 = vpack.c.b16 %v8579, %v8578
        %v8599 = vpack.c.b16 %v8581, %v8580
        %v8600 = vpack.c.b16 %v8583, %v8582
        %v8601 = vpack.c.b16 %v8585, %v8584
        %8618 = vmatprep.subr.bf16.mxu0 0
        %8619 = vmatpush1.bf16.msra.mxu0 %v8586
        %8620 = vmatprep.subr.bf16.mxu0 0
        %8621 = vmatpush1.bf16.msra.mxu0 %v8587
        %8622 = vmatprep.subr.bf16.mxu0 0
        %8623 = vmatpush1.bf16.msra.mxu0 %v8588
        %8624 = vmatprep.subr.bf16.mxu0 0
        %8625 = vmatpush1.bf16.msra.mxu0 %v8589
        %8626 = vmatprep.subr.bf16.mxu0 0
        %8627 = vmatpush1.bf16.msra.mxu0 %v8590
        %8628 = vmatprep.subr.bf16.mxu0 0
        %8629 = vmatpush1.bf16.msra.mxu0 %v8591
        %8630 = vmatprep.subr.bf16.mxu0 0
        %8631 = vmatpush1.bf16.msra.mxu0 %v8592
        %8632 = vmatprep.subr.bf16.mxu0 0
        %8633 = vmatpush1.bf16.msra.mxu0 %v8593
        %8634 = vmatprep.subr.bf16.mxu0 0
        %8635 = vmatpush1.bf16.msra.mxu0 %v8594
        %8636 = vmatprep.subr.bf16.mxu0 0
        %8637 = vmatpush1.bf16.msra.mxu0 %v8595
        %8638 = vmatprep.subr.bf16.mxu0 0
        %8639 = vmatpush1.bf16.msra.mxu0 %v8596
        %8640 = vmatprep.subr.bf16.mxu0 0
        %8641 = vmatpush1.bf16.msra.mxu0 %v8597
        %8642 = vmatprep.subr.bf16.mxu0 0
        %8643 = vmatpush1.bf16.msra.mxu0 %v8598
        %8644 = vmatprep.subr.bf16.mxu0 0
        %8645 = vmatpush1.bf16.msra.mxu0 %v8599
        %8646 = vmatprep.subr.bf16.mxu0 0
        %8647 = vmatpush1.bf16.msra.mxu0 %v8600
        %8648 = vmatprep.subr.bf16.mxu0 0
        %8649 = vmatpush1.bf16.msra.mxu0 %v8601
        %8650 = vmatprep.mubr.bf16.mxu0 %v8518
        %8651 = vmatmul.mubr.bf16.gmra.mrb[0].mxu0 %v8515
        %v8652 = vpop.f32.mrb[0].mxu0
        %v8653 = vadd.f32 0.0, %v8652
        %v8654 = vpop.f32.mrb[0].mxu0
        %v8655 = vpop.f32.mrb[0].mxu0
        %v8656 = vpop.f32.mrb[0].mxu0
        %8657 = vdwg.mxu0
        %v8690 = vunpack.c.l.b16 %v8449
        %v8691 = vunpack.c.l.b16 %v8450
        %v8692 = vunpack.c.l.b16 %v8451
        %v8693 = vunpack.c.l.b16 %v8452
        %v8694 = vunpack.c.l.b16 %v8453
        %v8695 = vunpack.c.l.b16 %v8454
        %v8696 = vunpack.c.l.b16 %v8455
        %v8697 = vunpack.c.l.b16 %v8456
        %v8698 = vunpack.c.l.b16 %v8457
        %v8699 = vunpack.c.l.b16 %v8458
        %v8700 = vunpack.c.l.b16 %v8459
        %v8701 = vunpack.c.l.b16 %v8460
        %v8702 = vunpack.c.l.b16 %v8461
        %v8703 = vunpack.c.l.b16 %v8462
        %v8704 = vunpack.c.l.b16 %v8463
        %v8705 = vunpack.c.l.b16 %v8464
        %v8706 = vunpack.c.l.b16 %v8465
        %v8707 = vunpack.c.l.b16 %v8466
        %v8708 = vunpack.c.l.b16 %v8467
        %v8709 = vunpack.c.l.b16 %v8468
        %v8710 = vunpack.c.l.b16 %v8469
        %v8711 = vunpack.c.l.b16 %v8470
        %v8712 = vunpack.c.l.b16 %v8471
        %v8713 = vunpack.c.l.b16 %v8472
        %v8714 = vunpack.c.l.b16 %v8473
        %v8715 = vunpack.c.l.b16 %v8474
        %v8716 = vunpack.c.l.b16 %v8475
        %v8717 = vunpack.c.l.b16 %v8476
        %v8718 = vunpack.c.l.b16 %v8477
        %v8719 = vunpack.c.l.b16 %v8478
        %v8720 = vunpack.c.l.b16 %v8479
        %v8721 = vunpack.c.l.b16 %v8480
        %v8722 = vpack.c.b16 %v8691, %v8690
        %v8723 = vpack.c.b16 %v8693, %v8692
        %v8724 = vpack.c.b16 %v8695, %v8694
        %v8725 = vpack.c.b16 %v8697, %v8696
        %v8726 = vpack.c.b16 %v8699, %v8698
        %v8727 = vpack.c.b16 %v8701, %v8700
        %v8728 = vpack.c.b16 %v8703, %v8702
        %v8729 = vpack.c.b16 %v8705, %v8704
        %v8730 = vpack.c.b16 %v8707, %v8706
        %v8731 = vpack.c.b16 %v8709, %v8708
        %v8732 = vpack.c.b16 %v8711, %v8710
        %v8733 = vpack.c.b16 %v8713, %v8712
        %v8734 = vpack.c.b16 %v8715, %v8714
        %v8735 = vpack.c.b16 %v8717, %v8716
        %v8736 = vpack.c.b16 %v8719, %v8718
        %v8737 = vpack.c.b16 %v8721, %v8720
        %8754 = vmatprep.subr.bf16.mxu0 0
        %8755 = vmatpush1.bf16.msra.mxu0 %v8722
        %8756 = vmatprep.subr.bf16.mxu0 0
        %8757 = vmatpush1.bf16.msra.mxu0 %v8723
        %8758 = vmatprep.subr.bf16.mxu0 0
        %8759 = vmatpush1.bf16.msra.mxu0 %v8724
        %8760 = vmatprep.subr.bf16.mxu0 0
        %8761 = vmatpush1.bf16.msra.mxu0 %v8725
        %8762 = vmatprep.subr.bf16.mxu0 0
        %8763 = vmatpush1.bf16.msra.mxu0 %v8726
        %8764 = vmatprep.subr.bf16.mxu0 0
        %8765 = vmatpush1.bf16.msra.mxu0 %v8727
        %8766 = vmatprep.subr.bf16.mxu0 0
        %8767 = vmatpush1.bf16.msra.mxu0 %v8728
        %8768 = vmatprep.subr.bf16.mxu0 0
        %8769 = vmatpush1.bf16.msra.mxu0 %v8729
        %8770 = vmatprep.subr.bf16.mxu0 0
        %8771 = vmatpush1.bf16.msra.mxu0 %v8730
        %8772 = vmatprep.subr.bf16.mxu0 0
        %8773 = vmatpush1.bf16.msra.mxu0 %v8731
        %8774 = vmatprep.subr.bf16.mxu0 0
        %8775 = vmatpush1.bf16.msra.mxu0 %v8732
        %8776 = vmatprep.subr.bf16.mxu0 0
        %8777 = vmatpush1.bf16.msra.mxu0 %v8733
        %8778 = vmatprep.subr.bf16.mxu0 0
        %8779 = vmatpush1.bf16.msra.mxu0 %v8734
        %8780 = vmatprep.subr.bf16.mxu0 0
        %8781 = vmatpush1.bf16.msra.mxu0 %v8735
        %8782 = vmatprep.subr.bf16.mxu0 0
        %8783 = vmatpush1.bf16.msra.mxu0 %v8736
        %8784 = vmatprep.subr.bf16.mxu0 0
        %8785 = vmatpush1.bf16.msra.mxu0 %v8737
        %8786 = vmatprep.mubr.bf16.mxu0 %v8448
        %8787 = vmatmul.mubr.bf16.gmra.mrb[0].mxu0 %v8447
        %v8788 = vpop.f32.mrb[0].mxu0
        %v8789 = vadd.f32 %v8653, %v8788
        %v8790 = vpop.f32.mrb[0].mxu0
        %v8791 = vpop.f32.mrb[0].mxu0
        %v8792 = vpop.f32.mrb[0].mxu0
        %8793 = vdwg.mxu0
        %s8794 = scalar_lea.vmem [#allocation14], 256
        %v8795 = vld [vmem:[%s8794] sm:$0xf]
        %v8796 = vld [vmem:[%s8794 + $0x4] sm:$0xf]
        %v8797 = vld [vmem:[%s8794 + $0x8] sm:$0xf]
        %v8798 = vld [vmem:[%s8794 + $0xc] sm:$0xf]
        %v8799 = vld [vmem:[%s8794 + $0x10] sm:$0xf]
        %v8800 = vld [vmem:[%s8794 + $0x14] sm:$0xf]
        %v8801 = vld [vmem:[%s8794 + $0x18] sm:$0xf]
        %v8802 = vld [vmem:[%s8794 + $0x1c] sm:$0xf]
        %v8803 = vld [vmem:[%s8794 + $0x20] sm:$0xf]
        %v8804 = vld [vmem:[%s8794 + $0x24] sm:$0xf]
        %v8805 = vld [vmem:[%s8794 + $0x28] sm:$0xf]
        %v8806 = vld [vmem:[%s8794 + $0x2c] sm:$0xf]
        %v8807 = vld [vmem:[%s8794 + $0x30] sm:$0xf]
        %v8808 = vld [vmem:[%s8794 + $0x34] sm:$0xf]
        %v8809 = vld [vmem:[%s8794 + $0x38] sm:$0xf]
        %v8810 = vld [vmem:[%s8794 + $0x3c] sm:$0xf]
        %v8811 = vld [vmem:[%s8794 + $0x40] sm:$0xf]
        %v8812 = vld [vmem:[%s8794 + $0x44] sm:$0xf]
        %v8813 = vld [vmem:[%s8794 + $0x48] sm:$0xf]
        %v8814 = vld [vmem:[%s8794 + $0x4c] sm:$0xf]
        %v8815 = vld [vmem:[%s8794 + $0x50] sm:$0xf]
        %v8816 = vld [vmem:[%s8794 + $0x54] sm:$0xf]
        %v8817 = vld [vmem:[%s8794 + $0x58] sm:$0xf]
        %v8818 = vld [vmem:[%s8794 + $0x5c] sm:$0xf]
        %v8819 = vld [vmem:[%s8794 + $0x60] sm:$0xf]
        %v8820 = vld [vmem:[%s8794 + $0x64] sm:$0xf]
        %v8821 = vld [vmem:[%s8794 + $0x68] sm:$0xf]
        %v8822 = vld [vmem:[%s8794 + $0x6c] sm:$0xf]
        %v8823 = vld [vmem:[%s8794 + $0x70] sm:$0xf]
        %v8824 = vld [vmem:[%s8794 + $0x74] sm:$0xf]
        %v8825 = vld [vmem:[%s8794 + $0x78] sm:$0xf]
        %v8826 = vld [vmem:[%s8794 + $0x7c] sm:$0xf]
        %v8829 = vrot.slane %v8447, 1
        %v8830 = vrot.slane %v8448, 1
        %v8865 = vunpack.c.l.b16 %v8795
        %v8866 = vunpack.c.l.b16 %v8796
        %v8867 = vunpack.c.l.b16 %v8797
        %v8868 = vunpack.c.l.b16 %v8798
        %v8869 = vunpack.c.l.b16 %v8799
        %v8870 = vunpack.c.l.b16 %v8800
        %v8871 = vunpack.c.l.b16 %v8801
        %v8872 = vunpack.c.l.b16 %v8802
        %v8873 = vunpack.c.l.b16 %v8803
        %v8874 = vunpack.c.l.b16 %v8804
        %v8875 = vunpack.c.l.b16 %v8805
        %v8876 = vunpack.c.l.b16 %v8806
        %v8877 = vunpack.c.l.b16 %v8807
        %v8878 = vunpack.c.l.b16 %v8808
        %v8879 = vunpack.c.l.b16 %v8809
        %v8880 = vunpack.c.l.b16 %v8810
        %v8881 = vunpack.c.l.b16 %v8811
        %v8882 = vunpack.c.l.b16 %v8812
        %v8883 = vunpack.c.l.b16 %v8813
        %v8884 = vunpack.c.l.b16 %v8814
        %v8885 = vunpack.c.l.b16 %v8815
        %v8886 = vunpack.c.l.b16 %v8816
        %v8887 = vunpack.c.l.b16 %v8817
        %v8888 = vunpack.c.l.b16 %v8818
        %v8889 = vunpack.c.l.b16 %v8819
        %v8890 = vunpack.c.l.b16 %v8820
        %v8891 = vunpack.c.l.b16 %v8821
        %v8892 = vunpack.c.l.b16 %v8822
        %v8893 = vunpack.c.l.b16 %v8823
        %v8894 = vunpack.c.l.b16 %v8824
        %v8895 = vunpack.c.l.b16 %v8825
        %v8896 = vunpack.c.l.b16 %v8826
        %v8897 = vpack.c.b16 %v8866, %v8865
        %v8898 = vpack.c.b16 %v8868, %v8867
        %v8899 = vpack.c.b16 %v8870, %v8869
        %v8900 = vpack.c.b16 %v8872, %v8871
        %v8901 = vpack.c.b16 %v8874, %v8873
        %v8902 = vpack.c.b16 %v8876, %v8875
        %v8903 = vpack.c.b16 %v8878, %v8877
        %v8904 = vpack.c.b16 %v8880, %v8879
        %v8905 = vpack.c.b16 %v8882, %v8881
        %v8906 = vpack.c.b16 %v8884, %v8883
        %v8907 = vpack.c.b16 %v8886, %v8885
        %v8908 = vpack.c.b16 %v8888, %v8887
        %v8909 = vpack.c.b16 %v8890, %v8889
        %v8910 = vpack.c.b16 %v8892, %v8891
        %v8911 = vpack.c.b16 %v8894, %v8893
        %v8912 = vpack.c.b16 %v8896, %v8895
        %8929 = vmatprep.subr.bf16.mxu0 0
        %8930 = vmatpush1.bf16.msra.mxu0 %v8897
        %8931 = vmatprep.subr.bf16.mxu0 0
        %8932 = vmatpush1.bf16.msra.mxu0 %v8898
        %8933 = vmatprep.subr.bf16.mxu0 0
        %8934 = vmatpush1.bf16.msra.mxu0 %v8899
        %8935 = vmatprep.subr.bf16.mxu0 0
        %8936 = vmatpush1.bf16.msra.mxu0 %v8900
        %8937 = vmatprep.subr.bf16.mxu0 0
        %8938 = vmatpush1.bf16.msra.mxu0 %v8901
        %8939 = vmatprep.subr.bf16.mxu0 0
        %8940 = vmatpush1.bf16.msra.mxu0 %v8902
        %8941 = vmatprep.subr.bf16.mxu0 0
        %8942 = vmatpush1.bf16.msra.mxu0 %v8903
        %8943 = vmatprep.subr.bf16.mxu0 0
        %8944 = vmatpush1.bf16.msra.mxu0 %v8904
        %8945 = vmatprep.subr.bf16.mxu0 0
        %8946 = vmatpush1.bf16.msra.mxu0 %v8905
        %8947 = vmatprep.subr.bf16.mxu0 0
        %8948 = vmatpush1.bf16.msra.mxu0 %v8906
        %8949 = vmatprep.subr.bf16.mxu0 0
        %8950 = vmatpush1.bf16.msra.mxu0 %v8907
        %8951 = vmatprep.subr.bf16.mxu0 0
        %8952 = vmatpush1.bf16.msra.mxu0 %v8908
        %8953 = vmatprep.subr.bf16.mxu0 0
        %8954 = vmatpush1.bf16.msra.mxu0 %v8909
        %8955 = vmatprep.subr.bf16.mxu0 0
        %8956 = vmatpush1.bf16.msra.mxu0 %v8910
        %8957 = vmatprep.subr.bf16.mxu0 0
        %8958 = vmatpush1.bf16.msra.mxu0 %v8911
        %8959 = vmatprep.subr.bf16.mxu0 0
        %8960 = vmatpush1.bf16.msra.mxu0 %v8912
        %8961 = vmatprep.mubr.bf16.mxu0 %v8830
        %8962 = vmatmul.mubr.bf16.gmra.mrb[0].mxu0 %v8829
        %v8963 = vpop.f32.mrb[0].mxu0
        %v8964 = vadd.f32 0.0, %v8963
        %v8965 = vpop.f32.mrb[0].mxu0
        %v8966 = vpop.f32.mrb[0].mxu0
        %v8967 = vpop.f32.mrb[0].mxu0
        %8968 = vdwg.mxu0
        %v8969 = vadd.f32 %v8789, %v8964
        %s8970 = scalar_lea.vmem [#allocation14], 384
        %v8971 = vld [vmem:[%s8970] sm:$0xf]
        %v8972 = vld [vmem:[%s8970 + $0x4] sm:$0xf]
        %v8973 = vld [vmem:[%s8970 + $0x8] sm:$0xf]
        %v8974 = vld [vmem:[%s8970 + $0xc] sm:$0xf]
        %v8975 = vld [vmem:[%s8970 + $0x10] sm:$0xf]
        %v8976 = vld [vmem:[%s8970 + $0x14] sm:$0xf]
        %v8977 = vld [vmem:[%s8970 + $0x18] sm:$0xf]
        %v8978 = vld [vmem:[%s8970 + $0x1c] sm:$0xf]
        %v8979 = vld [vmem:[%s8970 + $0x20] sm:$0xf]
        %v8980 = vld [vmem:[%s8970 + $0x24] sm:$0xf]
        %v8981 = vld [vmem:[%s8970 + $0x28] sm:$0xf]
        %v8982 = vld [vmem:[%s8970 + $0x2c] sm:$0xf]
        %v8983 = vld [vmem:[%s8970 + $0x30] sm:$0xf]
        %v8984 = vld [vmem:[%s8970 + $0x34] sm:$0xf]
        %v8985 = vld [vmem:[%s8970 + $0x38] sm:$0xf]
        %v8986 = vld [vmem:[%s8970 + $0x3c] sm:$0xf]
        %v8987 = vld [vmem:[%s8970 + $0x40] sm:$0xf]
        %v8988 = vld [vmem:[%s8970 + $0x44] sm:$0xf]
        %v8989 = vld [vmem:[%s8970 + $0x48] sm:$0xf]
        %v8990 = vld [vmem:[%s8970 + $0x4c] sm:$0xf]
        %v8991 = vld [vmem:[%s8970 + $0x50] sm:$0xf]
        %v8992 = vld [vmem:[%s8970 + $0x54] sm:$0xf]
        %v8993 = vld [vmem:[%s8970 + $0x58] sm:$0xf]
        %v8994 = vld [vmem:[%s8970 + $0x5c] sm:$0xf]
        %v8995 = vld [vmem:[%s8970 + $0x60] sm:$0xf]
        %v8996 = vld [vmem:[%s8970 + $0x64] sm:$0xf]
        %v8997 = vld [vmem:[%s8970 + $0x68] sm:$0xf]
        %v8998 = vld [vmem:[%s8970 + $0x6c] sm:$0xf]
        %v8999 = vld [vmem:[%s8970 + $0x70] sm:$0xf]
        %v9000 = vld [vmem:[%s8970 + $0x74] sm:$0xf]
        %v9001 = vld [vmem:[%s8970 + $0x78] sm:$0xf]
        %v9002 = vld [vmem:[%s8970 + $0x7c] sm:$0xf]
        %v9003 = vrot.slane %v8515, 1
        %v9004 = vrot.slane %v8518, 1
        %v9039 = vunpack.c.l.b16 %v8971
        %v9040 = vunpack.c.l.b16 %v8972
        %v9041 = vunpack.c.l.b16 %v8973
        %v9042 = vunpack.c.l.b16 %v8974
        %v9043 = vunpack.c.l.b16 %v8975
        %v9044 = vunpack.c.l.b16 %v8976
        %v9045 = vunpack.c.l.b16 %v8977
        %v9046 = vunpack.c.l.b16 %v8978
        %v9047 = vunpack.c.l.b16 %v8979
        %v9048 = vunpack.c.l.b16 %v8980
        %v9049 = vunpack.c.l.b16 %v8981
        %v9050 = vunpack.c.l.b16 %v8982
        %v9051 = vunpack.c.l.b16 %v8983
        %v9052 = vunpack.c.l.b16 %v8984
        %v9053 = vunpack.c.l.b16 %v8985
        %v9054 = vunpack.c.l.b16 %v8986
        %v9055 = vunpack.c.l.b16 %v8987
        %v9056 = vunpack.c.l.b16 %v8988
        %v9057 = vunpack.c.l.b16 %v8989
        %v9058 = vunpack.c.l.b16 %v8990
        %v9059 = vunpack.c.l.b16 %v8991
        %v9060 = vunpack.c.l.b16 %v8992
        %v9061 = vunpack.c.l.b16 %v8993
        %v9062 = vunpack.c.l.b16 %v8994
        %v9063 = vunpack.c.l.b16 %v8995
        %v9064 = vunpack.c.l.b16 %v8996
        %v9065 = vunpack.c.l.b16 %v8997
        %v9066 = vunpack.c.l.b16 %v8998
        %v9067 = vunpack.c.l.b16 %v8999
        %v9068 = vunpack.c.l.b16 %v9000
        %v9069 = vunpack.c.l.b16 %v9001
        %v9070 = vunpack.c.l.b16 %v9002
        %v9071 = vpack.c.b16 %v9040, %v9039
        %v9072 = vpack.c.b16 %v9042, %v9041
        %v9073 = vpack.c.b16 %v9044, %v9043
        %v9074 = vpack.c.b16 %v9046, %v9045
        %v9075 = vpack.c.b16 %v9048, %v9047
        %v9076 = vpack.c.b16 %v9050, %v9049
        %v9077 = vpack.c.b16 %v9052, %v9051
        %v9078 = vpack.c.b16 %v9054, %v9053
        %v9079 = vpack.c.b16 %v9056, %v9055
        %v9080 = vpack.c.b16 %v9058, %v9057
        %v9081 = vpack.c.b16 %v9060, %v9059
        %v9082 = vpack.c.b16 %v9062, %v9061
        %v9083 = vpack.c.b16 %v9064, %v9063
        %v9084 = vpack.c.b16 %v9066, %v9065
        %v9085 = vpack.c.b16 %v9068, %v9067
        %v9086 = vpack.c.b16 %v9070, %v9069
        %9103 = vmatprep.subr.bf16.mxu0 0
        %9104 = vmatpush1.bf16.msra.mxu0 %v9071
        %9105 = vmatprep.subr.bf16.mxu0 0
        %9106 = vmatpush1.bf16.msra.mxu0 %v9072
        %9107 = vmatprep.subr.bf16.mxu0 0
        %9108 = vmatpush1.bf16.msra.mxu0 %v9073
        %9109 = vmatprep.subr.bf16.mxu0 0
        %9110 = vmatpush1.bf16.msra.mxu0 %v9074
        %9111 = vmatprep.subr.bf16.mxu0 0
        %9112 = vmatpush1.bf16.msra.mxu0 %v9075
        %9113 = vmatprep.subr.bf16.mxu0 0
        %9114 = vmatpush1.bf16.msra.mxu0 %v9076
        %9115 = vmatprep.subr.bf16.mxu0 0
        %9116 = vmatpush1.bf16.msra.mxu0 %v9077
        %9117 = vmatprep.subr.bf16.mxu0 0
        %9118 = vmatpush1.bf16.msra.mxu0 %v9078
        %9119 = vmatprep.subr.bf16.mxu0 0
        %9120 = vmatpush1.bf16.msra.mxu0 %v9079
        %9121 = vmatprep.subr.bf16.mxu0 0
        %9122 = vmatpush1.bf16.msra.mxu0 %v9080
        %9123 = vmatprep.subr.bf16.mxu0 0
        %9124 = vmatpush1.bf16.msra.mxu0 %v9081
        %9125 = vmatprep.subr.bf16.mxu0 0
        %9126 = vmatpush1.bf16.msra.mxu0 %v9082
        %9127 = vmatprep.subr.bf16.mxu0 0
        %9128 = vmatpush1.bf16.msra.mxu0 %v9083
        %9129 = vmatprep.subr.bf16.mxu0 0
        %9130 = vmatpush1.bf16.msra.mxu0 %v9084
        %9131 = vmatprep.subr.bf16.mxu0 0
        %9132 = vmatpush1.bf16.msra.mxu0 %v9085
        %9133 = vmatprep.subr.bf16.mxu0 0
        %9134 = vmatpush1.bf16.msra.mxu0 %v9086
        %9135 = vmatprep.mubr.bf16.mxu0 %v9004
        %9136 = vmatmul.mubr.bf16.gmra.mrb[0].mxu0 %v9003
        %v9137 = vpop.f32.mrb[0].mxu0
        %v9138 = vadd.f32 0.0, %v9137
        %v9139 = vpop.f32.mrb[0].mxu0
        %v9140 = vpop.f32.mrb[0].mxu0
        %v9141 = vpop.f32.mrb[0].mxu0
        %9142 = vdwg.mxu0
        %v9143 = vadd.f32 %v8969, %v9138
        %v9144 = vld [vmem:[#allocation16] sm:$0x1]
        %v9145 = vadd.f32 %v9143, %v9144
        %v9146 = vmax.f32 %v9145, 0.0
        %v9147 = vpack.c.bf16 %v9146, %v9146
        %v9148 = vld [vmem:[#allocation17] sm:$0xf]
        %v9149 = vld [vmem:[#allocation17 + $0x4] sm:$0xf]
        %v9150 = vld [vmem:[#allocation17 + $0x8] sm:$0xf]
        %v9151 = vld [vmem:[#allocation17 + $0xc] sm:$0xf]
        %v9152 = vld [vmem:[#allocation17 + $0x10] sm:$0xf]
        %v9153 = vld [vmem:[#allocation17 + $0x14] sm:$0xf]
        %v9154 = vld [vmem:[#allocation17 + $0x18] sm:$0xf]
        %v9155 = vld [vmem:[#allocation17 + $0x1c] sm:$0xf]
        %v9156 = vld [vmem:[#allocation17 + $0x20] sm:$0xf]
        %v9157 = vld [vmem:[#allocation17 + $0x24] sm:$0xf]
        %v9158 = vld [vmem:[#allocation17 + $0x28] sm:$0xf]
        %v9159 = vld [vmem:[#allocation17 + $0x2c] sm:$0xf]
        %v9160 = vld [vmem:[#allocation17 + $0x30] sm:$0xf]
        %v9161 = vld [vmem:[#allocation17 + $0x34] sm:$0xf]
        %v9162 = vld [vmem:[#allocation17 + $0x38] sm:$0xf]
        %v9163 = vld [vmem:[#allocation17 + $0x3c] sm:$0xf]
        %v9164 = vld [vmem:[#allocation19] sm:$0x1]
        %v9181 = vunpack.c.l.b16 %v9148
        %v9182 = vunpack.c.l.b16 %v9149
        %v9183 = vunpack.c.l.b16 %v9150
        %v9184 = vunpack.c.l.b16 %v9151
        %v9185 = vunpack.c.l.b16 %v9152
        %v9186 = vunpack.c.l.b16 %v9153
        %v9187 = vunpack.c.l.b16 %v9154
        %v9188 = vunpack.c.l.b16 %v9155
        %v9189 = vunpack.c.l.b16 %v9156
        %v9190 = vunpack.c.l.b16 %v9157
        %v9191 = vunpack.c.l.b16 %v9158
        %v9192 = vunpack.c.l.b16 %v9159
        %v9193 = vunpack.c.l.b16 %v9160
        %v9194 = vunpack.c.l.b16 %v9161
        %v9195 = vunpack.c.l.b16 %v9162
        %v9196 = vunpack.c.l.b16 %v9163
        %v9197 = vpack.c.b16 %v9182, %v9181
        %v9198 = vpack.c.b16 %v9184, %v9183
        %v9199 = vpack.c.b16 %v9186, %v9185
        %v9200 = vpack.c.b16 %v9188, %v9187
        %v9201 = vpack.c.b16 %v9190, %v9189
        %v9202 = vpack.c.b16 %v9192, %v9191
        %v9203 = vpack.c.b16 %v9194, %v9193
        %v9204 = vpack.c.b16 %v9196, %v9195
        %9213 = vmatprep.subr.bf16.mxu0 0
        %9214 = vmatpush1.bf16.msra.mxu0 %v9197
        %9215 = vmatprep.subr.bf16.mxu0 0
        %9216 = vmatpush1.bf16.msra.mxu0 %v9198
        %9217 = vmatprep.subr.bf16.mxu0 0
        %9218 = vmatpush1.bf16.msra.mxu0 %v9199
        %9219 = vmatprep.subr.bf16.mxu0 0
        %9220 = vmatpush1.bf16.msra.mxu0 %v9200
        %9221 = vmatprep.subr.bf16.mxu0 0
        %9222 = vmatpush1.bf16.msra.mxu0 %v9201
        %9223 = vmatprep.subr.bf16.mxu0 0
        %9224 = vmatpush1.bf16.msra.mxu0 %v9202
        %9225 = vmatprep.subr.bf16.mxu0 0
        %9226 = vmatpush1.bf16.msra.mxu0 %v9203
        %9227 = vmatprep.subr.bf16.mxu0 0
        %9228 = vmatpush1.bf16.msra.mxu0 %v9204
        %9229 = vmatprep.subr.bf16.mxu0 0
        %9230 = vmatpush1.bf16.msra.mxu0 0
        %9231 = vmatprep.subr.bf16.mxu0 0
        %9232 = vmatpush1.bf16.msra.mxu0 0
        %9233 = vmatprep.subr.bf16.mxu0 0
        %9234 = vmatpush1.bf16.msra.mxu0 0
        %9235 = vmatprep.subr.bf16.mxu0 0
        %9236 = vmatpush1.bf16.msra.mxu0 0
        %9237 = vmatprep.subr.bf16.mxu0 0
        %9238 = vmatpush1.bf16.msra.mxu0 0
        %9239 = vmatprep.subr.bf16.mxu0 0
        %9240 = vmatpush1.bf16.msra.mxu0 0
        %9241 = vmatprep.subr.bf16.mxu0 0
        %9242 = vmatpush1.bf16.msra.mxu0 0
        %9243 = vmatprep.subr.bf16.mxu0 0
        %9244 = vmatpush1.bf16.msra.mxu0 0
        %9245 = vmatprep.mubr.bf16.mxu0 0
        %9246 = vmatmul.mubr.bf16.gmra.mrb[0].mxu0 %v9147
        %v9247 = vpop.f32.mrb[0].mxu0
        %v9248 = vadd.f32 %v9164, %v9247
        %v9249 = vpop.f32.mrb[0].mxu0
        %v9250 = vpop.f32.mrb[0].mxu0
        %v9251 = vpop.f32.mrb[0].mxu0
        %9252 = vdwg.mxu0
        %v9253 = vmax.f32 %v9248, 0.0
        %v9254 = vpack.c.bf16 %v9253, %v9253
        %v9255 = vld [vmem:[#allocation20] sm:$0xf]
        %v9256 = vld [vmem:[#allocation20 + $0x4] sm:$0xf]
        %v9257 = vld [vmem:[#allocation20 + $0x8] sm:$0xf]
        %v9258 = vld [vmem:[#allocation20 + $0xc] sm:$0xf]
        %v9259 = vld [vmem:[#allocation20 + $0x10] sm:$0xf]
        %v9260 = vld [vmem:[#allocation20 + $0x14] sm:$0xf]
        %v9261 = vld [vmem:[#allocation20 + $0x18] sm:$0xf]
        %v9262 = vld [vmem:[#allocation20 + $0x1c] sm:$0xf]
        %v9263 = vld [vmem:[#allocation20 + $0x20] sm:$0xf]
        %v9264 = vld [vmem:[#allocation20 + $0x24] sm:$0xf]
        %v9265 = vld [vmem:[#allocation20 + $0x28] sm:$0xf]
        %v9266 = vld [vmem:[#allocation20 + $0x2c] sm:$0xf]
        %v9267 = vld [vmem:[#allocation20 + $0x30] sm:$0xf]
        %v9268 = vld [vmem:[#allocation20 + $0x34] sm:$0xf]
        %v9269 = vld [vmem:[#allocation20 + $0x38] sm:$0xf]
        %v9270 = vld [vmem:[#allocation20 + $0x3c] sm:$0xf]
        %v9271 = vld [vmem:[#allocation22] sm:$0x1]
        %v9288 = vunpack.c.l.b16 %v9255
        %v9289 = vunpack.c.l.b16 %v9256
        %v9290 = vunpack.c.l.b16 %v9257
        %v9291 = vunpack.c.l.b16 %v9258
        %v9292 = vunpack.c.l.b16 %v9259
        %v9293 = vunpack.c.l.b16 %v9260
        %v9294 = vunpack.c.l.b16 %v9261
        %v9295 = vunpack.c.l.b16 %v9262
        %v9296 = vunpack.c.l.b16 %v9263
        %v9297 = vunpack.c.l.b16 %v9264
        %v9298 = vunpack.c.l.b16 %v9265
        %v9299 = vunpack.c.l.b16 %v9266
        %v9300 = vunpack.c.l.b16 %v9267
        %v9301 = vunpack.c.l.b16 %v9268
        %v9302 = vunpack.c.l.b16 %v9269
        %v9303 = vunpack.c.l.b16 %v9270
        %v9304 = vpack.c.b16 %v9289, %v9288
        %v9305 = vpack.c.b16 %v9291, %v9290
        %v9306 = vpack.c.b16 %v9293, %v9292
        %v9307 = vpack.c.b16 %v9295, %v9294
        %v9308 = vpack.c.b16 %v9297, %v9296
        %v9309 = vpack.c.b16 %v9299, %v9298
        %v9310 = vpack.c.b16 %v9301, %v9300
        %v9311 = vpack.c.b16 %v9303, %v9302
        %9320 = vmatprep.subr.bf16.mxu0 0
        %9321 = vmatpush1.bf16.msra.mxu0 %v9304
        %9322 = vmatprep.subr.bf16.mxu0 0
        %9323 = vmatpush1.bf16.msra.mxu0 %v9305
        %9324 = vmatprep.subr.bf16.mxu0 0
        %9325 = vmatpush1.bf16.msra.mxu0 %v9306
        %9326 = vmatprep.subr.bf16.mxu0 0
        %9327 = vmatpush1.bf16.msra.mxu0 %v9307
        %9328 = vmatprep.subr.bf16.mxu0 0
        %9329 = vmatpush1.bf16.msra.mxu0 %v9308
        %9330 = vmatprep.subr.bf16.mxu0 0
        %9331 = vmatpush1.bf16.msra.mxu0 %v9309
        %9332 = vmatprep.subr.bf16.mxu0 0
        %9333 = vmatpush1.bf16.msra.mxu0 %v9310
        %9334 = vmatprep.subr.bf16.mxu0 0
        %9335 = vmatpush1.bf16.msra.mxu0 %v9311
        %9336 = vmatprep.subr.bf16.mxu0 0
        %9337 = vmatpush1.bf16.msra.mxu0 0
        %9338 = vmatprep.subr.bf16.mxu0 0
        %9339 = vmatpush1.bf16.msra.mxu0 0
        %9340 = vmatprep.subr.bf16.mxu0 0
        %9341 = vmatpush1.bf16.msra.mxu0 0
        %9342 = vmatprep.subr.bf16.mxu0 0
        %9343 = vmatpush1.bf16.msra.mxu0 0
        %9344 = vmatprep.subr.bf16.mxu0 0
        %9345 = vmatpush1.bf16.msra.mxu0 0
        %9346 = vmatprep.subr.bf16.mxu0 0
        %9347 = vmatpush1.bf16.msra.mxu0 0
        %9348 = vmatprep.subr.bf16.mxu0 0
        %9349 = vmatpush1.bf16.msra.mxu0 0
        %9350 = vmatprep.subr.bf16.mxu0 0
        %9351 = vmatpush1.bf16.msra.mxu0 0
        %9352 = vmatprep.mubr.bf16.mxu0 0
        %9353 = vmatmul.mubr.bf16.gmra.mrb[0].mxu0 %v9254
        %v9354 = vpop.f32.mrb[0].mxu0
        %v9355 = vadd.f32 %v9271, %v9354
        %v9356 = vpop.f32.mrb[0].mxu0
        %v9357 = vpop.f32.mrb[0].mxu0
        %v9358 = vpop.f32.mrb[0].mxu0
        %9359 = vdwg.mxu0
        %9360 = vst [vmem:[%s665] sm:$0x1] %v9355
        %s9361 = sand.u32 %s364, 1
        %s9362 = scalar_lea.sflag [#allocation4], %s9361
        %s9363 = sand.u32 %s364, 1
        %s9364 = scalar_lea.vmem [#allocation23], %s9363
        // Predicated region
        $region133: #{customnet1_forward.1} parent=79 // pred_check
          %p9365 = pneg %p374
        $region134: #{customnet1_forward.1} parent=79 // pred_check_branch
          %9367 = sbr.rel (%p9365) target = $region136
        $region135: #{customnet1_forward.1} parent=79 // pred_region
          %s9369 = ssub.s32 16, 16
          %9370 = vsyncadd %s9362, %s9369
          %s9371 = smul.addr %s36, 16
          %s9372 = scalar_lea.hbm %s15, %s9371
          %s9374 = sshll.u32 %s9364, 4
          %s9375 = int_to_ptr.vmem [resolvable:$true] %s9374
          %9377 = dma.vmem_to_hbm [thread:$0]  %s9375, 16, %s9372, %s9362
        $region136: #{customnet1_forward.1} parent=79 // pred_fallthru
          _
      $region80: #{customnet1_forward.1} parent=5 // pred_fallthru
        _
      %p9378 = scmp.le.s32.totalorder 2, %s31
      // Predicated region
      $region137: #{customnet1_forward.1} parent=5 // pred_check
        %p9379 = pneg %p9378
      $region138: #{customnet1_forward.1} parent=5 // pred_check_branch
        %9381 = sbr.rel (%p9379) target = $region140
      $region139: #{customnet1_forward.1} parent=5 // pred_region
        %s9382 = ssub.s32 %s31, 2
        // Predicated region
        $region141: #{customnet1_forward.1} parent=139 // pred_check
          %p9383 = pneg %p380
        $region142: #{customnet1_forward.1} parent=139 // pred_check_branch
          %9385 = sbr.rel (%p9383) target = $region144
        $region143: #{customnet1_forward.1} parent=139 // pred_region
          %s9386 = sand.u32 %s365, 1
          %s9387 = scalar_lea.sflag [#allocation4], %s9386
          %s9388 = sand.u32 %s365, 1
          %s9389 = scalar_lea.vmem [#allocation23], %s9388
          %9390 = dma.done %s9387, 16
        $region144: #{customnet1_forward.1} parent=139 // pred_fallthru
          _
      $region140: #{customnet1_forward.1} parent=5 // pred_fallthru
        _
    $region6: #{customnet1_forward.1} parent=1 // loop_footer
      %s35 = sadd.s32 1, %s31
    $region7: #{customnet1_forward.1} parent=1 // loop_footer_branch
      %30 = sbr.rel target = $region3
    $region8: #{customnet1_forward.1} parent=1 // loop_exit
      _
    %9391 = vsyncpa [#allocation3], 1
    %s9392 = scalar_lea.sflag [#allocation3], 1
    %9393 = vsyncpa %s9392, 1
    %9394 = vsyncpa [#allocation6], 1
    %9395 = vsyncpa [#allocation9], 1
    %9396 = vsyncpa [#allocation12], 1
    %9397 = vsyncpa [#allocation15], 1
    %9398 = vsyncpa [#allocation18], 1
    %9399 = vsyncpa [#allocation21], 1
    %9400 = vsyncpa [#allocation4], 1
    %s9401 = scalar_lea.sflag [#allocation4], 1
    %9402 = vsyncpa %s9401, 1

</llo_original>
